<compile_context>
chip_gen: v7x
topology: tpu7x:2x2x1
jax: 0.10.0
libtpu: 0.0.40
codegen_flags: <defaults>
</compile_context>

<pallas_src>
import functools
import math

import jax
import jax.numpy as jnp
from jax import lax
from jax.experimental import pallas as pl
from jax.experimental.pallas import tpu as pltpu

MXU_DTYPE = jnp.bfloat16          # MXU operand dtype (accumulation is f32)
GOAL_PAD = 128                    # lane-dense padding of the 2-wide goal
VMEM_LIMIT = 32 * 1024 * 1024     # explicit scoped-VMEM limit (v7x-safe)


def _round_up(x, m):
    return (x + m - 1) // m * m


def _pick_time_block(T, s_blk, a_pad, h, cap=16, budget_bytes=4 << 20):
    """Largest divisor of T (<= cap) whose feature block fits a VMEM budget."""
    tb = 1
    for d in range(1, min(T, cap) + 1):
        if T % d == 0 and s_blk * d * a_pad * h * 4 <= budget_bytes:
            tb = d
    return tb


def _pick_scene_block(S, a_pad, row_target=256):
    """Largest divisor of S with SBLK * a_pad rows <= row_target."""
    best = 1
    for d in range(1, S + 1):
        if S % d == 0 and d * a_pad <= row_target:
            best = d
    return best


# --------------------------------------------------------------------------
# Kernel 1: fused 3-layer GRU + residual add + 'last_valid' aggregation
# grid = (scene_tiles, T // TBLK); ("parallel", "arbitrary")
# --------------------------------------------------------------------------
def fused_gru_agg_kernel(feat_ref, valid_ref, wi_ref, bi_ref, wh_ref, bh_ref,
                         out_ref, h_ref, *, mxu_dtype):
    t_blk = pl.program_id(1)
    L = h_ref.shape[0]
    SB, TB, AP, H = feat_ref.shape
    Bt = SB * AP
    H3 = 3 * H

    @pl.when(t_blk == 0)
    def _():
        h_ref[...] = jnp.zeros_like(h_ref)
        out_ref[...] = jnp.zeros_like(out_ref)

    # Resident weights, loaded once per grid step.
    wis = [wi_ref[l] for l in range(L)]
    whs = [wh_ref[l] for l in range(L)]
    bis = [bi_ref[l] for l in range(L)]
    bhs = [bh_ref[l] for l in range(L)]

    # Layer-0 input projection for the WHOLE time block in one matmul
    # (M = SB*TB*AP rows): no xproj0 HBM round trip, good MXU utilization.
    x_all = feat_ref[...].reshape(SB * TB * AP, H)
    gx0 = jnp.dot(x_all.astype(mxu_dtype), wis[0],
                  preferred_element_type=jnp.float32) + bis[0]
    gx0 = gx0.reshape(SB, TB, AP, H3)

    # Hidden states carried in registers across the unrolled time block.
    hs = [h_ref[l] for l in range(L)]
    out_acc = out_ref[...].reshape(Bt, H)

    for tt in range(TB):                           # static, unrolled
        keep = valid_ref[:, tt].reshape(Bt, 1) > 0.0
        feat_t = feat_ref[:, tt].reshape(Bt, H)
        x = None
        for l in range(L):
            if l == 0:
                gx = gx0[:, tt].reshape(Bt, H3)
            else:
                gx = jnp.dot(x.astype(mxu_dtype), wis[l],
                             preferred_element_type=jnp.float32) + bis[l]
            h = hs[l]
            gh = jnp.dot(h.astype(mxu_dtype), whs[l],
                         preferred_element_type=jnp.float32) + bhs[l]
            # Gates packed [r | z | n] along lanes; slices are lane-tile
            # aligned when H % 128 == 0 (production d_model).
            r = jax.nn.sigmoid(gx[:, :H] + gh[:, :H])
            z = jax.nn.sigmoid(gx[:, H:2 * H] + gh[:, H:2 * H])
            n = jnp.tanh(gx[:, 2 * H:] + r * gh[:, 2 * H:])
            h_new = jnp.where(keep, (1.0 - z) * n + z * h, h)   # hold if invalid
            hs[l] = h_new
            x = h_new
        # res_add_gru + TemporalAggregate('last_valid'): overwrite at every
        # valid step; rows with no valid step stay 0.
        out_acc = jnp.where(keep, x + feat_t, out_acc)

    for l in range(L):
        h_ref[l] = hs[l]
    out_ref[...] = out_acc.reshape(SB, AP, H)


def fused_gru_last_valid(agent_feature, agent_feature_valid, gru_params,
                         mxu_dtype=MXU_DTYPE):
    """agent_feature (S,T,A,H), valid (S,T,A) -> aggregated src (S, A_pad, H)."""
    S, T, A, H = agent_feature.shape
    A_pad = _round_up(A, 8)
    feat = agent_feature.astype(jnp.float32)
    valid = agent_feature_valid.astype(jnp.float32)
    if A_pad != A:                      # no-op when A is already sublane-aligned
        feat = jnp.pad(feat, ((0, 0), (0, 0), (0, A_pad - A), (0, 0)))
        valid = jnp.pad(valid, ((0, 0), (0, 0), (0, A_pad - A)))
    valid = valid[..., None]            # (S, T, A_pad, 1)

    wi, wh = gru_params["wi"], gru_params["wh"]     # (L, H, 3H) bf16
    bi, bh = gru_params["bi"], gru_params["bh"]     # (L, 1, 3H) f32
    L = wi.shape[0]

    # Two scene tiles when possible so the 'parallel' axis can shard across
    # v7x's two TensorCores; near-neutral on single-TC v5e/v6e.
    s_tiles = 2 if (S % 2 == 0 and S >= 2) else 1
    SB = S // s_tiles
    TB = _pick_time_block(T, SB, A_pad, H)

    kernel = functools.partial(fused_gru_agg_kernel, mxu_dtype=mxu_dtype)
    grid_spec = pltpu.PrefetchScalarGridSpec(
        num_scalar_prefetch=0,
        grid=(s_tiles, T // TB),
        in_specs=[
            pl.BlockSpec((SB, TB, A_pad, H), lambda s, t: (s, t, 0, 0)),  # features (native layout)
            pl.BlockSpec((SB, TB, A_pad, 1), lambda s, t: (s, t, 0, 0)),  # validity (streamed)
            pl.BlockSpec((L, H, 3 * H), lambda s, t: (0, 0, 0)),          # Wi (all layers)
            pl.BlockSpec((L, 1, 3 * H), lambda s, t: (0, 0, 0)),          # bi
            pl.BlockSpec((L, H, 3 * H), lambda s, t: (0, 0, 0)),          # Wh
            pl.BlockSpec((L, 1, 3 * H), lambda s, t: (0, 0, 0)),          # bh
        ],
        out_specs=pl.BlockSpec((SB, A_pad, H), lambda s, t: (s, 0, 0)),
        scratch_shapes=[pltpu.VMEM((L, SB * A_pad, H), jnp.float32)],
    )
    return pl.pallas_call(
        kernel,
        out_shape=jax.ShapeDtypeStruct((S, A_pad, H), jnp.float32),
        grid_spec=grid_spec,
        compiler_params=pltpu.CompilerParams(
            dimension_semantics=("parallel", "arbitrary"),
            vmem_limit_bytes=VMEM_LIMIT),
    )(feat, valid, wi, bi, wh, bh)


# --------------------------------------------------------------------------
# Kernel 2: cross-attention transformer block + mlp_mean head
# grid = (S // SBLK,); SBLK scenes batched per grid step
# --------------------------------------------------------------------------
def goal_head_kernel(src_ref, map_ref, map_valid_ref,
                     w_attn_ref, b_attn_ref, ln_ref,
                     ff_w1_ref, ff_b1_ref, ff_w2_ref, ff_b2_ref,
                     wm1_ref, bm1_ref, wm2_ref, bm2_ref,
                     out_ref, attn_scr, *, n_head, mxu_dtype):
    SB, AP, H = src_ref.shape
    P = map_ref.shape[1]
    dh = H // n_head
    scale = 1.0 / math.sqrt(dh)

    def lin(a, w, b):
        return jnp.dot(a.astype(mxu_dtype), w,
                       preferred_element_type=jnp.float32) + b

    def layer_norm(a, g, b):
        mu = jnp.mean(a, axis=-1, keepdims=True)
        var = jnp.mean(jnp.square(a - mu), axis=-1, keepdims=True)
        return (a - mu) * lax.rsqrt(var + 1e-5) * g + b

    # Scene-independent projections batched over all SB scenes (M = SB*AP / SB*P).
    x2 = src_ref[...].reshape(SB * AP, H)
    kv2 = map_ref[...].reshape(SB * P, H)
    q = lin(x2, w_attn_ref[0], b_attn_ref[0])
    k = lin(kv2, w_attn_ref[1], b_attn_ref[1])
    v = lin(kv2, w_attn_ref[2], b_attn_ref[2])
    wo = w_attn_ref[3]                              # (H, H)

    # Per-scene scores / softmax / PV (needs the per-scene key set + mask);
    # per-head output projection folded (no concat / cross-lane relayout).
    for si in range(SB):
        q_s = q[si * AP:(si + 1) * AP]
        k_s = k[si * P:(si + 1) * P]
        v_s = v[si * P:(si + 1) * P]
        mv = map_valid_ref[si]                      # (1, P)
        o_s = jnp.zeros((AP, H), jnp.float32)
        for hi in range(n_head):
            sl = slice(hi * dh, (hi + 1) * dh)
            qh = q_s[:, sl].astype(mxu_dtype)
            kh = k_s[:, sl].astype(mxu_dtype)
            vh = v_s[:, sl].astype(mxu_dtype)
            sc = lax.dot_general(qh, kh, (((1,), (1,)), ((), ())),
                                 preferred_element_type=jnp.float32) * scale
            sc = jnp.where(mv > 0.0, sc, -1e9)
            # Explicit softmax: the reciprocal goes to the EUP slot.
            m = jnp.max(sc, axis=-1, keepdims=True)
            e = jnp.exp(sc - m)
            p = e * pl.reciprocal(jnp.sum(e, axis=-1, keepdims=True), approx=True)
            oh = jnp.dot(p.astype(mxu_dtype), vh,
                         preferred_element_type=jnp.float32)
            o_s = o_s + jnp.dot(oh.astype(mxu_dtype), wo[sl, :],
                                preferred_element_type=jnp.float32)
        attn_scr[si * AP:(si + 1) * AP, :] = o_s
    attn = attn_scr[...] + b_attn_ref[3]

    # Post-norm transformer block + mlp_mean, batched over SB*AP rows.
    h1 = layer_norm(x2 + attn, ln_ref[0], ln_ref[1])
    ff = lin(jax.nn.relu(lin(h1, ff_w1_ref[...], ff_b1_ref[...])),
             ff_w2_ref[...], ff_b2_ref[...])
    gf = layer_norm(h1 + ff, ln_ref[2], ln_ref[3])

    m1 = lin(gf, wm1_ref[...], bm1_ref[...])
    m1 = jax.nn.relu(layer_norm(m1, ln_ref[4], ln_ref[5]))
    # wm2/bm2 zero-padded to GOAL_PAD lanes -> unmasked lane-dense store;
    # the wrapper slices [..., :2].
    out_ref[...] = lin(m1, wm2_ref[...], bm2_ref[...]).reshape(SB, AP, GOAL_PAD)


def goal_head(src, map_feat, map_valid, hp, n_head, mxu_dtype=MXU_DTYPE):
    S, A_pad, H = src.shape
    P = map_feat.shape[1]
    Dff = hp["ff_w1"].shape[1]
    SB = _pick_scene_block(S, A_pad)
    # TODO(synk): on v7x prefer S // SB to be a multiple of 2 so both
    # TensorCores stay busy on the 'parallel' scene axis.

    def const(shape):
        return pl.BlockSpec(shape, lambda s, _n=len(shape): (0,) * _n)

    kernel = functools.partial(goal_head_kernel, n_head=n_head,
                               mxu_dtype=mxu_dtype)
    grid_spec = pltpu.PrefetchScalarGridSpec(
        num_scalar_prefetch=0,
        grid=(S // SB,),
        in_specs=[
            pl.BlockSpec((SB, A_pad, H), lambda s: (s, 0, 0)),
            pl.BlockSpec((SB, P, H), lambda s: (s, 0, 0)),
            pl.BlockSpec((SB, 1, P), lambda s: (s, 0, 0)),
            const((4, H, H)), const((4, 1, H)), const((6, 1, H)),
            const((H, Dff)), const((1, Dff)), const((Dff, H)), const((1, H)),
            const((H, H)), const((1, H)),
            const((H, GOAL_PAD)), const((1, GOAL_PAD)),
        ],
        out_specs=pl.BlockSpec((SB, A_pad, GOAL_PAD), lambda s: (s, 0, 0)),
        scratch_shapes=[pltpu.VMEM((SB * A_pad, H), jnp.float32)],
    )
    return pl.pallas_call(
        kernel,
        out_shape=jax.ShapeDtypeStruct((S, A_pad, GOAL_PAD), jnp.float32),
        grid_spec=grid_spec,
        compiler_params=pltpu.CompilerParams(
            dimension_semantics=("parallel",),
            vmem_limit_bytes=VMEM_LIMIT),
    )(src, map_feat, map_valid,
      hp["w_attn"], hp["b_attn"], hp["ln"],
      hp["ff_w1"], hp["ff_b1"], hp["ff_w2"], hp["ff_b2"],
      hp["wm1"], hp["bm1"], hp["wm2"], hp["bm2"])


# --------------------------------------------------------------------------
# Parameters (deterministic, synthetic) and full forward
# --------------------------------------------------------------------------
def init_params(key, H, Dff, n_layer_gru=3, mxu_dtype=MXU_DTYPE):
    def dense(k, shape):
        fan_in = shape[-2] if len(shape) >= 2 else shape[-1]
        return jax.random.normal(k, shape, jnp.float32) / jnp.sqrt(float(fan_in))

    ks = iter(jax.random.split(key, 32))

    # GRU weights with gates fused along the last axis [r | z | n].
    wi = jnp.stack([dense(next(ks), (H, 3 * H)) for _ in range(n_layer_gru)])
    wh = jnp.stack([dense(next(ks), (H, 3 * H)) for _ in range(n_layer_gru)])
    bi = jnp.zeros((n_layer_gru, 1, 3 * H), jnp.float32)
    bh = jnp.zeros((n_layer_gru, 1, 3 * H), jnp.float32)

    ln = jnp.concatenate(
        [jnp.ones((1, 1, H)), jnp.zeros((1, 1, H))] * 3, axis=0
    ).astype(jnp.float32)                            # LN1, LN2, LN_mlp (g, b)

    wm2 = dense(next(ks), (H, 2))
    wm2p = jnp.zeros((H, GOAL_PAD), jnp.float32).at[:, :2].set(wm2)

    head = {
        "w_attn": dense(next(ks), (4, H, H)).astype(mxu_dtype),
        "b_attn": jnp.zeros((4, 1, H), jnp.float32),
        "ln": ln,
        "ff_w1": dense(next(ks), (H, Dff)).astype(mxu_dtype),
        "ff_b1": jnp.zeros((1, Dff), jnp.float32),
        "ff_w2": dense(next(ks), (Dff, H)).astype(mxu_dtype),
        "ff_b2": jnp.zeros((1, H), jnp.float32),
        "wm1": dense(next(ks), (H, H)).astype(mxu_dtype),
        "bm1": jnp.zeros((1, H), jnp.float32),
        "wm2": wm2p.astype(mxu_dtype),
        "bm2": jnp.zeros((1, GOAL_PAD), jnp.float32),
    }
    return {
        "gru": {"wi": wi.astype(mxu_dtype), "wh": wh.astype(mxu_dtype),
                "bi": bi, "bh": bh},
        "head": head,
        "log_std": 2.0 * jnp.ones((2,), jnp.float32),
    }


def goal_predictor_forward(params, agent_type, map_type, agent_state,
                           agent_feature, agent_feature_valid,
                           map_feature, map_feature_valid,
                           goal_in_local=True, n_head=4,
                           mxu_dtype=MXU_DTYPE):
    # agent_type / map_type unused by this forward (kept for signature parity).
    del agent_type, map_type
    S, T, A, H = agent_feature.shape

    # Fused 3-layer GRU + residual add + last_valid aggregation (one kernel,
    # native (S, T, A, H) feature layout -> no wrapper transpose).
    src = fused_gru_last_valid(agent_feature, agent_feature_valid,
                               params["gru"], mxu_dtype=mxu_dtype)   # (S, A_pad, H)

    # Map features padded to a sublane multiple (no-op when P % 8 == 0).
    P = map_feature.shape[1]
    P_pad = _round_up(P, 8)
    map_f = map_feature.astype(jnp.float32)
    map_v = map_feature_valid.astype(jnp.float32)
    if P_pad != P:
        map_f = jnp.pad(map_f, ((0, 0), (0, P_pad - P), (0, 0)))
        map_v = jnp.pad(map_v, ((0, 0), (0, P_pad - P)))

    goal_pad = goal_head(src, map_f, map_v.reshape(S, 1, P_pad),
                         params["head"], n_head, mxu_dtype)
    goal_mean = goal_pad[:, :A, :2]                  # drop agent/lane padding

    # goal_in_local / masked_fill: tiny O(S*A*2) tail, kept in plain XLA.
    if goal_in_local:
        last = agent_state[:, -1].astype(jnp.float32)  # (S, A, 4) (x,y,yaw,spd)
        c, s = jnp.cos(last[..., 2]), jnp.sin(last[..., 2])
        gx, gy = goal_mean[..., 0], goal_mean[..., 1]
        goal_mean = jnp.stack([gx * c - gy * s + last[..., 0],
                               gx * s + gy * c + last[..., 1]], axis=-1)

    goal_valid = jnp.any(agent_feature_valid, axis=1)  # (S, A)
    goal_mean = jnp.where(goal_valid[..., None], goal_mean, 0.0)

    # DiagGaussian(mean, log_std, valid) returned as a plain tuple.
    return goal_mean, params["log_std"], goal_valid


if __name__ == "__main__":
    key = jax.random.PRNGKey(0)
    S, T, A, P, H = 2, 8, 4, 8, 32     # n_scene, n_step_hist, n_agent, n_pl, d_model
    Dff, n_head = 64, 4

    ks = jax.random.split(key, 9)
    params = init_params(ks[0], H, Dff, n_layer_gru=3)
    agent_type = jax.nn.one_hot(jax.random.randint(ks[1], (S, A), 0, 3), 3)
    map_type = jax.nn.one_hot(jax.random.randint(ks[2], (S, P), 0, 11), 11)
    agent_state = jax.random.normal(ks[3], (S, T, A, 4), jnp.float32)
    agent_feature = jax.random.normal(ks[4], (S, T, A, H), jnp.float32)
    agent_feature_valid = jax.random.bernoulli(ks[5], 0.9, (S, T, A))
    map_feature = jax.random.normal(ks[6], (S, P, H), jnp.float32)
    map_feature_valid = jax.random.bernoulli(ks[7], 0.95, (S, P))

    fwd = jax.jit(functools.partial(goal_predictor_forward,
                                    goal_in_local=True, n_head=n_head))
    goal_mean, log_std, goal_valid = fwd(
        params, agent_type, map_type, agent_state, agent_feature,
        agent_feature_valid, map_feature, map_feature_valid)
    jax.block_until_ready((goal_mean, log_std, goal_valid))

    assert goal_mean.shape == (S, A, 2)
    assert log_std.shape == (2,)
    assert goal_valid.shape == (S, A)
    assert bool(jnp.all(jnp.isfinite(goal_mean)))
    print("KERNEL_OK")
</pallas_src>

<mosaic_0001>
module attributes {stable_mosaic.version = 11 : i64} {
  func.func @goal_head_kernel(%arg0: i32, %arg1: memref<2x8x32xf32, #tpu.memory_space<vmem>>, %arg2: memref<2x8x32xf32, #tpu.memory_space<vmem>>, %arg3: memref<2x1x8xf32, #tpu.memory_space<vmem>>, %arg4: memref<4x32x32xbf16, #tpu.memory_space<vmem>>, %arg5: memref<4x1x32xf32, #tpu.memory_space<vmem>>, %arg6: memref<6x1x32xf32, #tpu.memory_space<vmem>>, %arg7: memref<32x64xbf16, #tpu.memory_space<vmem>>, %arg8: memref<1x64xf32, #tpu.memory_space<vmem>>, %arg9: memref<64x32xbf16, #tpu.memory_space<vmem>>, %arg10: memref<1x32xf32, #tpu.memory_space<vmem>>, %arg11: memref<32x32xbf16, #tpu.memory_space<vmem>>, %arg12: memref<1x32xf32, #tpu.memory_space<vmem>>, %arg13: memref<32x128xbf16, #tpu.memory_space<vmem>>, %arg14: memref<1x128xf32, #tpu.memory_space<vmem>>, %arg15: memref<2x8x128xf32, #tpu.memory_space<vmem>>, %arg16: memref<16x32xf32, #tpu.memory_space<vmem>>) attributes {dimension_semantics = [#tpu.dimension_semantics<parallel>], iteration_bounds = array<i64: 1>, scalar_prefetch = 0 : i64, scratch_operands = 1 : i64, tpu.core_type = #tpu.core_type<tc>, window_params = [{transform_indices = @transform_0, window_bounds = array<i64: 2, 8, 32>}, {transform_indices = @transform_1, window_bounds = array<i64: 2, 8, 32>}, {transform_indices = @transform_2, window_bounds = array<i64: 2, 1, 8>}, {pipeline_mode = #tpu.pipeline_mode<synchronous>, transform_indices = @transform_3, window_bounds = array<i64: 4, 32, 32>}, {pipeline_mode = #tpu.pipeline_mode<synchronous>, transform_indices = @transform_4, window_bounds = array<i64: 4, 1, 32>}, {pipeline_mode = #tpu.pipeline_mode<synchronous>, transform_indices = @transform_5, window_bounds = array<i64: 6, 1, 32>}, {pipeline_mode = #tpu.pipeline_mode<synchronous>, transform_indices = @transform_6, window_bounds = array<i64: 32, 64>}, {pipeline_mode = #tpu.pipeline_mode<synchronous>, transform_indices = @transform_7, window_bounds = array<i64: 1, 64>}, {pipeline_mode = #tpu.pipeline_mode<synchronous>, transform_indices = @transform_8, window_bounds = array<i64: 64, 32>}, {pipeline_mode = #tpu.pipeline_mode<synchronous>, transform_indices = @transform_9, window_bounds = array<i64: 1, 32>}, {pipeline_mode = #tpu.pipeline_mode<synchronous>, transform_indices = @transform_10, window_bounds = array<i64: 32, 32>}, {pipeline_mode = #tpu.pipeline_mode<synchronous>, transform_indices = @transform_11, window_bounds = array<i64: 1, 32>}, {pipeline_mode = #tpu.pipeline_mode<synchronous>, transform_indices = @transform_12, window_bounds = array<i64: 32, 128>}, {pipeline_mode = #tpu.pipeline_mode<synchronous>, transform_indices = @transform_13, window_bounds = array<i64: 1, 128>}, {transform_indices = @transform_14, window_bounds = array<i64: 2, 8, 128>}]} {
    %c0 = arith.constant 0 : index
    %c0_0 = arith.constant 0 : index
    %c0_1 = arith.constant 0 : index
    %0 = vector.load %arg1[%c0, %c0_0, %c0_1] : memref<2x8x32xf32, #tpu.memory_space<vmem>>, vector<2x8x32xf32>
    %1 = vector.shape_cast %0 : vector<2x8x32xf32> to vector<16x32xf32>
    %c0_2 = arith.constant 0 : index
    %c0_3 = arith.constant 0 : index
    %c0_4 = arith.constant 0 : index
    %2 = vector.load %arg2[%c0_2, %c0_3, %c0_4] : memref<2x8x32xf32, #tpu.memory_space<vmem>>, vector<2x8x32xf32>
    %3 = vector.shape_cast %2 : vector<2x8x32xf32> to vector<16x32xf32>
    %c0_5 = arith.constant 0 : index
    %c0_6 = arith.constant 0 : index
    %c0_7 = arith.constant 0 : index
    %4 = vector.load %arg4[%c0_5, %c0_6, %c0_7] : memref<4x32x32xbf16, #tpu.memory_space<vmem>>, vector<1x32x32xbf16>
    %5 = vector.shape_cast %4 : vector<1x32x32xbf16> to vector<32x32xbf16>
    %c0_8 = arith.constant 0 : index
    %c0_9 = arith.constant 0 : index
    %c0_10 = arith.constant 0 : index
    %6 = vector.load %arg5[%c0_8, %c0_9, %c0_10] : memref<4x1x32xf32, #tpu.memory_space<vmem>>, vector<1x1x32xf32>
    %7 = vector.shape_cast %6 : vector<1x1x32xf32> to vector<1x32xf32>
    %8 = arith.truncf %1 : vector<16x32xf32> to vector<16x32xbf16>
    %cst = arith.constant dense<0.000000e+00> : vector<16x32xf32>
    %9 = tpu.matmul %8, %5, %cst {dimension_numbers = #tpu.dot_dimension_numbers<[1], [0], [0], [1], [0, 0, 1, 1], [], []>} : vector<16x32xbf16>, vector<32x32xbf16>, vector<16x32xf32> -> vector<16x32xf32>
    %10 = vector.broadcast %7 : vector<1x32xf32> to vector<16x32xf32>
    %11 = arith.addf %9, %10 : vector<16x32xf32>
    %c1 = arith.constant 1 : index
    %c0_11 = arith.constant 0 : index
    %c0_12 = arith.constant 0 : index
    %12 = vector.load %arg4[%c1, %c0_11, %c0_12] : memref<4x32x32xbf16, #tpu.memory_space<vmem>>, vector<1x32x32xbf16>
    %13 = vector.shape_cast %12 : vector<1x32x32xbf16> to vector<32x32xbf16>
    %c1_13 = arith.constant 1 : index
    %c0_14 = arith.constant 0 : index
    %c0_15 = arith.constant 0 : index
    %14 = vector.load %arg5[%c1_13, %c0_14, %c0_15] : memref<4x1x32xf32, #tpu.memory_space<vmem>>, vector<1x1x32xf32>
    %15 = vector.shape_cast %14 : vector<1x1x32xf32> to vector<1x32xf32>
    %16 = arith.truncf %3 : vector<16x32xf32> to vector<16x32xbf16>
    %cst_16 = arith.constant dense<0.000000e+00> : vector<16x32xf32>
    %17 = tpu.matmul %16, %13, %cst_16 {dimension_numbers = #tpu.dot_dimension_numbers<[1], [0], [0], [1], [0, 0, 1, 1], [], []>} : vector<16x32xbf16>, vector<32x32xbf16>, vector<16x32xf32> -> vector<16x32xf32>
    %18 = vector.broadcast %15 : vector<1x32xf32> to vector<16x32xf32>
    %19 = arith.addf %17, %18 : vector<16x32xf32>
    %c2 = arith.constant 2 : index
    %c0_17 = arith.constant 0 : index
    %c0_18 = arith.constant 0 : index
    %20 = vector.load %arg4[%c2, %c0_17, %c0_18] : memref<4x32x32xbf16, #tpu.memory_space<vmem>>, vector<1x32x32xbf16>
    %21 = vector.shape_cast %20 : vector<1x32x32xbf16> to vector<32x32xbf16>
    %c2_19 = arith.constant 2 : index
    %c0_20 = arith.constant 0 : index
    %c0_21 = arith.constant 0 : index
    %22 = vector.load %arg5[%c2_19, %c0_20, %c0_21] : memref<4x1x32xf32, #tpu.memory_space<vmem>>, vector<1x1x32xf32>
    %23 = vector.shape_cast %22 : vector<1x1x32xf32> to vector<1x32xf32>
    %24 = arith.truncf %3 : vector<16x32xf32> to vector<16x32xbf16>
    %cst_22 = arith.constant dense<0.000000e+00> : vector<16x32xf32>
    %25 = tpu.matmul %24, %21, %cst_22 {dimension_numbers = #tpu.dot_dimension_numbers<[1], [0], [0], [1], [0, 0, 1, 1], [], []>} : vector<16x32xbf16>, vector<32x32xbf16>, vector<16x32xf32> -> vector<16x32xf32>
    %26 = vector.broadcast %23 : vector<1x32xf32> to vector<16x32xf32>
    %27 = arith.addf %25, %26 : vector<16x32xf32>
    %c3 = arith.constant 3 : index
    %c0_23 = arith.constant 0 : index
    %c0_24 = arith.constant 0 : index
    %28 = vector.load %arg4[%c3, %c0_23, %c0_24] : memref<4x32x32xbf16, #tpu.memory_space<vmem>>, vector<1x32x32xbf16>
    %29 = vector.shape_cast %28 : vector<1x32x32xbf16> to vector<32x32xbf16>
    %30 = vector.extract_strided_slice %11 {offsets = [0, 0], sizes = [8, 32], strides = [1, 1]} : vector<16x32xf32> to vector<8x32xf32>
    %31 = vector.extract_strided_slice %19 {offsets = [0, 0], sizes = [8, 32], strides = [1, 1]} : vector<16x32xf32> to vector<8x32xf32>
    %32 = vector.extract_strided_slice %27 {offsets = [0, 0], sizes = [8, 32], strides = [1, 1]} : vector<16x32xf32> to vector<8x32xf32>
    %c0_25 = arith.constant 0 : index
    %c0_26 = arith.constant 0 : index
    %c0_27 = arith.constant 0 : index
    %33 = vector.load %arg3[%c0_25, %c0_26, %c0_27] : memref<2x1x8xf32, #tpu.memory_space<vmem>>, vector<1x1x8xf32>
    %34 = vector.shape_cast %33 : vector<1x1x8xf32> to vector<1x8xf32>
    %cst_28 = arith.constant 0.000000e+00 : f32
    %35 = vector.broadcast %cst_28 : f32 to vector<8x32xf32>
    %36 = vector.extract_strided_slice %30 {offsets = [0, 0], sizes = [8, 8], strides = [1, 1]} : vector<8x32xf32> to vector<8x8xf32>
    %37 = arith.truncf %36 : vector<8x8xf32> to vector<8x8xbf16>
    %38 = vector.extract_strided_slice %31 {offsets = [0, 0], sizes = [8, 8], strides = [1, 1]} : vector<8x32xf32> to vector<8x8xf32>
    %39 = arith.truncf %38 : vector<8x8xf32> to vector<8x8xbf16>
    %40 = vector.extract_strided_slice %32 {offsets = [0, 0], sizes = [8, 8], strides = [1, 1]} : vector<8x32xf32> to vector<8x8xf32>
    %41 = arith.truncf %40 : vector<8x8xf32> to vector<8x8xbf16>
    %cst_29 = arith.constant dense<0.000000e+00> : vector<8x8xf32>
    %42 = tpu.matmul %37, %39, %cst_29 {dimension_numbers = #tpu.dot_dimension_numbers<[1], [1], [0], [0], [0, 0, 1, 0], [], []>} : vector<8x8xbf16>, vector<8x8xbf16>, vector<8x8xf32> -> vector<8x8xf32>
    %cst_30 = arith.constant 0.353553385 : f32
    %43 = vector.broadcast %cst_30 : f32 to vector<8x8xf32>
    %44 = arith.mulf %42, %43 : vector<8x8xf32>
    %cst_31 = arith.constant 0.000000e+00 : f32
    %45 = vector.broadcast %cst_31 : f32 to vector<1x8xf32>
    %46 = arith.cmpf ogt, %34, %45 : vector<1x8xf32>
    %cst_32 = arith.constant -1.000000e+09 : f32
    %47 = vector.shape_cast %46 : vector<1x8xi1> to vector<1x8xi1>
    %48 = vector.broadcast %47 : vector<1x8xi1> to vector<8x8xi1>
    %49 = vector.broadcast %cst_32 : f32 to vector<8x8xf32>
    %50 = arith.select %48, %44, %49 : vector<8x8xi1>, vector<8x8xf32>
    %cst_33 = arith.constant dense<0xFF800000> : vector<8xf32>
    %51 = vector.multi_reduction <maximumf>, %50, %cst_33 [1] : vector<8x8xf32> to vector<8xf32>
    %52 = vector.shape_cast %51 : vector<8xf32> to vector<8x1xf32>
    %53 = vector.broadcast %52 : vector<8x1xf32> to vector<8x8xf32>
    %54 = arith.subf %50, %53 : vector<8x8xf32>
    %55 = math.exp %54 : vector<8x8xf32>
    %cst_34 = arith.constant dense<0.000000e+00> : vector<8xf32>
    %56 = vector.multi_reduction <add>, %55, %cst_34 [1] : vector<8x8xf32> to vector<8xf32>
    %57 = vector.shape_cast %56 : vector<8xf32> to vector<8x1xf32>
    %58 = tpu.reciprocal %57 {approx = true} : vector<8x1xf32> -> vector<8x1xf32>
    %59 = vector.broadcast %58 : vector<8x1xf32> to vector<8x8xf32>
    %60 = arith.mulf %55, %59 : vector<8x8xf32>
    %61 = arith.truncf %60 : vector<8x8xf32> to vector<8x8xbf16>
    %cst_35 = arith.constant dense<0.000000e+00> : vector<8x8xf32>
    %62 = tpu.matmul %61, %41, %cst_35 {dimension_numbers = #tpu.dot_dimension_numbers<[1], [0], [0], [1], [0, 0, 1, 1], [], []>} : vector<8x8xbf16>, vector<8x8xbf16>, vector<8x8xf32> -> vector<8x8xf32>
    %63 = arith.truncf %62 : vector<8x8xf32> to vector<8x8xbf16>
    %64 = vector.extract_strided_slice %29 {offsets = [0, 0], sizes = [8, 32], strides = [1, 1]} : vector<32x32xbf16> to vector<8x32xbf16>
    %cst_36 = arith.constant dense<0.000000e+00> : vector<8x32xf32>
    %65 = tpu.matmul %63, %64, %cst_36 {dimension_numbers = #tpu.dot_dimension_numbers<[1], [0], [0], [1], [0, 0, 1, 1], [], []>} : vector<8x8xbf16>, vector<8x32xbf16>, vector<8x32xf32> -> vector<8x32xf32>
    %66 = arith.addf %35, %65 : vector<8x32xf32>
    %67 = vector.extract_strided_slice %30 {offsets = [0, 8], sizes = [8, 8], strides = [1, 1]} : vector<8x32xf32> to vector<8x8xf32>
    %68 = arith.truncf %67 : vector<8x8xf32> to vector<8x8xbf16>
    %69 = vector.extract_strided_slice %31 {offsets = [0, 8], sizes = [8, 8], strides = [1, 1]} : vector<8x32xf32> to vector<8x8xf32>
    %70 = arith.truncf %69 : vector<8x8xf32> to vector<8x8xbf16>
    %71 = vector.extract_strided_slice %32 {offsets = [0, 8], sizes = [8, 8], strides = [1, 1]} : vector<8x32xf32> to vector<8x8xf32>
    %72 = arith.truncf %71 : vector<8x8xf32> to vector<8x8xbf16>
    %cst_37 = arith.constant dense<0.000000e+00> : vector<8x8xf32>
    %73 = tpu.matmul %68, %70, %cst_37 {dimension_numbers = #tpu.dot_dimension_numbers<[1], [1], [0], [0], [0, 0, 1, 0], [], []>} : vector<8x8xbf16>, vector<8x8xbf16>, vector<8x8xf32> -> vector<8x8xf32>
    %cst_38 = arith.constant 0.353553385 : f32
    %74 = vector.broadcast %cst_38 : f32 to vector<8x8xf32>
    %75 = arith.mulf %73, %74 : vector<8x8xf32>
    %cst_39 = arith.constant 0.000000e+00 : f32
    %76 = vector.broadcast %cst_39 : f32 to vector<1x8xf32>
    %77 = arith.cmpf ogt, %34, %76 : vector<1x8xf32>
    %cst_40 = arith.constant -1.000000e+09 : f32
    %78 = vector.shape_cast %77 : vector<1x8xi1> to vector<1x8xi1>
    %79 = vector.broadcast %78 : vector<1x8xi1> to vector<8x8xi1>
    %80 = vector.broadcast %cst_40 : f32 to vector<8x8xf32>
    %81 = arith.select %79, %75, %80 : vector<8x8xi1>, vector<8x8xf32>
    %cst_41 = arith.constant dense<0xFF800000> : vector<8xf32>
    %82 = vector.multi_reduction <maximumf>, %81, %cst_41 [1] : vector<8x8xf32> to vector<8xf32>
    %83 = vector.shape_cast %82 : vector<8xf32> to vector<8x1xf32>
    %84 = vector.broadcast %83 : vector<8x1xf32> to vector<8x8xf32>
    %85 = arith.subf %81, %84 : vector<8x8xf32>
    %86 = math.exp %85 : vector<8x8xf32>
    %cst_42 = arith.constant dense<0.000000e+00> : vector<8xf32>
    %87 = vector.multi_reduction <add>, %86, %cst_42 [1] : vector<8x8xf32> to vector<8xf32>
    %88 = vector.shape_cast %87 : vector<8xf32> to vector<8x1xf32>
    %89 = tpu.reciprocal %88 {approx = true} : vector<8x1xf32> -> vector<8x1xf32>
    %90 = vector.broadcast %89 : vector<8x1xf32> to vector<8x8xf32>
    %91 = arith.mulf %86, %90 : vector<8x8xf32>
    %92 = arith.truncf %91 : vector<8x8xf32> to vector<8x8xbf16>
    %cst_43 = arith.constant dense<0.000000e+00> : vector<8x8xf32>
    %93 = tpu.matmul %92, %72, %cst_43 {dimension_numbers = #tpu.dot_dimension_numbers<[1], [0], [0], [1], [0, 0, 1, 1], [], []>} : vector<8x8xbf16>, vector<8x8xbf16>, vector<8x8xf32> -> vector<8x8xf32>
    %94 = arith.truncf %93 : vector<8x8xf32> to vector<8x8xbf16>
    %95 = vector.extract_strided_slice %29 {offsets = [8, 0], sizes = [8, 32], strides = [1, 1]} : vector<32x32xbf16> to vector<8x32xbf16>
    %cst_44 = arith.constant dense<0.000000e+00> : vector<8x32xf32>
    %96 = tpu.matmul %94, %95, %cst_44 {dimension_numbers = #tpu.dot_dimension_numbers<[1], [0], [0], [1], [0, 0, 1, 1], [], []>} : vector<8x8xbf16>, vector<8x32xbf16>, vector<8x32xf32> -> vector<8x32xf32>
    %97 = arith.addf %66, %96 : vector<8x32xf32>
    %98 = vector.extract_strided_slice %30 {offsets = [0, 16], sizes = [8, 8], strides = [1, 1]} : vector<8x32xf32> to vector<8x8xf32>
    %99 = arith.truncf %98 : vector<8x8xf32> to vector<8x8xbf16>
    %100 = vector.extract_strided_slice %31 {offsets = [0, 16], sizes = [8, 8], strides = [1, 1]} : vector<8x32xf32> to vector<8x8xf32>
    %101 = arith.truncf %100 : vector<8x8xf32> to vector<8x8xbf16>
    %102 = vector.extract_strided_slice %32 {offsets = [0, 16], sizes = [8, 8], strides = [1, 1]} : vector<8x32xf32> to vector<8x8xf32>
    %103 = arith.truncf %102 : vector<8x8xf32> to vector<8x8xbf16>
    %cst_45 = arith.constant dense<0.000000e+00> : vector<8x8xf32>
    %104 = tpu.matmul %99, %101, %cst_45 {dimension_numbers = #tpu.dot_dimension_numbers<[1], [1], [0], [0], [0, 0, 1, 0], [], []>} : vector<8x8xbf16>, vector<8x8xbf16>, vector<8x8xf32> -> vector<8x8xf32>
    %cst_46 = arith.constant 0.353553385 : f32
    %105 = vector.broadcast %cst_46 : f32 to vector<8x8xf32>
    %106 = arith.mulf %104, %105 : vector<8x8xf32>
    %cst_47 = arith.constant 0.000000e+00 : f32
    %107 = vector.broadcast %cst_47 : f32 to vector<1x8xf32>
    %108 = arith.cmpf ogt, %34, %107 : vector<1x8xf32>
    %cst_48 = arith.constant -1.000000e+09 : f32
    %109 = vector.shape_cast %108 : vector<1x8xi1> to vector<1x8xi1>
    %110 = vector.broadcast %109 : vector<1x8xi1> to vector<8x8xi1>
    %111 = vector.broadcast %cst_48 : f32 to vector<8x8xf32>
    %112 = arith.select %110, %106, %111 : vector<8x8xi1>, vector<8x8xf32>
    %cst_49 = arith.constant dense<0xFF800000> : vector<8xf32>
    %113 = vector.multi_reduction <maximumf>, %112, %cst_49 [1] : vector<8x8xf32> to vector<8xf32>
    %114 = vector.shape_cast %113 : vector<8xf32> to vector<8x1xf32>
    %115 = vector.broadcast %114 : vector<8x1xf32> to vector<8x8xf32>
    %116 = arith.subf %112, %115 : vector<8x8xf32>
    %117 = math.exp %116 : vector<8x8xf32>
    %cst_50 = arith.constant dense<0.000000e+00> : vector<8xf32>
    %118 = vector.multi_reduction <add>, %117, %cst_50 [1] : vector<8x8xf32> to vector<8xf32>
    %119 = vector.shape_cast %118 : vector<8xf32> to vector<8x1xf32>
    %120 = tpu.reciprocal %119 {approx = true} : vector<8x1xf32> -> vector<8x1xf32>
    %121 = vector.broadcast %120 : vector<8x1xf32> to vector<8x8xf32>
    %122 = arith.mulf %117, %121 : vector<8x8xf32>
    %123 = arith.truncf %122 : vector<8x8xf32> to vector<8x8xbf16>
    %cst_51 = arith.constant dense<0.000000e+00> : vector<8x8xf32>
    %124 = tpu.matmul %123, %103, %cst_51 {dimension_numbers = #tpu.dot_dimension_numbers<[1], [0], [0], [1], [0, 0, 1, 1], [], []>} : vector<8x8xbf16>, vector<8x8xbf16>, vector<8x8xf32> -> vector<8x8xf32>
    %125 = arith.truncf %124 : vector<8x8xf32> to vector<8x8xbf16>
    %126 = vector.extract_strided_slice %29 {offsets = [16, 0], sizes = [8, 32], strides = [1, 1]} : vector<32x32xbf16> to vector<8x32xbf16>
    %cst_52 = arith.constant dense<0.000000e+00> : vector<8x32xf32>
    %127 = tpu.matmul %125, %126, %cst_52 {dimension_numbers = #tpu.dot_dimension_numbers<[1], [0], [0], [1], [0, 0, 1, 1], [], []>} : vector<8x8xbf16>, vector<8x32xbf16>, vector<8x32xf32> -> vector<8x32xf32>
    %128 = arith.addf %97, %127 : vector<8x32xf32>
    %129 = vector.extract_strided_slice %30 {offsets = [0, 24], sizes = [8, 8], strides = [1, 1]} : vector<8x32xf32> to vector<8x8xf32>
    %130 = arith.truncf %129 : vector<8x8xf32> to vector<8x8xbf16>
    %131 = vector.extract_strided_slice %31 {offsets = [0, 24], sizes = [8, 8], strides = [1, 1]} : vector<8x32xf32> to vector<8x8xf32>
    %132 = arith.truncf %131 : vector<8x8xf32> to vector<8x8xbf16>
    %133 = vector.extract_strided_slice %32 {offsets = [0, 24], sizes = [8, 8], strides = [1, 1]} : vector<8x32xf32> to vector<8x8xf32>
    %134 = arith.truncf %133 : vector<8x8xf32> to vector<8x8xbf16>
    %cst_53 = arith.constant dense<0.000000e+00> : vector<8x8xf32>
    %135 = tpu.matmul %130, %132, %cst_53 {dimension_numbers = #tpu.dot_dimension_numbers<[1], [1], [0], [0], [0, 0, 1, 0], [], []>} : vector<8x8xbf16>, vector<8x8xbf16>, vector<8x8xf32> -> vector<8x8xf32>
    %cst_54 = arith.constant 0.353553385 : f32
    %136 = vector.broadcast %cst_54 : f32 to vector<8x8xf32>
    %137 = arith.mulf %135, %136 : vector<8x8xf32>
    %cst_55 = arith.constant 0.000000e+00 : f32
    %138 = vector.broadcast %cst_55 : f32 to vector<1x8xf32>
    %139 = arith.cmpf ogt, %34, %138 : vector<1x8xf32>
    %cst_56 = arith.constant -1.000000e+09 : f32
    %140 = vector.shape_cast %139 : vector<1x8xi1> to vector<1x8xi1>
    %141 = vector.broadcast %140 : vector<1x8xi1> to vector<8x8xi1>
    %142 = vector.broadcast %cst_56 : f32 to vector<8x8xf32>
    %143 = arith.select %141, %137, %142 : vector<8x8xi1>, vector<8x8xf32>
    %cst_57 = arith.constant dense<0xFF800000> : vector<8xf32>
    %144 = vector.multi_reduction <maximumf>, %143, %cst_57 [1] : vector<8x8xf32> to vector<8xf32>
    %145 = vector.shape_cast %144 : vector<8xf32> to vector<8x1xf32>
    %146 = vector.broadcast %145 : vector<8x1xf32> to vector<8x8xf32>
    %147 = arith.subf %143, %146 : vector<8x8xf32>
    %148 = math.exp %147 : vector<8x8xf32>
    %cst_58 = arith.constant dense<0.000000e+00> : vector<8xf32>
    %149 = vector.multi_reduction <add>, %148, %cst_58 [1] : vector<8x8xf32> to vector<8xf32>
    %150 = vector.shape_cast %149 : vector<8xf32> to vector<8x1xf32>
    %151 = tpu.reciprocal %150 {approx = true} : vector<8x1xf32> -> vector<8x1xf32>
    %152 = vector.broadcast %151 : vector<8x1xf32> to vector<8x8xf32>
    %153 = arith.mulf %148, %152 : vector<8x8xf32>
    %154 = arith.truncf %153 : vector<8x8xf32> to vector<8x8xbf16>
    %cst_59 = arith.constant dense<0.000000e+00> : vector<8x8xf32>
    %155 = tpu.matmul %154, %134, %cst_59 {dimension_numbers = #tpu.dot_dimension_numbers<[1], [0], [0], [1], [0, 0, 1, 1], [], []>} : vector<8x8xbf16>, vector<8x8xbf16>, vector<8x8xf32> -> vector<8x8xf32>
    %156 = arith.truncf %155 : vector<8x8xf32> to vector<8x8xbf16>
    %157 = vector.extract_strided_slice %29 {offsets = [24, 0], sizes = [8, 32], strides = [1, 1]} : vector<32x32xbf16> to vector<8x32xbf16>
    %cst_60 = arith.constant dense<0.000000e+00> : vector<8x32xf32>
    %158 = tpu.matmul %156, %157, %cst_60 {dimension_numbers = #tpu.dot_dimension_numbers<[1], [0], [0], [1], [0, 0, 1, 1], [], []>} : vector<8x8xbf16>, vector<8x32xbf16>, vector<8x32xf32> -> vector<8x32xf32>
    %159 = arith.addf %128, %158 : vector<8x32xf32>
    %c0_61 = arith.constant 0 : index
    %c0_62 = arith.constant 0 : index
    %160 = vector.load %arg16[%c0_61, %c0_62] : memref<16x32xf32, #tpu.memory_space<vmem>>, vector<8x32xf32>
    tpu.vector_store %arg16[%c0_61, %c0_62], %159 {strides = array<i32>} : memref<16x32xf32, #tpu.memory_space<vmem>>, vector<8x32xf32>,
    %161 = vector.extract_strided_slice %11 {offsets = [8, 0], sizes = [8, 32], strides = [1, 1]} : vector<16x32xf32> to vector<8x32xf32>
    %162 = vector.extract_strided_slice %19 {offsets = [8, 0], sizes = [8, 32], strides = [1, 1]} : vector<16x32xf32> to vector<8x32xf32>
    %163 = vector.extract_strided_slice %27 {offsets = [8, 0], sizes = [8, 32], strides = [1, 1]} : vector<16x32xf32> to vector<8x32xf32>
    %c1_63 = arith.constant 1 : index
    %c0_64 = arith.constant 0 : index
    %c0_65 = arith.constant 0 : index
    %164 = vector.load %arg3[%c1_63, %c0_64, %c0_65] : memref<2x1x8xf32, #tpu.memory_space<vmem>>, vector<1x1x8xf32>
    %165 = vector.shape_cast %164 : vector<1x1x8xf32> to vector<1x8xf32>
    %cst_66 = arith.constant 0.000000e+00 : f32
    %166 = vector.broadcast %cst_66 : f32 to vector<8x32xf32>
    %167 = vector.extract_strided_slice %161 {offsets = [0, 0], sizes = [8, 8], strides = [1, 1]} : vector<8x32xf32> to vector<8x8xf32>
    %168 = arith.truncf %167 : vector<8x8xf32> to vector<8x8xbf16>
    %169 = vector.extract_strided_slice %162 {offsets = [0, 0], sizes = [8, 8], strides = [1, 1]} : vector<8x32xf32> to vector<8x8xf32>
    %170 = arith.truncf %169 : vector<8x8xf32> to vector<8x8xbf16>
    %171 = vector.extract_strided_slice %163 {offsets = [0, 0], sizes = [8, 8], strides = [1, 1]} : vector<8x32xf32> to vector<8x8xf32>
    %172 = arith.truncf %171 : vector<8x8xf32> to vector<8x8xbf16>
    %cst_67 = arith.constant dense<0.000000e+00> : vector<8x8xf32>
    %173 = tpu.matmul %168, %170, %cst_67 {dimension_numbers = #tpu.dot_dimension_numbers<[1], [1], [0], [0], [0, 0, 1, 0], [], []>} : vector<8x8xbf16>, vector<8x8xbf16>, vector<8x8xf32> -> vector<8x8xf32>
    %cst_68 = arith.constant 0.353553385 : f32
    %174 = vector.broadcast %cst_68 : f32 to vector<8x8xf32>
    %175 = arith.mulf %173, %174 : vector<8x8xf32>
    %cst_69 = arith.constant 0.000000e+00 : f32
    %176 = vector.broadcast %cst_69 : f32 to vector<1x8xf32>
    %177 = arith.cmpf ogt, %165, %176 : vector<1x8xf32>
    %cst_70 = arith.constant -1.000000e+09 : f32
    %178 = vector.shape_cast %177 : vector<1x8xi1> to vector<1x8xi1>
    %179 = vector.broadcast %178 : vector<1x8xi1> to vector<8x8xi1>
    %180 = vector.broadcast %cst_70 : f32 to vector<8x8xf32>
    %181 = arith.select %179, %175, %180 : vector<8x8xi1>, vector<8x8xf32>
    %cst_71 = arith.constant dense<0xFF800000> : vector<8xf32>
    %182 = vector.multi_reduction <maximumf>, %181, %cst_71 [1] : vector<8x8xf32> to vector<8xf32>
    %183 = vector.shape_cast %182 : vector<8xf32> to vector<8x1xf32>
    %184 = vector.broadcast %183 : vector<8x1xf32> to vector<8x8xf32>
    %185 = arith.subf %181, %184 : vector<8x8xf32>
    %186 = math.exp %185 : vector<8x8xf32>
    %cst_72 = arith.constant dense<0.000000e+00> : vector<8xf32>
    %187 = vector.multi_reduction <add>, %186, %cst_72 [1] : vector<8x8xf32> to vector<8xf32>
    %188 = vector.shape_cast %187 : vector<8xf32> to vector<8x1xf32>
    %189 = tpu.reciprocal %188 {approx = true} : vector<8x1xf32> -> vector<8x1xf32>
    %190 = vector.broadcast %189 : vector<8x1xf32> to vector<8x8xf32>
    %191 = arith.mulf %186, %190 : vector<8x8xf32>
    %192 = arith.truncf %191 : vector<8x8xf32> to vector<8x8xbf16>
    %cst_73 = arith.constant dense<0.000000e+00> : vector<8x8xf32>
    %193 = tpu.matmul %192, %172, %cst_73 {dimension_numbers = #tpu.dot_dimension_numbers<[1], [0], [0], [1], [0, 0, 1, 1], [], []>} : vector<8x8xbf16>, vector<8x8xbf16>, vector<8x8xf32> -> vector<8x8xf32>
    %194 = arith.truncf %193 : vector<8x8xf32> to vector<8x8xbf16>
    %195 = vector.extract_strided_slice %29 {offsets = [0, 0], sizes = [8, 32], strides = [1, 1]} : vector<32x32xbf16> to vector<8x32xbf16>
    %cst_74 = arith.constant dense<0.000000e+00> : vector<8x32xf32>
    %196 = tpu.matmul %194, %195, %cst_74 {dimension_numbers = #tpu.dot_dimension_numbers<[1], [0], [0], [1], [0, 0, 1, 1], [], []>} : vector<8x8xbf16>, vector<8x32xbf16>, vector<8x32xf32> -> vector<8x32xf32>
    %197 = arith.addf %166, %196 : vector<8x32xf32>
    %198 = vector.extract_strided_slice %161 {offsets = [0, 8], sizes = [8, 8], strides = [1, 1]} : vector<8x32xf32> to vector<8x8xf32>
    %199 = arith.truncf %198 : vector<8x8xf32> to vector<8x8xbf16>
    %200 = vector.extract_strided_slice %162 {offsets = [0, 8], sizes = [8, 8], strides = [1, 1]} : vector<8x32xf32> to vector<8x8xf32>
    %201 = arith.truncf %200 : vector<8x8xf32> to vector<8x8xbf16>
    %202 = vector.extract_strided_slice %163 {offsets = [0, 8], sizes = [8, 8], strides = [1, 1]} : vector<8x32xf32> to vector<8x8xf32>
    %203 = arith.truncf %202 : vector<8x8xf32> to vector<8x8xbf16>
    %cst_75 = arith.constant dense<0.000000e+00> : vector<8x8xf32>
    %204 = tpu.matmul %199, %201, %cst_75 {dimension_numbers = #tpu.dot_dimension_numbers<[1], [1], [0], [0], [0, 0, 1, 0], [], []>} : vector<8x8xbf16>, vector<8x8xbf16>, vector<8x8xf32> -> vector<8x8xf32>
    %cst_76 = arith.constant 0.353553385 : f32
    %205 = vector.broadcast %cst_76 : f32 to vector<8x8xf32>
    %206 = arith.mulf %204, %205 : vector<8x8xf32>
    %cst_77 = arith.constant 0.000000e+00 : f32
    %207 = vector.broadcast %cst_77 : f32 to vector<1x8xf32>
    %208 = arith.cmpf ogt, %165, %207 : vector<1x8xf32>
    %cst_78 = arith.constant -1.000000e+09 : f32
    %209 = vector.shape_cast %208 : vector<1x8xi1> to vector<1x8xi1>
    %210 = vector.broadcast %209 : vector<1x8xi1> to vector<8x8xi1>
    %211 = vector.broadcast %cst_78 : f32 to vector<8x8xf32>
    %212 = arith.select %210, %206, %211 : vector<8x8xi1>, vector<8x8xf32>
    %cst_79 = arith.constant dense<0xFF800000> : vector<8xf32>
    %213 = vector.multi_reduction <maximumf>, %212, %cst_79 [1] : vector<8x8xf32> to vector<8xf32>
    %214 = vector.shape_cast %213 : vector<8xf32> to vector<8x1xf32>
    %215 = vector.broadcast %214 : vector<8x1xf32> to vector<8x8xf32>
    %216 = arith.subf %212, %215 : vector<8x8xf32>
    %217 = math.exp %216 : vector<8x8xf32>
    %cst_80 = arith.constant dense<0.000000e+00> : vector<8xf32>
    %218 = vector.multi_reduction <add>, %217, %cst_80 [1] : vector<8x8xf32> to vector<8xf32>
    %219 = vector.shape_cast %218 : vector<8xf32> to vector<8x1xf32>
    %220 = tpu.reciprocal %219 {approx = true} : vector<8x1xf32> -> vector<8x1xf32>
    %221 = vector.broadcast %220 : vector<8x1xf32> to vector<8x8xf32>
    %222 = arith.mulf %217, %221 : vector<8x8xf32>
    %223 = arith.truncf %222 : vector<8x8xf32> to vector<8x8xbf16>
    %cst_81 = arith.constant dense<0.000000e+00> : vector<8x8xf32>
    %224 = tpu.matmul %223, %203, %cst_81 {dimension_numbers = #tpu.dot_dimension_numbers<[1], [0], [0], [1], [0, 0, 1, 1], [], []>} : vector<8x8xbf16>, vector<8x8xbf16>, vector<8x8xf32> -> vector<8x8xf32>
    %225 = arith.truncf %224 : vector<8x8xf32> to vector<8x8xbf16>
    %226 = vector.extract_strided_slice %29 {offsets = [8, 0], sizes = [8, 32], strides = [1, 1]} : vector<32x32xbf16> to vector<8x32xbf16>
    %cst_82 = arith.constant dense<0.000000e+00> : vector<8x32xf32>
    %227 = tpu.matmul %225, %226, %cst_82 {dimension_numbers = #tpu.dot_dimension_numbers<[1], [0], [0], [1], [0, 0, 1, 1], [], []>} : vector<8x8xbf16>, vector<8x32xbf16>, vector<8x32xf32> -> vector<8x32xf32>
    %228 = arith.addf %197, %227 : vector<8x32xf32>
    %229 = vector.extract_strided_slice %161 {offsets = [0, 16], sizes = [8, 8], strides = [1, 1]} : vector<8x32xf32> to vector<8x8xf32>
    %230 = arith.truncf %229 : vector<8x8xf32> to vector<8x8xbf16>
    %231 = vector.extract_strided_slice %162 {offsets = [0, 16], sizes = [8, 8], strides = [1, 1]} : vector<8x32xf32> to vector<8x8xf32>
    %232 = arith.truncf %231 : vector<8x8xf32> to vector<8x8xbf16>
    %233 = vector.extract_strided_slice %163 {offsets = [0, 16], sizes = [8, 8], strides = [1, 1]} : vector<8x32xf32> to vector<8x8xf32>
    %234 = arith.truncf %233 : vector<8x8xf32> to vector<8x8xbf16>
    %cst_83 = arith.constant dense<0.000000e+00> : vector<8x8xf32>
    %235 = tpu.matmul %230, %232, %cst_83 {dimension_numbers = #tpu.dot_dimension_numbers<[1], [1], [0], [0], [0, 0, 1, 0], [], []>} : vector<8x8xbf16>, vector<8x8xbf16>, vector<8x8xf32> -> vector<8x8xf32>
    %cst_84 = arith.constant 0.353553385 : f32
    %236 = vector.broadcast %cst_84 : f32 to vector<8x8xf32>
    %237 = arith.mulf %235, %236 : vector<8x8xf32>
    %cst_85 = arith.constant 0.000000e+00 : f32
    %238 = vector.broadcast %cst_85 : f32 to vector<1x8xf32>
    %239 = arith.cmpf ogt, %165, %238 : vector<1x8xf32>
    %cst_86 = arith.constant -1.000000e+09 : f32
    %240 = vector.shape_cast %239 : vector<1x8xi1> to vector<1x8xi1>
    %241 = vector.broadcast %240 : vector<1x8xi1> to vector<8x8xi1>
    %242 = vector.broadcast %cst_86 : f32 to vector<8x8xf32>
    %243 = arith.select %241, %237, %242 : vector<8x8xi1>, vector<8x8xf32>
    %cst_87 = arith.constant dense<0xFF800000> : vector<8xf32>
    %244 = vector.multi_reduction <maximumf>, %243, %cst_87 [1] : vector<8x8xf32> to vector<8xf32>
    %245 = vector.shape_cast %244 : vector<8xf32> to vector<8x1xf32>
    %246 = vector.broadcast %245 : vector<8x1xf32> to vector<8x8xf32>
    %247 = arith.subf %243, %246 : vector<8x8xf32>
    %248 = math.exp %247 : vector<8x8xf32>
    %cst_88 = arith.constant dense<0.000000e+00> : vector<8xf32>
    %249 = vector.multi_reduction <add>, %248, %cst_88 [1] : vector<8x8xf32> to vector<8xf32>
    %250 = vector.shape_cast %249 : vector<8xf32> to vector<8x1xf32>
    %251 = tpu.reciprocal %250 {approx = true} : vector<8x1xf32> -> vector<8x1xf32>
    %252 = vector.broadcast %251 : vector<8x1xf32> to vector<8x8xf32>
    %253 = arith.mulf %248, %252 : vector<8x8xf32>
    %254 = arith.truncf %253 : vector<8x8xf32> to vector<8x8xbf16>
    %cst_89 = arith.constant dense<0.000000e+00> : vector<8x8xf32>
    %255 = tpu.matmul %254, %234, %cst_89 {dimension_numbers = #tpu.dot_dimension_numbers<[1], [0], [0], [1], [0, 0, 1, 1], [], []>} : vector<8x8xbf16>, vector<8x8xbf16>, vector<8x8xf32> -> vector<8x8xf32>
    %256 = arith.truncf %255 : vector<8x8xf32> to vector<8x8xbf16>
    %257 = vector.extract_strided_slice %29 {offsets = [16, 0], sizes = [8, 32], strides = [1, 1]} : vector<32x32xbf16> to vector<8x32xbf16>
    %cst_90 = arith.constant dense<0.000000e+00> : vector<8x32xf32>
    %258 = tpu.matmul %256, %257, %cst_90 {dimension_numbers = #tpu.dot_dimension_numbers<[1], [0], [0], [1], [0, 0, 1, 1], [], []>} : vector<8x8xbf16>, vector<8x32xbf16>, vector<8x32xf32> -> vector<8x32xf32>
    %259 = arith.addf %228, %258 : vector<8x32xf32>
    %260 = vector.extract_strided_slice %161 {offsets = [0, 24], sizes = [8, 8], strides = [1, 1]} : vector<8x32xf32> to vector<8x8xf32>
    %261 = arith.truncf %260 : vector<8x8xf32> to vector<8x8xbf16>
    %262 = vector.extract_strided_slice %162 {offsets = [0, 24], sizes = [8, 8], strides = [1, 1]} : vector<8x32xf32> to vector<8x8xf32>
    %263 = arith.truncf %262 : vector<8x8xf32> to vector<8x8xbf16>
    %264 = vector.extract_strided_slice %163 {offsets = [0, 24], sizes = [8, 8], strides = [1, 1]} : vector<8x32xf32> to vector<8x8xf32>
    %265 = arith.truncf %264 : vector<8x8xf32> to vector<8x8xbf16>
    %cst_91 = arith.constant dense<0.000000e+00> : vector<8x8xf32>
    %266 = tpu.matmul %261, %263, %cst_91 {dimension_numbers = #tpu.dot_dimension_numbers<[1], [1], [0], [0], [0, 0, 1, 0], [], []>} : vector<8x8xbf16>, vector<8x8xbf16>, vector<8x8xf32> -> vector<8x8xf32>
    %cst_92 = arith.constant 0.353553385 : f32
    %267 = vector.broadcast %cst_92 : f32 to vector<8x8xf32>
    %268 = arith.mulf %266, %267 : vector<8x8xf32>
    %cst_93 = arith.constant 0.000000e+00 : f32
    %269 = vector.broadcast %cst_93 : f32 to vector<1x8xf32>
    %270 = arith.cmpf ogt, %165, %269 : vector<1x8xf32>
    %cst_94 = arith.constant -1.000000e+09 : f32
    %271 = vector.shape_cast %270 : vector<1x8xi1> to vector<1x8xi1>
    %272 = vector.broadcast %271 : vector<1x8xi1> to vector<8x8xi1>
    %273 = vector.broadcast %cst_94 : f32 to vector<8x8xf32>
    %274 = arith.select %272, %268, %273 : vector<8x8xi1>, vector<8x8xf32>
    %cst_95 = arith.constant dense<0xFF800000> : vector<8xf32>
    %275 = vector.multi_reduction <maximumf>, %274, %cst_95 [1] : vector<8x8xf32> to vector<8xf32>
    %276 = vector.shape_cast %275 : vector<8xf32> to vector<8x1xf32>
    %277 = vector.broadcast %276 : vector<8x1xf32> to vector<8x8xf32>
    %278 = arith.subf %274, %277 : vector<8x8xf32>
    %279 = math.exp %278 : vector<8x8xf32>
    %cst_96 = arith.constant dense<0.000000e+00> : vector<8xf32>
    %280 = vector.multi_reduction <add>, %279, %cst_96 [1] : vector<8x8xf32> to vector<8xf32>
    %281 = vector.shape_cast %280 : vector<8xf32> to vector<8x1xf32>
    %282 = tpu.reciprocal %281 {approx = true} : vector<8x1xf32> -> vector<8x1xf32>
    %283 = vector.broadcast %282 : vector<8x1xf32> to vector<8x8xf32>
    %284 = arith.mulf %279, %283 : vector<8x8xf32>
    %285 = arith.truncf %284 : vector<8x8xf32> to vector<8x8xbf16>
    %cst_97 = arith.constant dense<0.000000e+00> : vector<8x8xf32>
    %286 = tpu.matmul %285, %265, %cst_97 {dimension_numbers = #tpu.dot_dimension_numbers<[1], [0], [0], [1], [0, 0, 1, 1], [], []>} : vector<8x8xbf16>, vector<8x8xbf16>, vector<8x8xf32> -> vector<8x8xf32>
    %287 = arith.truncf %286 : vector<8x8xf32> to vector<8x8xbf16>
    %288 = vector.extract_strided_slice %29 {offsets = [24, 0], sizes = [8, 32], strides = [1, 1]} : vector<32x32xbf16> to vector<8x32xbf16>
    %cst_98 = arith.constant dense<0.000000e+00> : vector<8x32xf32>
    %289 = tpu.matmul %287, %288, %cst_98 {dimension_numbers = #tpu.dot_dimension_numbers<[1], [0], [0], [1], [0, 0, 1, 1], [], []>} : vector<8x8xbf16>, vector<8x32xbf16>, vector<8x32xf32> -> vector<8x32xf32>
    %290 = arith.addf %259, %289 : vector<8x32xf32>
    %c8 = arith.constant 8 : index
    %c0_99 = arith.constant 0 : index
    %291 = vector.load %arg16[%c8, %c0_99] : memref<16x32xf32, #tpu.memory_space<vmem>>, vector<8x32xf32>
    tpu.vector_store %arg16[%c8, %c0_99], %290 {strides = array<i32>} : memref<16x32xf32, #tpu.memory_space<vmem>>, vector<8x32xf32>,
    %c0_100 = arith.constant 0 : index
    %c0_101 = arith.constant 0 : index
    %292 = vector.load %arg16[%c0_100, %c0_101] : memref<16x32xf32, #tpu.memory_space<vmem>>, vector<16x32xf32>
    %c3_102 = arith.constant 3 : index
    %c0_103 = arith.constant 0 : index
    %c0_104 = arith.constant 0 : index
    %293 = vector.load %arg5[%c3_102, %c0_103, %c0_104] : memref<4x1x32xf32, #tpu.memory_space<vmem>>, vector<1x1x32xf32>
    %294 = vector.shape_cast %293 : vector<1x1x32xf32> to vector<1x32xf32>
    %295 = vector.broadcast %294 : vector<1x32xf32> to vector<16x32xf32>
    %296 = arith.addf %292, %295 : vector<16x32xf32>
    %297 = arith.addf %1, %296 : vector<16x32xf32>
    %c0_105 = arith.constant 0 : index
    %c0_106 = arith.constant 0 : index
    %c0_107 = arith.constant 0 : index
    %298 = vector.load %arg6[%c0_105, %c0_106, %c0_107] : memref<6x1x32xf32, #tpu.memory_space<vmem>>, vector<1x1x32xf32>
    %299 = vector.shape_cast %298 : vector<1x1x32xf32> to vector<1x32xf32>
    %c1_108 = arith.constant 1 : index
    %c0_109 = arith.constant 0 : index
    %c0_110 = arith.constant 0 : index
    %300 = vector.load %arg6[%c1_108, %c0_109, %c0_110] : memref<6x1x32xf32, #tpu.memory_space<vmem>>, vector<1x1x32xf32>
    %301 = vector.shape_cast %300 : vector<1x1x32xf32> to vector<1x32xf32>
    %cst_111 = arith.constant dense<0.000000e+00> : vector<16xf32>
    %302 = vector.multi_reduction <add>, %297, %cst_111 [1] : vector<16x32xf32> to vector<16xf32>
    %303 = vector.shape_cast %302 : vector<16xf32> to vector<16x1xf32>
    %cst_112 = arith.constant 3.200000e+01 : f32
    %304 = vector.broadcast %cst_112 : f32 to vector<16x1xf32>
    %305 = arith.divf %303, %304 : vector<16x1xf32>
    %306 = vector.broadcast %305 : vector<16x1xf32> to vector<16x32xf32>
    %307 = arith.subf %297, %306 : vector<16x32xf32>
    %308 = arith.mulf %307, %307 : vector<16x32xf32>
    %cst_113 = arith.constant dense<0.000000e+00> : vector<16xf32>
    %309 = vector.multi_reduction <add>, %308, %cst_113 [1] : vector<16x32xf32> to vector<16xf32>
    %310 = vector.shape_cast %309 : vector<16xf32> to vector<16x1xf32>
    %cst_114 = arith.constant 3.200000e+01 : f32
    %311 = vector.broadcast %cst_114 : f32 to vector<16x1xf32>
    %312 = arith.divf %310, %311 : vector<16x1xf32>
    %313 = vector.broadcast %305 : vector<16x1xf32> to vector<16x32xf32>
    %314 = arith.subf %297, %313 : vector<16x32xf32>
    %cst_115 = arith.constant 9.99999974E-6 : f32
    %315 = vector.broadcast %cst_115 : f32 to vector<16x1xf32>
    %316 = arith.addf %312, %315 : vector<16x1xf32>
    %317 = math.rsqrt %316 : vector<16x1xf32>
    %318 = vector.broadcast %317 : vector<16x1xf32> to vector<16x32xf32>
    %319 = arith.mulf %314, %318 : vector<16x32xf32>
    %320 = vector.broadcast %299 : vector<1x32xf32> to vector<16x32xf32>
    %321 = arith.mulf %319, %320 : vector<16x32xf32>
    %322 = vector.broadcast %301 : vector<1x32xf32> to vector<16x32xf32>
    %323 = arith.addf %321, %322 : vector<16x32xf32>
    %c0_116 = arith.constant 0 : index
    %c0_117 = arith.constant 0 : index
    %324 = vector.load %arg7[%c0_116, %c0_117] : memref<32x64xbf16, #tpu.memory_space<vmem>>, vector<32x64xbf16>
    %c0_118 = arith.constant 0 : index
    %c0_119 = arith.constant 0 : index
    %325 = vector.load %arg8[%c0_118, %c0_119] : memref<1x64xf32, #tpu.memory_space<vmem>>, vector<1x64xf32>
    %326 = arith.truncf %323 : vector<16x32xf32> to vector<16x32xbf16>
    %cst_120 = arith.constant dense<0.000000e+00> : vector<16x64xf32>
    %327 = tpu.matmul %326, %324, %cst_120 {dimension_numbers = #tpu.dot_dimension_numbers<[1], [0], [0], [1], [0, 0, 1, 1], [], []>} : vector<16x32xbf16>, vector<32x64xbf16>, vector<16x64xf32> -> vector<16x64xf32>
    %328 = vector.broadcast %325 : vector<1x64xf32> to vector<16x64xf32>
    %329 = arith.addf %327, %328 : vector<16x64xf32>
    %cst_121 = arith.constant 0.000000e+00 : f32
    %330 = vector.broadcast %cst_121 : f32 to vector<16x64xf32>
    %331 = arith.maximumf %329, %330 : vector<16x64xf32>
    %c0_122 = arith.constant 0 : index
    %c0_123 = arith.constant 0 : index
    %332 = vector.load %arg9[%c0_122, %c0_123] : memref<64x32xbf16, #tpu.memory_space<vmem>>, vector<64x32xbf16>
    %c0_124 = arith.constant 0 : index
    %c0_125 = arith.constant 0 : index
    %333 = vector.load %arg10[%c0_124, %c0_125] : memref<1x32xf32, #tpu.memory_space<vmem>>, vector<1x32xf32>
    %334 = arith.truncf %331 : vector<16x64xf32> to vector<16x64xbf16>
    %cst_126 = arith.constant dense<0.000000e+00> : vector<16x32xf32>
    %335 = tpu.matmul %334, %332, %cst_126 {dimension_numbers = #tpu.dot_dimension_numbers<[1], [0], [0], [1], [0, 0, 1, 1], [], []>} : vector<16x64xbf16>, vector<64x32xbf16>, vector<16x32xf32> -> vector<16x32xf32>
    %336 = vector.broadcast %333 : vector<1x32xf32> to vector<16x32xf32>
    %337 = arith.addf %335, %336 : vector<16x32xf32>
    %338 = arith.addf %323, %337 : vector<16x32xf32>
    %c2_127 = arith.constant 2 : index
    %c0_128 = arith.constant 0 : index
    %c0_129 = arith.constant 0 : index
    %339 = vector.load %arg6[%c2_127, %c0_128, %c0_129] : memref<6x1x32xf32, #tpu.memory_space<vmem>>, vector<1x1x32xf32>
    %340 = vector.shape_cast %339 : vector<1x1x32xf32> to vector<1x32xf32>
    %c3_130 = arith.constant 3 : index
    %c0_131 = arith.constant 0 : index
    %c0_132 = arith.constant 0 : index
    %341 = vector.load %arg6[%c3_130, %c0_131, %c0_132] : memref<6x1x32xf32, #tpu.memory_space<vmem>>, vector<1x1x32xf32>
    %342 = vector.shape_cast %341 : vector<1x1x32xf32> to vector<1x32xf32>
    %cst_133 = arith.constant dense<0.000000e+00> : vector<16xf32>
    %343 = vector.multi_reduction <add>, %338, %cst_133 [1] : vector<16x32xf32> to vector<16xf32>
    %344 = vector.shape_cast %343 : vector<16xf32> to vector<16x1xf32>
    %cst_134 = arith.constant 3.200000e+01 : f32
    %345 = vector.broadcast %cst_134 : f32 to vector<16x1xf32>
    %346 = arith.divf %344, %345 : vector<16x1xf32>
    %347 = vector.broadcast %346 : vector<16x1xf32> to vector<16x32xf32>
    %348 = arith.subf %338, %347 : vector<16x32xf32>
    %349 = arith.mulf %348, %348 : vector<16x32xf32>
    %cst_135 = arith.constant dense<0.000000e+00> : vector<16xf32>
    %350 = vector.multi_reduction <add>, %349, %cst_135 [1] : vector<16x32xf32> to vector<16xf32>
    %351 = vector.shape_cast %350 : vector<16xf32> to vector<16x1xf32>
    %cst_136 = arith.constant 3.200000e+01 : f32
    %352 = vector.broadcast %cst_136 : f32 to vector<16x1xf32>
    %353 = arith.divf %351, %352 : vector<16x1xf32>
    %354 = vector.broadcast %346 : vector<16x1xf32> to vector<16x32xf32>
    %355 = arith.subf %338, %354 : vector<16x32xf32>
    %cst_137 = arith.constant 9.99999974E-6 : f32
    %356 = vector.broadcast %cst_137 : f32 to vector<16x1xf32>
    %357 = arith.addf %353, %356 : vector<16x1xf32>
    %358 = math.rsqrt %357 : vector<16x1xf32>
    %359 = vector.broadcast %358 : vector<16x1xf32> to vector<16x32xf32>
    %360 = arith.mulf %355, %359 : vector<16x32xf32>
    %361 = vector.broadcast %340 : vector<1x32xf32> to vector<16x32xf32>
    %362 = arith.mulf %360, %361 : vector<16x32xf32>
    %363 = vector.broadcast %342 : vector<1x32xf32> to vector<16x32xf32>
    %364 = arith.addf %362, %363 : vector<16x32xf32>
    %c0_138 = arith.constant 0 : index
    %c0_139 = arith.constant 0 : index
    %365 = vector.load %arg11[%c0_138, %c0_139] : memref<32x32xbf16, #tpu.memory_space<vmem>>, vector<32x32xbf16>
    %c0_140 = arith.constant 0 : index
    %c0_141 = arith.constant 0 : index
    %366 = vector.load %arg12[%c0_140, %c0_141] : memref<1x32xf32, #tpu.memory_space<vmem>>, vector<1x32xf32>
    %367 = arith.truncf %364 : vector<16x32xf32> to vector<16x32xbf16>
    %cst_142 = arith.constant dense<0.000000e+00> : vector<16x32xf32>
    %368 = tpu.matmul %367, %365, %cst_142 {dimension_numbers = #tpu.dot_dimension_numbers<[1], [0], [0], [1], [0, 0, 1, 1], [], []>} : vector<16x32xbf16>, vector<32x32xbf16>, vector<16x32xf32> -> vector<16x32xf32>
    %369 = vector.broadcast %366 : vector<1x32xf32> to vector<16x32xf32>
    %370 = arith.addf %368, %369 : vector<16x32xf32>
    %c4 = arith.constant 4 : index
    %c0_143 = arith.constant 0 : index
    %c0_144 = arith.constant 0 : index
    %371 = vector.load %arg6[%c4, %c0_143, %c0_144] : memref<6x1x32xf32, #tpu.memory_space<vmem>>, vector<1x1x32xf32>
    %372 = vector.shape_cast %371 : vector<1x1x32xf32> to vector<1x32xf32>
    %c5 = arith.constant 5 : index
    %c0_145 = arith.constant 0 : index
    %c0_146 = arith.constant 0 : index
    %373 = vector.load %arg6[%c5, %c0_145, %c0_146] : memref<6x1x32xf32, #tpu.memory_space<vmem>>, vector<1x1x32xf32>
    %374 = vector.shape_cast %373 : vector<1x1x32xf32> to vector<1x32xf32>
    %cst_147 = arith.constant dense<0.000000e+00> : vector<16xf32>
    %375 = vector.multi_reduction <add>, %370, %cst_147 [1] : vector<16x32xf32> to vector<16xf32>
    %376 = vector.shape_cast %375 : vector<16xf32> to vector<16x1xf32>
    %cst_148 = arith.constant 3.200000e+01 : f32
    %377 = vector.broadcast %cst_148 : f32 to vector<16x1xf32>
    %378 = arith.divf %376, %377 : vector<16x1xf32>
    %379 = vector.broadcast %378 : vector<16x1xf32> to vector<16x32xf32>
    %380 = arith.subf %370, %379 : vector<16x32xf32>
    %381 = arith.mulf %380, %380 : vector<16x32xf32>
    %cst_149 = arith.constant dense<0.000000e+00> : vector<16xf32>
    %382 = vector.multi_reduction <add>, %381, %cst_149 [1] : vector<16x32xf32> to vector<16xf32>
    %383 = vector.shape_cast %382 : vector<16xf32> to vector<16x1xf32>
    %cst_150 = arith.constant 3.200000e+01 : f32
    %384 = vector.broadcast %cst_150 : f32 to vector<16x1xf32>
    %385 = arith.divf %383, %384 : vector<16x1xf32>
    %386 = vector.broadcast %378 : vector<16x1xf32> to vector<16x32xf32>
    %387 = arith.subf %370, %386 : vector<16x32xf32>
    %cst_151 = arith.constant 9.99999974E-6 : f32
    %388 = vector.broadcast %cst_151 : f32 to vector<16x1xf32>
    %389 = arith.addf %385, %388 : vector<16x1xf32>
    %390 = math.rsqrt %389 : vector<16x1xf32>
    %391 = vector.broadcast %390 : vector<16x1xf32> to vector<16x32xf32>
    %392 = arith.mulf %387, %391 : vector<16x32xf32>
    %393 = vector.broadcast %372 : vector<1x32xf32> to vector<16x32xf32>
    %394 = arith.mulf %392, %393 : vector<16x32xf32>
    %395 = vector.broadcast %374 : vector<1x32xf32> to vector<16x32xf32>
    %396 = arith.addf %394, %395 : vector<16x32xf32>
    %cst_152 = arith.constant 0.000000e+00 : f32
    %397 = vector.broadcast %cst_152 : f32 to vector<16x32xf32>
    %398 = arith.maximumf %396, %397 : vector<16x32xf32>
    %c0_153 = arith.constant 0 : index
    %c0_154 = arith.constant 0 : index
    %399 = vector.load %arg13[%c0_153, %c0_154] : memref<32x128xbf16, #tpu.memory_space<vmem>>, vector<32x128xbf16>
    %c0_155 = arith.constant 0 : index
    %c0_156 = arith.constant 0 : index
    %400 = vector.load %arg14[%c0_155, %c0_156] : memref<1x128xf32, #tpu.memory_space<vmem>>, vector<1x128xf32>
    %401 = arith.truncf %398 : vector<16x32xf32> to vector<16x32xbf16>
    %cst_157 = arith.constant dense<0.000000e+00> : vector<16x128xf32>
    %402 = tpu.matmul %401, %399, %cst_157 {dimension_numbers = #tpu.dot_dimension_numbers<[1], [0], [0], [1], [0, 0, 1, 1], [], []>} : vector<16x32xbf16>, vector<32x128xbf16>, vector<16x128xf32> -> vector<16x128xf32>
    %403 = vector.broadcast %400 : vector<1x128xf32> to vector<16x128xf32>
    %404 = arith.addf %402, %403 : vector<16x128xf32>
    %405 = vector.shape_cast %404 : vector<16x128xf32> to vector<2x8x128xf32>
    %c0_158 = arith.constant 0 : index
    %c0_159 = arith.constant 0 : index
    %c0_160 = arith.constant 0 : index
    %406 = vector.load %arg15[%c0_158, %c0_159, %c0_160] : memref<2x8x128xf32, #tpu.memory_space<vmem>>, vector<2x8x128xf32>
    tpu.vector_store %arg15[%c0_158, %c0_159, %c0_160], %405 {strides = array<i32>} : memref<2x8x128xf32, #tpu.memory_space<vmem>>, vector<2x8x128xf32>,
    return
  }
  func.func @transform_0(%arg0: i32) -> (i32, i32, i32) {
    %c0_i32 = arith.constant 0 : i32
    %c0_i32_0 = arith.constant 0 : i32
    %c0_i32_1 = arith.constant 0 : i32
    return %arg0, %c0_i32, %c0_i32_0 : i32, i32, i32
  }
  func.func @transform_1(%arg0: i32) -> (i32, i32, i32) {
    %c0_i32 = arith.constant 0 : i32
    %c0_i32_0 = arith.constant 0 : i32
    %c0_i32_1 = arith.constant 0 : i32
    return %arg0, %c0_i32, %c0_i32_0 : i32, i32, i32
  }
  func.func @transform_2(%arg0: i32) -> (i32, i32, i32) {
    %c0_i32 = arith.constant 0 : i32
    %c0_i32_0 = arith.constant 0 : i32
    %c0_i32_1 = arith.constant 0 : i32
    return %arg0, %c0_i32, %c0_i32_0 : i32, i32, i32
  }
  func.func @transform_3(%arg0: i32) -> (i32, i32, i32) {
    %c0_i32 = arith.constant 0 : i32
    %c0_i32_0 = arith.constant 0 : i32
    %c0_i32_1 = arith.constant 0 : i32
    %c0_i32_2 = arith.constant 0 : i32
    return %c0_i32, %c0_i32_0, %c0_i32_1 : i32, i32, i32
  }
  func.func @transform_4(%arg0: i32) -> (i32, i32, i32) {
    %c0_i32 = arith.constant 0 : i32
    %c0_i32_0 = arith.constant 0 : i32
    %c0_i32_1 = arith.constant 0 : i32
    %c0_i32_2 = arith.constant 0 : i32
    return %c0_i32, %c0_i32_0, %c0_i32_1 : i32, i32, i32
  }
  func.func @transform_5(%arg0: i32) -> (i32, i32, i32) {
    %c0_i32 = arith.constant 0 : i32
    %c0_i32_0 = arith.constant 0 : i32
    %c0_i32_1 = arith.constant 0 : i32
    %c0_i32_2 = arith.constant 0 : i32
    return %c0_i32, %c0_i32_0, %c0_i32_1 : i32, i32, i32
  }
  func.func @transform_6(%arg0: i32) -> (i32, i32) {
    %c0_i32 = arith.constant 0 : i32
    %c0_i32_0 = arith.constant 0 : i32
    %c0_i32_1 = arith.constant 0 : i32
    return %c0_i32, %c0_i32_0 : i32, i32
  }
  func.func @transform_7(%arg0: i32) -> (i32, i32) {
    %c0_i32 = arith.constant 0 : i32
    %c0_i32_0 = arith.constant 0 : i32
    %c0_i32_1 = arith.constant 0 : i32
    return %c0_i32, %c0_i32_0 : i32, i32
  }
  func.func @transform_8(%arg0: i32) -> (i32, i32) {
    %c0_i32 = arith.constant 0 : i32
    %c0_i32_0 = arith.constant 0 : i32
    %c0_i32_1 = arith.constant 0 : i32
    return %c0_i32, %c0_i32_0 : i32, i32
  }
  func.func @transform_9(%arg0: i32) -> (i32, i32) {
    %c0_i32 = arith.constant 0 : i32
    %c0_i32_0 = arith.constant 0 : i32
    %c0_i32_1 = arith.constant 0 : i32
    return %c0_i32, %c0_i32_0 : i32, i32
  }
  func.func @transform_10(%arg0: i32) -> (i32, i32) {
    %c0_i32 = arith.constant 0 : i32
    %c0_i32_0 = arith.constant 0 : i32
    %c0_i32_1 = arith.constant 0 : i32
    return %c0_i32, %c0_i32_0 : i32, i32
  }
  func.func @transform_11(%arg0: i32) -> (i32, i32) {
    %c0_i32 = arith.constant 0 : i32
    %c0_i32_0 = arith.constant 0 : i32
    %c0_i32_1 = arith.constant 0 : i32
    return %c0_i32, %c0_i32_0 : i32, i32
  }
  func.func @transform_12(%arg0: i32) -> (i32, i32) {
    %c0_i32 = arith.constant 0 : i32
    %c0_i32_0 = arith.constant 0 : i32
    %c0_i32_1 = arith.constant 0 : i32
    return %c0_i32, %c0_i32_0 : i32, i32
  }
  func.func @transform_13(%arg0: i32) -> (i32, i32) {
    %c0_i32 = arith.constant 0 : i32
    %c0_i32_0 = arith.constant 0 : i32
    %c0_i32_1 = arith.constant 0 : i32
    return %c0_i32, %c0_i32_0 : i32, i32
  }
  func.func @transform_14(%arg0: i32) -> (i32, i32, i32) {
    %c0_i32 = arith.constant 0 : i32
    %c0_i32_0 = arith.constant 0 : i32
    %c0_i32_1 = arith.constant 0 : i32
    return %arg0, %c0_i32, %c0_i32_0 : i32, i32, i32
  }
}

module attributes {stable_mosaic.version = 11 : i64} {
  func.func @fused_gru_agg_kernel(%arg0: i32, %arg1: i32, %arg2: memref<1x8x8x32xf32, #tpu.memory_space<vmem>>, %arg3: memref<1x8x8x1xf32, #tpu.memory_space<vmem>>, %arg4: memref<3x32x96xbf16, #tpu.memory_space<vmem>>, %arg5: memref<3x1x96xf32, #tpu.memory_space<vmem>>, %arg6: memref<3x32x96xbf16, #tpu.memory_space<vmem>>, %arg7: memref<3x1x96xf32, #tpu.memory_space<vmem>>, %arg8: memref<1x8x32xf32, #tpu.memory_space<vmem>>, %arg9: memref<3x8x32xf32, #tpu.memory_space<vmem>>) attributes {dimension_semantics = [#tpu.dimension_semantics<parallel>, #tpu.dimension_semantics<arbitrary>], iteration_bounds = array<i64: 2, 1>, scalar_prefetch = 0 : i64, scratch_operands = 1 : i64, tpu.core_type = #tpu.core_type<tc>, window_params = [{transform_indices = @transform_0, window_bounds = array<i64: 1, 8, 8, 32>}, {transform_indices = @transform_1, window_bounds = array<i64: 1, 8, 8, 1>}, {pipeline_mode = #tpu.pipeline_mode<synchronous>, transform_indices = @transform_2, window_bounds = array<i64: 3, 32, 96>}, {pipeline_mode = #tpu.pipeline_mode<synchronous>, transform_indices = @transform_3, window_bounds = array<i64: 3, 1, 96>}, {pipeline_mode = #tpu.pipeline_mode<synchronous>, transform_indices = @transform_4, window_bounds = array<i64: 3, 32, 96>}, {pipeline_mode = #tpu.pipeline_mode<synchronous>, transform_indices = @transform_5, window_bounds = array<i64: 3, 1, 96>}, {transform_indices = @transform_6, window_bounds = array<i64: 1, 8, 32>}]} {
    %c0_i32 = arith.constant 0 : i32
    %0 = arith.cmpi eq, %arg1, %c0_i32 : i32
    %1 = arith.extui %0 : i1 to i32
    %c0_i32_0 = arith.constant 0 : i32
    %2 = arith.cmpi ne, %1, %c0_i32_0 : i32
    scf.if %2 {
      %cst_241 = arith.constant 0.000000e+00 : f32
      %1029 = vector.broadcast %cst_241 : f32 to vector<3x8x32xf32>
      %c0_242 = arith.constant 0 : index
      %c0_243 = arith.constant 0 : index
      %c0_244 = arith.constant 0 : index
      %1030 = vector.load %arg9[%c0_242, %c0_243, %c0_244] : memref<3x8x32xf32, #tpu.memory_space<vmem>>, vector<3x8x32xf32>
      tpu.vector_store %arg9[%c0_242, %c0_243, %c0_244], %1029 {strides = array<i32>} : memref<3x8x32xf32, #tpu.memory_space<vmem>>, vector<3x8x32xf32>,
      %cst_245 = arith.constant 0.000000e+00 : f32
      %1031 = vector.broadcast %cst_245 : f32 to vector<1x8x32xf32>
      %c0_246 = arith.constant 0 : index
      %c0_247 = arith.constant 0 : index
      %c0_248 = arith.constant 0 : index
      %1032 = vector.load %arg8[%c0_246, %c0_247, %c0_248] : memref<1x8x32xf32, #tpu.memory_space<vmem>>, vector<1x8x32xf32>
      tpu.vector_store %arg8[%c0_246, %c0_247, %c0_248], %1031 {strides = array<i32>} : memref<1x8x32xf32, #tpu.memory_space<vmem>>, vector<1x8x32xf32>,
    } else {
    }
    %c0 = arith.constant 0 : index
    %c0_1 = arith.constant 0 : index
    %c0_2 = arith.constant 0 : index
    %3 = vector.load %arg4[%c0, %c0_1, %c0_2] : memref<3x32x96xbf16, #tpu.memory_space<vmem>>, vector<1x32x96xbf16>
    %4 = vector.shape_cast %3 : vector<1x32x96xbf16> to vector<32x96xbf16>
    %c1 = arith.constant 1 : index
    %c0_3 = arith.constant 0 : index
    %c0_4 = arith.constant 0 : index
    %5 = vector.load %arg4[%c1, %c0_3, %c0_4] : memref<3x32x96xbf16, #tpu.memory_space<vmem>>, vector<1x32x96xbf16>
    %6 = vector.shape_cast %5 : vector<1x32x96xbf16> to vector<32x96xbf16>
    %c2 = arith.constant 2 : index
    %c0_5 = arith.constant 0 : index
    %c0_6 = arith.constant 0 : index
    %7 = vector.load %arg4[%c2, %c0_5, %c0_6] : memref<3x32x96xbf16, #tpu.memory_space<vmem>>, vector<1x32x96xbf16>
    %8 = vector.shape_cast %7 : vector<1x32x96xbf16> to vector<32x96xbf16>
    %c0_7 = arith.constant 0 : index
    %c0_8 = arith.constant 0 : index
    %c0_9 = arith.constant 0 : index
    %9 = vector.load %arg6[%c0_7, %c0_8, %c0_9] : memref<3x32x96xbf16, #tpu.memory_space<vmem>>, vector<1x32x96xbf16>
    %10 = vector.shape_cast %9 : vector<1x32x96xbf16> to vector<32x96xbf16>
    %c1_10 = arith.constant 1 : index
    %c0_11 = arith.constant 0 : index
    %c0_12 = arith.constant 0 : index
    %11 = vector.load %arg6[%c1_10, %c0_11, %c0_12] : memref<3x32x96xbf16, #tpu.memory_space<vmem>>, vector<1x32x96xbf16>
    %12 = vector.shape_cast %11 : vector<1x32x96xbf16> to vector<32x96xbf16>
    %c2_13 = arith.constant 2 : index
    %c0_14 = arith.constant 0 : index
    %c0_15 = arith.constant 0 : index
    %13 = vector.load %arg6[%c2_13, %c0_14, %c0_15] : memref<3x32x96xbf16, #tpu.memory_space<vmem>>, vector<1x32x96xbf16>
    %14 = vector.shape_cast %13 : vector<1x32x96xbf16> to vector<32x96xbf16>
    %c0_16 = arith.constant 0 : index
    %c0_17 = arith.constant 0 : index
    %c0_18 = arith.constant 0 : index
    %15 = vector.load %arg5[%c0_16, %c0_17, %c0_18] : memref<3x1x96xf32, #tpu.memory_space<vmem>>, vector<1x1x96xf32>
    %16 = vector.shape_cast %15 : vector<1x1x96xf32> to vector<1x96xf32>
    %c1_19 = arith.constant 1 : index
    %c0_20 = arith.constant 0 : index
    %c0_21 = arith.constant 0 : index
    %17 = vector.load %arg5[%c1_19, %c0_20, %c0_21] : memref<3x1x96xf32, #tpu.memory_space<vmem>>, vector<1x1x96xf32>
    %18 = vector.shape_cast %17 : vector<1x1x96xf32> to vector<1x96xf32>
    %c2_22 = arith.constant 2 : index
    %c0_23 = arith.constant 0 : index
    %c0_24 = arith.constant 0 : index
    %19 = vector.load %arg5[%c2_22, %c0_23, %c0_24] : memref<3x1x96xf32, #tpu.memory_space<vmem>>, vector<1x1x96xf32>
    %20 = vector.shape_cast %19 : vector<1x1x96xf32> to vector<1x96xf32>
    %c0_25 = arith.constant 0 : index
    %c0_26 = arith.constant 0 : index
    %c0_27 = arith.constant 0 : index
    %21 = vector.load %arg7[%c0_25, %c0_26, %c0_27] : memref<3x1x96xf32, #tpu.memory_space<vmem>>, vector<1x1x96xf32>
    %22 = vector.shape_cast %21 : vector<1x1x96xf32> to vector<1x96xf32>
    %c1_28 = arith.constant 1 : index
    %c0_29 = arith.constant 0 : index
    %c0_30 = arith.constant 0 : index
    %23 = vector.load %arg7[%c1_28, %c0_29, %c0_30] : memref<3x1x96xf32, #tpu.memory_space<vmem>>, vector<1x1x96xf32>
    %24 = vector.shape_cast %23 : vector<1x1x96xf32> to vector<1x96xf32>
    %c2_31 = arith.constant 2 : index
    %c0_32 = arith.constant 0 : index
    %c0_33 = arith.constant 0 : index
    %25 = vector.load %arg7[%c2_31, %c0_32, %c0_33] : memref<3x1x96xf32, #tpu.memory_space<vmem>>, vector<1x1x96xf32>
    %26 = vector.shape_cast %25 : vector<1x1x96xf32> to vector<1x96xf32>
    %c0_34 = arith.constant 0 : index
    %c0_35 = arith.constant 0 : index
    %c0_36 = arith.constant 0 : index
    %c0_37 = arith.constant 0 : index
    %27 = vector.load %arg2[%c0_34, %c0_35, %c0_36, %c0_37] : memref<1x8x8x32xf32, #tpu.memory_space<vmem>>, vector<1x8x8x32xf32>
    %28 = vector.shape_cast %27 : vector<1x8x8x32xf32> to vector<64x32xf32>
    %29 = arith.truncf %28 : vector<64x32xf32> to vector<64x32xbf16>
    %cst = arith.constant dense<0.000000e+00> : vector<64x96xf32>
    %30 = tpu.matmul %29, %4, %cst {dimension_numbers = #tpu.dot_dimension_numbers<[1], [0], [0], [1], [0, 0, 1, 1], [], []>} : vector<64x32xbf16>, vector<32x96xbf16>, vector<64x96xf32> -> vector<64x96xf32>
    %31 = vector.broadcast %16 : vector<1x96xf32> to vector<64x96xf32>
    %32 = arith.addf %30, %31 : vector<64x96xf32>
    %33 = vector.shape_cast %32 : vector<64x96xf32> to vector<1x8x8x96xf32>
    %c0_38 = arith.constant 0 : index
    %c0_39 = arith.constant 0 : index
    %c0_40 = arith.constant 0 : index
    %34 = vector.load %arg9[%c0_38, %c0_39, %c0_40] : memref<3x8x32xf32, #tpu.memory_space<vmem>>, vector<1x8x32xf32>
    %35 = vector.shape_cast %34 : vector<1x8x32xf32> to vector<8x32xf32>
    %c1_41 = arith.constant 1 : index
    %c0_42 = arith.constant 0 : index
    %c0_43 = arith.constant 0 : index
    %36 = vector.load %arg9[%c1_41, %c0_42, %c0_43] : memref<3x8x32xf32, #tpu.memory_space<vmem>>, vector<1x8x32xf32>
    %37 = vector.shape_cast %36 : vector<1x8x32xf32> to vector<8x32xf32>
    %c2_44 = arith.constant 2 : index
    %c0_45 = arith.constant 0 : index
    %c0_46 = arith.constant 0 : index
    %38 = vector.load %arg9[%c2_44, %c0_45, %c0_46] : memref<3x8x32xf32, #tpu.memory_space<vmem>>, vector<1x8x32xf32>
    %39 = vector.shape_cast %38 : vector<1x8x32xf32> to vector<8x32xf32>
    %c0_47 = arith.constant 0 : index
    %c0_48 = arith.constant 0 : index
    %c0_49 = arith.constant 0 : index
    %40 = vector.load %arg8[%c0_47, %c0_48, %c0_49] : memref<1x8x32xf32, #tpu.memory_space<vmem>>, vector<1x8x32xf32>
    %41 = vector.shape_cast %40 : vector<1x8x32xf32> to vector<8x32xf32>
    %c0_50 = arith.constant 0 : index
    %c0_51 = arith.constant 0 : index
    %c0_52 = arith.constant 0 : index
    %c0_53 = arith.constant 0 : index
    %42 = vector.load %arg3[%c0_50, %c0_51, %c0_52, %c0_53] : memref<1x8x8x1xf32, #tpu.memory_space<vmem>>, vector<1x1x8x1xf32>
    %43 = vector.shape_cast %42 : vector<1x1x8x1xf32> to vector<1x8x1xf32>
    %44 = vector.shape_cast %43 : vector<1x8x1xf32> to vector<8x1xf32>
    %cst_54 = arith.constant 0.000000e+00 : f32
    %45 = vector.broadcast %cst_54 : f32 to vector<8x1xf32>
    %46 = arith.cmpf ogt, %44, %45 : vector<8x1xf32>
    %c0_55 = arith.constant 0 : index
    %c0_56 = arith.constant 0 : index
    %c0_57 = arith.constant 0 : index
    %c0_58 = arith.constant 0 : index
    %47 = vector.load %arg2[%c0_55, %c0_56, %c0_57, %c0_58] : memref<1x8x8x32xf32, #tpu.memory_space<vmem>>, vector<1x1x8x32xf32>
    %48 = vector.shape_cast %47 : vector<1x1x8x32xf32> to vector<1x8x32xf32>
    %49 = vector.shape_cast %48 : vector<1x8x32xf32> to vector<8x32xf32>
    %50 = vector.extract_strided_slice %33 {offsets = [0, 0, 0, 0], sizes = [1, 1, 8, 96], strides = [1, 1, 1, 1]} : vector<1x8x8x96xf32> to vector<1x1x8x96xf32>
    %51 = vector.shape_cast %50 : vector<1x1x8x96xf32> to vector<1x8x96xf32>
    %52 = vector.shape_cast %51 : vector<1x8x96xf32> to vector<8x96xf32>
    %53 = arith.truncf %35 : vector<8x32xf32> to vector<8x32xbf16>
    %cst_59 = arith.constant dense<0.000000e+00> : vector<8x96xf32>
    %54 = tpu.matmul %53, %10, %cst_59 {dimension_numbers = #tpu.dot_dimension_numbers<[1], [0], [0], [1], [0, 0, 1, 1], [], []>} : vector<8x32xbf16>, vector<32x96xbf16>, vector<8x96xf32> -> vector<8x96xf32>
    %55 = vector.broadcast %22 : vector<1x96xf32> to vector<8x96xf32>
    %56 = arith.addf %54, %55 : vector<8x96xf32>
    %57 = vector.extract_strided_slice %52 {offsets = [0, 0], sizes = [8, 32], strides = [1, 1]} : vector<8x96xf32> to vector<8x32xf32>
    %58 = vector.extract_strided_slice %56 {offsets = [0, 0], sizes = [8, 32], strides = [1, 1]} : vector<8x96xf32> to vector<8x32xf32>
    %59 = arith.addf %57, %58 : vector<8x32xf32>
    %60 = arith.negf %59 : vector<8x32xf32>
    %61 = math.exp %60 : vector<8x32xf32>
    %cst_60 = arith.constant 1.000000e+00 : f32
    %62 = vector.broadcast %cst_60 : f32 to vector<8x32xf32>
    %63 = arith.addf %62, %61 : vector<8x32xf32>
    %64 = arith.divf %62, %63 : vector<8x32xf32>
    %65 = vector.extract_strided_slice %52 {offsets = [0, 32], sizes = [8, 32], strides = [1, 1]} : vector<8x96xf32> to vector<8x32xf32>
    %66 = vector.extract_strided_slice %56 {offsets = [0, 32], sizes = [8, 32], strides = [1, 1]} : vector<8x96xf32> to vector<8x32xf32>
    %67 = arith.addf %65, %66 : vector<8x32xf32>
    %68 = arith.negf %67 : vector<8x32xf32>
    %69 = math.exp %68 : vector<8x32xf32>
    %cst_61 = arith.constant 1.000000e+00 : f32
    %70 = vector.broadcast %cst_61 : f32 to vector<8x32xf32>
    %71 = arith.addf %70, %69 : vector<8x32xf32>
    %72 = arith.divf %70, %71 : vector<8x32xf32>
    %73 = vector.extract_strided_slice %52 {offsets = [0, 64], sizes = [8, 32], strides = [1, 1]} : vector<8x96xf32> to vector<8x32xf32>
    %74 = vector.extract_strided_slice %56 {offsets = [0, 64], sizes = [8, 32], strides = [1, 1]} : vector<8x96xf32> to vector<8x32xf32>
    %75 = arith.mulf %64, %74 : vector<8x32xf32>
    %76 = arith.addf %73, %75 : vector<8x32xf32>
    %77 = math.tanh %76 : vector<8x32xf32>
    %cst_62 = arith.constant 1.000000e+00 : f32
    %78 = vector.broadcast %cst_62 : f32 to vector<8x32xf32>
    %79 = arith.subf %78, %72 : vector<8x32xf32>
    %80 = arith.mulf %79, %77 : vector<8x32xf32>
    %81 = arith.mulf %72, %35 : vector<8x32xf32>
    %82 = arith.addf %80, %81 : vector<8x32xf32>
    %83 = vector.shape_cast %46 : vector<8x1xi1> to vector<8x1xi1>
    %84 = vector.broadcast %83 : vector<8x1xi1> to vector<8x32xi1>
    %85 = arith.select %84, %82, %35 : vector<8x32xi1>, vector<8x32xf32>
    %86 = arith.truncf %85 : vector<8x32xf32> to vector<8x32xbf16>
    %cst_63 = arith.constant dense<0.000000e+00> : vector<8x96xf32>
    %87 = tpu.matmul %86, %6, %cst_63 {dimension_numbers = #tpu.dot_dimension_numbers<[1], [0], [0], [1], [0, 0, 1, 1], [], []>} : vector<8x32xbf16>, vector<32x96xbf16>, vector<8x96xf32> -> vector<8x96xf32>
    %88 = vector.broadcast %18 : vector<1x96xf32> to vector<8x96xf32>
    %89 = arith.addf %87, %88 : vector<8x96xf32>
    %90 = arith.truncf %37 : vector<8x32xf32> to vector<8x32xbf16>
    %cst_64 = arith.constant dense<0.000000e+00> : vector<8x96xf32>
    %91 = tpu.matmul %90, %12, %cst_64 {dimension_numbers = #tpu.dot_dimension_numbers<[1], [0], [0], [1], [0, 0, 1, 1], [], []>} : vector<8x32xbf16>, vector<32x96xbf16>, vector<8x96xf32> -> vector<8x96xf32>
    %92 = vector.broadcast %24 : vector<1x96xf32> to vector<8x96xf32>
    %93 = arith.addf %91, %92 : vector<8x96xf32>
    %94 = vector.extract_strided_slice %89 {offsets = [0, 0], sizes = [8, 32], strides = [1, 1]} : vector<8x96xf32> to vector<8x32xf32>
    %95 = vector.extract_strided_slice %93 {offsets = [0, 0], sizes = [8, 32], strides = [1, 1]} : vector<8x96xf32> to vector<8x32xf32>
    %96 = arith.addf %94, %95 : vector<8x32xf32>
    %97 = arith.negf %96 : vector<8x32xf32>
    %98 = math.exp %97 : vector<8x32xf32>
    %cst_65 = arith.constant 1.000000e+00 : f32
    %99 = vector.broadcast %cst_65 : f32 to vector<8x32xf32>
    %100 = arith.addf %99, %98 : vector<8x32xf32>
    %101 = arith.divf %99, %100 : vector<8x32xf32>
    %102 = vector.extract_strided_slice %89 {offsets = [0, 32], sizes = [8, 32], strides = [1, 1]} : vector<8x96xf32> to vector<8x32xf32>
    %103 = vector.extract_strided_slice %93 {offsets = [0, 32], sizes = [8, 32], strides = [1, 1]} : vector<8x96xf32> to vector<8x32xf32>
    %104 = arith.addf %102, %103 : vector<8x32xf32>
    %105 = arith.negf %104 : vector<8x32xf32>
    %106 = math.exp %105 : vector<8x32xf32>
    %cst_66 = arith.constant 1.000000e+00 : f32
    %107 = vector.broadcast %cst_66 : f32 to vector<8x32xf32>
    %108 = arith.addf %107, %106 : vector<8x32xf32>
    %109 = arith.divf %107, %108 : vector<8x32xf32>
    %110 = vector.extract_strided_slice %89 {offsets = [0, 64], sizes = [8, 32], strides = [1, 1]} : vector<8x96xf32> to vector<8x32xf32>
    %111 = vector.extract_strided_slice %93 {offsets = [0, 64], sizes = [8, 32], strides = [1, 1]} : vector<8x96xf32> to vector<8x32xf32>
    %112 = arith.mulf %101, %111 : vector<8x32xf32>
    %113 = arith.addf %110, %112 : vector<8x32xf32>
    %114 = math.tanh %113 : vector<8x32xf32>
    %cst_67 = arith.constant 1.000000e+00 : f32
    %115 = vector.broadcast %cst_67 : f32 to vector<8x32xf32>
    %116 = arith.subf %115, %109 : vector<8x32xf32>
    %117 = arith.mulf %116, %114 : vector<8x32xf32>
    %118 = arith.mulf %109, %37 : vector<8x32xf32>
    %119 = arith.addf %117, %118 : vector<8x32xf32>
    %120 = vector.shape_cast %46 : vector<8x1xi1> to vector<8x1xi1>
    %121 = vector.broadcast %120 : vector<8x1xi1> to vector<8x32xi1>
    %122 = arith.select %121, %119, %37 : vector<8x32xi1>, vector<8x32xf32>
    %123 = arith.truncf %122 : vector<8x32xf32> to vector<8x32xbf16>
    %cst_68 = arith.constant dense<0.000000e+00> : vector<8x96xf32>
    %124 = tpu.matmul %123, %8, %cst_68 {dimension_numbers = #tpu.dot_dimension_numbers<[1], [0], [0], [1], [0, 0, 1, 1], [], []>} : vector<8x32xbf16>, vector<32x96xbf16>, vector<8x96xf32> -> vector<8x96xf32>
    %125 = vector.broadcast %20 : vector<1x96xf32> to vector<8x96xf32>
    %126 = arith.addf %124, %125 : vector<8x96xf32>
    %127 = arith.truncf %39 : vector<8x32xf32> to vector<8x32xbf16>
    %cst_69 = arith.constant dense<0.000000e+00> : vector<8x96xf32>
    %128 = tpu.matmul %127, %14, %cst_69 {dimension_numbers = #tpu.dot_dimension_numbers<[1], [0], [0], [1], [0, 0, 1, 1], [], []>} : vector<8x32xbf16>, vector<32x96xbf16>, vector<8x96xf32> -> vector<8x96xf32>
    %129 = vector.broadcast %26 : vector<1x96xf32> to vector<8x96xf32>
    %130 = arith.addf %128, %129 : vector<8x96xf32>
    %131 = vector.extract_strided_slice %126 {offsets = [0, 0], sizes = [8, 32], strides = [1, 1]} : vector<8x96xf32> to vector<8x32xf32>
    %132 = vector.extract_strided_slice %130 {offsets = [0, 0], sizes = [8, 32], strides = [1, 1]} : vector<8x96xf32> to vector<8x32xf32>
    %133 = arith.addf %131, %132 : vector<8x32xf32>
    %134 = arith.negf %133 : vector<8x32xf32>
    %135 = math.exp %134 : vector<8x32xf32>
    %cst_70 = arith.constant 1.000000e+00 : f32
    %136 = vector.broadcast %cst_70 : f32 to vector<8x32xf32>
    %137 = arith.addf %136, %135 : vector<8x32xf32>
    %138 = arith.divf %136, %137 : vector<8x32xf32>
    %139 = vector.extract_strided_slice %126 {offsets = [0, 32], sizes = [8, 32], strides = [1, 1]} : vector<8x96xf32> to vector<8x32xf32>
    %140 = vector.extract_strided_slice %130 {offsets = [0, 32], sizes = [8, 32], strides = [1, 1]} : vector<8x96xf32> to vector<8x32xf32>
    %141 = arith.addf %139, %140 : vector<8x32xf32>
    %142 = arith.negf %141 : vector<8x32xf32>
    %143 = math.exp %142 : vector<8x32xf32>
    %cst_71 = arith.constant 1.000000e+00 : f32
    %144 = vector.broadcast %cst_71 : f32 to vector<8x32xf32>
    %145 = arith.addf %144, %143 : vector<8x32xf32>
    %146 = arith.divf %144, %145 : vector<8x32xf32>
    %147 = vector.extract_strided_slice %126 {offsets = [0, 64], sizes = [8, 32], strides = [1, 1]} : vector<8x96xf32> to vector<8x32xf32>
    %148 = vector.extract_strided_slice %130 {offsets = [0, 64], sizes = [8, 32], strides = [1, 1]} : vector<8x96xf32> to vector<8x32xf32>
    %149 = arith.mulf %138, %148 : vector<8x32xf32>
    %150 = arith.addf %147, %149 : vector<8x32xf32>
    %151 = math.tanh %150 : vector<8x32xf32>
    %cst_72 = arith.constant 1.000000e+00 : f32
    %152 = vector.broadcast %cst_72 : f32 to vector<8x32xf32>
    %153 = arith.subf %152, %146 : vector<8x32xf32>
    %154 = arith.mulf %153, %151 : vector<8x32xf32>
    %155 = arith.mulf %146, %39 : vector<8x32xf32>
    %156 = arith.addf %154, %155 : vector<8x32xf32>
    %157 = vector.shape_cast %46 : vector<8x1xi1> to vector<8x1xi1>
    %158 = vector.broadcast %157 : vector<8x1xi1> to vector<8x32xi1>
    %159 = arith.select %158, %156, %39 : vector<8x32xi1>, vector<8x32xf32>
    %160 = arith.addf %159, %49 : vector<8x32xf32>
    %161 = vector.shape_cast %46 : vector<8x1xi1> to vector<8x1xi1>
    %162 = vector.broadcast %161 : vector<8x1xi1> to vector<8x32xi1>
    %163 = arith.select %162, %160, %41 : vector<8x32xi1>, vector<8x32xf32>
    %c0_73 = arith.constant 0 : index
    %c1_74 = arith.constant 1 : index
    %c0_75 = arith.constant 0 : index
    %c0_76 = arith.constant 0 : index
    %164 = vector.load %arg3[%c0_73, %c1_74, %c0_75, %c0_76] : memref<1x8x8x1xf32, #tpu.memory_space<vmem>>, vector<1x1x8x1xf32>
    %165 = vector.shape_cast %164 : vector<1x1x8x1xf32> to vector<1x8x1xf32>
    %166 = vector.shape_cast %165 : vector<1x8x1xf32> to vector<8x1xf32>
    %cst_77 = arith.constant 0.000000e+00 : f32
    %167 = vector.broadcast %cst_77 : f32 to vector<8x1xf32>
    %168 = arith.cmpf ogt, %166, %167 : vector<8x1xf32>
    %c0_78 = arith.constant 0 : index
    %c1_79 = arith.constant 1 : index
    %c0_80 = arith.constant 0 : index
    %c0_81 = arith.constant 0 : index
    %169 = vector.load %arg2[%c0_78, %c1_79, %c0_80, %c0_81] : memref<1x8x8x32xf32, #tpu.memory_space<vmem>>, vector<1x1x8x32xf32>
    %170 = vector.shape_cast %169 : vector<1x1x8x32xf32> to vector<1x8x32xf32>
    %171 = vector.shape_cast %170 : vector<1x8x32xf32> to vector<8x32xf32>
    %172 = vector.extract_strided_slice %33 {offsets = [0, 1, 0, 0], sizes = [1, 1, 8, 96], strides = [1, 1, 1, 1]} : vector<1x8x8x96xf32> to vector<1x1x8x96xf32>
    %173 = vector.shape_cast %172 : vector<1x1x8x96xf32> to vector<1x8x96xf32>
    %174 = vector.shape_cast %173 : vector<1x8x96xf32> to vector<8x96xf32>
    %175 = arith.truncf %85 : vector<8x32xf32> to vector<8x32xbf16>
    %cst_82 = arith.constant dense<0.000000e+00> : vector<8x96xf32>
    %176 = tpu.matmul %175, %10, %cst_82 {dimension_numbers = #tpu.dot_dimension_numbers<[1], [0], [0], [1], [0, 0, 1, 1], [], []>} : vector<8x32xbf16>, vector<32x96xbf16>, vector<8x96xf32> -> vector<8x96xf32>
    %177 = vector.broadcast %22 : vector<1x96xf32> to vector<8x96xf32>
    %178 = arith.addf %176, %177 : vector<8x96xf32>
    %179 = vector.extract_strided_slice %174 {offsets = [0, 0], sizes = [8, 32], strides = [1, 1]} : vector<8x96xf32> to vector<8x32xf32>
    %180 = vector.extract_strided_slice %178 {offsets = [0, 0], sizes = [8, 32], strides = [1, 1]} : vector<8x96xf32> to vector<8x32xf32>
    %181 = arith.addf %179, %180 : vector<8x32xf32>
    %182 = arith.negf %181 : vector<8x32xf32>
    %183 = math.exp %182 : vector<8x32xf32>
    %cst_83 = arith.constant 1.000000e+00 : f32
    %184 = vector.broadcast %cst_83 : f32 to vector<8x32xf32>
    %185 = arith.addf %184, %183 : vector<8x32xf32>
    %186 = arith.divf %184, %185 : vector<8x32xf32>
    %187 = vector.extract_strided_slice %174 {offsets = [0, 32], sizes = [8, 32], strides = [1, 1]} : vector<8x96xf32> to vector<8x32xf32>
    %188 = vector.extract_strided_slice %178 {offsets = [0, 32], sizes = [8, 32], strides = [1, 1]} : vector<8x96xf32> to vector<8x32xf32>
    %189 = arith.addf %187, %188 : vector<8x32xf32>
    %190 = arith.negf %189 : vector<8x32xf32>
    %191 = math.exp %190 : vector<8x32xf32>
    %cst_84 = arith.constant 1.000000e+00 : f32
    %192 = vector.broadcast %cst_84 : f32 to vector<8x32xf32>
    %193 = arith.addf %192, %191 : vector<8x32xf32>
    %194 = arith.divf %192, %193 : vector<8x32xf32>
    %195 = vector.extract_strided_slice %174 {offsets = [0, 64], sizes = [8, 32], strides = [1, 1]} : vector<8x96xf32> to vector<8x32xf32>
    %196 = vector.extract_strided_slice %178 {offsets = [0, 64], sizes = [8, 32], strides = [1, 1]} : vector<8x96xf32> to vector<8x32xf32>
    %197 = arith.mulf %186, %196 : vector<8x32xf32>
    %198 = arith.addf %195, %197 : vector<8x32xf32>
    %199 = math.tanh %198 : vector<8x32xf32>
    %cst_85 = arith.constant 1.000000e+00 : f32
    %200 = vector.broadcast %cst_85 : f32 to vector<8x32xf32>
    %201 = arith.subf %200, %194 : vector<8x32xf32>
    %202 = arith.mulf %201, %199 : vector<8x32xf32>
    %203 = arith.mulf %194, %85 : vector<8x32xf32>
    %204 = arith.addf %202, %203 : vector<8x32xf32>
    %205 = vector.shape_cast %168 : vector<8x1xi1> to vector<8x1xi1>
    %206 = vector.broadcast %205 : vector<8x1xi1> to vector<8x32xi1>
    %207 = arith.select %206, %204, %85 : vector<8x32xi1>, vector<8x32xf32>
    %208 = arith.truncf %207 : vector<8x32xf32> to vector<8x32xbf16>
    %cst_86 = arith.constant dense<0.000000e+00> : vector<8x96xf32>
    %209 = tpu.matmul %208, %6, %cst_86 {dimension_numbers = #tpu.dot_dimension_numbers<[1], [0], [0], [1], [0, 0, 1, 1], [], []>} : vector<8x32xbf16>, vector<32x96xbf16>, vector<8x96xf32> -> vector<8x96xf32>
    %210 = vector.broadcast %18 : vector<1x96xf32> to vector<8x96xf32>
    %211 = arith.addf %209, %210 : vector<8x96xf32>
    %212 = arith.truncf %122 : vector<8x32xf32> to vector<8x32xbf16>
    %cst_87 = arith.constant dense<0.000000e+00> : vector<8x96xf32>
    %213 = tpu.matmul %212, %12, %cst_87 {dimension_numbers = #tpu.dot_dimension_numbers<[1], [0], [0], [1], [0, 0, 1, 1], [], []>} : vector<8x32xbf16>, vector<32x96xbf16>, vector<8x96xf32> -> vector<8x96xf32>
    %214 = vector.broadcast %24 : vector<1x96xf32> to vector<8x96xf32>
    %215 = arith.addf %213, %214 : vector<8x96xf32>
    %216 = vector.extract_strided_slice %211 {offsets = [0, 0], sizes = [8, 32], strides = [1, 1]} : vector<8x96xf32> to vector<8x32xf32>
    %217 = vector.extract_strided_slice %215 {offsets = [0, 0], sizes = [8, 32], strides = [1, 1]} : vector<8x96xf32> to vector<8x32xf32>
    %218 = arith.addf %216, %217 : vector<8x32xf32>
    %219 = arith.negf %218 : vector<8x32xf32>
    %220 = math.exp %219 : vector<8x32xf32>
    %cst_88 = arith.constant 1.000000e+00 : f32
    %221 = vector.broadcast %cst_88 : f32 to vector<8x32xf32>
    %222 = arith.addf %221, %220 : vector<8x32xf32>
    %223 = arith.divf %221, %222 : vector<8x32xf32>
    %224 = vector.extract_strided_slice %211 {offsets = [0, 32], sizes = [8, 32], strides = [1, 1]} : vector<8x96xf32> to vector<8x32xf32>
    %225 = vector.extract_strided_slice %215 {offsets = [0, 32], sizes = [8, 32], strides = [1, 1]} : vector<8x96xf32> to vector<8x32xf32>
    %226 = arith.addf %224, %225 : vector<8x32xf32>
    %227 = arith.negf %226 : vector<8x32xf32>
    %228 = math.exp %227 : vector<8x32xf32>
    %cst_89 = arith.constant 1.000000e+00 : f32
    %229 = vector.broadcast %cst_89 : f32 to vector<8x32xf32>
    %230 = arith.addf %229, %228 : vector<8x32xf32>
    %231 = arith.divf %229, %230 : vector<8x32xf32>
    %232 = vector.extract_strided_slice %211 {offsets = [0, 64], sizes = [8, 32], strides = [1, 1]} : vector<8x96xf32> to vector<8x32xf32>
    %233 = vector.extract_strided_slice %215 {offsets = [0, 64], sizes = [8, 32], strides = [1, 1]} : vector<8x96xf32> to vector<8x32xf32>
    %234 = arith.mulf %223, %233 : vector<8x32xf32>
    %235 = arith.addf %232, %234 : vector<8x32xf32>
    %236 = math.tanh %235 : vector<8x32xf32>
    %cst_90 = arith.constant 1.000000e+00 : f32
    %237 = vector.broadcast %cst_90 : f32 to vector<8x32xf32>
    %238 = arith.subf %237, %231 : vector<8x32xf32>
    %239 = arith.mulf %238, %236 : vector<8x32xf32>
    %240 = arith.mulf %231, %122 : vector<8x32xf32>
    %241 = arith.addf %239, %240 : vector<8x32xf32>
    %242 = vector.shape_cast %168 : vector<8x1xi1> to vector<8x1xi1>
    %243 = vector.broadcast %242 : vector<8x1xi1> to vector<8x32xi1>
    %244 = arith.select %243, %241, %122 : vector<8x32xi1>, vector<8x32xf32>
    %245 = arith.truncf %244 : vector<8x32xf32> to vector<8x32xbf16>
    %cst_91 = arith.constant dense<0.000000e+00> : vector<8x96xf32>
    %246 = tpu.matmul %245, %8, %cst_91 {dimension_numbers = #tpu.dot_dimension_numbers<[1], [0], [0], [1], [0, 0, 1, 1], [], []>} : vector<8x32xbf16>, vector<32x96xbf16>, vector<8x96xf32> -> vector<8x96xf32>
    %247 = vector.broadcast %20 : vector<1x96xf32> to vector<8x96xf32>
    %248 = arith.addf %246, %247 : vector<8x96xf32>
    %249 = arith.truncf %159 : vector<8x32xf32> to vector<8x32xbf16>
    %cst_92 = arith.constant dense<0.000000e+00> : vector<8x96xf32>
    %250 = tpu.matmul %249, %14, %cst_92 {dimension_numbers = #tpu.dot_dimension_numbers<[1], [0], [0], [1], [0, 0, 1, 1], [], []>} : vector<8x32xbf16>, vector<32x96xbf16>, vector<8x96xf32> -> vector<8x96xf32>
    %251 = vector.broadcast %26 : vector<1x96xf32> to vector<8x96xf32>
    %252 = arith.addf %250, %251 : vector<8x96xf32>
    %253 = vector.extract_strided_slice %248 {offsets = [0, 0], sizes = [8, 32], strides = [1, 1]} : vector<8x96xf32> to vector<8x32xf32>
    %254 = vector.extract_strided_slice %252 {offsets = [0, 0], sizes = [8, 32], strides = [1, 1]} : vector<8x96xf32> to vector<8x32xf32>
    %255 = arith.addf %253, %254 : vector<8x32xf32>
    %256 = arith.negf %255 : vector<8x32xf32>
    %257 = math.exp %256 : vector<8x32xf32>
    %cst_93 = arith.constant 1.000000e+00 : f32
    %258 = vector.broadcast %cst_93 : f32 to vector<8x32xf32>
    %259 = arith.addf %258, %257 : vector<8x32xf32>
    %260 = arith.divf %258, %259 : vector<8x32xf32>
    %261 = vector.extract_strided_slice %248 {offsets = [0, 32], sizes = [8, 32], strides = [1, 1]} : vector<8x96xf32> to vector<8x32xf32>
    %262 = vector.extract_strided_slice %252 {offsets = [0, 32], sizes = [8, 32], strides = [1, 1]} : vector<8x96xf32> to vector<8x32xf32>
    %263 = arith.addf %261, %262 : vector<8x32xf32>
    %264 = arith.negf %263 : vector<8x32xf32>
    %265 = math.exp %264 : vector<8x32xf32>
    %cst_94 = arith.constant 1.000000e+00 : f32
    %266 = vector.broadcast %cst_94 : f32 to vector<8x32xf32>
    %267 = arith.addf %266, %265 : vector<8x32xf32>
    %268 = arith.divf %266, %267 : vector<8x32xf32>
    %269 = vector.extract_strided_slice %248 {offsets = [0, 64], sizes = [8, 32], strides = [1, 1]} : vector<8x96xf32> to vector<8x32xf32>
    %270 = vector.extract_strided_slice %252 {offsets = [0, 64], sizes = [8, 32], strides = [1, 1]} : vector<8x96xf32> to vector<8x32xf32>
    %271 = arith.mulf %260, %270 : vector<8x32xf32>
    %272 = arith.addf %269, %271 : vector<8x32xf32>
    %273 = math.tanh %272 : vector<8x32xf32>
    %cst_95 = arith.constant 1.000000e+00 : f32
    %274 = vector.broadcast %cst_95 : f32 to vector<8x32xf32>
    %275 = arith.subf %274, %268 : vector<8x32xf32>
    %276 = arith.mulf %275, %273 : vector<8x32xf32>
    %277 = arith.mulf %268, %159 : vector<8x32xf32>
    %278 = arith.addf %276, %277 : vector<8x32xf32>
    %279 = vector.shape_cast %168 : vector<8x1xi1> to vector<8x1xi1>
    %280 = vector.broadcast %279 : vector<8x1xi1> to vector<8x32xi1>
    %281 = arith.select %280, %278, %159 : vector<8x32xi1>, vector<8x32xf32>
    %282 = arith.addf %281, %171 : vector<8x32xf32>
    %283 = vector.shape_cast %168 : vector<8x1xi1> to vector<8x1xi1>
    %284 = vector.broadcast %283 : vector<8x1xi1> to vector<8x32xi1>
    %285 = arith.select %284, %282, %163 : vector<8x32xi1>, vector<8x32xf32>
    %c0_96 = arith.constant 0 : index
    %c2_97 = arith.constant 2 : index
    %c0_98 = arith.constant 0 : index
    %c0_99 = arith.constant 0 : index
    %286 = vector.load %arg3[%c0_96, %c2_97, %c0_98, %c0_99] : memref<1x8x8x1xf32, #tpu.memory_space<vmem>>, vector<1x1x8x1xf32>
    %287 = vector.shape_cast %286 : vector<1x1x8x1xf32> to vector<1x8x1xf32>
    %288 = vector.shape_cast %287 : vector<1x8x1xf32> to vector<8x1xf32>
    %cst_100 = arith.constant 0.000000e+00 : f32
    %289 = vector.broadcast %cst_100 : f32 to vector<8x1xf32>
    %290 = arith.cmpf ogt, %288, %289 : vector<8x1xf32>
    %c0_101 = arith.constant 0 : index
    %c2_102 = arith.constant 2 : index
    %c0_103 = arith.constant 0 : index
    %c0_104 = arith.constant 0 : index
    %291 = vector.load %arg2[%c0_101, %c2_102, %c0_103, %c0_104] : memref<1x8x8x32xf32, #tpu.memory_space<vmem>>, vector<1x1x8x32xf32>
    %292 = vector.shape_cast %291 : vector<1x1x8x32xf32> to vector<1x8x32xf32>
    %293 = vector.shape_cast %292 : vector<1x8x32xf32> to vector<8x32xf32>
    %294 = vector.extract_strided_slice %33 {offsets = [0, 2, 0, 0], sizes = [1, 1, 8, 96], strides = [1, 1, 1, 1]} : vector<1x8x8x96xf32> to vector<1x1x8x96xf32>
    %295 = vector.shape_cast %294 : vector<1x1x8x96xf32> to vector<1x8x96xf32>
    %296 = vector.shape_cast %295 : vector<1x8x96xf32> to vector<8x96xf32>
    %297 = arith.truncf %207 : vector<8x32xf32> to vector<8x32xbf16>
    %cst_105 = arith.constant dense<0.000000e+00> : vector<8x96xf32>
    %298 = tpu.matmul %297, %10, %cst_105 {dimension_numbers = #tpu.dot_dimension_numbers<[1], [0], [0], [1], [0, 0, 1, 1], [], []>} : vector<8x32xbf16>, vector<32x96xbf16>, vector<8x96xf32> -> vector<8x96xf32>
    %299 = vector.broadcast %22 : vector<1x96xf32> to vector<8x96xf32>
    %300 = arith.addf %298, %299 : vector<8x96xf32>
    %301 = vector.extract_strided_slice %296 {offsets = [0, 0], sizes = [8, 32], strides = [1, 1]} : vector<8x96xf32> to vector<8x32xf32>
    %302 = vector.extract_strided_slice %300 {offsets = [0, 0], sizes = [8, 32], strides = [1, 1]} : vector<8x96xf32> to vector<8x32xf32>
    %303 = arith.addf %301, %302 : vector<8x32xf32>
    %304 = arith.negf %303 : vector<8x32xf32>
    %305 = math.exp %304 : vector<8x32xf32>
    %cst_106 = arith.constant 1.000000e+00 : f32
    %306 = vector.broadcast %cst_106 : f32 to vector<8x32xf32>
    %307 = arith.addf %306, %305 : vector<8x32xf32>
    %308 = arith.divf %306, %307 : vector<8x32xf32>
    %309 = vector.extract_strided_slice %296 {offsets = [0, 32], sizes = [8, 32], strides = [1, 1]} : vector<8x96xf32> to vector<8x32xf32>
    %310 = vector.extract_strided_slice %300 {offsets = [0, 32], sizes = [8, 32], strides = [1, 1]} : vector<8x96xf32> to vector<8x32xf32>
    %311 = arith.addf %309, %310 : vector<8x32xf32>
    %312 = arith.negf %311 : vector<8x32xf32>
    %313 = math.exp %312 : vector<8x32xf32>
    %cst_107 = arith.constant 1.000000e+00 : f32
    %314 = vector.broadcast %cst_107 : f32 to vector<8x32xf32>
    %315 = arith.addf %314, %313 : vector<8x32xf32>
    %316 = arith.divf %314, %315 : vector<8x32xf32>
    %317 = vector.extract_strided_slice %296 {offsets = [0, 64], sizes = [8, 32], strides = [1, 1]} : vector<8x96xf32> to vector<8x32xf32>
    %318 = vector.extract_strided_slice %300 {offsets = [0, 64], sizes = [8, 32], strides = [1, 1]} : vector<8x96xf32> to vector<8x32xf32>
    %319 = arith.mulf %308, %318 : vector<8x32xf32>
    %320 = arith.addf %317, %319 : vector<8x32xf32>
    %321 = math.tanh %320 : vector<8x32xf32>
    %cst_108 = arith.constant 1.000000e+00 : f32
    %322 = vector.broadcast %cst_108 : f32 to vector<8x32xf32>
    %323 = arith.subf %322, %316 : vector<8x32xf32>
    %324 = arith.mulf %323, %321 : vector<8x32xf32>
    %325 = arith.mulf %316, %207 : vector<8x32xf32>
    %326 = arith.addf %324, %325 : vector<8x32xf32>
    %327 = vector.shape_cast %290 : vector<8x1xi1> to vector<8x1xi1>
    %328 = vector.broadcast %327 : vector<8x1xi1> to vector<8x32xi1>
    %329 = arith.select %328, %326, %207 : vector<8x32xi1>, vector<8x32xf32>
    %330 = arith.truncf %329 : vector<8x32xf32> to vector<8x32xbf16>
    %cst_109 = arith.constant dense<0.000000e+00> : vector<8x96xf32>
    %331 = tpu.matmul %330, %6, %cst_109 {dimension_numbers = #tpu.dot_dimension_numbers<[1], [0], [0], [1], [0, 0, 1, 1], [], []>} : vector<8x32xbf16>, vector<32x96xbf16>, vector<8x96xf32> -> vector<8x96xf32>
    %332 = vector.broadcast %18 : vector<1x96xf32> to vector<8x96xf32>
    %333 = arith.addf %331, %332 : vector<8x96xf32>
    %334 = arith.truncf %244 : vector<8x32xf32> to vector<8x32xbf16>
    %cst_110 = arith.constant dense<0.000000e+00> : vector<8x96xf32>
    %335 = tpu.matmul %334, %12, %cst_110 {dimension_numbers = #tpu.dot_dimension_numbers<[1], [0], [0], [1], [0, 0, 1, 1], [], []>} : vector<8x32xbf16>, vector<32x96xbf16>, vector<8x96xf32> -> vector<8x96xf32>
    %336 = vector.broadcast %24 : vector<1x96xf32> to vector<8x96xf32>
    %337 = arith.addf %335, %336 : vector<8x96xf32>
    %338 = vector.extract_strided_slice %333 {offsets = [0, 0], sizes = [8, 32], strides = [1, 1]} : vector<8x96xf32> to vector<8x32xf32>
    %339 = vector.extract_strided_slice %337 {offsets = [0, 0], sizes = [8, 32], strides = [1, 1]} : vector<8x96xf32> to vector<8x32xf32>
    %340 = arith.addf %338, %339 : vector<8x32xf32>
    %341 = arith.negf %340 : vector<8x32xf32>
    %342 = math.exp %341 : vector<8x32xf32>
    %cst_111 = arith.constant 1.000000e+00 : f32
    %343 = vector.broadcast %cst_111 : f32 to vector<8x32xf32>
    %344 = arith.addf %343, %342 : vector<8x32xf32>
    %345 = arith.divf %343, %344 : vector<8x32xf32>
    %346 = vector.extract_strided_slice %333 {offsets = [0, 32], sizes = [8, 32], strides = [1, 1]} : vector<8x96xf32> to vector<8x32xf32>
    %347 = vector.extract_strided_slice %337 {offsets = [0, 32], sizes = [8, 32], strides = [1, 1]} : vector<8x96xf32> to vector<8x32xf32>
    %348 = arith.addf %346, %347 : vector<8x32xf32>
    %349 = arith.negf %348 : vector<8x32xf32>
    %350 = math.exp %349 : vector<8x32xf32>
    %cst_112 = arith.constant 1.000000e+00 : f32
    %351 = vector.broadcast %cst_112 : f32 to vector<8x32xf32>
    %352 = arith.addf %351, %350 : vector<8x32xf32>
    %353 = arith.divf %351, %352 : vector<8x32xf32>
    %354 = vector.extract_strided_slice %333 {offsets = [0, 64], sizes = [8, 32], strides = [1, 1]} : vector<8x96xf32> to vector<8x32xf32>
    %355 = vector.extract_strided_slice %337 {offsets = [0, 64], sizes = [8, 32], strides = [1, 1]} : vector<8x96xf32> to vector<8x32xf32>
    %356 = arith.mulf %345, %355 : vector<8x32xf32>
    %357 = arith.addf %354, %356 : vector<8x32xf32>
    %358 = math.tanh %357 : vector<8x32xf32>
    %cst_113 = arith.constant 1.000000e+00 : f32
    %359 = vector.broadcast %cst_113 : f32 to vector<8x32xf32>
    %360 = arith.subf %359, %353 : vector<8x32xf32>
    %361 = arith.mulf %360, %358 : vector<8x32xf32>
    %362 = arith.mulf %353, %244 : vector<8x32xf32>
    %363 = arith.addf %361, %362 : vector<8x32xf32>
    %364 = vector.shape_cast %290 : vector<8x1xi1> to vector<8x1xi1>
    %365 = vector.broadcast %364 : vector<8x1xi1> to vector<8x32xi1>
    %366 = arith.select %365, %363, %244 : vector<8x32xi1>, vector<8x32xf32>
    %367 = arith.truncf %366 : vector<8x32xf32> to vector<8x32xbf16>
    %cst_114 = arith.constant dense<0.000000e+00> : vector<8x96xf32>
    %368 = tpu.matmul %367, %8, %cst_114 {dimension_numbers = #tpu.dot_dimension_numbers<[1], [0], [0], [1], [0, 0, 1, 1], [], []>} : vector<8x32xbf16>, vector<32x96xbf16>, vector<8x96xf32> -> vector<8x96xf32>
    %369 = vector.broadcast %20 : vector<1x96xf32> to vector<8x96xf32>
    %370 = arith.addf %368, %369 : vector<8x96xf32>
    %371 = arith.truncf %281 : vector<8x32xf32> to vector<8x32xbf16>
    %cst_115 = arith.constant dense<0.000000e+00> : vector<8x96xf32>
    %372 = tpu.matmul %371, %14, %cst_115 {dimension_numbers = #tpu.dot_dimension_numbers<[1], [0], [0], [1], [0, 0, 1, 1], [], []>} : vector<8x32xbf16>, vector<32x96xbf16>, vector<8x96xf32> -> vector<8x96xf32>
    %373 = vector.broadcast %26 : vector<1x96xf32> to vector<8x96xf32>
    %374 = arith.addf %372, %373 : vector<8x96xf32>
    %375 = vector.extract_strided_slice %370 {offsets = [0, 0], sizes = [8, 32], strides = [1, 1]} : vector<8x96xf32> to vector<8x32xf32>
    %376 = vector.extract_strided_slice %374 {offsets = [0, 0], sizes = [8, 32], strides = [1, 1]} : vector<8x96xf32> to vector<8x32xf32>
    %377 = arith.addf %375, %376 : vector<8x32xf32>
    %378 = arith.negf %377 : vector<8x32xf32>
    %379 = math.exp %378 : vector<8x32xf32>
    %cst_116 = arith.constant 1.000000e+00 : f32
    %380 = vector.broadcast %cst_116 : f32 to vector<8x32xf32>
    %381 = arith.addf %380, %379 : vector<8x32xf32>
    %382 = arith.divf %380, %381 : vector<8x32xf32>
    %383 = vector.extract_strided_slice %370 {offsets = [0, 32], sizes = [8, 32], strides = [1, 1]} : vector<8x96xf32> to vector<8x32xf32>
    %384 = vector.extract_strided_slice %374 {offsets = [0, 32], sizes = [8, 32], strides = [1, 1]} : vector<8x96xf32> to vector<8x32xf32>
    %385 = arith.addf %383, %384 : vector<8x32xf32>
    %386 = arith.negf %385 : vector<8x32xf32>
    %387 = math.exp %386 : vector<8x32xf32>
    %cst_117 = arith.constant 1.000000e+00 : f32
    %388 = vector.broadcast %cst_117 : f32 to vector<8x32xf32>
    %389 = arith.addf %388, %387 : vector<8x32xf32>
    %390 = arith.divf %388, %389 : vector<8x32xf32>
    %391 = vector.extract_strided_slice %370 {offsets = [0, 64], sizes = [8, 32], strides = [1, 1]} : vector<8x96xf32> to vector<8x32xf32>
    %392 = vector.extract_strided_slice %374 {offsets = [0, 64], sizes = [8, 32], strides = [1, 1]} : vector<8x96xf32> to vector<8x32xf32>
    %393 = arith.mulf %382, %392 : vector<8x32xf32>
    %394 = arith.addf %391, %393 : vector<8x32xf32>
    %395 = math.tanh %394 : vector<8x32xf32>
    %cst_118 = arith.constant 1.000000e+00 : f32
    %396 = vector.broadcast %cst_118 : f32 to vector<8x32xf32>
    %397 = arith.subf %396, %390 : vector<8x32xf32>
    %398 = arith.mulf %397, %395 : vector<8x32xf32>
    %399 = arith.mulf %390, %281 : vector<8x32xf32>
    %400 = arith.addf %398, %399 : vector<8x32xf32>
    %401 = vector.shape_cast %290 : vector<8x1xi1> to vector<8x1xi1>
    %402 = vector.broadcast %401 : vector<8x1xi1> to vector<8x32xi1>
    %403 = arith.select %402, %400, %281 : vector<8x32xi1>, vector<8x32xf32>
    %404 = arith.addf %403, %293 : vector<8x32xf32>
    %405 = vector.shape_cast %290 : vector<8x1xi1> to vector<8x1xi1>
    %406 = vector.broadcast %405 : vector<8x1xi1> to vector<8x32xi1>
    %407 = arith.select %406, %404, %285 : vector<8x32xi1>, vector<8x32xf32>
    %c0_119 = arith.constant 0 : index
    %c3 = arith.constant 3 : index
    %c0_120 = arith.constant 0 : index
    %c0_121 = arith.constant 0 : index
    %408 = vector.load %arg3[%c0_119, %c3, %c0_120, %c0_121] : memref<1x8x8x1xf32, #tpu.memory_space<vmem>>, vector<1x1x8x1xf32>
    %409 = vector.shape_cast %408 : vector<1x1x8x1xf32> to vector<1x8x1xf32>
    %410 = vector.shape_cast %409 : vector<1x8x1xf32> to vector<8x1xf32>
    %cst_122 = arith.constant 0.000000e+00 : f32
    %411 = vector.broadcast %cst_122 : f32 to vector<8x1xf32>
    %412 = arith.cmpf ogt, %410, %411 : vector<8x1xf32>
    %c0_123 = arith.constant 0 : index
    %c3_124 = arith.constant 3 : index
    %c0_125 = arith.constant 0 : index
    %c0_126 = arith.constant 0 : index
    %413 = vector.load %arg2[%c0_123, %c3_124, %c0_125, %c0_126] : memref<1x8x8x32xf32, #tpu.memory_space<vmem>>, vector<1x1x8x32xf32>
    %414 = vector.shape_cast %413 : vector<1x1x8x32xf32> to vector<1x8x32xf32>
    %415 = vector.shape_cast %414 : vector<1x8x32xf32> to vector<8x32xf32>
    %416 = vector.extract_strided_slice %33 {offsets = [0, 3, 0, 0], sizes = [1, 1, 8, 96], strides = [1, 1, 1, 1]} : vector<1x8x8x96xf32> to vector<1x1x8x96xf32>
    %417 = vector.shape_cast %416 : vector<1x1x8x96xf32> to vector<1x8x96xf32>
    %418 = vector.shape_cast %417 : vector<1x8x96xf32> to vector<8x96xf32>
    %419 = arith.truncf %329 : vector<8x32xf32> to vector<8x32xbf16>
    %cst_127 = arith.constant dense<0.000000e+00> : vector<8x96xf32>
    %420 = tpu.matmul %419, %10, %cst_127 {dimension_numbers = #tpu.dot_dimension_numbers<[1], [0], [0], [1], [0, 0, 1, 1], [], []>} : vector<8x32xbf16>, vector<32x96xbf16>, vector<8x96xf32> -> vector<8x96xf32>
    %421 = vector.broadcast %22 : vector<1x96xf32> to vector<8x96xf32>
    %422 = arith.addf %420, %421 : vector<8x96xf32>
    %423 = vector.extract_strided_slice %418 {offsets = [0, 0], sizes = [8, 32], strides = [1, 1]} : vector<8x96xf32> to vector<8x32xf32>
    %424 = vector.extract_strided_slice %422 {offsets = [0, 0], sizes = [8, 32], strides = [1, 1]} : vector<8x96xf32> to vector<8x32xf32>
    %425 = arith.addf %423, %424 : vector<8x32xf32>
    %426 = arith.negf %425 : vector<8x32xf32>
    %427 = math.exp %426 : vector<8x32xf32>
    %cst_128 = arith.constant 1.000000e+00 : f32
    %428 = vector.broadcast %cst_128 : f32 to vector<8x32xf32>
    %429 = arith.addf %428, %427 : vector<8x32xf32>
    %430 = arith.divf %428, %429 : vector<8x32xf32>
    %431 = vector.extract_strided_slice %418 {offsets = [0, 32], sizes = [8, 32], strides = [1, 1]} : vector<8x96xf32> to vector<8x32xf32>
    %432 = vector.extract_strided_slice %422 {offsets = [0, 32], sizes = [8, 32], strides = [1, 1]} : vector<8x96xf32> to vector<8x32xf32>
    %433 = arith.addf %431, %432 : vector<8x32xf32>
    %434 = arith.negf %433 : vector<8x32xf32>
    %435 = math.exp %434 : vector<8x32xf32>
    %cst_129 = arith.constant 1.000000e+00 : f32
    %436 = vector.broadcast %cst_129 : f32 to vector<8x32xf32>
    %437 = arith.addf %436, %435 : vector<8x32xf32>
    %438 = arith.divf %436, %437 : vector<8x32xf32>
    %439 = vector.extract_strided_slice %418 {offsets = [0, 64], sizes = [8, 32], strides = [1, 1]} : vector<8x96xf32> to vector<8x32xf32>
    %440 = vector.extract_strided_slice %422 {offsets = [0, 64], sizes = [8, 32], strides = [1, 1]} : vector<8x96xf32> to vector<8x32xf32>
    %441 = arith.mulf %430, %440 : vector<8x32xf32>
    %442 = arith.addf %439, %441 : vector<8x32xf32>
    %443 = math.tanh %442 : vector<8x32xf32>
    %cst_130 = arith.constant 1.000000e+00 : f32
    %444 = vector.broadcast %cst_130 : f32 to vector<8x32xf32>
    %445 = arith.subf %444, %438 : vector<8x32xf32>
    %446 = arith.mulf %445, %443 : vector<8x32xf32>
    %447 = arith.mulf %438, %329 : vector<8x32xf32>
    %448 = arith.addf %446, %447 : vector<8x32xf32>
    %449 = vector.shape_cast %412 : vector<8x1xi1> to vector<8x1xi1>
    %450 = vector.broadcast %449 : vector<8x1xi1> to vector<8x32xi1>
    %451 = arith.select %450, %448, %329 : vector<8x32xi1>, vector<8x32xf32>
    %452 = arith.truncf %451 : vector<8x32xf32> to vector<8x32xbf16>
    %cst_131 = arith.constant dense<0.000000e+00> : vector<8x96xf32>
    %453 = tpu.matmul %452, %6, %cst_131 {dimension_numbers = #tpu.dot_dimension_numbers<[1], [0], [0], [1], [0, 0, 1, 1], [], []>} : vector<8x32xbf16>, vector<32x96xbf16>, vector<8x96xf32> -> vector<8x96xf32>
    %454 = vector.broadcast %18 : vector<1x96xf32> to vector<8x96xf32>
    %455 = arith.addf %453, %454 : vector<8x96xf32>
    %456 = arith.truncf %366 : vector<8x32xf32> to vector<8x32xbf16>
    %cst_132 = arith.constant dense<0.000000e+00> : vector<8x96xf32>
    %457 = tpu.matmul %456, %12, %cst_132 {dimension_numbers = #tpu.dot_dimension_numbers<[1], [0], [0], [1], [0, 0, 1, 1], [], []>} : vector<8x32xbf16>, vector<32x96xbf16>, vector<8x96xf32> -> vector<8x96xf32>
    %458 = vector.broadcast %24 : vector<1x96xf32> to vector<8x96xf32>
    %459 = arith.addf %457, %458 : vector<8x96xf32>
    %460 = vector.extract_strided_slice %455 {offsets = [0, 0], sizes = [8, 32], strides = [1, 1]} : vector<8x96xf32> to vector<8x32xf32>
    %461 = vector.extract_strided_slice %459 {offsets = [0, 0], sizes = [8, 32], strides = [1, 1]} : vector<8x96xf32> to vector<8x32xf32>
    %462 = arith.addf %460, %461 : vector<8x32xf32>
    %463 = arith.negf %462 : vector<8x32xf32>
    %464 = math.exp %463 : vector<8x32xf32>
    %cst_133 = arith.constant 1.000000e+00 : f32
    %465 = vector.broadcast %cst_133 : f32 to vector<8x32xf32>
    %466 = arith.addf %465, %464 : vector<8x32xf32>
    %467 = arith.divf %465, %466 : vector<8x32xf32>
    %468 = vector.extract_strided_slice %455 {offsets = [0, 32], sizes = [8, 32], strides = [1, 1]} : vector<8x96xf32> to vector<8x32xf32>
    %469 = vector.extract_strided_slice %459 {offsets = [0, 32], sizes = [8, 32], strides = [1, 1]} : vector<8x96xf32> to vector<8x32xf32>
    %470 = arith.addf %468, %469 : vector<8x32xf32>
    %471 = arith.negf %470 : vector<8x32xf32>
    %472 = math.exp %471 : vector<8x32xf32>
    %cst_134 = arith.constant 1.000000e+00 : f32
    %473 = vector.broadcast %cst_134 : f32 to vector<8x32xf32>
    %474 = arith.addf %473, %472 : vector<8x32xf32>
    %475 = arith.divf %473, %474 : vector<8x32xf32>
    %476 = vector.extract_strided_slice %455 {offsets = [0, 64], sizes = [8, 32], strides = [1, 1]} : vector<8x96xf32> to vector<8x32xf32>
    %477 = vector.extract_strided_slice %459 {offsets = [0, 64], sizes = [8, 32], strides = [1, 1]} : vector<8x96xf32> to vector<8x32xf32>
    %478 = arith.mulf %467, %477 : vector<8x32xf32>
    %479 = arith.addf %476, %478 : vector<8x32xf32>
    %480 = math.tanh %479 : vector<8x32xf32>
    %cst_135 = arith.constant 1.000000e+00 : f32
    %481 = vector.broadcast %cst_135 : f32 to vector<8x32xf32>
    %482 = arith.subf %481, %475 : vector<8x32xf32>
    %483 = arith.mulf %482, %480 : vector<8x32xf32>
    %484 = arith.mulf %475, %366 : vector<8x32xf32>
    %485 = arith.addf %483, %484 : vector<8x32xf32>
    %486 = vector.shape_cast %412 : vector<8x1xi1> to vector<8x1xi1>
    %487 = vector.broadcast %486 : vector<8x1xi1> to vector<8x32xi1>
    %488 = arith.select %487, %485, %366 : vector<8x32xi1>, vector<8x32xf32>
    %489 = arith.truncf %488 : vector<8x32xf32> to vector<8x32xbf16>
    %cst_136 = arith.constant dense<0.000000e+00> : vector<8x96xf32>
    %490 = tpu.matmul %489, %8, %cst_136 {dimension_numbers = #tpu.dot_dimension_numbers<[1], [0], [0], [1], [0, 0, 1, 1], [], []>} : vector<8x32xbf16>, vector<32x96xbf16>, vector<8x96xf32> -> vector<8x96xf32>
    %491 = vector.broadcast %20 : vector<1x96xf32> to vector<8x96xf32>
    %492 = arith.addf %490, %491 : vector<8x96xf32>
    %493 = arith.truncf %403 : vector<8x32xf32> to vector<8x32xbf16>
    %cst_137 = arith.constant dense<0.000000e+00> : vector<8x96xf32>
    %494 = tpu.matmul %493, %14, %cst_137 {dimension_numbers = #tpu.dot_dimension_numbers<[1], [0], [0], [1], [0, 0, 1, 1], [], []>} : vector<8x32xbf16>, vector<32x96xbf16>, vector<8x96xf32> -> vector<8x96xf32>
    %495 = vector.broadcast %26 : vector<1x96xf32> to vector<8x96xf32>
    %496 = arith.addf %494, %495 : vector<8x96xf32>
    %497 = vector.extract_strided_slice %492 {offsets = [0, 0], sizes = [8, 32], strides = [1, 1]} : vector<8x96xf32> to vector<8x32xf32>
    %498 = vector.extract_strided_slice %496 {offsets = [0, 0], sizes = [8, 32], strides = [1, 1]} : vector<8x96xf32> to vector<8x32xf32>
    %499 = arith.addf %497, %498 : vector<8x32xf32>
    %500 = arith.negf %499 : vector<8x32xf32>
    %501 = math.exp %500 : vector<8x32xf32>
    %cst_138 = arith.constant 1.000000e+00 : f32
    %502 = vector.broadcast %cst_138 : f32 to vector<8x32xf32>
    %503 = arith.addf %502, %501 : vector<8x32xf32>
    %504 = arith.divf %502, %503 : vector<8x32xf32>
    %505 = vector.extract_strided_slice %492 {offsets = [0, 32], sizes = [8, 32], strides = [1, 1]} : vector<8x96xf32> to vector<8x32xf32>
    %506 = vector.extract_strided_slice %496 {offsets = [0, 32], sizes = [8, 32], strides = [1, 1]} : vector<8x96xf32> to vector<8x32xf32>
    %507 = arith.addf %505, %506 : vector<8x32xf32>
    %508 = arith.negf %507 : vector<8x32xf32>
    %509 = math.exp %508 : vector<8x32xf32>
    %cst_139 = arith.constant 1.000000e+00 : f32
    %510 = vector.broadcast %cst_139 : f32 to vector<8x32xf32>
    %511 = arith.addf %510, %509 : vector<8x32xf32>
    %512 = arith.divf %510, %511 : vector<8x32xf32>
    %513 = vector.extract_strided_slice %492 {offsets = [0, 64], sizes = [8, 32], strides = [1, 1]} : vector<8x96xf32> to vector<8x32xf32>
    %514 = vector.extract_strided_slice %496 {offsets = [0, 64], sizes = [8, 32], strides = [1, 1]} : vector<8x96xf32> to vector<8x32xf32>
    %515 = arith.mulf %504, %514 : vector<8x32xf32>
    %516 = arith.addf %513, %515 : vector<8x32xf32>
    %517 = math.tanh %516 : vector<8x32xf32>
    %cst_140 = arith.constant 1.000000e+00 : f32
    %518 = vector.broadcast %cst_140 : f32 to vector<8x32xf32>
    %519 = arith.subf %518, %512 : vector<8x32xf32>
    %520 = arith.mulf %519, %517 : vector<8x32xf32>
    %521 = arith.mulf %512, %403 : vector<8x32xf32>
    %522 = arith.addf %520, %521 : vector<8x32xf32>
    %523 = vector.shape_cast %412 : vector<8x1xi1> to vector<8x1xi1>
    %524 = vector.broadcast %523 : vector<8x1xi1> to vector<8x32xi1>
    %525 = arith.select %524, %522, %403 : vector<8x32xi1>, vector<8x32xf32>
    %526 = arith.addf %525, %415 : vector<8x32xf32>
    %527 = vector.shape_cast %412 : vector<8x1xi1> to vector<8x1xi1>
    %528 = vector.broadcast %527 : vector<8x1xi1> to vector<8x32xi1>
    %529 = arith.select %528, %526, %407 : vector<8x32xi1>, vector<8x32xf32>
    %c0_141 = arith.constant 0 : index
    %c4 = arith.constant 4 : index
    %c0_142 = arith.constant 0 : index
    %c0_143 = arith.constant 0 : index
    %530 = vector.load %arg3[%c0_141, %c4, %c0_142, %c0_143] : memref<1x8x8x1xf32, #tpu.memory_space<vmem>>, vector<1x1x8x1xf32>
    %531 = vector.shape_cast %530 : vector<1x1x8x1xf32> to vector<1x8x1xf32>
    %532 = vector.shape_cast %531 : vector<1x8x1xf32> to vector<8x1xf32>
    %cst_144 = arith.constant 0.000000e+00 : f32
    %533 = vector.broadcast %cst_144 : f32 to vector<8x1xf32>
    %534 = arith.cmpf ogt, %532, %533 : vector<8x1xf32>
    %c0_145 = arith.constant 0 : index
    %c4_146 = arith.constant 4 : index
    %c0_147 = arith.constant 0 : index
    %c0_148 = arith.constant 0 : index
    %535 = vector.load %arg2[%c0_145, %c4_146, %c0_147, %c0_148] : memref<1x8x8x32xf32, #tpu.memory_space<vmem>>, vector<1x1x8x32xf32>
    %536 = vector.shape_cast %535 : vector<1x1x8x32xf32> to vector<1x8x32xf32>
    %537 = vector.shape_cast %536 : vector<1x8x32xf32> to vector<8x32xf32>
    %538 = vector.extract_strided_slice %33 {offsets = [0, 4, 0, 0], sizes = [1, 1, 8, 96], strides = [1, 1, 1, 1]} : vector<1x8x8x96xf32> to vector<1x1x8x96xf32>
    %539 = vector.shape_cast %538 : vector<1x1x8x96xf32> to vector<1x8x96xf32>
    %540 = vector.shape_cast %539 : vector<1x8x96xf32> to vector<8x96xf32>
    %541 = arith.truncf %451 : vector<8x32xf32> to vector<8x32xbf16>
    %cst_149 = arith.constant dense<0.000000e+00> : vector<8x96xf32>
    %542 = tpu.matmul %541, %10, %cst_149 {dimension_numbers = #tpu.dot_dimension_numbers<[1], [0], [0], [1], [0, 0, 1, 1], [], []>} : vector<8x32xbf16>, vector<32x96xbf16>, vector<8x96xf32> -> vector<8x96xf32>
    %543 = vector.broadcast %22 : vector<1x96xf32> to vector<8x96xf32>
    %544 = arith.addf %542, %543 : vector<8x96xf32>
    %545 = vector.extract_strided_slice %540 {offsets = [0, 0], sizes = [8, 32], strides = [1, 1]} : vector<8x96xf32> to vector<8x32xf32>
    %546 = vector.extract_strided_slice %544 {offsets = [0, 0], sizes = [8, 32], strides = [1, 1]} : vector<8x96xf32> to vector<8x32xf32>
    %547 = arith.addf %545, %546 : vector<8x32xf32>
    %548 = arith.negf %547 : vector<8x32xf32>
    %549 = math.exp %548 : vector<8x32xf32>
    %cst_150 = arith.constant 1.000000e+00 : f32
    %550 = vector.broadcast %cst_150 : f32 to vector<8x32xf32>
    %551 = arith.addf %550, %549 : vector<8x32xf32>
    %552 = arith.divf %550, %551 : vector<8x32xf32>
    %553 = vector.extract_strided_slice %540 {offsets = [0, 32], sizes = [8, 32], strides = [1, 1]} : vector<8x96xf32> to vector<8x32xf32>
    %554 = vector.extract_strided_slice %544 {offsets = [0, 32], sizes = [8, 32], strides = [1, 1]} : vector<8x96xf32> to vector<8x32xf32>
    %555 = arith.addf %553, %554 : vector<8x32xf32>
    %556 = arith.negf %555 : vector<8x32xf32>
    %557 = math.exp %556 : vector<8x32xf32>
    %cst_151 = arith.constant 1.000000e+00 : f32
    %558 = vector.broadcast %cst_151 : f32 to vector<8x32xf32>
    %559 = arith.addf %558, %557 : vector<8x32xf32>
    %560 = arith.divf %558, %559 : vector<8x32xf32>
    %561 = vector.extract_strided_slice %540 {offsets = [0, 64], sizes = [8, 32], strides = [1, 1]} : vector<8x96xf32> to vector<8x32xf32>
    %562 = vector.extract_strided_slice %544 {offsets = [0, 64], sizes = [8, 32], strides = [1, 1]} : vector<8x96xf32> to vector<8x32xf32>
    %563 = arith.mulf %552, %562 : vector<8x32xf32>
    %564 = arith.addf %561, %563 : vector<8x32xf32>
    %565 = math.tanh %564 : vector<8x32xf32>
    %cst_152 = arith.constant 1.000000e+00 : f32
    %566 = vector.broadcast %cst_152 : f32 to vector<8x32xf32>
    %567 = arith.subf %566, %560 : vector<8x32xf32>
    %568 = arith.mulf %567, %565 : vector<8x32xf32>
    %569 = arith.mulf %560, %451 : vector<8x32xf32>
    %570 = arith.addf %568, %569 : vector<8x32xf32>
    %571 = vector.shape_cast %534 : vector<8x1xi1> to vector<8x1xi1>
    %572 = vector.broadcast %571 : vector<8x1xi1> to vector<8x32xi1>
    %573 = arith.select %572, %570, %451 : vector<8x32xi1>, vector<8x32xf32>
    %574 = arith.truncf %573 : vector<8x32xf32> to vector<8x32xbf16>
    %cst_153 = arith.constant dense<0.000000e+00> : vector<8x96xf32>
    %575 = tpu.matmul %574, %6, %cst_153 {dimension_numbers = #tpu.dot_dimension_numbers<[1], [0], [0], [1], [0, 0, 1, 1], [], []>} : vector<8x32xbf16>, vector<32x96xbf16>, vector<8x96xf32> -> vector<8x96xf32>
    %576 = vector.broadcast %18 : vector<1x96xf32> to vector<8x96xf32>
    %577 = arith.addf %575, %576 : vector<8x96xf32>
    %578 = arith.truncf %488 : vector<8x32xf32> to vector<8x32xbf16>
    %cst_154 = arith.constant dense<0.000000e+00> : vector<8x96xf32>
    %579 = tpu.matmul %578, %12, %cst_154 {dimension_numbers = #tpu.dot_dimension_numbers<[1], [0], [0], [1], [0, 0, 1, 1], [], []>} : vector<8x32xbf16>, vector<32x96xbf16>, vector<8x96xf32> -> vector<8x96xf32>
    %580 = vector.broadcast %24 : vector<1x96xf32> to vector<8x96xf32>
    %581 = arith.addf %579, %580 : vector<8x96xf32>
    %582 = vector.extract_strided_slice %577 {offsets = [0, 0], sizes = [8, 32], strides = [1, 1]} : vector<8x96xf32> to vector<8x32xf32>
    %583 = vector.extract_strided_slice %581 {offsets = [0, 0], sizes = [8, 32], strides = [1, 1]} : vector<8x96xf32> to vector<8x32xf32>
    %584 = arith.addf %582, %583 : vector<8x32xf32>
    %585 = arith.negf %584 : vector<8x32xf32>
    %586 = math.exp %585 : vector<8x32xf32>
    %cst_155 = arith.constant 1.000000e+00 : f32
    %587 = vector.broadcast %cst_155 : f32 to vector<8x32xf32>
    %588 = arith.addf %587, %586 : vector<8x32xf32>
    %589 = arith.divf %587, %588 : vector<8x32xf32>
    %590 = vector.extract_strided_slice %577 {offsets = [0, 32], sizes = [8, 32], strides = [1, 1]} : vector<8x96xf32> to vector<8x32xf32>
    %591 = vector.extract_strided_slice %581 {offsets = [0, 32], sizes = [8, 32], strides = [1, 1]} : vector<8x96xf32> to vector<8x32xf32>
    %592 = arith.addf %590, %591 : vector<8x32xf32>
    %593 = arith.negf %592 : vector<8x32xf32>
    %594 = math.exp %593 : vector<8x32xf32>
    %cst_156 = arith.constant 1.000000e+00 : f32
    %595 = vector.broadcast %cst_156 : f32 to vector<8x32xf32>
    %596 = arith.addf %595, %594 : vector<8x32xf32>
    %597 = arith.divf %595, %596 : vector<8x32xf32>
    %598 = vector.extract_strided_slice %577 {offsets = [0, 64], sizes = [8, 32], strides = [1, 1]} : vector<8x96xf32> to vector<8x32xf32>
    %599 = vector.extract_strided_slice %581 {offsets = [0, 64], sizes = [8, 32], strides = [1, 1]} : vector<8x96xf32> to vector<8x32xf32>
    %600 = arith.mulf %589, %599 : vector<8x32xf32>
    %601 = arith.addf %598, %600 : vector<8x32xf32>
    %602 = math.tanh %601 : vector<8x32xf32>
    %cst_157 = arith.constant 1.000000e+00 : f32
    %603 = vector.broadcast %cst_157 : f32 to vector<8x32xf32>
    %604 = arith.subf %603, %597 : vector<8x32xf32>
    %605 = arith.mulf %604, %602 : vector<8x32xf32>
    %606 = arith.mulf %597, %488 : vector<8x32xf32>
    %607 = arith.addf %605, %606 : vector<8x32xf32>
    %608 = vector.shape_cast %534 : vector<8x1xi1> to vector<8x1xi1>
    %609 = vector.broadcast %608 : vector<8x1xi1> to vector<8x32xi1>
    %610 = arith.select %609, %607, %488 : vector<8x32xi1>, vector<8x32xf32>
    %611 = arith.truncf %610 : vector<8x32xf32> to vector<8x32xbf16>
    %cst_158 = arith.constant dense<0.000000e+00> : vector<8x96xf32>
    %612 = tpu.matmul %611, %8, %cst_158 {dimension_numbers = #tpu.dot_dimension_numbers<[1], [0], [0], [1], [0, 0, 1, 1], [], []>} : vector<8x32xbf16>, vector<32x96xbf16>, vector<8x96xf32> -> vector<8x96xf32>
    %613 = vector.broadcast %20 : vector<1x96xf32> to vector<8x96xf32>
    %614 = arith.addf %612, %613 : vector<8x96xf32>
    %615 = arith.truncf %525 : vector<8x32xf32> to vector<8x32xbf16>
    %cst_159 = arith.constant dense<0.000000e+00> : vector<8x96xf32>
    %616 = tpu.matmul %615, %14, %cst_159 {dimension_numbers = #tpu.dot_dimension_numbers<[1], [0], [0], [1], [0, 0, 1, 1], [], []>} : vector<8x32xbf16>, vector<32x96xbf16>, vector<8x96xf32> -> vector<8x96xf32>
    %617 = vector.broadcast %26 : vector<1x96xf32> to vector<8x96xf32>
    %618 = arith.addf %616, %617 : vector<8x96xf32>
    %619 = vector.extract_strided_slice %614 {offsets = [0, 0], sizes = [8, 32], strides = [1, 1]} : vector<8x96xf32> to vector<8x32xf32>
    %620 = vector.extract_strided_slice %618 {offsets = [0, 0], sizes = [8, 32], strides = [1, 1]} : vector<8x96xf32> to vector<8x32xf32>
    %621 = arith.addf %619, %620 : vector<8x32xf32>
    %622 = arith.negf %621 : vector<8x32xf32>
    %623 = math.exp %622 : vector<8x32xf32>
    %cst_160 = arith.constant 1.000000e+00 : f32
    %624 = vector.broadcast %cst_160 : f32 to vector<8x32xf32>
    %625 = arith.addf %624, %623 : vector<8x32xf32>
    %626 = arith.divf %624, %625 : vector<8x32xf32>
    %627 = vector.extract_strided_slice %614 {offsets = [0, 32], sizes = [8, 32], strides = [1, 1]} : vector<8x96xf32> to vector<8x32xf32>
    %628 = vector.extract_strided_slice %618 {offsets = [0, 32], sizes = [8, 32], strides = [1, 1]} : vector<8x96xf32> to vector<8x32xf32>
    %629 = arith.addf %627, %628 : vector<8x32xf32>
    %630 = arith.negf %629 : vector<8x32xf32>
    %631 = math.exp %630 : vector<8x32xf32>
    %cst_161 = arith.constant 1.000000e+00 : f32
    %632 = vector.broadcast %cst_161 : f32 to vector<8x32xf32>
    %633 = arith.addf %632, %631 : vector<8x32xf32>
    %634 = arith.divf %632, %633 : vector<8x32xf32>
    %635 = vector.extract_strided_slice %614 {offsets = [0, 64], sizes = [8, 32], strides = [1, 1]} : vector<8x96xf32> to vector<8x32xf32>
    %636 = vector.extract_strided_slice %618 {offsets = [0, 64], sizes = [8, 32], strides = [1, 1]} : vector<8x96xf32> to vector<8x32xf32>
    %637 = arith.mulf %626, %636 : vector<8x32xf32>
    %638 = arith.addf %635, %637 : vector<8x32xf32>
    %639 = math.tanh %638 : vector<8x32xf32>
    %cst_162 = arith.constant 1.000000e+00 : f32
    %640 = vector.broadcast %cst_162 : f32 to vector<8x32xf32>
    %641 = arith.subf %640, %634 : vector<8x32xf32>
    %642 = arith.mulf %641, %639 : vector<8x32xf32>
    %643 = arith.mulf %634, %525 : vector<8x32xf32>
    %644 = arith.addf %642, %643 : vector<8x32xf32>
    %645 = vector.shape_cast %534 : vector<8x1xi1> to vector<8x1xi1>
    %646 = vector.broadcast %645 : vector<8x1xi1> to vector<8x32xi1>
    %647 = arith.select %646, %644, %525 : vector<8x32xi1>, vector<8x32xf32>
    %648 = arith.addf %647, %537 : vector<8x32xf32>
    %649 = vector.shape_cast %534 : vector<8x1xi1> to vector<8x1xi1>
    %650 = vector.broadcast %649 : vector<8x1xi1> to vector<8x32xi1>
    %651 = arith.select %650, %648, %529 : vector<8x32xi1>, vector<8x32xf32>
    %c0_163 = arith.constant 0 : index
    %c5 = arith.constant 5 : index
    %c0_164 = arith.constant 0 : index
    %c0_165 = arith.constant 0 : index
    %652 = vector.load %arg3[%c0_163, %c5, %c0_164, %c0_165] : memref<1x8x8x1xf32, #tpu.memory_space<vmem>>, vector<1x1x8x1xf32>
    %653 = vector.shape_cast %652 : vector<1x1x8x1xf32> to vector<1x8x1xf32>
    %654 = vector.shape_cast %653 : vector<1x8x1xf32> to vector<8x1xf32>
    %cst_166 = arith.constant 0.000000e+00 : f32
    %655 = vector.broadcast %cst_166 : f32 to vector<8x1xf32>
    %656 = arith.cmpf ogt, %654, %655 : vector<8x1xf32>
    %c0_167 = arith.constant 0 : index
    %c5_168 = arith.constant 5 : index
    %c0_169 = arith.constant 0 : index
    %c0_170 = arith.constant 0 : index
    %657 = vector.load %arg2[%c0_167, %c5_168, %c0_169, %c0_170] : memref<1x8x8x32xf32, #tpu.memory_space<vmem>>, vector<1x1x8x32xf32>
    %658 = vector.shape_cast %657 : vector<1x1x8x32xf32> to vector<1x8x32xf32>
    %659 = vector.shape_cast %658 : vector<1x8x32xf32> to vector<8x32xf32>
    %660 = vector.extract_strided_slice %33 {offsets = [0, 5, 0, 0], sizes = [1, 1, 8, 96], strides = [1, 1, 1, 1]} : vector<1x8x8x96xf32> to vector<1x1x8x96xf32>
    %661 = vector.shape_cast %660 : vector<1x1x8x96xf32> to vector<1x8x96xf32>
    %662 = vector.shape_cast %661 : vector<1x8x96xf32> to vector<8x96xf32>
    %663 = arith.truncf %573 : vector<8x32xf32> to vector<8x32xbf16>
    %cst_171 = arith.constant dense<0.000000e+00> : vector<8x96xf32>
    %664 = tpu.matmul %663, %10, %cst_171 {dimension_numbers = #tpu.dot_dimension_numbers<[1], [0], [0], [1], [0, 0, 1, 1], [], []>} : vector<8x32xbf16>, vector<32x96xbf16>, vector<8x96xf32> -> vector<8x96xf32>
    %665 = vector.broadcast %22 : vector<1x96xf32> to vector<8x96xf32>
    %666 = arith.addf %664, %665 : vector<8x96xf32>
    %667 = vector.extract_strided_slice %662 {offsets = [0, 0], sizes = [8, 32], strides = [1, 1]} : vector<8x96xf32> to vector<8x32xf32>
    %668 = vector.extract_strided_slice %666 {offsets = [0, 0], sizes = [8, 32], strides = [1, 1]} : vector<8x96xf32> to vector<8x32xf32>
    %669 = arith.addf %667, %668 : vector<8x32xf32>
    %670 = arith.negf %669 : vector<8x32xf32>
    %671 = math.exp %670 : vector<8x32xf32>
    %cst_172 = arith.constant 1.000000e+00 : f32
    %672 = vector.broadcast %cst_172 : f32 to vector<8x32xf32>
    %673 = arith.addf %672, %671 : vector<8x32xf32>
    %674 = arith.divf %672, %673 : vector<8x32xf32>
    %675 = vector.extract_strided_slice %662 {offsets = [0, 32], sizes = [8, 32], strides = [1, 1]} : vector<8x96xf32> to vector<8x32xf32>
    %676 = vector.extract_strided_slice %666 {offsets = [0, 32], sizes = [8, 32], strides = [1, 1]} : vector<8x96xf32> to vector<8x32xf32>
    %677 = arith.addf %675, %676 : vector<8x32xf32>
    %678 = arith.negf %677 : vector<8x32xf32>
    %679 = math.exp %678 : vector<8x32xf32>
    %cst_173 = arith.constant 1.000000e+00 : f32
    %680 = vector.broadcast %cst_173 : f32 to vector<8x32xf32>
    %681 = arith.addf %680, %679 : vector<8x32xf32>
    %682 = arith.divf %680, %681 : vector<8x32xf32>
    %683 = vector.extract_strided_slice %662 {offsets = [0, 64], sizes = [8, 32], strides = [1, 1]} : vector<8x96xf32> to vector<8x32xf32>
    %684 = vector.extract_strided_slice %666 {offsets = [0, 64], sizes = [8, 32], strides = [1, 1]} : vector<8x96xf32> to vector<8x32xf32>
    %685 = arith.mulf %674, %684 : vector<8x32xf32>
    %686 = arith.addf %683, %685 : vector<8x32xf32>
    %687 = math.tanh %686 : vector<8x32xf32>
    %cst_174 = arith.constant 1.000000e+00 : f32
    %688 = vector.broadcast %cst_174 : f32 to vector<8x32xf32>
    %689 = arith.subf %688, %682 : vector<8x32xf32>
    %690 = arith.mulf %689, %687 : vector<8x32xf32>
    %691 = arith.mulf %682, %573 : vector<8x32xf32>
    %692 = arith.addf %690, %691 : vector<8x32xf32>
    %693 = vector.shape_cast %656 : vector<8x1xi1> to vector<8x1xi1>
    %694 = vector.broadcast %693 : vector<8x1xi1> to vector<8x32xi1>
    %695 = arith.select %694, %692, %573 : vector<8x32xi1>, vector<8x32xf32>
    %696 = arith.truncf %695 : vector<8x32xf32> to vector<8x32xbf16>
    %cst_175 = arith.constant dense<0.000000e+00> : vector<8x96xf32>
    %697 = tpu.matmul %696, %6, %cst_175 {dimension_numbers = #tpu.dot_dimension_numbers<[1], [0], [0], [1], [0, 0, 1, 1], [], []>} : vector<8x32xbf16>, vector<32x96xbf16>, vector<8x96xf32> -> vector<8x96xf32>
    %698 = vector.broadcast %18 : vector<1x96xf32> to vector<8x96xf32>
    %699 = arith.addf %697, %698 : vector<8x96xf32>
    %700 = arith.truncf %610 : vector<8x32xf32> to vector<8x32xbf16>
    %cst_176 = arith.constant dense<0.000000e+00> : vector<8x96xf32>
    %701 = tpu.matmul %700, %12, %cst_176 {dimension_numbers = #tpu.dot_dimension_numbers<[1], [0], [0], [1], [0, 0, 1, 1], [], []>} : vector<8x32xbf16>, vector<32x96xbf16>, vector<8x96xf32> -> vector<8x96xf32>
    %702 = vector.broadcast %24 : vector<1x96xf32> to vector<8x96xf32>
    %703 = arith.addf %701, %702 : vector<8x96xf32>
    %704 = vector.extract_strided_slice %699 {offsets = [0, 0], sizes = [8, 32], strides = [1, 1]} : vector<8x96xf32> to vector<8x32xf32>
    %705 = vector.extract_strided_slice %703 {offsets = [0, 0], sizes = [8, 32], strides = [1, 1]} : vector<8x96xf32> to vector<8x32xf32>
    %706 = arith.addf %704, %705 : vector<8x32xf32>
    %707 = arith.negf %706 : vector<8x32xf32>
    %708 = math.exp %707 : vector<8x32xf32>
    %cst_177 = arith.constant 1.000000e+00 : f32
    %709 = vector.broadcast %cst_177 : f32 to vector<8x32xf32>
    %710 = arith.addf %709, %708 : vector<8x32xf32>
    %711 = arith.divf %709, %710 : vector<8x32xf32>
    %712 = vector.extract_strided_slice %699 {offsets = [0, 32], sizes = [8, 32], strides = [1, 1]} : vector<8x96xf32> to vector<8x32xf32>
    %713 = vector.extract_strided_slice %703 {offsets = [0, 32], sizes = [8, 32], strides = [1, 1]} : vector<8x96xf32> to vector<8x32xf32>
    %714 = arith.addf %712, %713 : vector<8x32xf32>
    %715 = arith.negf %714 : vector<8x32xf32>
    %716 = math.exp %715 : vector<8x32xf32>
    %cst_178 = arith.constant 1.000000e+00 : f32
    %717 = vector.broadcast %cst_178 : f32 to vector<8x32xf32>
    %718 = arith.addf %717, %716 : vector<8x32xf32>
    %719 = arith.divf %717, %718 : vector<8x32xf32>
    %720 = vector.extract_strided_slice %699 {offsets = [0, 64], sizes = [8, 32], strides = [1, 1]} : vector<8x96xf32> to vector<8x32xf32>
    %721 = vector.extract_strided_slice %703 {offsets = [0, 64], sizes = [8, 32], strides = [1, 1]} : vector<8x96xf32> to vector<8x32xf32>
    %722 = arith.mulf %711, %721 : vector<8x32xf32>
    %723 = arith.addf %720, %722 : vector<8x32xf32>
    %724 = math.tanh %723 : vector<8x32xf32>
    %cst_179 = arith.constant 1.000000e+00 : f32
    %725 = vector.broadcast %cst_179 : f32 to vector<8x32xf32>
    %726 = arith.subf %725, %719 : vector<8x32xf32>
    %727 = arith.mulf %726, %724 : vector<8x32xf32>
    %728 = arith.mulf %719, %610 : vector<8x32xf32>
    %729 = arith.addf %727, %728 : vector<8x32xf32>
    %730 = vector.shape_cast %656 : vector<8x1xi1> to vector<8x1xi1>
    %731 = vector.broadcast %730 : vector<8x1xi1> to vector<8x32xi1>
    %732 = arith.select %731, %729, %610 : vector<8x32xi1>, vector<8x32xf32>
    %733 = arith.truncf %732 : vector<8x32xf32> to vector<8x32xbf16>
    %cst_180 = arith.constant dense<0.000000e+00> : vector<8x96xf32>
    %734 = tpu.matmul %733, %8, %cst_180 {dimension_numbers = #tpu.dot_dimension_numbers<[1], [0], [0], [1], [0, 0, 1, 1], [], []>} : vector<8x32xbf16>, vector<32x96xbf16>, vector<8x96xf32> -> vector<8x96xf32>
    %735 = vector.broadcast %20 : vector<1x96xf32> to vector<8x96xf32>
    %736 = arith.addf %734, %735 : vector<8x96xf32>
    %737 = arith.truncf %647 : vector<8x32xf32> to vector<8x32xbf16>
    %cst_181 = arith.constant dense<0.000000e+00> : vector<8x96xf32>
    %738 = tpu.matmul %737, %14, %cst_181 {dimension_numbers = #tpu.dot_dimension_numbers<[1], [0], [0], [1], [0, 0, 1, 1], [], []>} : vector<8x32xbf16>, vector<32x96xbf16>, vector<8x96xf32> -> vector<8x96xf32>
    %739 = vector.broadcast %26 : vector<1x96xf32> to vector<8x96xf32>
    %740 = arith.addf %738, %739 : vector<8x96xf32>
    %741 = vector.extract_strided_slice %736 {offsets = [0, 0], sizes = [8, 32], strides = [1, 1]} : vector<8x96xf32> to vector<8x32xf32>
    %742 = vector.extract_strided_slice %740 {offsets = [0, 0], sizes = [8, 32], strides = [1, 1]} : vector<8x96xf32> to vector<8x32xf32>
    %743 = arith.addf %741, %742 : vector<8x32xf32>
    %744 = arith.negf %743 : vector<8x32xf32>
    %745 = math.exp %744 : vector<8x32xf32>
    %cst_182 = arith.constant 1.000000e+00 : f32
    %746 = vector.broadcast %cst_182 : f32 to vector<8x32xf32>
    %747 = arith.addf %746, %745 : vector<8x32xf32>
    %748 = arith.divf %746, %747 : vector<8x32xf32>
    %749 = vector.extract_strided_slice %736 {offsets = [0, 32], sizes = [8, 32], strides = [1, 1]} : vector<8x96xf32> to vector<8x32xf32>
    %750 = vector.extract_strided_slice %740 {offsets = [0, 32], sizes = [8, 32], strides = [1, 1]} : vector<8x96xf32> to vector<8x32xf32>
    %751 = arith.addf %749, %750 : vector<8x32xf32>
    %752 = arith.negf %751 : vector<8x32xf32>
    %753 = math.exp %752 : vector<8x32xf32>
    %cst_183 = arith.constant 1.000000e+00 : f32
    %754 = vector.broadcast %cst_183 : f32 to vector<8x32xf32>
    %755 = arith.addf %754, %753 : vector<8x32xf32>
    %756 = arith.divf %754, %755 : vector<8x32xf32>
    %757 = vector.extract_strided_slice %736 {offsets = [0, 64], sizes = [8, 32], strides = [1, 1]} : vector<8x96xf32> to vector<8x32xf32>
    %758 = vector.extract_strided_slice %740 {offsets = [0, 64], sizes = [8, 32], strides = [1, 1]} : vector<8x96xf32> to vector<8x32xf32>
    %759 = arith.mulf %748, %758 : vector<8x32xf32>
    %760 = arith.addf %757, %759 : vector<8x32xf32>
    %761 = math.tanh %760 : vector<8x32xf32>
    %cst_184 = arith.constant 1.000000e+00 : f32
    %762 = vector.broadcast %cst_184 : f32 to vector<8x32xf32>
    %763 = arith.subf %762, %756 : vector<8x32xf32>
    %764 = arith.mulf %763, %761 : vector<8x32xf32>
    %765 = arith.mulf %756, %647 : vector<8x32xf32>
    %766 = arith.addf %764, %765 : vector<8x32xf32>
    %767 = vector.shape_cast %656 : vector<8x1xi1> to vector<8x1xi1>
    %768 = vector.broadcast %767 : vector<8x1xi1> to vector<8x32xi1>
    %769 = arith.select %768, %766, %647 : vector<8x32xi1>, vector<8x32xf32>
    %770 = arith.addf %769, %659 : vector<8x32xf32>
    %771 = vector.shape_cast %656 : vector<8x1xi1> to vector<8x1xi1>
    %772 = vector.broadcast %771 : vector<8x1xi1> to vector<8x32xi1>
    %773 = arith.select %772, %770, %651 : vector<8x32xi1>, vector<8x32xf32>
    %c0_185 = arith.constant 0 : index
    %c6 = arith.constant 6 : index
    %c0_186 = arith.constant 0 : index
    %c0_187 = arith.constant 0 : index
    %774 = vector.load %arg3[%c0_185, %c6, %c0_186, %c0_187] : memref<1x8x8x1xf32, #tpu.memory_space<vmem>>, vector<1x1x8x1xf32>
    %775 = vector.shape_cast %774 : vector<1x1x8x1xf32> to vector<1x8x1xf32>
    %776 = vector.shape_cast %775 : vector<1x8x1xf32> to vector<8x1xf32>
    %cst_188 = arith.constant 0.000000e+00 : f32
    %777 = vector.broadcast %cst_188 : f32 to vector<8x1xf32>
    %778 = arith.cmpf ogt, %776, %777 : vector<8x1xf32>
    %c0_189 = arith.constant 0 : index
    %c6_190 = arith.constant 6 : index
    %c0_191 = arith.constant 0 : index
    %c0_192 = arith.constant 0 : index
    %779 = vector.load %arg2[%c0_189, %c6_190, %c0_191, %c0_192] : memref<1x8x8x32xf32, #tpu.memory_space<vmem>>, vector<1x1x8x32xf32>
    %780 = vector.shape_cast %779 : vector<1x1x8x32xf32> to vector<1x8x32xf32>
    %781 = vector.shape_cast %780 : vector<1x8x32xf32> to vector<8x32xf32>
    %782 = vector.extract_strided_slice %33 {offsets = [0, 6, 0, 0], sizes = [1, 1, 8, 96], strides = [1, 1, 1, 1]} : vector<1x8x8x96xf32> to vector<1x1x8x96xf32>
    %783 = vector.shape_cast %782 : vector<1x1x8x96xf32> to vector<1x8x96xf32>
    %784 = vector.shape_cast %783 : vector<1x8x96xf32> to vector<8x96xf32>
    %785 = arith.truncf %695 : vector<8x32xf32> to vector<8x32xbf16>
    %cst_193 = arith.constant dense<0.000000e+00> : vector<8x96xf32>
    %786 = tpu.matmul %785, %10, %cst_193 {dimension_numbers = #tpu.dot_dimension_numbers<[1], [0], [0], [1], [0, 0, 1, 1], [], []>} : vector<8x32xbf16>, vector<32x96xbf16>, vector<8x96xf32> -> vector<8x96xf32>
    %787 = vector.broadcast %22 : vector<1x96xf32> to vector<8x96xf32>
    %788 = arith.addf %786, %787 : vector<8x96xf32>
    %789 = vector.extract_strided_slice %784 {offsets = [0, 0], sizes = [8, 32], strides = [1, 1]} : vector<8x96xf32> to vector<8x32xf32>
    %790 = vector.extract_strided_slice %788 {offsets = [0, 0], sizes = [8, 32], strides = [1, 1]} : vector<8x96xf32> to vector<8x32xf32>
    %791 = arith.addf %789, %790 : vector<8x32xf32>
    %792 = arith.negf %791 : vector<8x32xf32>
    %793 = math.exp %792 : vector<8x32xf32>
    %cst_194 = arith.constant 1.000000e+00 : f32
    %794 = vector.broadcast %cst_194 : f32 to vector<8x32xf32>
    %795 = arith.addf %794, %793 : vector<8x32xf32>
    %796 = arith.divf %794, %795 : vector<8x32xf32>
    %797 = vector.extract_strided_slice %784 {offsets = [0, 32], sizes = [8, 32], strides = [1, 1]} : vector<8x96xf32> to vector<8x32xf32>
    %798 = vector.extract_strided_slice %788 {offsets = [0, 32], sizes = [8, 32], strides = [1, 1]} : vector<8x96xf32> to vector<8x32xf32>
    %799 = arith.addf %797, %798 : vector<8x32xf32>
    %800 = arith.negf %799 : vector<8x32xf32>
    %801 = math.exp %800 : vector<8x32xf32>
    %cst_195 = arith.constant 1.000000e+00 : f32
    %802 = vector.broadcast %cst_195 : f32 to vector<8x32xf32>
    %803 = arith.addf %802, %801 : vector<8x32xf32>
    %804 = arith.divf %802, %803 : vector<8x32xf32>
    %805 = vector.extract_strided_slice %784 {offsets = [0, 64], sizes = [8, 32], strides = [1, 1]} : vector<8x96xf32> to vector<8x32xf32>
    %806 = vector.extract_strided_slice %788 {offsets = [0, 64], sizes = [8, 32], strides = [1, 1]} : vector<8x96xf32> to vector<8x32xf32>
    %807 = arith.mulf %796, %806 : vector<8x32xf32>
    %808 = arith.addf %805, %807 : vector<8x32xf32>
    %809 = math.tanh %808 : vector<8x32xf32>
    %cst_196 = arith.constant 1.000000e+00 : f32
    %810 = vector.broadcast %cst_196 : f32 to vector<8x32xf32>
    %811 = arith.subf %810, %804 : vector<8x32xf32>
    %812 = arith.mulf %811, %809 : vector<8x32xf32>
    %813 = arith.mulf %804, %695 : vector<8x32xf32>
    %814 = arith.addf %812, %813 : vector<8x32xf32>
    %815 = vector.shape_cast %778 : vector<8x1xi1> to vector<8x1xi1>
    %816 = vector.broadcast %815 : vector<8x1xi1> to vector<8x32xi1>
    %817 = arith.select %816, %814, %695 : vector<8x32xi1>, vector<8x32xf32>
    %818 = arith.truncf %817 : vector<8x32xf32> to vector<8x32xbf16>
    %cst_197 = arith.constant dense<0.000000e+00> : vector<8x96xf32>
    %819 = tpu.matmul %818, %6, %cst_197 {dimension_numbers = #tpu.dot_dimension_numbers<[1], [0], [0], [1], [0, 0, 1, 1], [], []>} : vector<8x32xbf16>, vector<32x96xbf16>, vector<8x96xf32> -> vector<8x96xf32>
    %820 = vector.broadcast %18 : vector<1x96xf32> to vector<8x96xf32>
    %821 = arith.addf %819, %820 : vector<8x96xf32>
    %822 = arith.truncf %732 : vector<8x32xf32> to vector<8x32xbf16>
    %cst_198 = arith.constant dense<0.000000e+00> : vector<8x96xf32>
    %823 = tpu.matmul %822, %12, %cst_198 {dimension_numbers = #tpu.dot_dimension_numbers<[1], [0], [0], [1], [0, 0, 1, 1], [], []>} : vector<8x32xbf16>, vector<32x96xbf16>, vector<8x96xf32> -> vector<8x96xf32>
    %824 = vector.broadcast %24 : vector<1x96xf32> to vector<8x96xf32>
    %825 = arith.addf %823, %824 : vector<8x96xf32>
    %826 = vector.extract_strided_slice %821 {offsets = [0, 0], sizes = [8, 32], strides = [1, 1]} : vector<8x96xf32> to vector<8x32xf32>
    %827 = vector.extract_strided_slice %825 {offsets = [0, 0], sizes = [8, 32], strides = [1, 1]} : vector<8x96xf32> to vector<8x32xf32>
    %828 = arith.addf %826, %827 : vector<8x32xf32>
    %829 = arith.negf %828 : vector<8x32xf32>
    %830 = math.exp %829 : vector<8x32xf32>
    %cst_199 = arith.constant 1.000000e+00 : f32
    %831 = vector.broadcast %cst_199 : f32 to vector<8x32xf32>
    %832 = arith.addf %831, %830 : vector<8x32xf32>
    %833 = arith.divf %831, %832 : vector<8x32xf32>
    %834 = vector.extract_strided_slice %821 {offsets = [0, 32], sizes = [8, 32], strides = [1, 1]} : vector<8x96xf32> to vector<8x32xf32>
    %835 = vector.extract_strided_slice %825 {offsets = [0, 32], sizes = [8, 32], strides = [1, 1]} : vector<8x96xf32> to vector<8x32xf32>
    %836 = arith.addf %834, %835 : vector<8x32xf32>
    %837 = arith.negf %836 : vector<8x32xf32>
    %838 = math.exp %837 : vector<8x32xf32>
    %cst_200 = arith.constant 1.000000e+00 : f32
    %839 = vector.broadcast %cst_200 : f32 to vector<8x32xf32>
    %840 = arith.addf %839, %838 : vector<8x32xf32>
    %841 = arith.divf %839, %840 : vector<8x32xf32>
    %842 = vector.extract_strided_slice %821 {offsets = [0, 64], sizes = [8, 32], strides = [1, 1]} : vector<8x96xf32> to vector<8x32xf32>
    %843 = vector.extract_strided_slice %825 {offsets = [0, 64], sizes = [8, 32], strides = [1, 1]} : vector<8x96xf32> to vector<8x32xf32>
    %844 = arith.mulf %833, %843 : vector<8x32xf32>
    %845 = arith.addf %842, %844 : vector<8x32xf32>
    %846 = math.tanh %845 : vector<8x32xf32>
    %cst_201 = arith.constant 1.000000e+00 : f32
    %847 = vector.broadcast %cst_201 : f32 to vector<8x32xf32>
    %848 = arith.subf %847, %841 : vector<8x32xf32>
    %849 = arith.mulf %848, %846 : vector<8x32xf32>
    %850 = arith.mulf %841, %732 : vector<8x32xf32>
    %851 = arith.addf %849, %850 : vector<8x32xf32>
    %852 = vector.shape_cast %778 : vector<8x1xi1> to vector<8x1xi1>
    %853 = vector.broadcast %852 : vector<8x1xi1> to vector<8x32xi1>
    %854 = arith.select %853, %851, %732 : vector<8x32xi1>, vector<8x32xf32>
    %855 = arith.truncf %854 : vector<8x32xf32> to vector<8x32xbf16>
    %cst_202 = arith.constant dense<0.000000e+00> : vector<8x96xf32>
    %856 = tpu.matmul %855, %8, %cst_202 {dimension_numbers = #tpu.dot_dimension_numbers<[1], [0], [0], [1], [0, 0, 1, 1], [], []>} : vector<8x32xbf16>, vector<32x96xbf16>, vector<8x96xf32> -> vector<8x96xf32>
    %857 = vector.broadcast %20 : vector<1x96xf32> to vector<8x96xf32>
    %858 = arith.addf %856, %857 : vector<8x96xf32>
    %859 = arith.truncf %769 : vector<8x32xf32> to vector<8x32xbf16>
    %cst_203 = arith.constant dense<0.000000e+00> : vector<8x96xf32>
    %860 = tpu.matmul %859, %14, %cst_203 {dimension_numbers = #tpu.dot_dimension_numbers<[1], [0], [0], [1], [0, 0, 1, 1], [], []>} : vector<8x32xbf16>, vector<32x96xbf16>, vector<8x96xf32> -> vector<8x96xf32>
    %861 = vector.broadcast %26 : vector<1x96xf32> to vector<8x96xf32>
    %862 = arith.addf %860, %861 : vector<8x96xf32>
    %863 = vector.extract_strided_slice %858 {offsets = [0, 0], sizes = [8, 32], strides = [1, 1]} : vector<8x96xf32> to vector<8x32xf32>
    %864 = vector.extract_strided_slice %862 {offsets = [0, 0], sizes = [8, 32], strides = [1, 1]} : vector<8x96xf32> to vector<8x32xf32>
    %865 = arith.addf %863, %864 : vector<8x32xf32>
    %866 = arith.negf %865 : vector<8x32xf32>
    %867 = math.exp %866 : vector<8x32xf32>
    %cst_204 = arith.constant 1.000000e+00 : f32
    %868 = vector.broadcast %cst_204 : f32 to vector<8x32xf32>
    %869 = arith.addf %868, %867 : vector<8x32xf32>
    %870 = arith.divf %868, %869 : vector<8x32xf32>
    %871 = vector.extract_strided_slice %858 {offsets = [0, 32], sizes = [8, 32], strides = [1, 1]} : vector<8x96xf32> to vector<8x32xf32>
    %872 = vector.extract_strided_slice %862 {offsets = [0, 32], sizes = [8, 32], strides = [1, 1]} : vector<8x96xf32> to vector<8x32xf32>
    %873 = arith.addf %871, %872 : vector<8x32xf32>
    %874 = arith.negf %873 : vector<8x32xf32>
    %875 = math.exp %874 : vector<8x32xf32>
    %cst_205 = arith.constant 1.000000e+00 : f32
    %876 = vector.broadcast %cst_205 : f32 to vector<8x32xf32>
    %877 = arith.addf %876, %875 : vector<8x32xf32>
    %878 = arith.divf %876, %877 : vector<8x32xf32>
    %879 = vector.extract_strided_slice %858 {offsets = [0, 64], sizes = [8, 32], strides = [1, 1]} : vector<8x96xf32> to vector<8x32xf32>
    %880 = vector.extract_strided_slice %862 {offsets = [0, 64], sizes = [8, 32], strides = [1, 1]} : vector<8x96xf32> to vector<8x32xf32>
    %881 = arith.mulf %870, %880 : vector<8x32xf32>
    %882 = arith.addf %879, %881 : vector<8x32xf32>
    %883 = math.tanh %882 : vector<8x32xf32>
    %cst_206 = arith.constant 1.000000e+00 : f32
    %884 = vector.broadcast %cst_206 : f32 to vector<8x32xf32>
    %885 = arith.subf %884, %878 : vector<8x32xf32>
    %886 = arith.mulf %885, %883 : vector<8x32xf32>
    %887 = arith.mulf %878, %769 : vector<8x32xf32>
    %888 = arith.addf %886, %887 : vector<8x32xf32>
    %889 = vector.shape_cast %778 : vector<8x1xi1> to vector<8x1xi1>
    %890 = vector.broadcast %889 : vector<8x1xi1> to vector<8x32xi1>
    %891 = arith.select %890, %888, %769 : vector<8x32xi1>, vector<8x32xf32>
    %892 = arith.addf %891, %781 : vector<8x32xf32>
    %893 = vector.shape_cast %778 : vector<8x1xi1> to vector<8x1xi1>
    %894 = vector.broadcast %893 : vector<8x1xi1> to vector<8x32xi1>
    %895 = arith.select %894, %892, %773 : vector<8x32xi1>, vector<8x32xf32>
    %c0_207 = arith.constant 0 : index
    %c7 = arith.constant 7 : index
    %c0_208 = arith.constant 0 : index
    %c0_209 = arith.constant 0 : index
    %896 = vector.load %arg3[%c0_207, %c7, %c0_208, %c0_209] : memref<1x8x8x1xf32, #tpu.memory_space<vmem>>, vector<1x1x8x1xf32>
    %897 = vector.shape_cast %896 : vector<1x1x8x1xf32> to vector<1x8x1xf32>
    %898 = vector.shape_cast %897 : vector<1x8x1xf32> to vector<8x1xf32>
    %cst_210 = arith.constant 0.000000e+00 : f32
    %899 = vector.broadcast %cst_210 : f32 to vector<8x1xf32>
    %900 = arith.cmpf ogt, %898, %899 : vector<8x1xf32>
    %c0_211 = arith.constant 0 : index
    %c7_212 = arith.constant 7 : index
    %c0_213 = arith.constant 0 : index
    %c0_214 = arith.constant 0 : index
    %901 = vector.load %arg2[%c0_211, %c7_212, %c0_213, %c0_214] : memref<1x8x8x32xf32, #tpu.memory_space<vmem>>, vector<1x1x8x32xf32>
    %902 = vector.shape_cast %901 : vector<1x1x8x32xf32> to vector<1x8x32xf32>
    %903 = vector.shape_cast %902 : vector<1x8x32xf32> to vector<8x32xf32>
    %904 = vector.extract_strided_slice %33 {offsets = [0, 7, 0, 0], sizes = [1, 1, 8, 96], strides = [1, 1, 1, 1]} : vector<1x8x8x96xf32> to vector<1x1x8x96xf32>
    %905 = vector.shape_cast %904 : vector<1x1x8x96xf32> to vector<1x8x96xf32>
    %906 = vector.shape_cast %905 : vector<1x8x96xf32> to vector<8x96xf32>
    %907 = arith.truncf %817 : vector<8x32xf32> to vector<8x32xbf16>
    %cst_215 = arith.constant dense<0.000000e+00> : vector<8x96xf32>
    %908 = tpu.matmul %907, %10, %cst_215 {dimension_numbers = #tpu.dot_dimension_numbers<[1], [0], [0], [1], [0, 0, 1, 1], [], []>} : vector<8x32xbf16>, vector<32x96xbf16>, vector<8x96xf32> -> vector<8x96xf32>
    %909 = vector.broadcast %22 : vector<1x96xf32> to vector<8x96xf32>
    %910 = arith.addf %908, %909 : vector<8x96xf32>
    %911 = vector.extract_strided_slice %906 {offsets = [0, 0], sizes = [8, 32], strides = [1, 1]} : vector<8x96xf32> to vector<8x32xf32>
    %912 = vector.extract_strided_slice %910 {offsets = [0, 0], sizes = [8, 32], strides = [1, 1]} : vector<8x96xf32> to vector<8x32xf32>
    %913 = arith.addf %911, %912 : vector<8x32xf32>
    %914 = arith.negf %913 : vector<8x32xf32>
    %915 = math.exp %914 : vector<8x32xf32>
    %cst_216 = arith.constant 1.000000e+00 : f32
    %916 = vector.broadcast %cst_216 : f32 to vector<8x32xf32>
    %917 = arith.addf %916, %915 : vector<8x32xf32>
    %918 = arith.divf %916, %917 : vector<8x32xf32>
    %919 = vector.extract_strided_slice %906 {offsets = [0, 32], sizes = [8, 32], strides = [1, 1]} : vector<8x96xf32> to vector<8x32xf32>
    %920 = vector.extract_strided_slice %910 {offsets = [0, 32], sizes = [8, 32], strides = [1, 1]} : vector<8x96xf32> to vector<8x32xf32>
    %921 = arith.addf %919, %920 : vector<8x32xf32>
    %922 = arith.negf %921 : vector<8x32xf32>
    %923 = math.exp %922 : vector<8x32xf32>
    %cst_217 = arith.constant 1.000000e+00 : f32
    %924 = vector.broadcast %cst_217 : f32 to vector<8x32xf32>
    %925 = arith.addf %924, %923 : vector<8x32xf32>
    %926 = arith.divf %924, %925 : vector<8x32xf32>
    %927 = vector.extract_strided_slice %906 {offsets = [0, 64], sizes = [8, 32], strides = [1, 1]} : vector<8x96xf32> to vector<8x32xf32>
    %928 = vector.extract_strided_slice %910 {offsets = [0, 64], sizes = [8, 32], strides = [1, 1]} : vector<8x96xf32> to vector<8x32xf32>
    %929 = arith.mulf %918, %928 : vector<8x32xf32>
    %930 = arith.addf %927, %929 : vector<8x32xf32>
    %931 = math.tanh %930 : vector<8x32xf32>
    %cst_218 = arith.constant 1.000000e+00 : f32
    %932 = vector.broadcast %cst_218 : f32 to vector<8x32xf32>
    %933 = arith.subf %932, %926 : vector<8x32xf32>
    %934 = arith.mulf %933, %931 : vector<8x32xf32>
    %935 = arith.mulf %926, %817 : vector<8x32xf32>
    %936 = arith.addf %934, %935 : vector<8x32xf32>
    %937 = vector.shape_cast %900 : vector<8x1xi1> to vector<8x1xi1>
    %938 = vector.broadcast %937 : vector<8x1xi1> to vector<8x32xi1>
    %939 = arith.select %938, %936, %817 : vector<8x32xi1>, vector<8x32xf32>
    %940 = arith.truncf %939 : vector<8x32xf32> to vector<8x32xbf16>
    %cst_219 = arith.constant dense<0.000000e+00> : vector<8x96xf32>
    %941 = tpu.matmul %940, %6, %cst_219 {dimension_numbers = #tpu.dot_dimension_numbers<[1], [0], [0], [1], [0, 0, 1, 1], [], []>} : vector<8x32xbf16>, vector<32x96xbf16>, vector<8x96xf32> -> vector<8x96xf32>
    %942 = vector.broadcast %18 : vector<1x96xf32> to vector<8x96xf32>
    %943 = arith.addf %941, %942 : vector<8x96xf32>
    %944 = arith.truncf %854 : vector<8x32xf32> to vector<8x32xbf16>
    %cst_220 = arith.constant dense<0.000000e+00> : vector<8x96xf32>
    %945 = tpu.matmul %944, %12, %cst_220 {dimension_numbers = #tpu.dot_dimension_numbers<[1], [0], [0], [1], [0, 0, 1, 1], [], []>} : vector<8x32xbf16>, vector<32x96xbf16>, vector<8x96xf32> -> vector<8x96xf32>
    %946 = vector.broadcast %24 : vector<1x96xf32> to vector<8x96xf32>
    %947 = arith.addf %945, %946 : vector<8x96xf32>
    %948 = vector.extract_strided_slice %943 {offsets = [0, 0], sizes = [8, 32], strides = [1, 1]} : vector<8x96xf32> to vector<8x32xf32>
    %949 = vector.extract_strided_slice %947 {offsets = [0, 0], sizes = [8, 32], strides = [1, 1]} : vector<8x96xf32> to vector<8x32xf32>
    %950 = arith.addf %948, %949 : vector<8x32xf32>
    %951 = arith.negf %950 : vector<8x32xf32>
    %952 = math.exp %951 : vector<8x32xf32>
    %cst_221 = arith.constant 1.000000e+00 : f32
    %953 = vector.broadcast %cst_221 : f32 to vector<8x32xf32>
    %954 = arith.addf %953, %952 : vector<8x32xf32>
    %955 = arith.divf %953, %954 : vector<8x32xf32>
    %956 = vector.extract_strided_slice %943 {offsets = [0, 32], sizes = [8, 32], strides = [1, 1]} : vector<8x96xf32> to vector<8x32xf32>
    %957 = vector.extract_strided_slice %947 {offsets = [0, 32], sizes = [8, 32], strides = [1, 1]} : vector<8x96xf32> to vector<8x32xf32>
    %958 = arith.addf %956, %957 : vector<8x32xf32>
    %959 = arith.negf %958 : vector<8x32xf32>
    %960 = math.exp %959 : vector<8x32xf32>
    %cst_222 = arith.constant 1.000000e+00 : f32
    %961 = vector.broadcast %cst_222 : f32 to vector<8x32xf32>
    %962 = arith.addf %961, %960 : vector<8x32xf32>
    %963 = arith.divf %961, %962 : vector<8x32xf32>
    %964 = vector.extract_strided_slice %943 {offsets = [0, 64], sizes = [8, 32], strides = [1, 1]} : vector<8x96xf32> to vector<8x32xf32>
    %965 = vector.extract_strided_slice %947 {offsets = [0, 64], sizes = [8, 32], strides = [1, 1]} : vector<8x96xf32> to vector<8x32xf32>
    %966 = arith.mulf %955, %965 : vector<8x32xf32>
    %967 = arith.addf %964, %966 : vector<8x32xf32>
    %968 = math.tanh %967 : vector<8x32xf32>
    %cst_223 = arith.constant 1.000000e+00 : f32
    %969 = vector.broadcast %cst_223 : f32 to vector<8x32xf32>
    %970 = arith.subf %969, %963 : vector<8x32xf32>
    %971 = arith.mulf %970, %968 : vector<8x32xf32>
    %972 = arith.mulf %963, %854 : vector<8x32xf32>
    %973 = arith.addf %971, %972 : vector<8x32xf32>
    %974 = vector.shape_cast %900 : vector<8x1xi1> to vector<8x1xi1>
    %975 = vector.broadcast %974 : vector<8x1xi1> to vector<8x32xi1>
    %976 = arith.select %975, %973, %854 : vector<8x32xi1>, vector<8x32xf32>
    %977 = arith.truncf %976 : vector<8x32xf32> to vector<8x32xbf16>
    %cst_224 = arith.constant dense<0.000000e+00> : vector<8x96xf32>
    %978 = tpu.matmul %977, %8, %cst_224 {dimension_numbers = #tpu.dot_dimension_numbers<[1], [0], [0], [1], [0, 0, 1, 1], [], []>} : vector<8x32xbf16>, vector<32x96xbf16>, vector<8x96xf32> -> vector<8x96xf32>
    %979 = vector.broadcast %20 : vector<1x96xf32> to vector<8x96xf32>
    %980 = arith.addf %978, %979 : vector<8x96xf32>
    %981 = arith.truncf %891 : vector<8x32xf32> to vector<8x32xbf16>
    %cst_225 = arith.constant dense<0.000000e+00> : vector<8x96xf32>
    %982 = tpu.matmul %981, %14, %cst_225 {dimension_numbers = #tpu.dot_dimension_numbers<[1], [0], [0], [1], [0, 0, 1, 1], [], []>} : vector<8x32xbf16>, vector<32x96xbf16>, vector<8x96xf32> -> vector<8x96xf32>
    %983 = vector.broadcast %26 : vector<1x96xf32> to vector<8x96xf32>
    %984 = arith.addf %982, %983 : vector<8x96xf32>
    %985 = vector.extract_strided_slice %980 {offsets = [0, 0], sizes = [8, 32], strides = [1, 1]} : vector<8x96xf32> to vector<8x32xf32>
    %986 = vector.extract_strided_slice %984 {offsets = [0, 0], sizes = [8, 32], strides = [1, 1]} : vector<8x96xf32> to vector<8x32xf32>
    %987 = arith.addf %985, %986 : vector<8x32xf32>
    %988 = arith.negf %987 : vector<8x32xf32>
    %989 = math.exp %988 : vector<8x32xf32>
    %cst_226 = arith.constant 1.000000e+00 : f32
    %990 = vector.broadcast %cst_226 : f32 to vector<8x32xf32>
    %991 = arith.addf %990, %989 : vector<8x32xf32>
    %992 = arith.divf %990, %991 : vector<8x32xf32>
    %993 = vector.extract_strided_slice %980 {offsets = [0, 32], sizes = [8, 32], strides = [1, 1]} : vector<8x96xf32> to vector<8x32xf32>
    %994 = vector.extract_strided_slice %984 {offsets = [0, 32], sizes = [8, 32], strides = [1, 1]} : vector<8x96xf32> to vector<8x32xf32>
    %995 = arith.addf %993, %994 : vector<8x32xf32>
    %996 = arith.negf %995 : vector<8x32xf32>
    %997 = math.exp %996 : vector<8x32xf32>
    %cst_227 = arith.constant 1.000000e+00 : f32
    %998 = vector.broadcast %cst_227 : f32 to vector<8x32xf32>
    %999 = arith.addf %998, %997 : vector<8x32xf32>
    %1000 = arith.divf %998, %999 : vector<8x32xf32>
    %1001 = vector.extract_strided_slice %980 {offsets = [0, 64], sizes = [8, 32], strides = [1, 1]} : vector<8x96xf32> to vector<8x32xf32>
    %1002 = vector.extract_strided_slice %984 {offsets = [0, 64], sizes = [8, 32], strides = [1, 1]} : vector<8x96xf32> to vector<8x32xf32>
    %1003 = arith.mulf %992, %1002 : vector<8x32xf32>
    %1004 = arith.addf %1001, %1003 : vector<8x32xf32>
    %1005 = math.tanh %1004 : vector<8x32xf32>
    %cst_228 = arith.constant 1.000000e+00 : f32
    %1006 = vector.broadcast %cst_228 : f32 to vector<8x32xf32>
    %1007 = arith.subf %1006, %1000 : vector<8x32xf32>
    %1008 = arith.mulf %1007, %1005 : vector<8x32xf32>
    %1009 = arith.mulf %1000, %891 : vector<8x32xf32>
    %1010 = arith.addf %1008, %1009 : vector<8x32xf32>
    %1011 = vector.shape_cast %900 : vector<8x1xi1> to vector<8x1xi1>
    %1012 = vector.broadcast %1011 : vector<8x1xi1> to vector<8x32xi1>
    %1013 = arith.select %1012, %1010, %891 : vector<8x32xi1>, vector<8x32xf32>
    %1014 = arith.addf %1013, %903 : vector<8x32xf32>
    %1015 = vector.shape_cast %900 : vector<8x1xi1> to vector<8x1xi1>
    %1016 = vector.broadcast %1015 : vector<8x1xi1> to vector<8x32xi1>
    %1017 = arith.select %1016, %1014, %895 : vector<8x32xi1>, vector<8x32xf32>
    %c0_229 = arith.constant 0 : index
    %c0_230 = arith.constant 0 : index
    %c0_231 = arith.constant 0 : index
    %1018 = vector.load %arg9[%c0_229, %c0_230, %c0_231] : memref<3x8x32xf32, #tpu.memory_space<vmem>>, vector<1x8x32xf32>
    %1019 = vector.shape_cast %1018 : vector<1x8x32xf32> to vector<8x32xf32>
    %1020 = vector.shape_cast %939 : vector<8x32xf32> to vector<1x8x32xf32>
    tpu.vector_store %arg9[%c0_229, %c0_230, %c0_231], %1020 {strides = array<i32>} : memref<3x8x32xf32, #tpu.memory_space<vmem>>, vector<1x8x32xf32>,
    %c1_232 = arith.constant 1 : index
    %c0_233 = arith.constant 0 : index
    %c0_234 = arith.constant 0 : index
    %1021 = vector.load %arg9[%c1_232, %c0_233, %c0_234] : memref<3x8x32xf32, #tpu.memory_space<vmem>>, vector<1x8x32xf32>
    %1022 = vector.shape_cast %1021 : vector<1x8x32xf32> to vector<8x32xf32>
    %1023 = vector.shape_cast %976 : vector<8x32xf32> to vector<1x8x32xf32>
    tpu.vector_store %arg9[%c1_232, %c0_233, %c0_234], %1023 {strides = array<i32>} : memref<3x8x32xf32, #tpu.memory_space<vmem>>, vector<1x8x32xf32>,
    %c2_235 = arith.constant 2 : index
    %c0_236 = arith.constant 0 : index
    %c0_237 = arith.constant 0 : index
    %1024 = vector.load %arg9[%c2_235, %c0_236, %c0_237] : memref<3x8x32xf32, #tpu.memory_space<vmem>>, vector<1x8x32xf32>
    %1025 = vector.shape_cast %1024 : vector<1x8x32xf32> to vector<8x32xf32>
    %1026 = vector.shape_cast %1013 : vector<8x32xf32> to vector<1x8x32xf32>
    tpu.vector_store %arg9[%c2_235, %c0_236, %c0_237], %1026 {strides = array<i32>} : memref<3x8x32xf32, #tpu.memory_space<vmem>>, vector<1x8x32xf32>,
    %1027 = vector.shape_cast %1017 : vector<8x32xf32> to vector<1x8x32xf32>
    %c0_238 = arith.constant 0 : index
    %c0_239 = arith.constant 0 : index
    %c0_240 = arith.constant 0 : index
    %1028 = vector.load %arg8[%c0_238, %c0_239, %c0_240] : memref<1x8x32xf32, #tpu.memory_space<vmem>>, vector<1x8x32xf32>
    tpu.vector_store %arg8[%c0_238, %c0_239, %c0_240], %1027 {strides = array<i32>} : memref<1x8x32xf32, #tpu.memory_space<vmem>>, vector<1x8x32xf32>,
    return
  }
  func.func @transform_0(%arg0: i32, %arg1: i32) -> (i32, i32, i32, i32) {
    %c0_i32 = arith.constant 0 : i32
    %c0_i32_0 = arith.constant 0 : i32
    %c0_i32_1 = arith.constant 0 : i32
    return %arg0, %arg1, %c0_i32, %c0_i32_0 : i32, i32, i32, i32
  }
  func.func @transform_1(%arg0: i32, %arg1: i32) -> (i32, i32, i32, i32) {
    %c0_i32 = arith.constant 0 : i32
    %c0_i32_0 = arith.constant 0 : i32
    %c0_i32_1 = arith.constant 0 : i32
    return %arg0, %arg1, %c0_i32, %c0_i32_0 : i32, i32, i32, i32
  }
  func.func @transform_2(%arg0: i32, %arg1: i32) -> (i32, i32, i32) {
    %c0_i32 = arith.constant 0 : i32
    %c0_i32_0 = arith.constant 0 : i32
    %c0_i32_1 = arith.constant 0 : i32
    %c0_i32_2 = arith.constant 0 : i32
    return %c0_i32, %c0_i32_0, %c0_i32_1 : i32, i32, i32
  }
  func.func @transform_3(%arg0: i32, %arg1: i32) -> (i32, i32, i32) {
    %c0_i32 = arith.constant 0 : i32
    %c0_i32_0 = arith.constant 0 : i32
    %c0_i32_1 = arith.constant 0 : i32
    %c0_i32_2 = arith.constant 0 : i32
    return %c0_i32, %c0_i32_0, %c0_i32_1 : i32, i32, i32
  }
  func.func @transform_4(%arg0: i32, %arg1: i32) -> (i32, i32, i32) {
    %c0_i32 = arith.constant 0 : i32
    %c0_i32_0 = arith.constant 0 : i32
    %c0_i32_1 = arith.constant 0 : i32
    %c0_i32_2 = arith.constant 0 : i32
    return %c0_i32, %c0_i32_0, %c0_i32_1 : i32, i32, i32
  }
  func.func @transform_5(%arg0: i32, %arg1: i32) -> (i32, i32, i32) {
    %c0_i32 = arith.constant 0 : i32
    %c0_i32_0 = arith.constant 0 : i32
    %c0_i32_1 = arith.constant 0 : i32
    %c0_i32_2 = arith.constant 0 : i32
    return %c0_i32, %c0_i32_0, %c0_i32_1 : i32, i32, i32
  }
  func.func @transform_6(%arg0: i32, %arg1: i32) -> (i32, i32, i32) {
    %c0_i32 = arith.constant 0 : i32
    %c0_i32_0 = arith.constant 0 : i32
    %c0_i32_1 = arith.constant 0 : i32
    return %arg0, %c0_i32, %c0_i32_0 : i32, i32, i32
  }
}

</mosaic_0001>

<llo_original>
// kernel: goal_predictor_forward.3
$region0: #{goal_predictor_forward.3}
  #allocation0 [shape = 'u32[]', space=smem, size = 0x4, offset = 0x4, fixed_abs, tag = 'smem constant byte address 0x4 - core index']
  #allocation1 [shape = 'u32[144,128]{1,0:T(1,128)}', space=vmem, size = 0x12000, scoped, tag = 'internal scratch']
  #allocation2 [shape = 'f32[16,32]{1,0:T(8,128)}', space=vmem, size = 0x2000, scoped, tag = 'scratch operand']
  %s0 = inlined_call_operand.vmem [shape: f32[2,8,32], index: 0, kind: input, shape index: {}]
  %s1 = inlined_call_operand.vmem [shape: f32[2,8,32], index: 1, kind: input, shape index: {}]
  %s2 = inlined_call_operand.vmem [shape: f32[2,1,8], index: 2, kind: input, shape index: {}]
  %s3 = inlined_call_operand.vmem [shape: bf16[4,32,32], index: 3, kind: input, shape index: {}]
  %s4 = inlined_call_operand.vmem [shape: f32[4,1,32], index: 4, kind: input, shape index: {}]
  %s5 = inlined_call_operand.vmem [shape: f32[6,1,32], index: 5, kind: input, shape index: {}]
  %s6 = inlined_call_operand.vmem [shape: bf16[32,64], index: 6, kind: input, shape index: {}]
  %s7 = inlined_call_operand.vmem [shape: f32[1,64], index: 7, kind: input, shape index: {}]
  %s8 = inlined_call_operand.vmem [shape: bf16[64,32], index: 8, kind: input, shape index: {}]
  %s9 = inlined_call_operand.vmem [shape: f32[1,32], index: 9, kind: input, shape index: {}]
  %s10 = inlined_call_operand.vmem [shape: bf16[32,32], index: 10, kind: input, shape index: {}]
  %s11 = inlined_call_operand.vmem [shape: f32[1,32], index: 11, kind: input, shape index: {}]
  %s12 = inlined_call_operand.vmem [shape: bf16[32,128], index: 12, kind: input, shape index: {}]
  %s13 = inlined_call_operand.vmem [shape: f32[1,128], index: 13, kind: input, shape index: {}]
  %s14 = inlined_call_operand.vmem [shape: f32[2,8,128], index: 14, kind: output, shape index: {}]
  %s15 = sld [smem:[#allocation0]]
  $region66: #{goal_predictor_forward.3} parent=0
    _
  %s17 = ssub.s32 1, %s15
  %s18 = scalar_select 0, %s17, %s15
  // Predicated region
  $region2: #{goal_predictor_forward.3} parent=0 // pred_check
    _
  $region3: #{goal_predictor_forward.3} parent=0 // pred_check_branch
    %20 = sbr.rel (0) target = $region5
  $region4: #{goal_predictor_forward.3} parent=0 // pred_region
    _
  $region5: #{goal_predictor_forward.3} parent=0 // pred_fallthru
    _
  // Predicated region
  $region6: #{goal_predictor_forward.3} parent=0 // pred_check
    _
  $region7: #{goal_predictor_forward.3} parent=0 // pred_check_branch
    %22 = sbr.rel (0) target = $region9
  $region8: #{goal_predictor_forward.3} parent=0 // pred_region
    _
  $region9: #{goal_predictor_forward.3} parent=0 // pred_fallthru
    _
  // Predicated region
  $region10: #{goal_predictor_forward.3} parent=0 // pred_check
    _
  $region11: #{goal_predictor_forward.3} parent=0 // pred_check_branch
    %24 = sbr.rel (0) target = $region13
  $region12: #{goal_predictor_forward.3} parent=0 // pred_region
    _
  $region13: #{goal_predictor_forward.3} parent=0 // pred_fallthru
    _
  // Predicated region
  $region14: #{goal_predictor_forward.3} parent=0 // pred_check
    _
  $region15: #{goal_predictor_forward.3} parent=0 // pred_check_branch
    %26 = sbr.rel (0) target = $region17
  $region16: #{goal_predictor_forward.3} parent=0 // pred_region
    _
  $region17: #{goal_predictor_forward.3} parent=0 // pred_fallthru
    _
  // Predicated region
  $region18: #{goal_predictor_forward.3} parent=0 // pred_check
    _
  $region19: #{goal_predictor_forward.3} parent=0 // pred_check_branch
    %28 = sbr.rel (0) target = $region21
  $region20: #{goal_predictor_forward.3} parent=0 // pred_region
    _
  $region21: #{goal_predictor_forward.3} parent=0 // pred_fallthru
    _
  // Predicated region
  $region22: #{goal_predictor_forward.3} parent=0 // pred_check
    _
  $region23: #{goal_predictor_forward.3} parent=0 // pred_check_branch
    %30 = sbr.rel (0) target = $region25
  $region24: #{goal_predictor_forward.3} parent=0 // pred_region
    _
  $region25: #{goal_predictor_forward.3} parent=0 // pred_fallthru
    _
  // Predicated region
  $region26: #{goal_predictor_forward.3} parent=0 // pred_check
    _
  $region27: #{goal_predictor_forward.3} parent=0 // pred_check_branch
    %32 = sbr.rel (0) target = $region29
  $region28: #{goal_predictor_forward.3} parent=0 // pred_region
    _
  $region29: #{goal_predictor_forward.3} parent=0 // pred_fallthru
    _
  // Predicated region
  $region30: #{goal_predictor_forward.3} parent=0 // pred_check
    _
  $region31: #{goal_predictor_forward.3} parent=0 // pred_check_branch
    %34 = sbr.rel (0) target = $region33
  $region32: #{goal_predictor_forward.3} parent=0 // pred_region
    _
  $region33: #{goal_predictor_forward.3} parent=0 // pred_fallthru
    _
  // Predicated region
  $region34: #{goal_predictor_forward.3} parent=0 // pred_check
    _
  $region35: #{goal_predictor_forward.3} parent=0 // pred_check_branch
    %36 = sbr.rel (0) target = $region37
  $region36: #{goal_predictor_forward.3} parent=0 // pred_region
    _
  $region37: #{goal_predictor_forward.3} parent=0 // pred_fallthru
    _
  // Predicated region
  $region38: #{goal_predictor_forward.3} parent=0 // pred_check
    _
  $region39: #{goal_predictor_forward.3} parent=0 // pred_check_branch
    %38 = sbr.rel (0) target = $region41
  $region40: #{goal_predictor_forward.3} parent=0 // pred_region
    _
  $region41: #{goal_predictor_forward.3} parent=0 // pred_fallthru
    _
  // Predicated region
  $region42: #{goal_predictor_forward.3} parent=0 // pred_check
    _
  $region43: #{goal_predictor_forward.3} parent=0 // pred_check_branch
    %40 = sbr.rel (0) target = $region45
  $region44: #{goal_predictor_forward.3} parent=0 // pred_region
    _
  $region45: #{goal_predictor_forward.3} parent=0 // pred_fallthru
    _
  // Predicated region
  $region46: #{goal_predictor_forward.3} parent=0 // pred_check
    _
  $region47: #{goal_predictor_forward.3} parent=0 // pred_check_branch
    %42 = sbr.rel (0) target = $region49
  $region48: #{goal_predictor_forward.3} parent=0 // pred_region
    _
  $region49: #{goal_predictor_forward.3} parent=0 // pred_fallthru
    _
  // Predicated region
  $region50: #{goal_predictor_forward.3} parent=0 // pred_check
    _
  $region51: #{goal_predictor_forward.3} parent=0 // pred_check_branch
    %44 = sbr.rel (0) target = $region53
  $region52: #{goal_predictor_forward.3} parent=0 // pred_region
    _
  $region53: #{goal_predictor_forward.3} parent=0 // pred_fallthru
    _
  // Predicated region
  $region54: #{goal_predictor_forward.3} parent=0 // pred_check
    _
  $region55: #{goal_predictor_forward.3} parent=0 // pred_check_branch
    %46 = sbr.rel (0) target = $region57
  $region56: #{goal_predictor_forward.3} parent=0 // pred_region
    _
  $region57: #{goal_predictor_forward.3} parent=0 // pred_fallthru
    _
  %v48 = vld [vmem:[%s0] sm:$0xff]
  %v49 = vld [vmem:[%s0 + $0x8] sm:$0xff]
  %v50 = vld [vmem:[%s1] sm:$0xff]
  %v51 = vld [vmem:[%s1 + $0x8] sm:$0xff]
  %v52 = vld [vmem:[%s3] sm:$0xf]
  %v53 = vld [vmem:[%s3 + $0x4] sm:$0xf]
  %v54 = vld [vmem:[%s3 + $0x8] sm:$0xf]
  %v55 = vld [vmem:[%s3 + $0xc] sm:$0xf]
  %v56 = vld [vmem:[%s4] sm:$0x1]
  %v57 = vpack.c.bf16 %v49, %v48
  %v59 = vlaneseq
  %v60 = vshrl.u32 %v59, 7
  %v61 = vsub.s32 0, %v60
  %v62 = vrot.slane %v56, %v61
  %v68 = vunpack.c.l.b16 %v52
  %v69 = vunpack.c.l.b16 %v53
  %v70 = vunpack.c.l.b16 %v54
  %v71 = vunpack.c.l.b16 %v55
  %v72 = vpack.c.b16 %v69, %v68
  %v73 = vpack.c.b16 %v71, %v70
  %vm76 = vcmask 261120
  %v78 = vsel %vm76, %v57, 0
  %80 = vmatprep.subr.bf16.mxu0 0
  %81 = vmatpush1.bf16.msra.mxu0 %v72
  %82 = vmatprep.subr.bf16.mxu0 0
  %83 = vmatpush1.bf16.msra.mxu0 %v73
  %84 = vmatprep.subr.bf16.mxu0 0
  %85 = vmatpush1.bf16.msra.mxu0 0
  %86 = vmatprep.subr.bf16.mxu0 0
  %87 = vmatpush1.bf16.msra.mxu0 0
  %88 = vmatprep.subr.bf16.mxu0 0
  %89 = vmatpush1.bf16.msra.mxu0 0
  %90 = vmatprep.subr.bf16.mxu0 0
  %91 = vmatpush1.bf16.msra.mxu0 0
  %92 = vmatprep.subr.bf16.mxu0 0
  %93 = vmatpush1.bf16.msra.mxu0 0
  %94 = vmatprep.subr.bf16.mxu0 0
  %95 = vmatpush1.bf16.msra.mxu0 0
  %96 = vmatprep.subr.bf16.mxu0 0
  %97 = vmatpush1.bf16.msra.mxu0 0
  %98 = vmatprep.subr.bf16.mxu0 0
  %99 = vmatpush1.bf16.msra.mxu0 0
  %100 = vmatprep.subr.bf16.mxu0 0
  %101 = vmatpush1.bf16.msra.mxu0 0
  %102 = vmatprep.subr.bf16.mxu0 0
  %103 = vmatpush1.bf16.msra.mxu0 0
  %104 = vmatprep.subr.bf16.mxu0 0
  %105 = vmatpush1.bf16.msra.mxu0 0
  %106 = vmatprep.subr.bf16.mxu0 0
  %107 = vmatpush1.bf16.msra.mxu0 0
  %108 = vmatprep.subr.bf16.mxu0 0
  %109 = vmatpush1.bf16.msra.mxu0 0
  %110 = vmatprep.subr.bf16.mxu0 0
  %111 = vmatpush1.bf16.msra.mxu0 0
  %112 = vmatprep.mubr.bf16.mxu0 0
  %113 = vmatmul.mubr.bf16.gmra.mrb[0].mxu0 %v78
  %v114 = vpop.f32.mrb[0].mxu0
  %v115 = vadd.f32 %v62, %v114
  %v116 = vpop.f32.mrb[0].mxu0
  %v117 = vpop.f32.mrb[0].mxu0
  %v118 = vadd.f32 %v62, %v117
  %v119 = vpop.f32.mrb[0].mxu0
  %120 = vdwg.mxu0
  %s121 = scalar_lea.vmem %s3, 16
  %v122 = vld [vmem:[%s121] sm:$0xf]
  %v123 = vld [vmem:[%s121 + $0x4] sm:$0xf]
  %v124 = vld [vmem:[%s121 + $0x8] sm:$0xf]
  %v125 = vld [vmem:[%s121 + $0xc] sm:$0xf]
  %s126 = scalar_lea.vmem %s4, 1
  %v127 = vld [vmem:[%s126] sm:$0x1]
  %v128 = vpack.c.bf16 %v51, %v50
  %v130 = vlaneseq
  %v131 = vshrl.u32 %v130, 7
  %v132 = vsub.s32 0, %v131
  %v133 = vrot.slane %v127, %v132
  %v139 = vunpack.c.l.b16 %v122
  %v140 = vunpack.c.l.b16 %v123
  %v141 = vunpack.c.l.b16 %v124
  %v142 = vunpack.c.l.b16 %v125
  %v143 = vpack.c.b16 %v140, %v139
  %v144 = vpack.c.b16 %v142, %v141
  %v148 = vsel %vm76, %v128, 0
  %150 = vmatprep.subr.bf16.mxu0 0
  %151 = vmatpush1.bf16.msra.mxu0 %v143
  %152 = vmatprep.subr.bf16.mxu0 0
  %153 = vmatpush1.bf16.msra.mxu0 %v144
  %154 = vmatprep.subr.bf16.mxu0 0
  %155 = vmatpush1.bf16.msra.mxu0 0
  %156 = vmatprep.subr.bf16.mxu0 0
  %157 = vmatpush1.bf16.msra.mxu0 0
  %158 = vmatprep.subr.bf16.mxu0 0
  %159 = vmatpush1.bf16.msra.mxu0 0
  %160 = vmatprep.subr.bf16.mxu0 0
  %161 = vmatpush1.bf16.msra.mxu0 0
  %162 = vmatprep.subr.bf16.mxu0 0
  %163 = vmatpush1.bf16.msra.mxu0 0
  %164 = vmatprep.subr.bf16.mxu0 0
  %165 = vmatpush1.bf16.msra.mxu0 0
  %166 = vmatprep.subr.bf16.mxu0 0
  %167 = vmatpush1.bf16.msra.mxu0 0
  %168 = vmatprep.subr.bf16.mxu0 0
  %169 = vmatpush1.bf16.msra.mxu0 0
  %170 = vmatprep.subr.bf16.mxu0 0
  %171 = vmatpush1.bf16.msra.mxu0 0
  %172 = vmatprep.subr.bf16.mxu0 0
  %173 = vmatpush1.bf16.msra.mxu0 0
  %174 = vmatprep.subr.bf16.mxu0 0
  %175 = vmatpush1.bf16.msra.mxu0 0
  %176 = vmatprep.subr.bf16.mxu0 0
  %177 = vmatpush1.bf16.msra.mxu0 0
  %178 = vmatprep.subr.bf16.mxu0 0
  %179 = vmatpush1.bf16.msra.mxu0 0
  %180 = vmatprep.subr.bf16.mxu0 0
  %181 = vmatpush1.bf16.msra.mxu0 0
  %182 = vmatprep.mubr.bf16.mxu0 0
  %183 = vmatmul.mubr.bf16.gmra.mrb[0].mxu0 %v148
  %v184 = vpop.f32.mrb[0].mxu0
  %v185 = vadd.f32 %v133, %v184
  %v186 = vpop.f32.mrb[0].mxu0
  %v187 = vpop.f32.mrb[0].mxu0
  %v188 = vadd.f32 %v133, %v187
  %v189 = vpop.f32.mrb[0].mxu0
  %190 = vdwg.mxu0
  %s191 = scalar_lea.vmem %s3, 32
  %v192 = vld [vmem:[%s191] sm:$0xf]
  %v193 = vld [vmem:[%s191 + $0x4] sm:$0xf]
  %v194 = vld [vmem:[%s191 + $0x8] sm:$0xf]
  %v195 = vld [vmem:[%s191 + $0xc] sm:$0xf]
  %s196 = scalar_lea.vmem %s4, 2
  %v197 = vld [vmem:[%s196] sm:$0x1]
  %v199 = vlaneseq
  %v200 = vshrl.u32 %v199, 7
  %v201 = vsub.s32 0, %v200
  %v202 = vrot.slane %v197, %v201
  %v208 = vunpack.c.l.b16 %v192
  %v209 = vunpack.c.l.b16 %v193
  %v210 = vunpack.c.l.b16 %v194
  %v211 = vunpack.c.l.b16 %v195
  %v212 = vpack.c.b16 %v209, %v208
  %v213 = vpack.c.b16 %v211, %v210
  %216 = vmatprep.subr.bf16.mxu0 0
  %217 = vmatpush1.bf16.msra.mxu0 %v212
  %218 = vmatprep.subr.bf16.mxu0 0
  %219 = vmatpush1.bf16.msra.mxu0 %v213
  %220 = vmatprep.subr.bf16.mxu0 0
  %221 = vmatpush1.bf16.msra.mxu0 0
  %222 = vmatprep.subr.bf16.mxu0 0
  %223 = vmatpush1.bf16.msra.mxu0 0
  %224 = vmatprep.subr.bf16.mxu0 0
  %225 = vmatpush1.bf16.msra.mxu0 0
  %226 = vmatprep.subr.bf16.mxu0 0
  %227 = vmatpush1.bf16.msra.mxu0 0
  %228 = vmatprep.subr.bf16.mxu0 0
  %229 = vmatpush1.bf16.msra.mxu0 0
  %230 = vmatprep.subr.bf16.mxu0 0
  %231 = vmatpush1.bf16.msra.mxu0 0
  %232 = vmatprep.subr.bf16.mxu0 0
  %233 = vmatpush1.bf16.msra.mxu0 0
  %234 = vmatprep.subr.bf16.mxu0 0
  %235 = vmatpush1.bf16.msra.mxu0 0
  %236 = vmatprep.subr.bf16.mxu0 0
  %237 = vmatpush1.bf16.msra.mxu0 0
  %238 = vmatprep.subr.bf16.mxu0 0
  %239 = vmatpush1.bf16.msra.mxu0 0
  %240 = vmatprep.subr.bf16.mxu0 0
  %241 = vmatpush1.bf16.msra.mxu0 0
  %242 = vmatprep.subr.bf16.mxu0 0
  %243 = vmatpush1.bf16.msra.mxu0 0
  %244 = vmatprep.subr.bf16.mxu0 0
  %245 = vmatpush1.bf16.msra.mxu0 0
  %246 = vmatprep.subr.bf16.mxu0 0
  %247 = vmatpush1.bf16.msra.mxu0 0
  %248 = vmatprep.mubr.bf16.mxu0 0
  %249 = vmatmul.mubr.bf16.gmra.mrb[0].mxu0 %v148
  %v250 = vpop.f32.mrb[0].mxu0
  %v251 = vadd.f32 %v202, %v250
  %v252 = vpop.f32.mrb[0].mxu0
  %v253 = vpop.f32.mrb[0].mxu0
  %v254 = vadd.f32 %v202, %v253
  %v255 = vpop.f32.mrb[0].mxu0
  %256 = vdwg.mxu0
  %s257 = scalar_lea.vmem %s3, 48
  %v258 = vld [vmem:[%s257] sm:$0xf]
  %v259 = vld [vmem:[%s257 + $0x4] sm:$0xf]
  %v260 = vld [vmem:[%s257 + $0x8] sm:$0xf]
  %v261 = vld [vmem:[%s257 + $0xc] sm:$0xf]
  %v262 = vld [vmem:[%s2] sm:$0x1]
  %v263 = vpack.c.bf16 %v115, %v115
  %v264 = vpack.c.bf16 %v185, %v185
  %v265 = vpack.c.bf16 %v251, %v251
  %vm266 = vcmask 64512
  %v268 = vsel %vm266, %v263, 0
  %v271 = vsel %vm266, %v264, 0
  %273 = vmatprep.subr.bf16.mxu0 0
  %274 = vmatpush1.bf16.xpose.msra.mxu0 %v271
  %275 = vmatprep.subr.bf16.mxu0 0
  %276 = vmatpush1.bf16.xpose.msra.mxu0 0
  %277 = vmatprep.subr.bf16.mxu0 0
  %278 = vmatpush1.bf16.xpose.msra.mxu0 0
  %279 = vmatprep.subr.bf16.mxu0 0
  %280 = vmatpush1.bf16.xpose.msra.mxu0 0
  %281 = vmatprep.subr.bf16.mxu0 0
  %282 = vmatpush1.bf16.xpose.msra.mxu0 0
  %283 = vmatprep.subr.bf16.mxu0 0
  %284 = vmatpush1.bf16.xpose.msra.mxu0 0
  %285 = vmatprep.subr.bf16.mxu0 0
  %286 = vmatpush1.bf16.xpose.msra.mxu0 0
  %287 = vmatprep.subr.bf16.mxu0 0
  %288 = vmatpush1.bf16.xpose.msra.mxu0 0
  %289 = vmatprep.subr.bf16.mxu0 0
  %290 = vmatpush1.bf16.xpose.msra.mxu0 0
  %291 = vmatprep.subr.bf16.mxu0 0
  %292 = vmatpush1.bf16.xpose.msra.mxu0 0
  %293 = vmatprep.subr.bf16.mxu0 0
  %294 = vmatpush1.bf16.xpose.msra.mxu0 0
  %295 = vmatprep.subr.bf16.mxu0 0
  %296 = vmatpush1.bf16.xpose.msra.mxu0 0
  %297 = vmatprep.subr.bf16.mxu0 0
  %298 = vmatpush1.bf16.xpose.msra.mxu0 0
  %299 = vmatprep.subr.bf16.mxu0 0
  %300 = vmatpush1.bf16.xpose.msra.mxu0 0
  %301 = vmatprep.subr.bf16.mxu0 0
  %302 = vmatpush1.bf16.xpose.msra.mxu0 0
  %303 = vmatprep.subr.bf16.mxu0 0
  %304 = vmatpush1.bf16.xpose.msra.mxu0 0
  %305 = vmatprep.mubr.bf16.mxu0 0
  %306 = vmatmul.mubr.bf16.gmra.mrb[0].mxu0 %v268
  %v307 = vpop.f32.mrb[0].mxu0
  %v308 = vadd.f32 0.0, %v307
  %v309 = vpop.f32.mrb[0].mxu0
  %v310 = vpop.f32.mrb[0].mxu0
  %v311 = vpop.f32.mrb[0].mxu0
  %312 = vdwg.mxu0
  %v313 = vmul.f32 %v308, 0.35355338
  %vm314 = vcmp.gt.f32.partialorder %v262, 0.0
  %v315 = vsel %vm314, 1, 0
  %v316 = vlaneseq
  %v317 = vshrl.u32 %v316, 7
  %v318 = vsub.s32 0, %v317
  %v319 = vrot.slane %v315, %v318
  %vm320 = vcmp.eq.s32.totalorder %v319, 1
  %v321 = vsel %vm320, %v313, -1e+09
  %v322 = vsel %vm266, %v321, -inf
  %323 = vmax.xlane.f32.xlu0 %v322
  %v324 = vpop.xlane.xlu0 %323
  %v325 = vsub.f32 %v321, %v324
  %v326 = vmul.f32 %v325, 1.442695
  %v327 = vpow.pop %v326
  %v328 = vsel %vm266, %v327, 0.0
  %329 = vadd.xlane.f32.xlu0 %v328
  %v330 = vpop.xlane.xlu0 %329
  %v331 = vrcp.pop %v330
  %v332 = vmul.f32 %v327, %v331
  %v333 = vpack.c.bf16 %v332, %v332
  %v335 = vsel %vm266, %v333, 0
  %vm337 = vcmask 1043456
  %v339 = vsel %vm337, %v265, 0
  %341 = vmatprep.subr.bf16.mxu0 0
  %342 = vmatpush1.bf16.msra.mxu0 %v339
  %343 = vmatprep.subr.bf16.mxu0 0
  %344 = vmatpush1.bf16.msra.mxu0 0
  %345 = vmatprep.subr.bf16.mxu0 0
  %346 = vmatpush1.bf16.msra.mxu0 0
  %347 = vmatprep.subr.bf16.mxu0 0
  %348 = vmatpush1.bf16.msra.mxu0 0
  %349 = vmatprep.subr.bf16.mxu0 0
  %350 = vmatpush1.bf16.msra.mxu0 0
  %351 = vmatprep.subr.bf16.mxu0 0
  %352 = vmatpush1.bf16.msra.mxu0 0
  %353 = vmatprep.subr.bf16.mxu0 0
  %354 = vmatpush1.bf16.msra.mxu0 0
  %355 = vmatprep.subr.bf16.mxu0 0
  %356 = vmatpush1.bf16.msra.mxu0 0
  %357 = vmatprep.subr.bf16.mxu0 0
  %358 = vmatpush1.bf16.msra.mxu0 0
  %359 = vmatprep.subr.bf16.mxu0 0
  %360 = vmatpush1.bf16.msra.mxu0 0
  %361 = vmatprep.subr.bf16.mxu0 0
  %362 = vmatpush1.bf16.msra.mxu0 0
  %363 = vmatprep.subr.bf16.mxu0 0
  %364 = vmatpush1.bf16.msra.mxu0 0
  %365 = vmatprep.subr.bf16.mxu0 0
  %366 = vmatpush1.bf16.msra.mxu0 0
  %367 = vmatprep.subr.bf16.mxu0 0
  %368 = vmatpush1.bf16.msra.mxu0 0
  %369 = vmatprep.subr.bf16.mxu0 0
  %370 = vmatpush1.bf16.msra.mxu0 0
  %371 = vmatprep.subr.bf16.mxu0 0
  %372 = vmatpush1.bf16.msra.mxu0 0
  %373 = vmatprep.mubr.bf16.mxu0 0
  %374 = vmatmul.mubr.bf16.gmra.mrb[0].mxu0 %v335
  %v375 = vpop.f32.mrb[0].mxu0
  %v376 = vadd.f32 0.0, %v375
  %v377 = vpop.f32.mrb[0].mxu0
  %v378 = vpop.f32.mrb[0].mxu0
  %v379 = vpop.f32.mrb[0].mxu0
  %380 = vdwg.mxu0
  %v381 = vpack.c.bf16 %v376, %v376
  %383 = vrot.lane.b32.xlu0 %v263, 120
  %v384 = vpop.permute.xlu0 %383
  %386 = vrot.lane.b32.xlu0 %v264, 120
  %v387 = vpop.permute.xlu0 %386
  %v389 = vsel %vm266, %v384, 0
  %v392 = vsel %vm266, %v387, 0
  %394 = vmatprep.subr.bf16.mxu0 0
  %395 = vmatpush1.bf16.xpose.msra.mxu0 %v392
  %396 = vmatprep.subr.bf16.mxu0 0
  %397 = vmatpush1.bf16.xpose.msra.mxu0 0
  %398 = vmatprep.subr.bf16.mxu0 0
  %399 = vmatpush1.bf16.xpose.msra.mxu0 0
  %400 = vmatprep.subr.bf16.mxu0 0
  %401 = vmatpush1.bf16.xpose.msra.mxu0 0
  %402 = vmatprep.subr.bf16.mxu0 0
  %403 = vmatpush1.bf16.xpose.msra.mxu0 0
  %404 = vmatprep.subr.bf16.mxu0 0
  %405 = vmatpush1.bf16.xpose.msra.mxu0 0
  %406 = vmatprep.subr.bf16.mxu0 0
  %407 = vmatpush1.bf16.xpose.msra.mxu0 0
  %408 = vmatprep.subr.bf16.mxu0 0
  %409 = vmatpush1.bf16.xpose.msra.mxu0 0
  %410 = vmatprep.subr.bf16.mxu0 0
  %411 = vmatpush1.bf16.xpose.msra.mxu0 0
  %412 = vmatprep.subr.bf16.mxu0 0
  %413 = vmatpush1.bf16.xpose.msra.mxu0 0
  %414 = vmatprep.subr.bf16.mxu0 0
  %415 = vmatpush1.bf16.xpose.msra.mxu0 0
  %416 = vmatprep.subr.bf16.mxu0 0
  %417 = vmatpush1.bf16.xpose.msra.mxu0 0
  %418 = vmatprep.subr.bf16.mxu0 0
  %419 = vmatpush1.bf16.xpose.msra.mxu0 0
  %420 = vmatprep.subr.bf16.mxu0 0
  %421 = vmatpush1.bf16.xpose.msra.mxu0 0
  %422 = vmatprep.subr.bf16.mxu0 0
  %423 = vmatpush1.bf16.xpose.msra.mxu0 0
  %424 = vmatprep.subr.bf16.mxu0 0
  %425 = vmatpush1.bf16.xpose.msra.mxu0 0
  %426 = vmatprep.mubr.bf16.mxu0 0
  %427 = vmatmul.mubr.bf16.gmra.mrb[0].mxu0 %v389
  %v428 = vpop.f32.mrb[0].mxu0
  %v429 = vadd.f32 0.0, %v428
  %v430 = vpop.f32.mrb[0].mxu0
  %v431 = vpop.f32.mrb[0].mxu0
  %v432 = vpop.f32.mrb[0].mxu0
  %433 = vdwg.mxu0
  %v434 = vmul.f32 %v429, 0.35355338
  %v435 = vsel %vm320, %v434, -1e+09
  %v436 = vsel %vm266, %v435, -inf
  %437 = vmax.xlane.f32.xlu0 %v436
  %v438 = vpop.xlane.xlu0 %437
  %v439 = vsub.f32 %v435, %v438
  %v440 = vmul.f32 %v439, 1.442695
  %v441 = vpow.pop %v440
  %v442 = vsel %vm266, %v441, 0.0
  %443 = vadd.xlane.f32.xlu0 %v442
  %v444 = vpop.xlane.xlu0 %443
  %v445 = vrcp.pop %v444
  %v446 = vmul.f32 %v441, %v445
  %v447 = vpack.c.bf16 %v446, %v446
  %449 = vrot.lane.b32.xlu0 %v265, 120
  %v450 = vpop.permute.xlu0 %449
  %v452 = vsel %vm266, %v447, 0
  %v455 = vsel %vm337, %v450, 0
  %457 = vmatprep.subr.bf16.mxu0 0
  %458 = vmatpush1.bf16.msra.mxu0 %v455
  %459 = vmatprep.subr.bf16.mxu0 0
  %460 = vmatpush1.bf16.msra.mxu0 0
  %461 = vmatprep.subr.bf16.mxu0 0
  %462 = vmatpush1.bf16.msra.mxu0 0
  %463 = vmatprep.subr.bf16.mxu0 0
  %464 = vmatpush1.bf16.msra.mxu0 0
  %465 = vmatprep.subr.bf16.mxu0 0
  %466 = vmatpush1.bf16.msra.mxu0 0
  %467 = vmatprep.subr.bf16.mxu0 0
  %468 = vmatpush1.bf16.msra.mxu0 0
  %469 = vmatprep.subr.bf16.mxu0 0
  %470 = vmatpush1.bf16.msra.mxu0 0
  %471 = vmatprep.subr.bf16.mxu0 0
  %472 = vmatpush1.bf16.msra.mxu0 0
  %473 = vmatprep.subr.bf16.mxu0 0
  %474 = vmatpush1.bf16.msra.mxu0 0
  %475 = vmatprep.subr.bf16.mxu0 0
  %476 = vmatpush1.bf16.msra.mxu0 0
  %477 = vmatprep.subr.bf16.mxu0 0
  %478 = vmatpush1.bf16.msra.mxu0 0
  %479 = vmatprep.subr.bf16.mxu0 0
  %480 = vmatpush1.bf16.msra.mxu0 0
  %481 = vmatprep.subr.bf16.mxu0 0
  %482 = vmatpush1.bf16.msra.mxu0 0
  %483 = vmatprep.subr.bf16.mxu0 0
  %484 = vmatpush1.bf16.msra.mxu0 0
  %485 = vmatprep.subr.bf16.mxu0 0
  %486 = vmatpush1.bf16.msra.mxu0 0
  %487 = vmatprep.subr.bf16.mxu0 0
  %488 = vmatpush1.bf16.msra.mxu0 0
  %489 = vmatprep.mubr.bf16.mxu0 0
  %490 = vmatmul.mubr.bf16.gmra.mrb[0].mxu0 %v452
  %v491 = vpop.f32.mrb[0].mxu0
  %v492 = vadd.f32 0.0, %v491
  %v493 = vpop.f32.mrb[0].mxu0
  %v494 = vpop.f32.mrb[0].mxu0
  %v495 = vpop.f32.mrb[0].mxu0
  %496 = vdwg.mxu0
  %v497 = vpack.c.bf16 %v492, %v492
  %v499 = vsel %vm266, %v497, 0
  %v502 = vsel %vm337, %v259, 0
  %504 = vmatprep.subr.bf16.mxu0 0
  %505 = vmatpush1.bf16.msra.mxu0 %v502
  %506 = vmatprep.subr.bf16.mxu0 0
  %507 = vmatpush1.bf16.msra.mxu0 0
  %508 = vmatprep.subr.bf16.mxu0 0
  %509 = vmatpush1.bf16.msra.mxu0 0
  %510 = vmatprep.subr.bf16.mxu0 0
  %511 = vmatpush1.bf16.msra.mxu0 0
  %512 = vmatprep.subr.bf16.mxu0 0
  %513 = vmatpush1.bf16.msra.mxu0 0
  %514 = vmatprep.subr.bf16.mxu0 0
  %515 = vmatpush1.bf16.msra.mxu0 0
  %516 = vmatprep.subr.bf16.mxu0 0
  %517 = vmatpush1.bf16.msra.mxu0 0
  %518 = vmatprep.subr.bf16.mxu0 0
  %519 = vmatpush1.bf16.msra.mxu0 0
  %520 = vmatprep.subr.bf16.mxu0 0
  %521 = vmatpush1.bf16.msra.mxu0 0
  %522 = vmatprep.subr.bf16.mxu0 0
  %523 = vmatpush1.bf16.msra.mxu0 0
  %524 = vmatprep.subr.bf16.mxu0 0
  %525 = vmatpush1.bf16.msra.mxu0 0
  %526 = vmatprep.subr.bf16.mxu0 0
  %527 = vmatpush1.bf16.msra.mxu0 0
  %528 = vmatprep.subr.bf16.mxu0 0
  %529 = vmatpush1.bf16.msra.mxu0 0
  %530 = vmatprep.subr.bf16.mxu0 0
  %531 = vmatpush1.bf16.msra.mxu0 0
  %532 = vmatprep.subr.bf16.mxu0 0
  %533 = vmatpush1.bf16.msra.mxu0 0
  %534 = vmatprep.subr.bf16.mxu0 0
  %535 = vmatpush1.bf16.msra.mxu0 0
  %536 = vmatprep.mubr.bf16.mxu0 0
  %537 = vmatmul.mubr.bf16.gmra.mrb[0].mxu0 %v499
  %v538 = vpop.f32.mrb[0].mxu0
  %v539 = vadd.f32 0.0, %v538
  %v540 = vpop.f32.mrb[0].mxu0
  %v541 = vpop.f32.mrb[0].mxu0
  %v542 = vpop.f32.mrb[0].mxu0
  %543 = vdwg.mxu0
  %v545 = vsel %vm266, %v381, 0
  %v548 = vsel %vm337, %v258, 0
  %550 = vmatprep.subr.bf16.mxu0 0
  %551 = vmatpush1.bf16.msra.mxu0 %v548
  %552 = vmatprep.subr.bf16.mxu0 0
  %553 = vmatpush1.bf16.msra.mxu0 0
  %554 = vmatprep.subr.bf16.mxu0 0
  %555 = vmatpush1.bf16.msra.mxu0 0
  %556 = vmatprep.subr.bf16.mxu0 0
  %557 = vmatpush1.bf16.msra.mxu0 0
  %558 = vmatprep.subr.bf16.mxu0 0
  %559 = vmatpush1.bf16.msra.mxu0 0
  %560 = vmatprep.subr.bf16.mxu0 0
  %561 = vmatpush1.bf16.msra.mxu0 0
  %562 = vmatprep.subr.bf16.mxu0 0
  %563 = vmatpush1.bf16.msra.mxu0 0
  %564 = vmatprep.subr.bf16.mxu0 0
  %565 = vmatpush1.bf16.msra.mxu0 0
  %566 = vmatprep.subr.bf16.mxu0 0
  %567 = vmatpush1.bf16.msra.mxu0 0
  %568 = vmatprep.subr.bf16.mxu0 0
  %569 = vmatpush1.bf16.msra.mxu0 0
  %570 = vmatprep.subr.bf16.mxu0 0
  %571 = vmatpush1.bf16.msra.mxu0 0
  %572 = vmatprep.subr.bf16.mxu0 0
  %573 = vmatpush1.bf16.msra.mxu0 0
  %574 = vmatprep.subr.bf16.mxu0 0
  %575 = vmatpush1.bf16.msra.mxu0 0
  %576 = vmatprep.subr.bf16.mxu0 0
  %577 = vmatpush1.bf16.msra.mxu0 0
  %578 = vmatprep.subr.bf16.mxu0 0
  %579 = vmatpush1.bf16.msra.mxu0 0
  %580 = vmatprep.subr.bf16.mxu0 0
  %581 = vmatpush1.bf16.msra.mxu0 0
  %582 = vmatprep.mubr.bf16.mxu0 0
  %583 = vmatmul.mubr.bf16.gmra.mrb[0].mxu0 %v545
  %v584 = vpop.f32.mrb[0].mxu0
  %v585 = vadd.f32 %v539, %v584
  %v586 = vpop.f32.mrb[0].mxu0
  %v587 = vpop.f32.mrb[0].mxu0
  %v588 = vpop.f32.mrb[0].mxu0
  %589 = vdwg.mxu0
  %590 = vrot.lane.b32.xlu0 %v263, 112
  %v591 = vpop.permute.xlu0 %590
  %592 = vrot.lane.b32.xlu0 %v264, 112
  %v593 = vpop.permute.xlu0 %592
  %v595 = vsel %vm266, %v591, 0
  %v598 = vsel %vm266, %v593, 0
  %600 = vmatprep.subr.bf16.mxu0 0
  %601 = vmatpush1.bf16.xpose.msra.mxu0 %v598
  %602 = vmatprep.subr.bf16.mxu0 0
  %603 = vmatpush1.bf16.xpose.msra.mxu0 0
  %604 = vmatprep.subr.bf16.mxu0 0
  %605 = vmatpush1.bf16.xpose.msra.mxu0 0
  %606 = vmatprep.subr.bf16.mxu0 0
  %607 = vmatpush1.bf16.xpose.msra.mxu0 0
  %608 = vmatprep.subr.bf16.mxu0 0
  %609 = vmatpush1.bf16.xpose.msra.mxu0 0
  %610 = vmatprep.subr.bf16.mxu0 0
  %611 = vmatpush1.bf16.xpose.msra.mxu0 0
  %612 = vmatprep.subr.bf16.mxu0 0
  %613 = vmatpush1.bf16.xpose.msra.mxu0 0
  %614 = vmatprep.subr.bf16.mxu0 0
  %615 = vmatpush1.bf16.xpose.msra.mxu0 0
  %616 = vmatprep.subr.bf16.mxu0 0
  %617 = vmatpush1.bf16.xpose.msra.mxu0 0
  %618 = vmatprep.subr.bf16.mxu0 0
  %619 = vmatpush1.bf16.xpose.msra.mxu0 0
  %620 = vmatprep.subr.bf16.mxu0 0
  %621 = vmatpush1.bf16.xpose.msra.mxu0 0
  %622 = vmatprep.subr.bf16.mxu0 0
  %623 = vmatpush1.bf16.xpose.msra.mxu0 0
  %624 = vmatprep.subr.bf16.mxu0 0
  %625 = vmatpush1.bf16.xpose.msra.mxu0 0
  %626 = vmatprep.subr.bf16.mxu0 0
  %627 = vmatpush1.bf16.xpose.msra.mxu0 0
  %628 = vmatprep.subr.bf16.mxu0 0
  %629 = vmatpush1.bf16.xpose.msra.mxu0 0
  %630 = vmatprep.subr.bf16.mxu0 0
  %631 = vmatpush1.bf16.xpose.msra.mxu0 0
  %632 = vmatprep.mubr.bf16.mxu0 0
  %633 = vmatmul.mubr.bf16.gmra.mrb[0].mxu0 %v595
  %v634 = vpop.f32.mrb[0].mxu0
  %v635 = vadd.f32 0.0, %v634
  %v636 = vpop.f32.mrb[0].mxu0
  %v637 = vpop.f32.mrb[0].mxu0
  %v638 = vpop.f32.mrb[0].mxu0
  %639 = vdwg.mxu0
  %v640 = vmul.f32 %v635, 0.35355338
  %v641 = vsel %vm320, %v640, -1e+09
  %v642 = vsel %vm266, %v641, -inf
  %643 = vmax.xlane.f32.xlu0 %v642
  %v644 = vpop.xlane.xlu0 %643
  %v645 = vsub.f32 %v641, %v644
  %v646 = vmul.f32 %v645, 1.442695
  %v647 = vpow.pop %v646
  %v648 = vsel %vm266, %v647, 0.0
  %649 = vadd.xlane.f32.xlu0 %v648
  %v650 = vpop.xlane.xlu0 %649
  %v651 = vrcp.pop %v650
  %v652 = vmul.f32 %v647, %v651
  %v653 = vpack.c.bf16 %v652, %v652
  %654 = vrot.lane.b32.xlu0 %v265, 112
  %v655 = vpop.permute.xlu0 %654
  %v657 = vsel %vm266, %v653, 0
  %v660 = vsel %vm337, %v655, 0
  %662 = vmatprep.subr.bf16.mxu0 0
  %663 = vmatpush1.bf16.msra.mxu0 %v660
  %664 = vmatprep.subr.bf16.mxu0 0
  %665 = vmatpush1.bf16.msra.mxu0 0
  %666 = vmatprep.subr.bf16.mxu0 0
  %667 = vmatpush1.bf16.msra.mxu0 0
  %668 = vmatprep.subr.bf16.mxu0 0
  %669 = vmatpush1.bf16.msra.mxu0 0
  %670 = vmatprep.subr.bf16.mxu0 0
  %671 = vmatpush1.bf16.msra.mxu0 0
  %672 = vmatprep.subr.bf16.mxu0 0
  %673 = vmatpush1.bf16.msra.mxu0 0
  %674 = vmatprep.subr.bf16.mxu0 0
  %675 = vmatpush1.bf16.msra.mxu0 0
  %676 = vmatprep.subr.bf16.mxu0 0
  %677 = vmatpush1.bf16.msra.mxu0 0
  %678 = vmatprep.subr.bf16.mxu0 0
  %679 = vmatpush1.bf16.msra.mxu0 0
  %680 = vmatprep.subr.bf16.mxu0 0
  %681 = vmatpush1.bf16.msra.mxu0 0
  %682 = vmatprep.subr.bf16.mxu0 0
  %683 = vmatpush1.bf16.msra.mxu0 0
  %684 = vmatprep.subr.bf16.mxu0 0
  %685 = vmatpush1.bf16.msra.mxu0 0
  %686 = vmatprep.subr.bf16.mxu0 0
  %687 = vmatpush1.bf16.msra.mxu0 0
  %688 = vmatprep.subr.bf16.mxu0 0
  %689 = vmatpush1.bf16.msra.mxu0 0
  %690 = vmatprep.subr.bf16.mxu0 0
  %691 = vmatpush1.bf16.msra.mxu0 0
  %692 = vmatprep.subr.bf16.mxu0 0
  %693 = vmatpush1.bf16.msra.mxu0 0
  %694 = vmatprep.mubr.bf16.mxu0 0
  %695 = vmatmul.mubr.bf16.gmra.mrb[0].mxu0 %v657
  %v696 = vpop.f32.mrb[0].mxu0
  %v697 = vadd.f32 0.0, %v696
  %v698 = vpop.f32.mrb[0].mxu0
  %v699 = vpop.f32.mrb[0].mxu0
  %v700 = vpop.f32.mrb[0].mxu0
  %701 = vdwg.mxu0
  %v702 = vpack.c.bf16 %v697, %v697
  %v704 = vsel %vm266, %v702, 0
  %v707 = vsel %vm337, %v260, 0
  %709 = vmatprep.subr.bf16.mxu0 0
  %710 = vmatpush1.bf16.msra.mxu0 %v707
  %711 = vmatprep.subr.bf16.mxu0 0
  %712 = vmatpush1.bf16.msra.mxu0 0
  %713 = vmatprep.subr.bf16.mxu0 0
  %714 = vmatpush1.bf16.msra.mxu0 0
  %715 = vmatprep.subr.bf16.mxu0 0
  %716 = vmatpush1.bf16.msra.mxu0 0
  %717 = vmatprep.subr.bf16.mxu0 0
  %718 = vmatpush1.bf16.msra.mxu0 0
  %719 = vmatprep.subr.bf16.mxu0 0
  %720 = vmatpush1.bf16.msra.mxu0 0
  %721 = vmatprep.subr.bf16.mxu0 0
  %722 = vmatpush1.bf16.msra.mxu0 0
  %723 = vmatprep.subr.bf16.mxu0 0
  %724 = vmatpush1.bf16.msra.mxu0 0
  %725 = vmatprep.subr.bf16.mxu0 0
  %726 = vmatpush1.bf16.msra.mxu0 0
  %727 = vmatprep.subr.bf16.mxu0 0
  %728 = vmatpush1.bf16.msra.mxu0 0
  %729 = vmatprep.subr.bf16.mxu0 0
  %730 = vmatpush1.bf16.msra.mxu0 0
  %731 = vmatprep.subr.bf16.mxu0 0
  %732 = vmatpush1.bf16.msra.mxu0 0
  %733 = vmatprep.subr.bf16.mxu0 0
  %734 = vmatpush1.bf16.msra.mxu0 0
  %735 = vmatprep.subr.bf16.mxu0 0
  %736 = vmatpush1.bf16.msra.mxu0 0
  %737 = vmatprep.subr.bf16.mxu0 0
  %738 = vmatpush1.bf16.msra.mxu0 0
  %739 = vmatprep.subr.bf16.mxu0 0
  %740 = vmatpush1.bf16.msra.mxu0 0
  %741 = vmatprep.mubr.bf16.mxu0 0
  %742 = vmatmul.mubr.bf16.gmra.mrb[0].mxu0 %v704
  %v743 = vpop.f32.mrb[0].mxu0
  %v744 = vadd.f32 0.0, %v743
  %v745 = vpop.f32.mrb[0].mxu0
  %v746 = vpop.f32.mrb[0].mxu0
  %v747 = vpop.f32.mrb[0].mxu0
  %748 = vdwg.mxu0
  %v749 = vadd.f32 %v585, %v744
  %750 = vrot.lane.b32.xlu0 %v263, 104
  %v751 = vpop.permute.xlu0 %750
  %752 = vrot.lane.b32.xlu0 %v264, 104
  %v753 = vpop.permute.xlu0 %752
  %v755 = vsel %vm266, %v751, 0
  %v758 = vsel %vm266, %v753, 0
  %760 = vmatprep.subr.bf16.mxu0 0
  %761 = vmatpush1.bf16.xpose.msra.mxu0 %v758
  %762 = vmatprep.subr.bf16.mxu0 0
  %763 = vmatpush1.bf16.xpose.msra.mxu0 0
  %764 = vmatprep.subr.bf16.mxu0 0
  %765 = vmatpush1.bf16.xpose.msra.mxu0 0
  %766 = vmatprep.subr.bf16.mxu0 0
  %767 = vmatpush1.bf16.xpose.msra.mxu0 0
  %768 = vmatprep.subr.bf16.mxu0 0
  %769 = vmatpush1.bf16.xpose.msra.mxu0 0
  %770 = vmatprep.subr.bf16.mxu0 0
  %771 = vmatpush1.bf16.xpose.msra.mxu0 0
  %772 = vmatprep.subr.bf16.mxu0 0
  %773 = vmatpush1.bf16.xpose.msra.mxu0 0
  %774 = vmatprep.subr.bf16.mxu0 0
  %775 = vmatpush1.bf16.xpose.msra.mxu0 0
  %776 = vmatprep.subr.bf16.mxu0 0
  %777 = vmatpush1.bf16.xpose.msra.mxu0 0
  %778 = vmatprep.subr.bf16.mxu0 0
  %779 = vmatpush1.bf16.xpose.msra.mxu0 0
  %780 = vmatprep.subr.bf16.mxu0 0
  %781 = vmatpush1.bf16.xpose.msra.mxu0 0
  %782 = vmatprep.subr.bf16.mxu0 0
  %783 = vmatpush1.bf16.xpose.msra.mxu0 0
  %784 = vmatprep.subr.bf16.mxu0 0
  %785 = vmatpush1.bf16.xpose.msra.mxu0 0
  %786 = vmatprep.subr.bf16.mxu0 0
  %787 = vmatpush1.bf16.xpose.msra.mxu0 0
  %788 = vmatprep.subr.bf16.mxu0 0
  %789 = vmatpush1.bf16.xpose.msra.mxu0 0
  %790 = vmatprep.subr.bf16.mxu0 0
  %791 = vmatpush1.bf16.xpose.msra.mxu0 0
  %792 = vmatprep.mubr.bf16.mxu0 0
  %793 = vmatmul.mubr.bf16.gmra.mrb[0].mxu0 %v755
  %v794 = vpop.f32.mrb[0].mxu0
  %v795 = vadd.f32 0.0, %v794
  %v796 = vpop.f32.mrb[0].mxu0
  %v797 = vpop.f32.mrb[0].mxu0
  %v798 = vpop.f32.mrb[0].mxu0
  %799 = vdwg.mxu0
  %v800 = vmul.f32 %v795, 0.35355338
  %v801 = vsel %vm320, %v800, -1e+09
  %v802 = vsel %vm266, %v801, -inf
  %803 = vmax.xlane.f32.xlu0 %v802
  %v804 = vpop.xlane.xlu0 %803
  %v805 = vsub.f32 %v801, %v804
  %v806 = vmul.f32 %v805, 1.442695
  %v807 = vpow.pop %v806
  %v808 = vsel %vm266, %v807, 0.0
  %809 = vadd.xlane.f32.xlu0 %v808
  %v810 = vpop.xlane.xlu0 %809
  %v811 = vrcp.pop %v810
  %v812 = vmul.f32 %v807, %v811
  %v813 = vpack.c.bf16 %v812, %v812
  %814 = vrot.lane.b32.xlu0 %v265, 104
  %v815 = vpop.permute.xlu0 %814
  %v817 = vsel %vm266, %v813, 0
  %v820 = vsel %vm337, %v815, 0
  %822 = vmatprep.subr.bf16.mxu0 0
  %823 = vmatpush1.bf16.msra.mxu0 %v820
  %824 = vmatprep.subr.bf16.mxu0 0
  %825 = vmatpush1.bf16.msra.mxu0 0
  %826 = vmatprep.subr.bf16.mxu0 0
  %827 = vmatpush1.bf16.msra.mxu0 0
  %828 = vmatprep.subr.bf16.mxu0 0
  %829 = vmatpush1.bf16.msra.mxu0 0
  %830 = vmatprep.subr.bf16.mxu0 0
  %831 = vmatpush1.bf16.msra.mxu0 0
  %832 = vmatprep.subr.bf16.mxu0 0
  %833 = vmatpush1.bf16.msra.mxu0 0
  %834 = vmatprep.subr.bf16.mxu0 0
  %835 = vmatpush1.bf16.msra.mxu0 0
  %836 = vmatprep.subr.bf16.mxu0 0
  %837 = vmatpush1.bf16.msra.mxu0 0
  %838 = vmatprep.subr.bf16.mxu0 0
  %839 = vmatpush1.bf16.msra.mxu0 0
  %840 = vmatprep.subr.bf16.mxu0 0
  %841 = vmatpush1.bf16.msra.mxu0 0
  %842 = vmatprep.subr.bf16.mxu0 0
  %843 = vmatpush1.bf16.msra.mxu0 0
  %844 = vmatprep.subr.bf16.mxu0 0
  %845 = vmatpush1.bf16.msra.mxu0 0
  %846 = vmatprep.subr.bf16.mxu0 0
  %847 = vmatpush1.bf16.msra.mxu0 0
  %848 = vmatprep.subr.bf16.mxu0 0
  %849 = vmatpush1.bf16.msra.mxu0 0
  %850 = vmatprep.subr.bf16.mxu0 0
  %851 = vmatpush1.bf16.msra.mxu0 0
  %852 = vmatprep.subr.bf16.mxu0 0
  %853 = vmatpush1.bf16.msra.mxu0 0
  %854 = vmatprep.mubr.bf16.mxu0 0
  %855 = vmatmul.mubr.bf16.gmra.mrb[0].mxu0 %v817
  %v856 = vpop.f32.mrb[0].mxu0
  %v857 = vadd.f32 0.0, %v856
  %v858 = vpop.f32.mrb[0].mxu0
  %v859 = vpop.f32.mrb[0].mxu0
  %v860 = vpop.f32.mrb[0].mxu0
  %861 = vdwg.mxu0
  %v862 = vpack.c.bf16 %v857, %v857
  %v864 = vsel %vm266, %v862, 0
  %v867 = vsel %vm337, %v261, 0
  %869 = vmatprep.subr.bf16.mxu0 0
  %870 = vmatpush1.bf16.msra.mxu0 %v867
  %871 = vmatprep.subr.bf16.mxu0 0
  %872 = vmatpush1.bf16.msra.mxu0 0
  %873 = vmatprep.subr.bf16.mxu0 0
  %874 = vmatpush1.bf16.msra.mxu0 0
  %875 = vmatprep.subr.bf16.mxu0 0
  %876 = vmatpush1.bf16.msra.mxu0 0
  %877 = vmatprep.subr.bf16.mxu0 0
  %878 = vmatpush1.bf16.msra.mxu0 0
  %879 = vmatprep.subr.bf16.mxu0 0
  %880 = vmatpush1.bf16.msra.mxu0 0
  %881 = vmatprep.subr.bf16.mxu0 0
  %882 = vmatpush1.bf16.msra.mxu0 0
  %883 = vmatprep.subr.bf16.mxu0 0
  %884 = vmatpush1.bf16.msra.mxu0 0
  %885 = vmatprep.subr.bf16.mxu0 0
  %886 = vmatpush1.bf16.msra.mxu0 0
  %887 = vmatprep.subr.bf16.mxu0 0
  %888 = vmatpush1.bf16.msra.mxu0 0
  %889 = vmatprep.subr.bf16.mxu0 0
  %890 = vmatpush1.bf16.msra.mxu0 0
  %891 = vmatprep.subr.bf16.mxu0 0
  %892 = vmatpush1.bf16.msra.mxu0 0
  %893 = vmatprep.subr.bf16.mxu0 0
  %894 = vmatpush1.bf16.msra.mxu0 0
  %895 = vmatprep.subr.bf16.mxu0 0
  %896 = vmatpush1.bf16.msra.mxu0 0
  %897 = vmatprep.subr.bf16.mxu0 0
  %898 = vmatpush1.bf16.msra.mxu0 0
  %899 = vmatprep.subr.bf16.mxu0 0
  %900 = vmatpush1.bf16.msra.mxu0 0
  %901 = vmatprep.mubr.bf16.mxu0 0
  %902 = vmatmul.mubr.bf16.gmra.mrb[0].mxu0 %v864
  %v903 = vpop.f32.mrb[0].mxu0
  %v904 = vadd.f32 0.0, %v903
  %v905 = vpop.f32.mrb[0].mxu0
  %v906 = vpop.f32.mrb[0].mxu0
  %v907 = vpop.f32.mrb[0].mxu0
  %908 = vdwg.mxu0
  %v909 = vadd.f32 %v749, %v904
  %910 = vst.msk [vmem:[#allocation2] sm:$0xff] %vm76, %v909
  %s911 = scalar_lea.vmem %s2, 1
  %v912 = vld [vmem:[%s911] sm:$0x1]
  %v913 = vpack.c.bf16 %v118, %v118
  %v914 = vpack.c.bf16 %v188, %v188
  %v915 = vpack.c.bf16 %v254, %v254
  %v917 = vsel %vm266, %v913, 0
  %v920 = vsel %vm266, %v914, 0
  %922 = vmatprep.subr.bf16.mxu0 0
  %923 = vmatpush1.bf16.xpose.msra.mxu0 %v920
  %924 = vmatprep.subr.bf16.mxu0 0
  %925 = vmatpush1.bf16.xpose.msra.mxu0 0
  %926 = vmatprep.subr.bf16.mxu0 0
  %927 = vmatpush1.bf16.xpose.msra.mxu0 0
  %928 = vmatprep.subr.bf16.mxu0 0
  %929 = vmatpush1.bf16.xpose.msra.mxu0 0
  %930 = vmatprep.subr.bf16.mxu0 0
  %931 = vmatpush1.bf16.xpose.msra.mxu0 0
  %932 = vmatprep.subr.bf16.mxu0 0
  %933 = vmatpush1.bf16.xpose.msra.mxu0 0
  %934 = vmatprep.subr.bf16.mxu0 0
  %935 = vmatpush1.bf16.xpose.msra.mxu0 0
  %936 = vmatprep.subr.bf16.mxu0 0
  %937 = vmatpush1.bf16.xpose.msra.mxu0 0
  %938 = vmatprep.subr.bf16.mxu0 0
  %939 = vmatpush1.bf16.xpose.msra.mxu0 0
  %940 = vmatprep.subr.bf16.mxu0 0
  %941 = vmatpush1.bf16.xpose.msra.mxu0 0
  %942 = vmatprep.subr.bf16.mxu0 0
  %943 = vmatpush1.bf16.xpose.msra.mxu0 0
  %944 = vmatprep.subr.bf16.mxu0 0
  %945 = vmatpush1.bf16.xpose.msra.mxu0 0
  %946 = vmatprep.subr.bf16.mxu0 0
  %947 = vmatpush1.bf16.xpose.msra.mxu0 0
  %948 = vmatprep.subr.bf16.mxu0 0
  %949 = vmatpush1.bf16.xpose.msra.mxu0 0
  %950 = vmatprep.subr.bf16.mxu0 0
  %951 = vmatpush1.bf16.xpose.msra.mxu0 0
  %952 = vmatprep.subr.bf16.mxu0 0
  %953 = vmatpush1.bf16.xpose.msra.mxu0 0
  %954 = vmatprep.mubr.bf16.mxu0 0
  %955 = vmatmul.mubr.bf16.gmra.mrb[0].mxu0 %v917
  %v956 = vpop.f32.mrb[0].mxu0
  %v957 = vadd.f32 0.0, %v956
  %v958 = vpop.f32.mrb[0].mxu0
  %v959 = vpop.f32.mrb[0].mxu0
  %v960 = vpop.f32.mrb[0].mxu0
  %961 = vdwg.mxu0
  %v962 = vmul.f32 %v957, 0.35355338
  %vm963 = vcmp.gt.f32.partialorder %v912, 0.0
  %v964 = vsel %vm963, 1, 0
  %v965 = vlaneseq
  %v966 = vshrl.u32 %v965, 7
  %v967 = vsub.s32 0, %v966
  %v968 = vrot.slane %v964, %v967
  %vm969 = vcmp.eq.s32.totalorder %v968, 1
  %v970 = vsel %vm969, %v962, -1e+09
  %v971 = vsel %vm266, %v970, -inf
  %972 = vmax.xlane.f32.xlu0 %v971
  %v973 = vpop.xlane.xlu0 %972
  %v974 = vsub.f32 %v970, %v973
  %v975 = vmul.f32 %v974, 1.442695
  %v976 = vpow.pop %v975
  %v977 = vsel %vm266, %v976, 0.0
  %978 = vadd.xlane.f32.xlu0 %v977
  %v979 = vpop.xlane.xlu0 %978
  %v980 = vrcp.pop %v979
  %v981 = vmul.f32 %v976, %v980
  %v982 = vpack.c.bf16 %v981, %v981
  %v984 = vsel %vm266, %v982, 0
  %v987 = vsel %vm337, %v915, 0
  %989 = vmatprep.subr.bf16.mxu0 0
  %990 = vmatpush1.bf16.msra.mxu0 %v987
  %991 = vmatprep.subr.bf16.mxu0 0
  %992 = vmatpush1.bf16.msra.mxu0 0
  %993 = vmatprep.subr.bf16.mxu0 0
  %994 = vmatpush1.bf16.msra.mxu0 0
  %995 = vmatprep.subr.bf16.mxu0 0
  %996 = vmatpush1.bf16.msra.mxu0 0
  %997 = vmatprep.subr.bf16.mxu0 0
  %998 = vmatpush1.bf16.msra.mxu0 0
  %999 = vmatprep.subr.bf16.mxu0 0
  %1000 = vmatpush1.bf16.msra.mxu0 0
  %1001 = vmatprep.subr.bf16.mxu0 0
  %1002 = vmatpush1.bf16.msra.mxu0 0
  %1003 = vmatprep.subr.bf16.mxu0 0
  %1004 = vmatpush1.bf16.msra.mxu0 0
  %1005 = vmatprep.subr.bf16.mxu0 0
  %1006 = vmatpush1.bf16.msra.mxu0 0
  %1007 = vmatprep.subr.bf16.mxu0 0
  %1008 = vmatpush1.bf16.msra.mxu0 0
  %1009 = vmatprep.subr.bf16.mxu0 0
  %1010 = vmatpush1.bf16.msra.mxu0 0
  %1011 = vmatprep.subr.bf16.mxu0 0
  %1012 = vmatpush1.bf16.msra.mxu0 0
  %1013 = vmatprep.subr.bf16.mxu0 0
  %1014 = vmatpush1.bf16.msra.mxu0 0
  %1015 = vmatprep.subr.bf16.mxu0 0
  %1016 = vmatpush1.bf16.msra.mxu0 0
  %1017 = vmatprep.subr.bf16.mxu0 0
  %1018 = vmatpush1.bf16.msra.mxu0 0
  %1019 = vmatprep.subr.bf16.mxu0 0
  %1020 = vmatpush1.bf16.msra.mxu0 0
  %1021 = vmatprep.mubr.bf16.mxu0 0
  %1022 = vmatmul.mubr.bf16.gmra.mrb[0].mxu0 %v984
  %v1023 = vpop.f32.mrb[0].mxu0
  %v1024 = vadd.f32 0.0, %v1023
  %v1025 = vpop.f32.mrb[0].mxu0
  %v1026 = vpop.f32.mrb[0].mxu0
  %v1027 = vpop.f32.mrb[0].mxu0
  %1028 = vdwg.mxu0
  %v1029 = vpack.c.bf16 %v1024, %v1024
  %1031 = vrot.lane.b32.xlu0 %v913, 120
  %v1032 = vpop.permute.xlu0 %1031
  %1034 = vrot.lane.b32.xlu0 %v914, 120
  %v1035 = vpop.permute.xlu0 %1034
  %v1037 = vsel %vm266, %v1032, 0
  %v1040 = vsel %vm266, %v1035, 0
  %1042 = vmatprep.subr.bf16.mxu0 0
  %1043 = vmatpush1.bf16.xpose.msra.mxu0 %v1040
  %1044 = vmatprep.subr.bf16.mxu0 0
  %1045 = vmatpush1.bf16.xpose.msra.mxu0 0
  %1046 = vmatprep.subr.bf16.mxu0 0
  %1047 = vmatpush1.bf16.xpose.msra.mxu0 0
  %1048 = vmatprep.subr.bf16.mxu0 0
  %1049 = vmatpush1.bf16.xpose.msra.mxu0 0
  %1050 = vmatprep.subr.bf16.mxu0 0
  %1051 = vmatpush1.bf16.xpose.msra.mxu0 0
  %1052 = vmatprep.subr.bf16.mxu0 0
  %1053 = vmatpush1.bf16.xpose.msra.mxu0 0
  %1054 = vmatprep.subr.bf16.mxu0 0
  %1055 = vmatpush1.bf16.xpose.msra.mxu0 0
  %1056 = vmatprep.subr.bf16.mxu0 0
  %1057 = vmatpush1.bf16.xpose.msra.mxu0 0
  %1058 = vmatprep.subr.bf16.mxu0 0
  %1059 = vmatpush1.bf16.xpose.msra.mxu0 0
  %1060 = vmatprep.subr.bf16.mxu0 0
  %1061 = vmatpush1.bf16.xpose.msra.mxu0 0
  %1062 = vmatprep.subr.bf16.mxu0 0
  %1063 = vmatpush1.bf16.xpose.msra.mxu0 0
  %1064 = vmatprep.subr.bf16.mxu0 0
  %1065 = vmatpush1.bf16.xpose.msra.mxu0 0
  %1066 = vmatprep.subr.bf16.mxu0 0
  %1067 = vmatpush1.bf16.xpose.msra.mxu0 0
  %1068 = vmatprep.subr.bf16.mxu0 0
  %1069 = vmatpush1.bf16.xpose.msra.mxu0 0
  %1070 = vmatprep.subr.bf16.mxu0 0
  %1071 = vmatpush1.bf16.xpose.msra.mxu0 0
  %1072 = vmatprep.subr.bf16.mxu0 0
  %1073 = vmatpush1.bf16.xpose.msra.mxu0 0
  %1074 = vmatprep.mubr.bf16.mxu0 0
  %1075 = vmatmul.mubr.bf16.gmra.mrb[0].mxu0 %v1037
  %v1076 = vpop.f32.mrb[0].mxu0
  %v1077 = vadd.f32 0.0, %v1076
  %v1078 = vpop.f32.mrb[0].mxu0
  %v1079 = vpop.f32.mrb[0].mxu0
  %v1080 = vpop.f32.mrb[0].mxu0
  %1081 = vdwg.mxu0
  %v1082 = vmul.f32 %v1077, 0.35355338
  %v1083 = vsel %vm969, %v1082, -1e+09
  %v1084 = vsel %vm266, %v1083, -inf
  %1085 = vmax.xlane.f32.xlu0 %v1084
  %v1086 = vpop.xlane.xlu0 %1085
  %v1087 = vsub.f32 %v1083, %v1086
  %v1088 = vmul.f32 %v1087, 1.442695
  %v1089 = vpow.pop %v1088
  %v1090 = vsel %vm266, %v1089, 0.0
  %1091 = vadd.xlane.f32.xlu0 %v1090
  %v1092 = vpop.xlane.xlu0 %1091
  %v1093 = vrcp.pop %v1092
  %v1094 = vmul.f32 %v1089, %v1093
  %v1095 = vpack.c.bf16 %v1094, %v1094
  %1097 = vrot.lane.b32.xlu0 %v915, 120
  %v1098 = vpop.permute.xlu0 %1097
  %v1100 = vsel %vm266, %v1095, 0
  %v1103 = vsel %vm337, %v1098, 0
  %1105 = vmatprep.subr.bf16.mxu0 0
  %1106 = vmatpush1.bf16.msra.mxu0 %v1103
  %1107 = vmatprep.subr.bf16.mxu0 0
  %1108 = vmatpush1.bf16.msra.mxu0 0
  %1109 = vmatprep.subr.bf16.mxu0 0
  %1110 = vmatpush1.bf16.msra.mxu0 0
  %1111 = vmatprep.subr.bf16.mxu0 0
  %1112 = vmatpush1.bf16.msra.mxu0 0
  %1113 = vmatprep.subr.bf16.mxu0 0
  %1114 = vmatpush1.bf16.msra.mxu0 0
  %1115 = vmatprep.subr.bf16.mxu0 0
  %1116 = vmatpush1.bf16.msra.mxu0 0
  %1117 = vmatprep.subr.bf16.mxu0 0
  %1118 = vmatpush1.bf16.msra.mxu0 0
  %1119 = vmatprep.subr.bf16.mxu0 0
  %1120 = vmatpush1.bf16.msra.mxu0 0
  %1121 = vmatprep.subr.bf16.mxu0 0
  %1122 = vmatpush1.bf16.msra.mxu0 0
  %1123 = vmatprep.subr.bf16.mxu0 0
  %1124 = vmatpush1.bf16.msra.mxu0 0
  %1125 = vmatprep.subr.bf16.mxu0 0
  %1126 = vmatpush1.bf16.msra.mxu0 0
  %1127 = vmatprep.subr.bf16.mxu0 0
  %1128 = vmatpush1.bf16.msra.mxu0 0
  %1129 = vmatprep.subr.bf16.mxu0 0
  %1130 = vmatpush1.bf16.msra.mxu0 0
  %1131 = vmatprep.subr.bf16.mxu0 0
  %1132 = vmatpush1.bf16.msra.mxu0 0
  %1133 = vmatprep.subr.bf16.mxu0 0
  %1134 = vmatpush1.bf16.msra.mxu0 0
  %1135 = vmatprep.subr.bf16.mxu0 0
  %1136 = vmatpush1.bf16.msra.mxu0 0
  %1137 = vmatprep.mubr.bf16.mxu0 0
  %1138 = vmatmul.mubr.bf16.gmra.mrb[0].mxu0 %v1100
  %v1139 = vpop.f32.mrb[0].mxu0
  %v1140 = vadd.f32 0.0, %v1139
  %v1141 = vpop.f32.mrb[0].mxu0
  %v1142 = vpop.f32.mrb[0].mxu0
  %v1143 = vpop.f32.mrb[0].mxu0
  %1144 = vdwg.mxu0
  %v1145 = vpack.c.bf16 %v1140, %v1140
  %v1147 = vsel %vm266, %v1145, 0
  %1149 = vmatprep.subr.bf16.mxu0 0
  %1150 = vmatpush1.bf16.msra.mxu0 %v502
  %1151 = vmatprep.subr.bf16.mxu0 0
  %1152 = vmatpush1.bf16.msra.mxu0 0
  %1153 = vmatprep.subr.bf16.mxu0 0
  %1154 = vmatpush1.bf16.msra.mxu0 0
  %1155 = vmatprep.subr.bf16.mxu0 0
  %1156 = vmatpush1.bf16.msra.mxu0 0
  %1157 = vmatprep.subr.bf16.mxu0 0
  %1158 = vmatpush1.bf16.msra.mxu0 0
  %1159 = vmatprep.subr.bf16.mxu0 0
  %1160 = vmatpush1.bf16.msra.mxu0 0
  %1161 = vmatprep.subr.bf16.mxu0 0
  %1162 = vmatpush1.bf16.msra.mxu0 0
  %1163 = vmatprep.subr.bf16.mxu0 0
  %1164 = vmatpush1.bf16.msra.mxu0 0
  %1165 = vmatprep.subr.bf16.mxu0 0
  %1166 = vmatpush1.bf16.msra.mxu0 0
  %1167 = vmatprep.subr.bf16.mxu0 0
  %1168 = vmatpush1.bf16.msra.mxu0 0
  %1169 = vmatprep.subr.bf16.mxu0 0
  %1170 = vmatpush1.bf16.msra.mxu0 0
  %1171 = vmatprep.subr.bf16.mxu0 0
  %1172 = vmatpush1.bf16.msra.mxu0 0
  %1173 = vmatprep.subr.bf16.mxu0 0
  %1174 = vmatpush1.bf16.msra.mxu0 0
  %1175 = vmatprep.subr.bf16.mxu0 0
  %1176 = vmatpush1.bf16.msra.mxu0 0
  %1177 = vmatprep.subr.bf16.mxu0 0
  %1178 = vmatpush1.bf16.msra.mxu0 0
  %1179 = vmatprep.subr.bf16.mxu0 0
  %1180 = vmatpush1.bf16.msra.mxu0 0
  %1181 = vmatprep.mubr.bf16.mxu0 0
  %1182 = vmatmul.mubr.bf16.gmra.mrb[0].mxu0 %v1147
  %v1183 = vpop.f32.mrb[0].mxu0
  %v1184 = vadd.f32 0.0, %v1183
  %v1185 = vpop.f32.mrb[0].mxu0
  %v1186 = vpop.f32.mrb[0].mxu0
  %v1187 = vpop.f32.mrb[0].mxu0
  %1188 = vdwg.mxu0
  %v1190 = vsel %vm266, %v1029, 0
  %1192 = vmatprep.subr.bf16.mxu0 0
  %1193 = vmatpush1.bf16.msra.mxu0 %v548
  %1194 = vmatprep.subr.bf16.mxu0 0
  %1195 = vmatpush1.bf16.msra.mxu0 0
  %1196 = vmatprep.subr.bf16.mxu0 0
  %1197 = vmatpush1.bf16.msra.mxu0 0
  %1198 = vmatprep.subr.bf16.mxu0 0
  %1199 = vmatpush1.bf16.msra.mxu0 0
  %1200 = vmatprep.subr.bf16.mxu0 0
  %1201 = vmatpush1.bf16.msra.mxu0 0
  %1202 = vmatprep.subr.bf16.mxu0 0
  %1203 = vmatpush1.bf16.msra.mxu0 0
  %1204 = vmatprep.subr.bf16.mxu0 0
  %1205 = vmatpush1.bf16.msra.mxu0 0
  %1206 = vmatprep.subr.bf16.mxu0 0
  %1207 = vmatpush1.bf16.msra.mxu0 0
  %1208 = vmatprep.subr.bf16.mxu0 0
  %1209 = vmatpush1.bf16.msra.mxu0 0
  %1210 = vmatprep.subr.bf16.mxu0 0
  %1211 = vmatpush1.bf16.msra.mxu0 0
  %1212 = vmatprep.subr.bf16.mxu0 0
  %1213 = vmatpush1.bf16.msra.mxu0 0
  %1214 = vmatprep.subr.bf16.mxu0 0
  %1215 = vmatpush1.bf16.msra.mxu0 0
  %1216 = vmatprep.subr.bf16.mxu0 0
  %1217 = vmatpush1.bf16.msra.mxu0 0
  %1218 = vmatprep.subr.bf16.mxu0 0
  %1219 = vmatpush1.bf16.msra.mxu0 0
  %1220 = vmatprep.subr.bf16.mxu0 0
  %1221 = vmatpush1.bf16.msra.mxu0 0
  %1222 = vmatprep.subr.bf16.mxu0 0
  %1223 = vmatpush1.bf16.msra.mxu0 0
  %1224 = vmatprep.mubr.bf16.mxu0 0
  %1225 = vmatmul.mubr.bf16.gmra.mrb[0].mxu0 %v1190
  %v1226 = vpop.f32.mrb[0].mxu0
  %v1227 = vadd.f32 %v1184, %v1226
  %v1228 = vpop.f32.mrb[0].mxu0
  %v1229 = vpop.f32.mrb[0].mxu0
  %v1230 = vpop.f32.mrb[0].mxu0
  %1231 = vdwg.mxu0
  %1232 = vrot.lane.b32.xlu0 %v913, 112
  %v1233 = vpop.permute.xlu0 %1232
  %1234 = vrot.lane.b32.xlu0 %v914, 112
  %v1235 = vpop.permute.xlu0 %1234
  %v1237 = vsel %vm266, %v1233, 0
  %v1240 = vsel %vm266, %v1235, 0
  %1242 = vmatprep.subr.bf16.mxu0 0
  %1243 = vmatpush1.bf16.xpose.msra.mxu0 %v1240
  %1244 = vmatprep.subr.bf16.mxu0 0
  %1245 = vmatpush1.bf16.xpose.msra.mxu0 0
  %1246 = vmatprep.subr.bf16.mxu0 0
  %1247 = vmatpush1.bf16.xpose.msra.mxu0 0
  %1248 = vmatprep.subr.bf16.mxu0 0
  %1249 = vmatpush1.bf16.xpose.msra.mxu0 0
  %1250 = vmatprep.subr.bf16.mxu0 0
  %1251 = vmatpush1.bf16.xpose.msra.mxu0 0
  %1252 = vmatprep.subr.bf16.mxu0 0
  %1253 = vmatpush1.bf16.xpose.msra.mxu0 0
  %1254 = vmatprep.subr.bf16.mxu0 0
  %1255 = vmatpush1.bf16.xpose.msra.mxu0 0
  %1256 = vmatprep.subr.bf16.mxu0 0
  %1257 = vmatpush1.bf16.xpose.msra.mxu0 0
  %1258 = vmatprep.subr.bf16.mxu0 0
  %1259 = vmatpush1.bf16.xpose.msra.mxu0 0
  %1260 = vmatprep.subr.bf16.mxu0 0
  %1261 = vmatpush1.bf16.xpose.msra.mxu0 0
  %1262 = vmatprep.subr.bf16.mxu0 0
  %1263 = vmatpush1.bf16.xpose.msra.mxu0 0
  %1264 = vmatprep.subr.bf16.mxu0 0
  %1265 = vmatpush1.bf16.xpose.msra.mxu0 0
  %1266 = vmatprep.subr.bf16.mxu0 0
  %1267 = vmatpush1.bf16.xpose.msra.mxu0 0
  %1268 = vmatprep.subr.bf16.mxu0 0
  %1269 = vmatpush1.bf16.xpose.msra.mxu0 0
  %1270 = vmatprep.subr.bf16.mxu0 0
  %1271 = vmatpush1.bf16.xpose.msra.mxu0 0
  %1272 = vmatprep.subr.bf16.mxu0 0
  %1273 = vmatpush1.bf16.xpose.msra.mxu0 0
  %1274 = vmatprep.mubr.bf16.mxu0 0
  %1275 = vmatmul.mubr.bf16.gmra.mrb[0].mxu0 %v1237
  %v1276 = vpop.f32.mrb[0].mxu0
  %v1277 = vadd.f32 0.0, %v1276
  %v1278 = vpop.f32.mrb[0].mxu0
  %v1279 = vpop.f32.mrb[0].mxu0
  %v1280 = vpop.f32.mrb[0].mxu0
  %1281 = vdwg.mxu0
  %v1282 = vmul.f32 %v1277, 0.35355338
  %v1283 = vsel %vm969, %v1282, -1e+09
  %v1284 = vsel %vm266, %v1283, -inf
  %1285 = vmax.xlane.f32.xlu0 %v1284
  %v1286 = vpop.xlane.xlu0 %1285
  %v1287 = vsub.f32 %v1283, %v1286
  %v1288 = vmul.f32 %v1287, 1.442695
  %v1289 = vpow.pop %v1288
  %v1290 = vsel %vm266, %v1289, 0.0
  %1291 = vadd.xlane.f32.xlu0 %v1290
  %v1292 = vpop.xlane.xlu0 %1291
  %v1293 = vrcp.pop %v1292
  %v1294 = vmul.f32 %v1289, %v1293
  %v1295 = vpack.c.bf16 %v1294, %v1294
  %1296 = vrot.lane.b32.xlu0 %v915, 112
  %v1297 = vpop.permute.xlu0 %1296
  %v1299 = vsel %vm266, %v1295, 0
  %v1302 = vsel %vm337, %v1297, 0
  %1304 = vmatprep.subr.bf16.mxu0 0
  %1305 = vmatpush1.bf16.msra.mxu0 %v1302
  %1306 = vmatprep.subr.bf16.mxu0 0
  %1307 = vmatpush1.bf16.msra.mxu0 0
  %1308 = vmatprep.subr.bf16.mxu0 0
  %1309 = vmatpush1.bf16.msra.mxu0 0
  %1310 = vmatprep.subr.bf16.mxu0 0
  %1311 = vmatpush1.bf16.msra.mxu0 0
  %1312 = vmatprep.subr.bf16.mxu0 0
  %1313 = vmatpush1.bf16.msra.mxu0 0
  %1314 = vmatprep.subr.bf16.mxu0 0
  %1315 = vmatpush1.bf16.msra.mxu0 0
  %1316 = vmatprep.subr.bf16.mxu0 0
  %1317 = vmatpush1.bf16.msra.mxu0 0
  %1318 = vmatprep.subr.bf16.mxu0 0
  %1319 = vmatpush1.bf16.msra.mxu0 0
  %1320 = vmatprep.subr.bf16.mxu0 0
  %1321 = vmatpush1.bf16.msra.mxu0 0
  %1322 = vmatprep.subr.bf16.mxu0 0
  %1323 = vmatpush1.bf16.msra.mxu0 0
  %1324 = vmatprep.subr.bf16.mxu0 0
  %1325 = vmatpush1.bf16.msra.mxu0 0
  %1326 = vmatprep.subr.bf16.mxu0 0
  %1327 = vmatpush1.bf16.msra.mxu0 0
  %1328 = vmatprep.subr.bf16.mxu0 0
  %1329 = vmatpush1.bf16.msra.mxu0 0
  %1330 = vmatprep.subr.bf16.mxu0 0
  %1331 = vmatpush1.bf16.msra.mxu0 0
  %1332 = vmatprep.subr.bf16.mxu0 0
  %1333 = vmatpush1.bf16.msra.mxu0 0
  %1334 = vmatprep.subr.bf16.mxu0 0
  %1335 = vmatpush1.bf16.msra.mxu0 0
  %1336 = vmatprep.mubr.bf16.mxu0 0
  %1337 = vmatmul.mubr.bf16.gmra.mrb[0].mxu0 %v1299
  %v1338 = vpop.f32.mrb[0].mxu0
  %v1339 = vadd.f32 0.0, %v1338
  %v1340 = vpop.f32.mrb[0].mxu0
  %v1341 = vpop.f32.mrb[0].mxu0
  %v1342 = vpop.f32.mrb[0].mxu0
  %1343 = vdwg.mxu0
  %v1344 = vpack.c.bf16 %v1339, %v1339
  %v1346 = vsel %vm266, %v1344, 0
  %1348 = vmatprep.subr.bf16.mxu0 0
  %1349 = vmatpush1.bf16.msra.mxu0 %v707
  %1350 = vmatprep.subr.bf16.mxu0 0
  %1351 = vmatpush1.bf16.msra.mxu0 0
  %1352 = vmatprep.subr.bf16.mxu0 0
  %1353 = vmatpush1.bf16.msra.mxu0 0
  %1354 = vmatprep.subr.bf16.mxu0 0
  %1355 = vmatpush1.bf16.msra.mxu0 0
  %1356 = vmatprep.subr.bf16.mxu0 0
  %1357 = vmatpush1.bf16.msra.mxu0 0
  %1358 = vmatprep.subr.bf16.mxu0 0
  %1359 = vmatpush1.bf16.msra.mxu0 0
  %1360 = vmatprep.subr.bf16.mxu0 0
  %1361 = vmatpush1.bf16.msra.mxu0 0
  %1362 = vmatprep.subr.bf16.mxu0 0
  %1363 = vmatpush1.bf16.msra.mxu0 0
  %1364 = vmatprep.subr.bf16.mxu0 0
  %1365 = vmatpush1.bf16.msra.mxu0 0
  %1366 = vmatprep.subr.bf16.mxu0 0
  %1367 = vmatpush1.bf16.msra.mxu0 0
  %1368 = vmatprep.subr.bf16.mxu0 0
  %1369 = vmatpush1.bf16.msra.mxu0 0
  %1370 = vmatprep.subr.bf16.mxu0 0
  %1371 = vmatpush1.bf16.msra.mxu0 0
  %1372 = vmatprep.subr.bf16.mxu0 0
  %1373 = vmatpush1.bf16.msra.mxu0 0
  %1374 = vmatprep.subr.bf16.mxu0 0
  %1375 = vmatpush1.bf16.msra.mxu0 0
  %1376 = vmatprep.subr.bf16.mxu0 0
  %1377 = vmatpush1.bf16.msra.mxu0 0
  %1378 = vmatprep.subr.bf16.mxu0 0
  %1379 = vmatpush1.bf16.msra.mxu0 0
  %1380 = vmatprep.mubr.bf16.mxu0 0
  %1381 = vmatmul.mubr.bf16.gmra.mrb[0].mxu0 %v1346
  %v1382 = vpop.f32.mrb[0].mxu0
  %v1383 = vadd.f32 0.0, %v1382
  %v1384 = vpop.f32.mrb[0].mxu0
  %v1385 = vpop.f32.mrb[0].mxu0
  %v1386 = vpop.f32.mrb[0].mxu0
  %1387 = vdwg.mxu0
  %v1388 = vadd.f32 %v1227, %v1383
  %1389 = vrot.lane.b32.xlu0 %v913, 104
  %v1390 = vpop.permute.xlu0 %1389
  %1391 = vrot.lane.b32.xlu0 %v914, 104
  %v1392 = vpop.permute.xlu0 %1391
  %v1394 = vsel %vm266, %v1390, 0
  %v1397 = vsel %vm266, %v1392, 0
  %1399 = vmatprep.subr.bf16.mxu0 0
  %1400 = vmatpush1.bf16.xpose.msra.mxu0 %v1397
  %1401 = vmatprep.subr.bf16.mxu0 0
  %1402 = vmatpush1.bf16.xpose.msra.mxu0 0
  %1403 = vmatprep.subr.bf16.mxu0 0
  %1404 = vmatpush1.bf16.xpose.msra.mxu0 0
  %1405 = vmatprep.subr.bf16.mxu0 0
  %1406 = vmatpush1.bf16.xpose.msra.mxu0 0
  %1407 = vmatprep.subr.bf16.mxu0 0
  %1408 = vmatpush1.bf16.xpose.msra.mxu0 0
  %1409 = vmatprep.subr.bf16.mxu0 0
  %1410 = vmatpush1.bf16.xpose.msra.mxu0 0
  %1411 = vmatprep.subr.bf16.mxu0 0
  %1412 = vmatpush1.bf16.xpose.msra.mxu0 0
  %1413 = vmatprep.subr.bf16.mxu0 0
  %1414 = vmatpush1.bf16.xpose.msra.mxu0 0
  %1415 = vmatprep.subr.bf16.mxu0 0
  %1416 = vmatpush1.bf16.xpose.msra.mxu0 0
  %1417 = vmatprep.subr.bf16.mxu0 0
  %1418 = vmatpush1.bf16.xpose.msra.mxu0 0
  %1419 = vmatprep.subr.bf16.mxu0 0
  %1420 = vmatpush1.bf16.xpose.msra.mxu0 0
  %1421 = vmatprep.subr.bf16.mxu0 0
  %1422 = vmatpush1.bf16.xpose.msra.mxu0 0
  %1423 = vmatprep.subr.bf16.mxu0 0
  %1424 = vmatpush1.bf16.xpose.msra.mxu0 0
  %1425 = vmatprep.subr.bf16.mxu0 0
  %1426 = vmatpush1.bf16.xpose.msra.mxu0 0
  %1427 = vmatprep.subr.bf16.mxu0 0
  %1428 = vmatpush1.bf16.xpose.msra.mxu0 0
  %1429 = vmatprep.subr.bf16.mxu0 0
  %1430 = vmatpush1.bf16.xpose.msra.mxu0 0
  %1431 = vmatprep.mubr.bf16.mxu0 0
  %1432 = vmatmul.mubr.bf16.gmra.mrb[0].mxu0 %v1394
  %v1433 = vpop.f32.mrb[0].mxu0
  %v1434 = vadd.f32 0.0, %v1433
  %v1435 = vpop.f32.mrb[0].mxu0
  %v1436 = vpop.f32.mrb[0].mxu0
  %v1437 = vpop.f32.mrb[0].mxu0
  %1438 = vdwg.mxu0
  %v1439 = vmul.f32 %v1434, 0.35355338
  %v1440 = vsel %vm969, %v1439, -1e+09
  %v1441 = vsel %vm266, %v1440, -inf
  %1442 = vmax.xlane.f32.xlu0 %v1441
  %v1443 = vpop.xlane.xlu0 %1442
  %v1444 = vsub.f32 %v1440, %v1443
  %v1445 = vmul.f32 %v1444, 1.442695
  %v1446 = vpow.pop %v1445
  %v1447 = vsel %vm266, %v1446, 0.0
  %1448 = vadd.xlane.f32.xlu0 %v1447
  %v1449 = vpop.xlane.xlu0 %1448
  %v1450 = vrcp.pop %v1449
  %v1451 = vmul.f32 %v1446, %v1450
  %v1452 = vpack.c.bf16 %v1451, %v1451
  %1453 = vrot.lane.b32.xlu0 %v915, 104
  %v1454 = vpop.permute.xlu0 %1453
  %v1456 = vsel %vm266, %v1452, 0
  %v1459 = vsel %vm337, %v1454, 0
  %1461 = vmatprep.subr.bf16.mxu0 0
  %1462 = vmatpush1.bf16.msra.mxu0 %v1459
  %1463 = vmatprep.subr.bf16.mxu0 0
  %1464 = vmatpush1.bf16.msra.mxu0 0
  %1465 = vmatprep.subr.bf16.mxu0 0
  %1466 = vmatpush1.bf16.msra.mxu0 0
  %1467 = vmatprep.subr.bf16.mxu0 0
  %1468 = vmatpush1.bf16.msra.mxu0 0
  %1469 = vmatprep.subr.bf16.mxu0 0
  %1470 = vmatpush1.bf16.msra.mxu0 0
  %1471 = vmatprep.subr.bf16.mxu0 0
  %1472 = vmatpush1.bf16.msra.mxu0 0
  %1473 = vmatprep.subr.bf16.mxu0 0
  %1474 = vmatpush1.bf16.msra.mxu0 0
  %1475 = vmatprep.subr.bf16.mxu0 0
  %1476 = vmatpush1.bf16.msra.mxu0 0
  %1477 = vmatprep.subr.bf16.mxu0 0
  %1478 = vmatpush1.bf16.msra.mxu0 0
  %1479 = vmatprep.subr.bf16.mxu0 0
  %1480 = vmatpush1.bf16.msra.mxu0 0
  %1481 = vmatprep.subr.bf16.mxu0 0
  %1482 = vmatpush1.bf16.msra.mxu0 0
  %1483 = vmatprep.subr.bf16.mxu0 0
  %1484 = vmatpush1.bf16.msra.mxu0 0
  %1485 = vmatprep.subr.bf16.mxu0 0
  %1486 = vmatpush1.bf16.msra.mxu0 0
  %1487 = vmatprep.subr.bf16.mxu0 0
  %1488 = vmatpush1.bf16.msra.mxu0 0
  %1489 = vmatprep.subr.bf16.mxu0 0
  %1490 = vmatpush1.bf16.msra.mxu0 0
  %1491 = vmatprep.subr.bf16.mxu0 0
  %1492 = vmatpush1.bf16.msra.mxu0 0
  %1493 = vmatprep.mubr.bf16.mxu0 0
  %1494 = vmatmul.mubr.bf16.gmra.mrb[0].mxu0 %v1456
  %v1495 = vpop.f32.mrb[0].mxu0
  %v1496 = vadd.f32 0.0, %v1495
  %v1497 = vpop.f32.mrb[0].mxu0
  %v1498 = vpop.f32.mrb[0].mxu0
  %v1499 = vpop.f32.mrb[0].mxu0
  %1500 = vdwg.mxu0
  %v1501 = vpack.c.bf16 %v1496, %v1496
  %v1503 = vsel %vm266, %v1501, 0
  %1505 = vmatprep.subr.bf16.mxu0 0
  %1506 = vmatpush1.bf16.msra.mxu0 %v867
  %1507 = vmatprep.subr.bf16.mxu0 0
  %1508 = vmatpush1.bf16.msra.mxu0 0
  %1509 = vmatprep.subr.bf16.mxu0 0
  %1510 = vmatpush1.bf16.msra.mxu0 0
  %1511 = vmatprep.subr.bf16.mxu0 0
  %1512 = vmatpush1.bf16.msra.mxu0 0
  %1513 = vmatprep.subr.bf16.mxu0 0
  %1514 = vmatpush1.bf16.msra.mxu0 0
  %1515 = vmatprep.subr.bf16.mxu0 0
  %1516 = vmatpush1.bf16.msra.mxu0 0
  %1517 = vmatprep.subr.bf16.mxu0 0
  %1518 = vmatpush1.bf16.msra.mxu0 0
  %1519 = vmatprep.subr.bf16.mxu0 0
  %1520 = vmatpush1.bf16.msra.mxu0 0
  %1521 = vmatprep.subr.bf16.mxu0 0
  %1522 = vmatpush1.bf16.msra.mxu0 0
  %1523 = vmatprep.subr.bf16.mxu0 0
  %1524 = vmatpush1.bf16.msra.mxu0 0
  %1525 = vmatprep.subr.bf16.mxu0 0
  %1526 = vmatpush1.bf16.msra.mxu0 0
  %1527 = vmatprep.subr.bf16.mxu0 0
  %1528 = vmatpush1.bf16.msra.mxu0 0
  %1529 = vmatprep.subr.bf16.mxu0 0
  %1530 = vmatpush1.bf16.msra.mxu0 0
  %1531 = vmatprep.subr.bf16.mxu0 0
  %1532 = vmatpush1.bf16.msra.mxu0 0
  %1533 = vmatprep.subr.bf16.mxu0 0
  %1534 = vmatpush1.bf16.msra.mxu0 0
  %1535 = vmatprep.subr.bf16.mxu0 0
  %1536 = vmatpush1.bf16.msra.mxu0 0
  %1537 = vmatprep.mubr.bf16.mxu0 0
  %1538 = vmatmul.mubr.bf16.gmra.mrb[0].mxu0 %v1503
  %v1539 = vpop.f32.mrb[0].mxu0
  %v1540 = vadd.f32 0.0, %v1539
  %v1541 = vpop.f32.mrb[0].mxu0
  %v1542 = vpop.f32.mrb[0].mxu0
  %v1543 = vpop.f32.mrb[0].mxu0
  %1544 = vdwg.mxu0
  %v1545 = vadd.f32 %v1388, %v1540
  %1546 = vst.msk [vmem:[#allocation2 + $0x8] sm:$0xff] %vm76, %v1545
  %v1547 = vld [vmem:[#allocation2] sm:$0xff]
  %v1548 = vld [vmem:[#allocation2 + $0x8] sm:$0xff]
  %s1549 = scalar_lea.vmem %s4, 3
  %v1550 = vld [vmem:[%s1549] sm:$0x1]
  %v1552 = vlaneseq
  %v1553 = vshrl.u32 %v1552, 7
  %v1554 = vsub.s32 0, %v1553
  %v1555 = vrot.slane %v1550, %v1554
  %v1557 = vadd.f32 %v1547, %v1555
  %v1558 = vadd.f32 %v1548, %v1555
  %v1559 = vadd.f32 %v48, %v1557
  %v1560 = vadd.f32 %v49, %v1558
  %v1561 = vld [vmem:[%s5] sm:$0x1]
  %s1562 = scalar_lea.vmem %s5, 1
  %v1563 = vld [vmem:[%s1562] sm:$0x1]
  %v1564 = vsel %vm76, %v1559, 0.0
  %1565 = vadd.xlane.f32.xlu0 %v1564
  %v1566 = vpop.xlane.xlu0 %1565
  %v1567 = vsel %vm76, %v1560, 0.0
  %1568 = vadd.xlane.f32.xlu0 %v1567
  %v1569 = vpop.xlane.xlu0 %1568
  %v1570 = vrcp.pop 32.0
  %v1571 = vmul.f32 %v1566, %v1570
  %v1572 = vmul.f32 %v1569, %v1570
  %v1573 = vsub.f32 %v1559, %v1571
  %v1574 = vsub.f32 %v1560, %v1572
  %v1575 = vmul.f32 %v1573, %v1573
  %v1576 = vmul.f32 %v1574, %v1574
  %v1577 = vsel %vm76, %v1575, 0.0
  %1578 = vadd.xlane.f32.xlu0 %v1577
  %v1579 = vpop.xlane.xlu0 %1578
  %v1580 = vsel %vm76, %v1576, 0.0
  %1581 = vadd.xlane.f32.xlu0 %v1580
  %v1582 = vpop.xlane.xlu0 %1581
  %v1583 = vmul.f32 %v1579, %v1570
  %v1584 = vmul.f32 %v1582, %v1570
  %v1585 = vadd.f32 %v1583, 1e-05
  %v1586 = vadd.f32 %v1584, 1e-05
  %v1587 = vrsqrt.pop %v1585
  %v1588 = vrsqrt.pop %v1586
  %v1589 = vmul.f32 %v1573, %v1587
  %v1590 = vmul.f32 %v1574, %v1588
  %v1592 = vlaneseq
  %v1593 = vshrl.u32 %v1592, 7
  %v1594 = vsub.s32 0, %v1593
  %v1595 = vrot.slane %v1561, %v1594
  %v1597 = vmul.f32 %v1589, %v1595
  %v1598 = vmul.f32 %v1590, %v1595
  %v1600 = vlaneseq
  %v1601 = vshrl.u32 %v1600, 7
  %v1602 = vsub.s32 0, %v1601
  %v1603 = vrot.slane %v1563, %v1602
  %v1605 = vadd.f32 %v1597, %v1603
  %v1606 = vadd.f32 %v1598, %v1603
  %v1607 = vld [vmem:[%s6] sm:$0xf]
  %v1608 = vld [vmem:[%s6 + $0x4] sm:$0xf]
  %v1609 = vld [vmem:[%s6 + $0x8] sm:$0xf]
  %v1610 = vld [vmem:[%s6 + $0xc] sm:$0xf]
  %v1611 = vld [vmem:[%s7] sm:$0x1]
  %v1612 = vpack.c.bf16 %v1606, %v1605
  %v1614 = vlaneseq
  %v1615 = vshrl.u32 %v1614, 7
  %v1616 = vsub.s32 0, %v1615
  %v1617 = vrot.slane %v1611, %v1616
  %v1623 = vunpack.c.l.b16 %v1607
  %v1624 = vunpack.c.l.b16 %v1608
  %v1625 = vunpack.c.l.b16 %v1609
  %v1626 = vunpack.c.l.b16 %v1610
  %v1627 = vpack.c.b16 %v1624, %v1623
  %v1628 = vpack.c.b16 %v1626, %v1625
  %v1632 = vsel %vm76, %v1612, 0
  %1634 = vmatprep.subr.bf16.mxu0 0
  %1635 = vmatpush1.bf16.msra.mxu0 %v1627
  %1636 = vmatprep.subr.bf16.mxu0 0
  %1637 = vmatpush1.bf16.msra.mxu0 %v1628
  %1638 = vmatprep.subr.bf16.mxu0 0
  %1639 = vmatpush1.bf16.msra.mxu0 0
  %1640 = vmatprep.subr.bf16.mxu0 0
  %1641 = vmatpush1.bf16.msra.mxu0 0
  %1642 = vmatprep.subr.bf16.mxu0 0
  %1643 = vmatpush1.bf16.msra.mxu0 0
  %1644 = vmatprep.subr.bf16.mxu0 0
  %1645 = vmatpush1.bf16.msra.mxu0 0
  %1646 = vmatprep.subr.bf16.mxu0 0
  %1647 = vmatpush1.bf16.msra.mxu0 0
  %1648 = vmatprep.subr.bf16.mxu0 0
  %1649 = vmatpush1.bf16.msra.mxu0 0
  %1650 = vmatprep.subr.bf16.mxu0 0
  %1651 = vmatpush1.bf16.msra.mxu0 0
  %1652 = vmatprep.subr.bf16.mxu0 0
  %1653 = vmatpush1.bf16.msra.mxu0 0
  %1654 = vmatprep.subr.bf16.mxu0 0
  %1655 = vmatpush1.bf16.msra.mxu0 0
  %1656 = vmatprep.subr.bf16.mxu0 0
  %1657 = vmatpush1.bf16.msra.mxu0 0
  %1658 = vmatprep.subr.bf16.mxu0 0
  %1659 = vmatpush1.bf16.msra.mxu0 0
  %1660 = vmatprep.subr.bf16.mxu0 0
  %1661 = vmatpush1.bf16.msra.mxu0 0
  %1662 = vmatprep.subr.bf16.mxu0 0
  %1663 = vmatpush1.bf16.msra.mxu0 0
  %1664 = vmatprep.subr.bf16.mxu0 0
  %1665 = vmatpush1.bf16.msra.mxu0 0
  %1666 = vmatprep.mubr.bf16.mxu0 0
  %1667 = vmatmul.mubr.bf16.gmra.mrb[0].mxu0 %v1632
  %v1668 = vpop.f32.mrb[0].mxu0
  %v1669 = vadd.f32 %v1617, %v1668
  %v1670 = vpop.f32.mrb[0].mxu0
  %v1671 = vpop.f32.mrb[0].mxu0
  %v1672 = vadd.f32 %v1617, %v1671
  %v1673 = vpop.f32.mrb[0].mxu0
  %1674 = vdwg.mxu0
  %v1675 = vmax.f32 %v1669, 0.0
  %v1676 = vmax.f32 %v1672, 0.0
  %v1677 = vld [vmem:[%s8] sm:$0xf]
  %v1678 = vld [vmem:[%s8 + $0x4] sm:$0xf]
  %v1679 = vld [vmem:[%s8 + $0x8] sm:$0xf]
  %v1680 = vld [vmem:[%s8 + $0xc] sm:$0xf]
  %v1681 = vld [vmem:[%s8 + $0x10] sm:$0xf]
  %v1682 = vld [vmem:[%s8 + $0x14] sm:$0xf]
  %v1683 = vld [vmem:[%s8 + $0x18] sm:$0xf]
  %v1684 = vld [vmem:[%s8 + $0x1c] sm:$0xf]
  %v1685 = vld [vmem:[%s9] sm:$0x1]
  %v1686 = vpack.c.bf16 %v1676, %v1675
  %v1688 = vlaneseq
  %v1689 = vshrl.u32 %v1688, 7
  %v1690 = vsub.s32 0, %v1689
  %v1691 = vrot.slane %v1685, %v1690
  %v1701 = vunpack.c.l.b16 %v1677
  %v1702 = vunpack.c.l.b16 %v1678
  %v1703 = vunpack.c.l.b16 %v1679
  %v1704 = vunpack.c.l.b16 %v1680
  %v1705 = vunpack.c.l.b16 %v1681
  %v1706 = vunpack.c.l.b16 %v1682
  %v1707 = vunpack.c.l.b16 %v1683
  %v1708 = vunpack.c.l.b16 %v1684
  %v1709 = vpack.c.b16 %v1702, %v1701
  %v1710 = vpack.c.b16 %v1704, %v1703
  %v1711 = vpack.c.b16 %v1706, %v1705
  %v1712 = vpack.c.b16 %v1708, %v1707
  %vm1717 = vcmask 523264
  %v1719 = vsel %vm1717, %v1686, 0
  %1721 = vmatprep.subr.bf16.mxu0 0
  %1722 = vmatpush1.bf16.msra.mxu0 %v1709
  %1723 = vmatprep.subr.bf16.mxu0 0
  %1724 = vmatpush1.bf16.msra.mxu0 %v1710
  %1725 = vmatprep.subr.bf16.mxu0 0
  %1726 = vmatpush1.bf16.msra.mxu0 %v1711
  %1727 = vmatprep.subr.bf16.mxu0 0
  %1728 = vmatpush1.bf16.msra.mxu0 %v1712
  %1729 = vmatprep.subr.bf16.mxu0 0
  %1730 = vmatpush1.bf16.msra.mxu0 0
  %1731 = vmatprep.subr.bf16.mxu0 0
  %1732 = vmatpush1.bf16.msra.mxu0 0
  %1733 = vmatprep.subr.bf16.mxu0 0
  %1734 = vmatpush1.bf16.msra.mxu0 0
  %1735 = vmatprep.subr.bf16.mxu0 0
  %1736 = vmatpush1.bf16.msra.mxu0 0
  %1737 = vmatprep.subr.bf16.mxu0 0
  %1738 = vmatpush1.bf16.msra.mxu0 0
  %1739 = vmatprep.subr.bf16.mxu0 0
  %1740 = vmatpush1.bf16.msra.mxu0 0
  %1741 = vmatprep.subr.bf16.mxu0 0
  %1742 = vmatpush1.bf16.msra.mxu0 0
  %1743 = vmatprep.subr.bf16.mxu0 0
  %1744 = vmatpush1.bf16.msra.mxu0 0
  %1745 = vmatprep.subr.bf16.mxu0 0
  %1746 = vmatpush1.bf16.msra.mxu0 0
  %1747 = vmatprep.subr.bf16.mxu0 0
  %1748 = vmatpush1.bf16.msra.mxu0 0
  %1749 = vmatprep.subr.bf16.mxu0 0
  %1750 = vmatpush1.bf16.msra.mxu0 0
  %1751 = vmatprep.subr.bf16.mxu0 0
  %1752 = vmatpush1.bf16.msra.mxu0 0
  %1753 = vmatprep.mubr.bf16.mxu0 0
  %1754 = vmatmul.mubr.bf16.gmra.mrb[0].mxu0 %v1719
  %v1755 = vpop.f32.mrb[0].mxu0
  %v1756 = vadd.f32 %v1691, %v1755
  %v1757 = vpop.f32.mrb[0].mxu0
  %v1758 = vpop.f32.mrb[0].mxu0
  %v1759 = vadd.f32 %v1691, %v1758
  %v1760 = vpop.f32.mrb[0].mxu0
  %1761 = vdwg.mxu0
  %v1762 = vadd.f32 %v1605, %v1756
  %v1763 = vadd.f32 %v1606, %v1759
  %s1764 = scalar_lea.vmem %s5, 2
  %v1765 = vld [vmem:[%s1764] sm:$0x1]
  %s1766 = scalar_lea.vmem %s5, 3
  %v1767 = vld [vmem:[%s1766] sm:$0x1]
  %v1768 = vsel %vm76, %v1762, 0.0
  %1769 = vadd.xlane.f32.xlu0 %v1768
  %v1770 = vpop.xlane.xlu0 %1769
  %v1771 = vsel %vm76, %v1763, 0.0
  %1772 = vadd.xlane.f32.xlu0 %v1771
  %v1773 = vpop.xlane.xlu0 %1772
  %v1774 = vmul.f32 %v1770, %v1570
  %v1775 = vmul.f32 %v1773, %v1570
  %v1776 = vsub.f32 %v1762, %v1774
  %v1777 = vsub.f32 %v1763, %v1775
  %v1778 = vmul.f32 %v1776, %v1776
  %v1779 = vmul.f32 %v1777, %v1777
  %v1780 = vsel %vm76, %v1778, 0.0
  %1781 = vadd.xlane.f32.xlu0 %v1780
  %v1782 = vpop.xlane.xlu0 %1781
  %v1783 = vsel %vm76, %v1779, 0.0
  %1784 = vadd.xlane.f32.xlu0 %v1783
  %v1785 = vpop.xlane.xlu0 %1784
  %v1786 = vmul.f32 %v1782, %v1570
  %v1787 = vmul.f32 %v1785, %v1570
  %v1788 = vadd.f32 %v1786, 1e-05
  %v1789 = vadd.f32 %v1787, 1e-05
  %v1790 = vrsqrt.pop %v1788
  %v1791 = vrsqrt.pop %v1789
  %v1792 = vmul.f32 %v1776, %v1790
  %v1793 = vmul.f32 %v1777, %v1791
  %v1795 = vlaneseq
  %v1796 = vshrl.u32 %v1795, 7
  %v1797 = vsub.s32 0, %v1796
  %v1798 = vrot.slane %v1765, %v1797
  %v1800 = vmul.f32 %v1792, %v1798
  %v1801 = vmul.f32 %v1793, %v1798
  %v1803 = vlaneseq
  %v1804 = vshrl.u32 %v1803, 7
  %v1805 = vsub.s32 0, %v1804
  %v1806 = vrot.slane %v1767, %v1805
  %v1808 = vadd.f32 %v1800, %v1806
  %v1809 = vadd.f32 %v1801, %v1806
  %v1810 = vld [vmem:[%s10] sm:$0xf]
  %v1811 = vld [vmem:[%s10 + $0x4] sm:$0xf]
  %v1812 = vld [vmem:[%s10 + $0x8] sm:$0xf]
  %v1813 = vld [vmem:[%s10 + $0xc] sm:$0xf]
  %v1814 = vld [vmem:[%s11] sm:$0x1]
  %v1815 = vpack.c.bf16 %v1809, %v1808
  %v1817 = vlaneseq
  %v1818 = vshrl.u32 %v1817, 7
  %v1819 = vsub.s32 0, %v1818
  %v1820 = vrot.slane %v1814, %v1819
  %v1826 = vunpack.c.l.b16 %v1810
  %v1827 = vunpack.c.l.b16 %v1811
  %v1828 = vunpack.c.l.b16 %v1812
  %v1829 = vunpack.c.l.b16 %v1813
  %v1830 = vpack.c.b16 %v1827, %v1826
  %v1831 = vpack.c.b16 %v1829, %v1828
  %v1835 = vsel %vm76, %v1815, 0
  %1837 = vmatprep.subr.bf16.mxu0 0
  %1838 = vmatpush1.bf16.msra.mxu0 %v1830
  %1839 = vmatprep.subr.bf16.mxu0 0
  %1840 = vmatpush1.bf16.msra.mxu0 %v1831
  %1841 = vmatprep.subr.bf16.mxu0 0
  %1842 = vmatpush1.bf16.msra.mxu0 0
  %1843 = vmatprep.subr.bf16.mxu0 0
  %1844 = vmatpush1.bf16.msra.mxu0 0
  %1845 = vmatprep.subr.bf16.mxu0 0
  %1846 = vmatpush1.bf16.msra.mxu0 0
  %1847 = vmatprep.subr.bf16.mxu0 0
  %1848 = vmatpush1.bf16.msra.mxu0 0
  %1849 = vmatprep.subr.bf16.mxu0 0
  %1850 = vmatpush1.bf16.msra.mxu0 0
  %1851 = vmatprep.subr.bf16.mxu0 0
  %1852 = vmatpush1.bf16.msra.mxu0 0
  %1853 = vmatprep.subr.bf16.mxu0 0
  %1854 = vmatpush1.bf16.msra.mxu0 0
  %1855 = vmatprep.subr.bf16.mxu0 0
  %1856 = vmatpush1.bf16.msra.mxu0 0
  %1857 = vmatprep.subr.bf16.mxu0 0
  %1858 = vmatpush1.bf16.msra.mxu0 0
  %1859 = vmatprep.subr.bf16.mxu0 0
  %1860 = vmatpush1.bf16.msra.mxu0 0
  %1861 = vmatprep.subr.bf16.mxu0 0
  %1862 = vmatpush1.bf16.msra.mxu0 0
  %1863 = vmatprep.subr.bf16.mxu0 0
  %1864 = vmatpush1.bf16.msra.mxu0 0
  %1865 = vmatprep.subr.bf16.mxu0 0
  %1866 = vmatpush1.bf16.msra.mxu0 0
  %1867 = vmatprep.subr.bf16.mxu0 0
  %1868 = vmatpush1.bf16.msra.mxu0 0
  %1869 = vmatprep.mubr.bf16.mxu0 0
  %1870 = vmatmul.mubr.bf16.gmra.mrb[0].mxu0 %v1835
  %v1871 = vpop.f32.mrb[0].mxu0
  %v1872 = vadd.f32 %v1820, %v1871
  %v1873 = vpop.f32.mrb[0].mxu0
  %v1874 = vpop.f32.mrb[0].mxu0
  %v1875 = vadd.f32 %v1820, %v1874
  %v1876 = vpop.f32.mrb[0].mxu0
  %1877 = vdwg.mxu0
  %s1878 = scalar_lea.vmem %s5, 4
  %v1879 = vld [vmem:[%s1878] sm:$0x1]
  %s1880 = scalar_lea.vmem %s5, 5
  %v1881 = vld [vmem:[%s1880] sm:$0x1]
  %v1882 = vsel %vm76, %v1872, 0.0
  %1883 = vadd.xlane.f32.xlu0 %v1882
  %v1884 = vpop.xlane.xlu0 %1883
  %v1885 = vsel %vm76, %v1875, 0.0
  %1886 = vadd.xlane.f32.xlu0 %v1885
  %v1887 = vpop.xlane.xlu0 %1886
  %v1888 = vmul.f32 %v1884, %v1570
  %v1889 = vmul.f32 %v1887, %v1570
  %v1890 = vsub.f32 %v1872, %v1888
  %v1891 = vsub.f32 %v1875, %v1889
  %v1892 = vmul.f32 %v1890, %v1890
  %v1893 = vmul.f32 %v1891, %v1891
  %v1894 = vsel %vm76, %v1892, 0.0
  %1895 = vadd.xlane.f32.xlu0 %v1894
  %v1896 = vpop.xlane.xlu0 %1895
  %v1897 = vsel %vm76, %v1893, 0.0
  %1898 = vadd.xlane.f32.xlu0 %v1897
  %v1899 = vpop.xlane.xlu0 %1898
  %v1900 = vmul.f32 %v1896, %v1570
  %v1901 = vmul.f32 %v1899, %v1570
  %v1902 = vadd.f32 %v1900, 1e-05
  %v1903 = vadd.f32 %v1901, 1e-05
  %v1904 = vrsqrt.pop %v1902
  %v1905 = vrsqrt.pop %v1903
  %v1906 = vmul.f32 %v1890, %v1904
  %v1907 = vmul.f32 %v1891, %v1905
  %v1909 = vlaneseq
  %v1910 = vshrl.u32 %v1909, 7
  %v1911 = vsub.s32 0, %v1910
  %v1912 = vrot.slane %v1879, %v1911
  %v1914 = vmul.f32 %v1906, %v1912
  %v1915 = vmul.f32 %v1907, %v1912
  %v1917 = vlaneseq
  %v1918 = vshrl.u32 %v1917, 7
  %v1919 = vsub.s32 0, %v1918
  %v1920 = vrot.slane %v1881, %v1919
  %v1922 = vadd.f32 %v1914, %v1920
  %v1923 = vadd.f32 %v1915, %v1920
  %v1924 = vmax.f32 %v1922, 0.0
  %v1925 = vmax.f32 %v1923, 0.0
  %v1926 = vld [vmem:[%s12] sm:$0xf]
  %v1927 = vld [vmem:[%s12 + $0x4] sm:$0xf]
  %v1928 = vld [vmem:[%s12 + $0x8] sm:$0xf]
  %v1929 = vld [vmem:[%s12 + $0xc] sm:$0xf]
  %v1930 = vld [vmem:[%s13] sm:$0x1]
  %v1931 = vpack.c.bf16 %v1925, %v1924
  %v1933 = vlaneseq
  %v1934 = vshrl.u32 %v1933, 7
  %v1935 = vsub.s32 0, %v1934
  %v1936 = vrot.slane %v1930, %v1935
  %v1942 = vunpack.c.l.b16 %v1926
  %v1943 = vunpack.c.l.b16 %v1927
  %v1944 = vunpack.c.l.b16 %v1928
  %v1945 = vunpack.c.l.b16 %v1929
  %v1946 = vpack.c.b16 %v1943, %v1942
  %v1947 = vpack.c.b16 %v1945, %v1944
  %v1951 = vsel %vm76, %v1931, 0
  %1953 = vmatprep.subr.bf16.mxu0 0
  %1954 = vmatpush1.bf16.msra.mxu0 %v1946
  %1955 = vmatprep.subr.bf16.mxu0 0
  %1956 = vmatpush1.bf16.msra.mxu0 %v1947
  %1957 = vmatprep.subr.bf16.mxu0 0
  %1958 = vmatpush1.bf16.msra.mxu0 0
  %1959 = vmatprep.subr.bf16.mxu0 0
  %1960 = vmatpush1.bf16.msra.mxu0 0
  %1961 = vmatprep.subr.bf16.mxu0 0
  %1962 = vmatpush1.bf16.msra.mxu0 0
  %1963 = vmatprep.subr.bf16.mxu0 0
  %1964 = vmatpush1.bf16.msra.mxu0 0
  %1965 = vmatprep.subr.bf16.mxu0 0
  %1966 = vmatpush1.bf16.msra.mxu0 0
  %1967 = vmatprep.subr.bf16.mxu0 0
  %1968 = vmatpush1.bf16.msra.mxu0 0
  %1969 = vmatprep.subr.bf16.mxu0 0
  %1970 = vmatpush1.bf16.msra.mxu0 0
  %1971 = vmatprep.subr.bf16.mxu0 0
  %1972 = vmatpush1.bf16.msra.mxu0 0
  %1973 = vmatprep.subr.bf16.mxu0 0
  %1974 = vmatpush1.bf16.msra.mxu0 0
  %1975 = vmatprep.subr.bf16.mxu0 0
  %1976 = vmatpush1.bf16.msra.mxu0 0
  %1977 = vmatprep.subr.bf16.mxu0 0
  %1978 = vmatpush1.bf16.msra.mxu0 0
  %1979 = vmatprep.subr.bf16.mxu0 0
  %1980 = vmatpush1.bf16.msra.mxu0 0
  %1981 = vmatprep.subr.bf16.mxu0 0
  %1982 = vmatpush1.bf16.msra.mxu0 0
  %1983 = vmatprep.subr.bf16.mxu0 0
  %1984 = vmatpush1.bf16.msra.mxu0 0
  %1985 = vmatprep.mubr.bf16.mxu0 0
  %1986 = vmatmul.mubr.bf16.gmra.mrb[0].mxu0 %v1951
  %v1987 = vpop.f32.mrb[0].mxu0
  %v1988 = vadd.f32 %v1936, %v1987
  %v1989 = vpop.f32.mrb[0].mxu0
  %v1990 = vpop.f32.mrb[0].mxu0
  %v1991 = vadd.f32 %v1936, %v1990
  %v1992 = vpop.f32.mrb[0].mxu0
  %1993 = vdwg.mxu0
  %1994 = vst [vmem:[%s14] sm:$0xff] %v1988
  %1995 = vst [vmem:[%s14 + $0x8] sm:$0xff] %v1991
  // Predicated region
  $region58: #{goal_predictor_forward.3} parent=0 // pred_check
    _
  $region59: #{goal_predictor_forward.3} parent=0 // pred_check_branch
    %1997 = sbr.rel (0) target = $region61
  $region60: #{goal_predictor_forward.3} parent=0 // pred_region
    _
  $region61: #{goal_predictor_forward.3} parent=0 // pred_fallthru
    _
  // Predicated region
  $region62: #{goal_predictor_forward.3} parent=0 // pred_check
    _
  $region63: #{goal_predictor_forward.3} parent=0 // pred_check_branch
    %1999 = sbr.rel (0) target = $region65
  $region64: #{goal_predictor_forward.3} parent=0 // pred_region
    _
  $region65: #{goal_predictor_forward.3} parent=0 // pred_fallthru
    _

// kernel: goal_predictor_forward.2
$region0: #{goal_predictor_forward.2}
  #allocation0 [shape = 'u32[]', space=smem, size = 0x4, offset = 0x4, fixed_abs, tag = 'smem constant byte address 0x4 - core index']
  #allocation1 [shape = 'u32[144,128]{1,0:T(1,128)}', space=vmem, size = 0x12000, scoped, tag = 'internal scratch']
  #allocation2 [shape = 'f32[3,8,32]{2,1,0:T(8,128)}', space=vmem, size = 0x3000, scoped, tag = 'scratch operand']
  %s0 = inlined_call_operand.vmem [shape: f32[2,8,8,32], index: 0, kind: input, shape index: {}]
  %s1 = inlined_call_operand.vmem [shape: f32[2,8,8,1], index: 1, kind: input, shape index: {}]
  %s2 = inlined_call_operand.vmem [shape: bf16[3,32,96], index: 2, kind: input, shape index: {}]
  %s3 = inlined_call_operand.vmem [shape: f32[3,1,96], index: 3, kind: input, shape index: {}]
  %s4 = inlined_call_operand.vmem [shape: bf16[3,32,96], index: 4, kind: input, shape index: {}]
  %s5 = inlined_call_operand.vmem [shape: f32[3,1,96], index: 5, kind: input, shape index: {}]
  %s6 = inlined_call_operand.vmem [shape: f32[2,8,32], index: 6, kind: output, shape index: {}]
  %s7 = sld [smem:[#allocation0]]
  $region61: #{goal_predictor_forward.2} parent=0
    _
  %s9 = ssub.s32 1, %s7
  %s10 = scalar_select 0, %s9, %s7
  loop: start=0, step=1, limit=4
  $region2: #{goal_predictor_forward.2} parent=0 // loop_pre_header
    _
  $region3: #{goal_predictor_forward.2} parent=0 // loop_header
    %s12 = sphi 0, %s16
    %p13 = scmp.ge.s32.totalorder %s12, 4
    %s19 = sphi 0, %s31
    %s20 = sphi 0, %s27
    %s21 = sphi 0, %s19
    %s22 = sphi 0, %s20
    %s23 = sphi 0, %s21
    %s24 = sphi 0, %s22
    %s36 = sphi 0, %s38
    %s39 = sphi 0, %s36
    %s40 = sphi 0, %s39
    %s56 = sphi 0, %s40
    %s64 = sphi 0, %s66
    %s67 = sphi 0, %s64
    %s68 = sphi 0, %s67
    %s84 = sphi 0, %s68
    %s88 = sphi 0, %s88
    %s90 = sphi 0, %s88
    %s91 = sphi 0, %s90
    %s105 = sphi 0, %s91
    %s109 = sphi 0, %s109
    %s111 = sphi 0, %s109
    %s112 = sphi 0, %s111
    %s126 = sphi 0, %s112
    %s130 = sphi 0, %s130
    %s132 = sphi 0, %s130
    %s133 = sphi 0, %s132
    %s147 = sphi 0, %s133
    %s151 = sphi 0, %s151
    %s153 = sphi 0, %s151
    %s154 = sphi 0, %s153
    %s168 = sphi 0, %s154
    %s174 = sphi 0, %s176
    %s177 = sphi 0, %s174
    %s178 = sphi 0, %s177
    %s194 = sphi 0, %s178
  $region4: #{goal_predictor_forward.2} parent=0 // loop_header_branch
    %15 = sbr.rel (%p13) target = $region8
  $region5: #{goal_predictor_forward.2} parent=0 // loop_body
    %s17 = ssub.s32 %s12, 1
    %s18 = ssub.s32 %s12, 2
    %s25 = sadd.s32 1, %s20
    %p26 = scmp.ge.s32.totalorder %s25, 1
    %s27 = scalar_select %p26, 0, %s25
    %s28 = sadd.s32 1, %s19
    %s29 = scalar_select %p26, %s28, %s19
    %p30 = scmp.ge.s32.totalorder %s29, 2
    %s31 = scalar_select %p30, 0, %s29
    %s32 = ssub.s32 %s19, %s31
    %s33 = ssub.s32 %s20, %s27
    %s34 = sor.u32 %s32, %s33
    %p35 = scmp.eq.s32.totalorder %s34, 0
    %s37 = sadd.s32 %s36, 1
    %s38 = scalar_select %p35, %s36, %s37
    %p41 = pneg %p35
    %p42 = scmp.eq.s32.totalorder %s12, 1
    %p43 = por %p41, %p42
    %p44 = scmp.ne.s32.totalorder %s36, %s39
    %p45 = scmp.eq.s32.totalorder %s12, 0
    %p46 = por %p44, %p45
    %p47 = scmp.ne.s32.totalorder %s36, %s39
    %p48 = scmp.eq.s32.totalorder %s17, 1
    %p49 = por %p47, %p48
    %p50 = scmp.ne.s32.totalorder %s39, %s40
    %p51 = scmp.eq.s32.totalorder %s17, 0
    %p52 = por %p50, %p51
    %p53 = scmp.ne.s32.totalorder %s39, %s40
    %p54 = scmp.eq.s32.totalorder %s18, 1
    %p55 = por %p53, %p54
    %p57 = scmp.ne.s32.totalorder %s40, %s56
    %p58 = scmp.eq.s32.totalorder %s18, 0
    %p59 = por %p57, %p58
    %s60 = ssub.s32 %s19, %s31
    %s61 = ssub.s32 %s20, %s27
    %s62 = sor.u32 %s60, %s61
    %p63 = scmp.eq.s32.totalorder %s62, 0
    %s65 = sadd.s32 %s64, 1
    %s66 = scalar_select %p63, %s64, %s65
    %p69 = pneg %p63
    %p70 = scmp.eq.s32.totalorder %s12, 1
    %p71 = por %p69, %p70
    %p72 = scmp.ne.s32.totalorder %s64, %s67
    %p73 = scmp.eq.s32.totalorder %s12, 0
    %p74 = por %p72, %p73
    %p75 = scmp.ne.s32.totalorder %s64, %s67
    %p76 = scmp.eq.s32.totalorder %s17, 1
    %p77 = por %p75, %p76
    %p78 = scmp.ne.s32.totalorder %s67, %s68
    %p79 = scmp.eq.s32.totalorder %s17, 0
    %p80 = por %p78, %p79
    %p81 = scmp.ne.s32.totalorder %s67, %s68
    %p82 = scmp.eq.s32.totalorder %s18, 1
    %p83 = por %p81, %p82
    %p85 = scmp.ne.s32.totalorder %s68, %s84
    %p86 = scmp.eq.s32.totalorder %s18, 0
    %p87 = por %p85, %p86
    %s89 = sadd.s32 %s88, 1
    %p92 = scmp.eq.s32.totalorder %s12, 1
    %p93 = scmp.ne.s32.totalorder %s88, %s90
    %p94 = scmp.eq.s32.totalorder %s12, 0
    %p95 = por %p93, %p94
    %p96 = scmp.ne.s32.totalorder %s88, %s90
    %p97 = scmp.eq.s32.totalorder %s17, 1
    %p98 = por %p96, %p97
    %p99 = scmp.ne.s32.totalorder %s90, %s91
    %p100 = scmp.eq.s32.totalorder %s17, 0
    %p101 = por %p99, %p100
    %p102 = scmp.ne.s32.totalorder %s90, %s91
    %p103 = scmp.eq.s32.totalorder %s18, 1
    %p104 = por %p102, %p103
    %p106 = scmp.ne.s32.totalorder %s91, %s105
    %p107 = scmp.eq.s32.totalorder %s18, 0
    %p108 = por %p106, %p107
    %s110 = sadd.s32 %s109, 1
    %p113 = scmp.eq.s32.totalorder %s12, 1
    %p114 = scmp.ne.s32.totalorder %s109, %s111
    %p115 = scmp.eq.s32.totalorder %s12, 0
    %p116 = por %p114, %p115
    %p117 = scmp.ne.s32.totalorder %s109, %s111
    %p118 = scmp.eq.s32.totalorder %s17, 1
    %p119 = por %p117, %p118
    %p120 = scmp.ne.s32.totalorder %s111, %s112
    %p121 = scmp.eq.s32.totalorder %s17, 0
    %p122 = por %p120, %p121
    %p123 = scmp.ne.s32.totalorder %s111, %s112
    %p124 = scmp.eq.s32.totalorder %s18, 1
    %p125 = por %p123, %p124
    %p127 = scmp.ne.s32.totalorder %s112, %s126
    %p128 = scmp.eq.s32.totalorder %s18, 0
    %p129 = por %p127, %p128
    %s131 = sadd.s32 %s130, 1
    %p134 = scmp.eq.s32.totalorder %s12, 1
    %p135 = scmp.ne.s32.totalorder %s130, %s132
    %p136 = scmp.eq.s32.totalorder %s12, 0
    %p137 = por %p135, %p136
    %p138 = scmp.ne.s32.totalorder %s130, %s132
    %p139 = scmp.eq.s32.totalorder %s17, 1
    %p140 = por %p138, %p139
    %p141 = scmp.ne.s32.totalorder %s132, %s133
    %p142 = scmp.eq.s32.totalorder %s17, 0
    %p143 = por %p141, %p142
    %p144 = scmp.ne.s32.totalorder %s132, %s133
    %p145 = scmp.eq.s32.totalorder %s18, 1
    %p146 = por %p144, %p145
    %p148 = scmp.ne.s32.totalorder %s133, %s147
    %p149 = scmp.eq.s32.totalorder %s18, 0
    %p150 = por %p148, %p149
    %s152 = sadd.s32 %s151, 1
    %p155 = scmp.eq.s32.totalorder %s12, 1
    %p156 = scmp.ne.s32.totalorder %s151, %s153
    %p157 = scmp.eq.s32.totalorder %s12, 0
    %p158 = por %p156, %p157
    %p159 = scmp.ne.s32.totalorder %s151, %s153
    %p160 = scmp.eq.s32.totalorder %s17, 1
    %p161 = por %p159, %p160
    %p162 = scmp.ne.s32.totalorder %s153, %s154
    %p163 = scmp.eq.s32.totalorder %s17, 0
    %p164 = por %p162, %p163
    %p165 = scmp.ne.s32.totalorder %s153, %s154
    %p166 = scmp.eq.s32.totalorder %s18, 1
    %p167 = por %p165, %p166
    %p169 = scmp.ne.s32.totalorder %s154, %s168
    %p170 = scmp.eq.s32.totalorder %s18, 0
    %p171 = por %p169, %p170
    %s172 = ssub.s32 %s19, %s31
    %p173 = scmp.eq.s32.totalorder %s172, 0
    %s175 = sadd.s32 %s174, 1
    %s176 = scalar_select %p173, %s174, %s175
    %p179 = pneg %p173
    %p180 = scmp.eq.s32.totalorder %s12, 1
    %p181 = por %p179, %p180
    %p182 = scmp.ne.s32.totalorder %s174, %s177
    %p183 = scmp.eq.s32.totalorder %s12, 0
    %p184 = por %p182, %p183
    %p185 = scmp.ne.s32.totalorder %s174, %s177
    %p186 = scmp.eq.s32.totalorder %s17, 1
    %p187 = por %p185, %p186
    %p188 = scmp.ne.s32.totalorder %s177, %s178
    %p189 = scmp.eq.s32.totalorder %s17, 0
    %p190 = por %p188, %p189
    %p191 = scmp.ne.s32.totalorder %s177, %s178
    %p192 = scmp.eq.s32.totalorder %s18, 1
    %p193 = por %p191, %p192
    %p195 = scmp.ne.s32.totalorder %s178, %s194
    %p196 = scmp.eq.s32.totalorder %s18, 0
    %p197 = por %p195, %p196
    %p198 = scmp.le.s32.totalorder 1, %s12
    %p199 = scmp.lt.s32.totalorder %s12, 3
    %p200 = pnand %p198, %p199
    %p201 = pneg %p200
    // Predicated region
    $region9: #{goal_predictor_forward.2} parent=5 // pred_check
      _
    $region10: #{goal_predictor_forward.2} parent=5 // pred_check_branch
      %203 = sbr.rel (%p200) target = $region12
    $region11: #{goal_predictor_forward.2} parent=5 // pred_region
      %s204 = ssub.s32 %s12, 1
      // Predicated region
      $region13: #{goal_predictor_forward.2} parent=11 // pred_check
        %p205 = pneg %p101
      $region14: #{goal_predictor_forward.2} parent=11 // pred_check_branch
        %207 = sbr.rel (%p205) target = $region16
      $region15: #{goal_predictor_forward.2} parent=11 // pred_region
        _
      $region16: #{goal_predictor_forward.2} parent=11 // pred_fallthru
        _
      // Predicated region
      $region17: #{goal_predictor_forward.2} parent=11 // pred_check
        %p208 = pneg %p122
      $region18: #{goal_predictor_forward.2} parent=11 // pred_check_branch
        %210 = sbr.rel (%p208) target = $region20
      $region19: #{goal_predictor_forward.2} parent=11 // pred_region
        _
      $region20: #{goal_predictor_forward.2} parent=11 // pred_fallthru
        _
      // Predicated region
      $region21: #{goal_predictor_forward.2} parent=11 // pred_check
        %p211 = pneg %p143
      $region22: #{goal_predictor_forward.2} parent=11 // pred_check_branch
        %213 = sbr.rel (%p211) target = $region24
      $region23: #{goal_predictor_forward.2} parent=11 // pred_region
        _
      $region24: #{goal_predictor_forward.2} parent=11 // pred_fallthru
        _
      // Predicated region
      $region25: #{goal_predictor_forward.2} parent=11 // pred_check
        %p214 = pneg %p164
      $region26: #{goal_predictor_forward.2} parent=11 // pred_check_branch
        %216 = sbr.rel (%p214) target = $region28
      $region27: #{goal_predictor_forward.2} parent=11 // pred_region
        _
      $region28: #{goal_predictor_forward.2} parent=11 // pred_fallthru
        _
    $region12: #{goal_predictor_forward.2} parent=5 // pred_fallthru
      _
    %p217 = scmp.lt.s32.totalorder %s12, 2
    // Predicated region
    $region29: #{goal_predictor_forward.2} parent=5 // pred_check
      %p218 = pneg %p217
    $region30: #{goal_predictor_forward.2} parent=5 // pred_check_branch
      %220 = sbr.rel (%p218) target = $region32
    $region31: #{goal_predictor_forward.2} parent=5 // pred_region
      // Predicated region
      $region33: #{goal_predictor_forward.2} parent=31 // pred_check
        %p221 = pneg %p46
      $region34: #{goal_predictor_forward.2} parent=31 // pred_check_branch
        %223 = sbr.rel (%p221) target = $region36
      $region35: #{goal_predictor_forward.2} parent=31 // pred_region
        %s224 = smul.u32 8, %s20
        %p225 = scmp.lt.s32.totalorder %s19, 1
        %s226 = scalar_select %p225, %s19, 1
        %p227 = scmp.lt.s32.totalorder %s224, 7
        %s228 = scalar_select %p227, %s224, 7
        %s229 = smul.addr %s226, 8
        %s230 = sadd.s32 %s228, %s229
        %s231 = smul.addr %s230, 8
        %s232 = scalar_lea.vmem %s0, %s231
        %s233 = smul.u32 8, %s20
      $region36: #{goal_predictor_forward.2} parent=31 // pred_fallthru
        _
      // Predicated region
      $region37: #{goal_predictor_forward.2} parent=31 // pred_check
        %p234 = pneg %p74
      $region38: #{goal_predictor_forward.2} parent=31 // pred_check_branch
        %236 = sbr.rel (%p234) target = $region40
      $region39: #{goal_predictor_forward.2} parent=31 // pred_region
        %s237 = smul.u32 8, %s20
        %p238 = scmp.lt.s32.totalorder %s19, 1
        %s239 = scalar_select %p238, %s19, 1
        %p240 = scmp.lt.s32.totalorder %s237, 7
        %s241 = scalar_select %p240, %s237, 7
        %s242 = smul.addr %s239, 8
        %s243 = sadd.s32 %s241, %s242
        %s244 = smul.addr %s243, 8
        %s245 = scalar_lea.vmem %s1, %s244
        %s246 = smul.u32 8, %s20
      $region40: #{goal_predictor_forward.2} parent=31 // pred_fallthru
        _
    $region32: #{goal_predictor_forward.2} parent=5 // pred_fallthru
      _
    %p247 = scmp.le.s32.totalorder 1, %s12
    %p248 = scmp.lt.s32.totalorder %s12, 3
    %p249 = pnand %p247, %p248
    %p250 = pneg %p249
    // Predicated region
    $region41: #{goal_predictor_forward.2} parent=5 // pred_check
      _
    $region42: #{goal_predictor_forward.2} parent=5 // pred_check_branch
      %252 = sbr.rel (%p249) target = $region44
    $region43: #{goal_predictor_forward.2} parent=5 // pred_region
      %s253 = ssub.s32 %s12, 1
      %s254 = smul.u32 8, %s22
      %p255 = scmp.lt.s32.totalorder %s21, 1
      %s256 = scalar_select %p255, %s21, 1
      %p257 = scmp.lt.s32.totalorder %s254, 7
      %s258 = scalar_select %p257, %s254, 7
      %s259 = smul.addr %s256, 8
      %s260 = sadd.s32 %s258, %s259
      %s261 = smul.addr %s260, 8
      %s262 = scalar_lea.vmem %s0, %s261
      %p263 = pneg %p52
      %p264 = pneg %p49
      %s265 = smul.u32 8, %s22
      %p266 = scmp.lt.s32.totalorder %s21, 1
      %s267 = scalar_select %p266, %s21, 1
      %p268 = scmp.lt.s32.totalorder %s265, 7
      %s269 = scalar_select %p268, %s265, 7
      %s270 = smul.addr %s267, 8
      %s271 = sadd.s32 %s269, %s270
      %s272 = smul.addr %s271, 8
      %s273 = scalar_lea.vmem %s1, %s272
      %p274 = pneg %p80
      %p275 = pneg %p77
      %p276 = pneg %p101
      %p277 = pneg %p98
      %p278 = pneg %p122
      %p279 = pneg %p119
      %p280 = pneg %p143
      %p281 = pneg %p140
      %p282 = pneg %p164
      %p283 = pneg %p161
      %p284 = pneg %p190
      %p285 = pneg %p187
      %p286 = scmp.lt.s32.totalorder %s21, 1
      %s287 = scalar_select %p286, %s21, 1
      %s288 = smul.addr %s287, 8
      %s289 = scalar_lea.vmem %s6, %s288
      %s290 = smul.u32 8, %s22
      %p291 = scmp.lt.s32.totalorder %s21, 1
      %s292 = scalar_select %p291, %s21, 1
      %p293 = scmp.lt.s32.totalorder %s290, 7
      %s294 = scalar_select %p293, %s290, 7
      %s295 = smul.addr %s292, 8
      %s296 = sadd.s32 %s294, %s295
      %s297 = smul.addr %s296, 8
      %s298 = scalar_lea.vmem %s0, %s297
      %s299 = smul.u32 8, %s22
      %s300 = smul.u32 8, %s22
      %p301 = scmp.lt.s32.totalorder %s21, 1
      %s302 = scalar_select %p301, %s21, 1
      %p303 = scmp.lt.s32.totalorder %s300, 7
      %s304 = scalar_select %p303, %s300, 7
      %s305 = smul.addr %s302, 8
      %s306 = sadd.s32 %s304, %s305
      %s307 = smul.addr %s306, 8
      %s308 = scalar_lea.vmem %s1, %s307
      %s309 = smul.u32 8, %s22
      %p310 = scmp.lt.s32.totalorder %s21, 1
      %s311 = scalar_select %p310, %s21, 1
      %s312 = smul.addr %s311, 8
      %s313 = scalar_lea.vmem %s6, %s312
      %p315 = scmp.eq.s32.totalorder %s22, 0
      // Predicated region
      $region45: #{goal_predictor_forward.2} parent=43 // pred_check
        %p316 = pneg %p315
      $region46: #{goal_predictor_forward.2} parent=43 // pred_check_branch
        %318 = sbr.rel (%p316) target = $region48
      $region47: #{goal_predictor_forward.2} parent=43 // pred_region
        %vm319 = vcmask 261120
        %320 = vst.msk [vmem:[#allocation2] sm:$0xff] %vm319, 0.0
        %321 = vst.msk [vmem:[#allocation2 + $0x8] sm:$0xff] %vm319, 0.0
        %322 = vst.msk [vmem:[#allocation2 + $0x10] sm:$0xff] %vm319, 0.0
        %323 = vst.msk [vmem:[%s313] sm:$0xff] %vm319, 0.0
      $region48: #{goal_predictor_forward.2} parent=43 // pred_fallthru
        _
      %v324 = vld [vmem:[%s2] sm:$0xf]
      %v325 = vld [vmem:[%s2 + $0x4] sm:$0xf]
      %v326 = vld [vmem:[%s2 + $0x8] sm:$0xf]
      %v327 = vld [vmem:[%s2 + $0xc] sm:$0xf]
      %s328 = scalar_lea.vmem %s2, 16
      %v329 = vld [vmem:[%s328] sm:$0xf]
      %v330 = vld [vmem:[%s328 + $0x4] sm:$0xf]
      %v331 = vld [vmem:[%s328 + $0x8] sm:$0xf]
      %v332 = vld [vmem:[%s328 + $0xc] sm:$0xf]
      %s333 = scalar_lea.vmem %s2, 32
      %v334 = vld [vmem:[%s333] sm:$0xf]
      %v335 = vld [vmem:[%s333 + $0x4] sm:$0xf]
      %v336 = vld [vmem:[%s333 + $0x8] sm:$0xf]
      %v337 = vld [vmem:[%s333 + $0xc] sm:$0xf]
      %v338 = vld [vmem:[%s4] sm:$0xf]
      %v339 = vld [vmem:[%s4 + $0x4] sm:$0xf]
      %v340 = vld [vmem:[%s4 + $0x8] sm:$0xf]
      %v341 = vld [vmem:[%s4 + $0xc] sm:$0xf]
      %s342 = scalar_lea.vmem %s4, 16
      %v343 = vld [vmem:[%s342] sm:$0xf]
      %v344 = vld [vmem:[%s342 + $0x4] sm:$0xf]
      %v345 = vld [vmem:[%s342 + $0x8] sm:$0xf]
      %v346 = vld [vmem:[%s342 + $0xc] sm:$0xf]
      %s347 = scalar_lea.vmem %s4, 32
      %v348 = vld [vmem:[%s347] sm:$0xf]
      %v349 = vld [vmem:[%s347 + $0x4] sm:$0xf]
      %v350 = vld [vmem:[%s347 + $0x8] sm:$0xf]
      %v351 = vld [vmem:[%s347 + $0xc] sm:$0xf]
      %v352 = vld [vmem:[%s3] sm:$0x1]
      %s353 = scalar_lea.vmem %s3, 1
      %v354 = vld [vmem:[%s353] sm:$0x1]
      %s355 = scalar_lea.vmem %s3, 2
      %v356 = vld [vmem:[%s355] sm:$0x1]
      %v357 = vld [vmem:[%s5] sm:$0x1]
      %s358 = scalar_lea.vmem %s5, 1
      %v359 = vld [vmem:[%s358] sm:$0x1]
      %s360 = scalar_lea.vmem %s5, 2
      %v361 = vld [vmem:[%s360] sm:$0x1]
      %v362 = vld [vmem:[%s298] sm:$0xff]
      %v363 = vld [vmem:[%s298 + $0x8] sm:$0xff]
      %v364 = vld [vmem:[%s298 + $0x10] sm:$0xff]
      %v365 = vld [vmem:[%s298 + $0x18] sm:$0xff]
      %v366 = vld [vmem:[%s298 + $0x20] sm:$0xff]
      %v367 = vld [vmem:[%s298 + $0x28] sm:$0xff]
      %v368 = vld [vmem:[%s298 + $0x30] sm:$0xff]
      %v369 = vld [vmem:[%s298 + $0x38] sm:$0xff]
      %v370 = vpack.c.bf16 %v363, %v362
      %v371 = vpack.c.bf16 %v365, %v364
      %v372 = vpack.c.bf16 %v367, %v366
      %v373 = vpack.c.bf16 %v369, %v368
      %v375 = vlaneseq
      %v376 = vshrl.u32 %v375, 7
      %v377 = vsub.s32 0, %v376
      %v378 = vrot.slane %v352, %v377
      %v384 = vunpack.c.l.b16 %v324
      %v385 = vunpack.c.l.b16 %v325
      %v386 = vunpack.c.l.b16 %v326
      %v387 = vunpack.c.l.b16 %v327
      %v388 = vpack.c.b16 %v385, %v384
      %v389 = vpack.c.b16 %v387, %v386
      %vm392 = vcmask 261120
      %v394 = vsel %vm392, %v370, 0
      %v397 = vsel %vm392, %v371, 0
      %v400 = vsel %vm392, %v372, 0
      %v403 = vsel %vm392, %v373, 0
      %405 = vmatprep.subr.bf16.mxu0 0
      %406 = vmatpush1.bf16.msra.mxu0 %v388
      %407 = vmatprep.subr.bf16.mxu0 0
      %408 = vmatpush1.bf16.msra.mxu0 %v389
      %409 = vmatprep.subr.bf16.mxu0 0
      %410 = vmatpush1.bf16.msra.mxu0 0
      %411 = vmatprep.subr.bf16.mxu0 0
      %412 = vmatpush1.bf16.msra.mxu0 0
      %413 = vmatprep.subr.bf16.mxu0 0
      %414 = vmatpush1.bf16.msra.mxu0 0
      %415 = vmatprep.subr.bf16.mxu0 0
      %416 = vmatpush1.bf16.msra.mxu0 0
      %417 = vmatprep.subr.bf16.mxu0 0
      %418 = vmatpush1.bf16.msra.mxu0 0
      %419 = vmatprep.subr.bf16.mxu0 0
      %420 = vmatpush1.bf16.msra.mxu0 0
      %421 = vmatprep.subr.bf16.mxu0 0
      %422 = vmatpush1.bf16.msra.mxu0 0
      %423 = vmatprep.subr.bf16.mxu0 0
      %424 = vmatpush1.bf16.msra.mxu0 0
      %425 = vmatprep.subr.bf16.mxu0 0
      %426 = vmatpush1.bf16.msra.mxu0 0
      %427 = vmatprep.subr.bf16.mxu0 0
      %428 = vmatpush1.bf16.msra.mxu0 0
      %429 = vmatprep.subr.bf16.mxu0 0
      %430 = vmatpush1.bf16.msra.mxu0 0
      %431 = vmatprep.subr.bf16.mxu0 0
      %432 = vmatpush1.bf16.msra.mxu0 0
      %433 = vmatprep.subr.bf16.mxu0 0
      %434 = vmatpush1.bf16.msra.mxu0 0
      %435 = vmatprep.subr.bf16.mxu0 0
      %436 = vmatpush1.bf16.msra.mxu0 0
      %437 = vmatprep.mubr.bf16.mxu0 0
      %438 = vmatmul.mubr.bf16.gmra.mrb[0].mxu0 %v394
      %v439 = vpop.f32.mrb[0].mxu0
      %v440 = vadd.f32 %v378, %v439
      %v441 = vpop.f32.mrb[0].mxu0
      %v442 = vpop.f32.mrb[0].mxu0
      %v443 = vadd.f32 %v378, %v442
      %v444 = vpop.f32.mrb[0].mxu0
      %445 = vmatprep.mubr.bf16.mxu0 0
      %446 = vmatmul.mubr.bf16.gmra.mrb[0].mxu0 %v397
      %v447 = vpop.f32.mrb[0].mxu0
      %v448 = vadd.f32 %v378, %v447
      %v449 = vpop.f32.mrb[0].mxu0
      %v450 = vpop.f32.mrb[0].mxu0
      %v451 = vadd.f32 %v378, %v450
      %v452 = vpop.f32.mrb[0].mxu0
      %453 = vmatprep.mubr.bf16.mxu0 0
      %454 = vmatmul.mubr.bf16.gmra.mrb[0].mxu0 %v400
      %v455 = vpop.f32.mrb[0].mxu0
      %v456 = vadd.f32 %v378, %v455
      %v457 = vpop.f32.mrb[0].mxu0
      %v458 = vpop.f32.mrb[0].mxu0
      %v459 = vadd.f32 %v378, %v458
      %v460 = vpop.f32.mrb[0].mxu0
      %461 = vmatprep.mubr.bf16.mxu0 0
      %462 = vmatmul.mubr.bf16.gmra.mrb[0].mxu0 %v403
      %v463 = vpop.f32.mrb[0].mxu0
      %v464 = vadd.f32 %v378, %v463
      %v465 = vpop.f32.mrb[0].mxu0
      %v466 = vpop.f32.mrb[0].mxu0
      %v467 = vadd.f32 %v378, %v466
      %v468 = vpop.f32.mrb[0].mxu0
      %469 = vdwg.mxu0
      %v470 = vld [vmem:[#allocation2] sm:$0xff]
      %s471 = scalar_lea.vmem [#allocation2], 8
      %v472 = vld [vmem:[%s471] sm:$0xff]
      %s473 = scalar_lea.vmem [#allocation2], 16
      %v474 = vld [vmem:[%s473] sm:$0xff]
      %v475 = vld [vmem:[%s313] sm:$0xff]
      %v476 = vld [vmem:[%s308] sm:$0xff]
      %vm477 = vcmp.gt.f32.partialorder %v476, 0.0
      %v478 = vld [vmem:[%s298] sm:$0xff]
      %v479 = vpack.c.bf16 %v470, %v470
      %v481 = vlaneseq
      %v482 = vshrl.u32 %v481, 7
      %v483 = vsub.s32 0, %v482
      %v484 = vrot.slane %v357, %v483
      %v490 = vunpack.c.l.b16 %v338
      %v491 = vunpack.c.l.b16 %v339
      %v492 = vunpack.c.l.b16 %v340
      %v493 = vunpack.c.l.b16 %v341
      %v494 = vpack.c.b16 %v491, %v490
      %v495 = vpack.c.b16 %v493, %v492
      %v499 = vsel %vm392, %v479, 0
      %501 = vmatprep.subr.bf16.mxu0 0
      %502 = vmatpush1.bf16.msra.mxu0 %v494
      %503 = vmatprep.subr.bf16.mxu0 0
      %504 = vmatpush1.bf16.msra.mxu0 %v495
      %505 = vmatprep.subr.bf16.mxu0 0
      %506 = vmatpush1.bf16.msra.mxu0 0
      %507 = vmatprep.subr.bf16.mxu0 0
      %508 = vmatpush1.bf16.msra.mxu0 0
      %509 = vmatprep.subr.bf16.mxu0 0
      %510 = vmatpush1.bf16.msra.mxu0 0
      %511 = vmatprep.subr.bf16.mxu0 0
      %512 = vmatpush1.bf16.msra.mxu0 0
      %513 = vmatprep.subr.bf16.mxu0 0
      %514 = vmatpush1.bf16.msra.mxu0 0
      %515 = vmatprep.subr.bf16.mxu0 0
      %516 = vmatpush1.bf16.msra.mxu0 0
      %517 = vmatprep.subr.bf16.mxu0 0
      %518 = vmatpush1.bf16.msra.mxu0 0
      %519 = vmatprep.subr.bf16.mxu0 0
      %520 = vmatpush1.bf16.msra.mxu0 0
      %521 = vmatprep.subr.bf16.mxu0 0
      %522 = vmatpush1.bf16.msra.mxu0 0
      %523 = vmatprep.subr.bf16.mxu0 0
      %524 = vmatpush1.bf16.msra.mxu0 0
      %525 = vmatprep.subr.bf16.mxu0 0
      %526 = vmatpush1.bf16.msra.mxu0 0
      %527 = vmatprep.subr.bf16.mxu0 0
      %528 = vmatpush1.bf16.msra.mxu0 0
      %529 = vmatprep.subr.bf16.mxu0 0
      %530 = vmatpush1.bf16.msra.mxu0 0
      %531 = vmatprep.subr.bf16.mxu0 0
      %532 = vmatpush1.bf16.msra.mxu0 0
      %533 = vmatprep.mubr.bf16.mxu0 0
      %534 = vmatmul.mubr.bf16.gmra.mrb[0].mxu0 %v499
      %v535 = vpop.f32.mrb[0].mxu0
      %v536 = vadd.f32 %v484, %v535
      %v537 = vpop.f32.mrb[0].mxu0
      %v538 = vpop.f32.mrb[0].mxu0
      %v539 = vpop.f32.mrb[0].mxu0
      %540 = vdwg.mxu0
      %v541 = vadd.f32 %v440, %v536
      %v542 = vxor.u32 %v541, 2147483648
      %v543 = vmul.f32 %v542, 1.442695
      %v544 = vpow.pop %v543
      %v545 = vadd.f32 %v544, 1.0
      %v546 = vrcp.pop %v545
      %v547 = vmul.f32 1.0, %v546
      %549 = vrot.lane.b32.xlu0 %v536, 64
      %v550 = vpop.permute.xlu0 %549
      %v552 = vmul.f32 %v547, %v550
      %554 = vrot.lane.b32.xlu0 %v552, 64
      %v555 = vpop.permute.xlu0 %554
      %v557 = vadd.f32 %v440, %v555
      %v558 = vtanh.pop %v557
      %v559 = vsub.f32 1.0, %v547
      %561 = vrot.lane.b32.xlu0 %v558, 96
      %v562 = vpop.permute.xlu0 %561
      %v564 = vmul.f32 %v559, %v562
      %566 = vrot.lane.b32.xlu0 %v470, 32
      %v567 = vpop.permute.xlu0 %566
      %v569 = vmul.f32 %v547, %v567
      %v570 = vadd.f32 %v564, %v569
      %v571 = vsel %vm477, 1, 0
      %572 = vset.pattern.permute.xlu0 0
      %573 = vperm.xlu0 %572, %v571
      %v574 = vpop.permute.xlu0 %573
      %vm575 = vcmp.eq.s32.totalorder %v574, 1
      %v576 = vsel %vm575, %v570, %v567
      %v577 = vpack.c.bf16 %v576, %v576
      %v579 = vlaneseq
      %v580 = vshrl.u32 %v579, 7
      %v581 = vsub.s32 0, %v580
      %v582 = vrot.slane %v354, %v581
      %585 = vrot.lane.b32.xlu0 %v577, 96
      %v586 = vpop.permute.xlu0 %585
      %v591 = vunpack.c.l.b16 %v329
      %v592 = vunpack.c.l.b16 %v330
      %v593 = vunpack.c.l.b16 %v331
      %v594 = vunpack.c.l.b16 %v332
      %v595 = vpack.c.b16 %v592, %v591
      %v596 = vpack.c.b16 %v594, %v593
      %v600 = vsel %vm392, %v586, 0
      %602 = vmatprep.subr.bf16.mxu0 0
      %603 = vmatpush1.bf16.msra.mxu0 %v595
      %604 = vmatprep.subr.bf16.mxu0 0
      %605 = vmatpush1.bf16.msra.mxu0 %v596
      %606 = vmatprep.subr.bf16.mxu0 0
      %607 = vmatpush1.bf16.msra.mxu0 0
      %608 = vmatprep.subr.bf16.mxu0 0
      %609 = vmatpush1.bf16.msra.mxu0 0
      %610 = vmatprep.subr.bf16.mxu0 0
      %611 = vmatpush1.bf16.msra.mxu0 0
      %612 = vmatprep.subr.bf16.mxu0 0
      %613 = vmatpush1.bf16.msra.mxu0 0
      %614 = vmatprep.subr.bf16.mxu0 0
      %615 = vmatpush1.bf16.msra.mxu0 0
      %616 = vmatprep.subr.bf16.mxu0 0
      %617 = vmatpush1.bf16.msra.mxu0 0
      %618 = vmatprep.subr.bf16.mxu0 0
      %619 = vmatpush1.bf16.msra.mxu0 0
      %620 = vmatprep.subr.bf16.mxu0 0
      %621 = vmatpush1.bf16.msra.mxu0 0
      %622 = vmatprep.subr.bf16.mxu0 0
      %623 = vmatpush1.bf16.msra.mxu0 0
      %624 = vmatprep.subr.bf16.mxu0 0
      %625 = vmatpush1.bf16.msra.mxu0 0
      %626 = vmatprep.subr.bf16.mxu0 0
      %627 = vmatpush1.bf16.msra.mxu0 0
      %628 = vmatprep.subr.bf16.mxu0 0
      %629 = vmatpush1.bf16.msra.mxu0 0
      %630 = vmatprep.subr.bf16.mxu0 0
      %631 = vmatpush1.bf16.msra.mxu0 0
      %632 = vmatprep.subr.bf16.mxu0 0
      %633 = vmatpush1.bf16.msra.mxu0 0
      %634 = vmatprep.mubr.bf16.mxu0 0
      %635 = vmatmul.mubr.bf16.gmra.mrb[0].mxu0 %v600
      %v636 = vpop.f32.mrb[0].mxu0
      %v637 = vadd.f32 %v582, %v636
      %v638 = vpop.f32.mrb[0].mxu0
      %v639 = vpop.f32.mrb[0].mxu0
      %v640 = vpop.f32.mrb[0].mxu0
      %641 = vdwg.mxu0
      %v642 = vpack.c.bf16 %v472, %v472
      %v644 = vlaneseq
      %v645 = vshrl.u32 %v644, 7
      %v646 = vsub.s32 0, %v645
      %v647 = vrot.slane %v359, %v646
      %v653 = vunpack.c.l.b16 %v343
      %v654 = vunpack.c.l.b16 %v344
      %v655 = vunpack.c.l.b16 %v345
      %v656 = vunpack.c.l.b16 %v346
      %v657 = vpack.c.b16 %v654, %v653
      %v658 = vpack.c.b16 %v656, %v655
      %v662 = vsel %vm392, %v642, 0
      %664 = vmatprep.subr.bf16.mxu0 0
      %665 = vmatpush1.bf16.msra.mxu0 %v657
      %666 = vmatprep.subr.bf16.mxu0 0
      %667 = vmatpush1.bf16.msra.mxu0 %v658
      %668 = vmatprep.subr.bf16.mxu0 0
      %669 = vmatpush1.bf16.msra.mxu0 0
      %670 = vmatprep.subr.bf16.mxu0 0
      %671 = vmatpush1.bf16.msra.mxu0 0
      %672 = vmatprep.subr.bf16.mxu0 0
      %673 = vmatpush1.bf16.msra.mxu0 0
      %674 = vmatprep.subr.bf16.mxu0 0
      %675 = vmatpush1.bf16.msra.mxu0 0
      %676 = vmatprep.subr.bf16.mxu0 0
      %677 = vmatpush1.bf16.msra.mxu0 0
      %678 = vmatprep.subr.bf16.mxu0 0
      %679 = vmatpush1.bf16.msra.mxu0 0
      %680 = vmatprep.subr.bf16.mxu0 0
      %681 = vmatpush1.bf16.msra.mxu0 0
      %682 = vmatprep.subr.bf16.mxu0 0
      %683 = vmatpush1.bf16.msra.mxu0 0
      %684 = vmatprep.subr.bf16.mxu0 0
      %685 = vmatpush1.bf16.msra.mxu0 0
      %686 = vmatprep.subr.bf16.mxu0 0
      %687 = vmatpush1.bf16.msra.mxu0 0
      %688 = vmatprep.subr.bf16.mxu0 0
      %689 = vmatpush1.bf16.msra.mxu0 0
      %690 = vmatprep.subr.bf16.mxu0 0
      %691 = vmatpush1.bf16.msra.mxu0 0
      %692 = vmatprep.subr.bf16.mxu0 0
      %693 = vmatpush1.bf16.msra.mxu0 0
      %694 = vmatprep.subr.bf16.mxu0 0
      %695 = vmatpush1.bf16.msra.mxu0 0
      %696 = vmatprep.mubr.bf16.mxu0 0
      %697 = vmatmul.mubr.bf16.gmra.mrb[0].mxu0 %v662
      %v698 = vpop.f32.mrb[0].mxu0
      %v699 = vadd.f32 %v647, %v698
      %v700 = vpop.f32.mrb[0].mxu0
      %v701 = vpop.f32.mrb[0].mxu0
      %v702 = vpop.f32.mrb[0].mxu0
      %703 = vdwg.mxu0
      %v704 = vadd.f32 %v637, %v699
      %v705 = vxor.u32 %v704, 2147483648
      %v706 = vmul.f32 %v705, 1.442695
      %v707 = vpow.pop %v706
      %v708 = vadd.f32 %v707, 1.0
      %v709 = vrcp.pop %v708
      %v710 = vmul.f32 1.0, %v709
      %712 = vrot.lane.b32.xlu0 %v699, 64
      %v713 = vpop.permute.xlu0 %712
      %v715 = vmul.f32 %v710, %v713
      %717 = vrot.lane.b32.xlu0 %v715, 64
      %v718 = vpop.permute.xlu0 %717
      %v720 = vadd.f32 %v637, %v718
      %v721 = vtanh.pop %v720
      %v722 = vsub.f32 1.0, %v710
      %724 = vrot.lane.b32.xlu0 %v721, 96
      %v725 = vpop.permute.xlu0 %724
      %v727 = vmul.f32 %v722, %v725
      %729 = vrot.lane.b32.xlu0 %v472, 32
      %v730 = vpop.permute.xlu0 %729
      %v732 = vmul.f32 %v710, %v730
      %v733 = vadd.f32 %v727, %v732
      %v734 = vsel %vm575, %v733, %v730
      %v735 = vpack.c.bf16 %v734, %v734
      %v737 = vlaneseq
      %v738 = vshrl.u32 %v737, 7
      %v739 = vsub.s32 0, %v738
      %v740 = vrot.slane %v356, %v739
      %743 = vrot.lane.b32.xlu0 %v735, 96
      %v744 = vpop.permute.xlu0 %743
      %v749 = vunpack.c.l.b16 %v334
      %v750 = vunpack.c.l.b16 %v335
      %v751 = vunpack.c.l.b16 %v336
      %v752 = vunpack.c.l.b16 %v337
      %v753 = vpack.c.b16 %v750, %v749
      %v754 = vpack.c.b16 %v752, %v751
      %v758 = vsel %vm392, %v744, 0
      %760 = vmatprep.subr.bf16.mxu0 0
      %761 = vmatpush1.bf16.msra.mxu0 %v753
      %762 = vmatprep.subr.bf16.mxu0 0
      %763 = vmatpush1.bf16.msra.mxu0 %v754
      %764 = vmatprep.subr.bf16.mxu0 0
      %765 = vmatpush1.bf16.msra.mxu0 0
      %766 = vmatprep.subr.bf16.mxu0 0
      %767 = vmatpush1.bf16.msra.mxu0 0
      %768 = vmatprep.subr.bf16.mxu0 0
      %769 = vmatpush1.bf16.msra.mxu0 0
      %770 = vmatprep.subr.bf16.mxu0 0
      %771 = vmatpush1.bf16.msra.mxu0 0
      %772 = vmatprep.subr.bf16.mxu0 0
      %773 = vmatpush1.bf16.msra.mxu0 0
      %774 = vmatprep.subr.bf16.mxu0 0
      %775 = vmatpush1.bf16.msra.mxu0 0
      %776 = vmatprep.subr.bf16.mxu0 0
      %777 = vmatpush1.bf16.msra.mxu0 0
      %778 = vmatprep.subr.bf16.mxu0 0
      %779 = vmatpush1.bf16.msra.mxu0 0
      %780 = vmatprep.subr.bf16.mxu0 0
      %781 = vmatpush1.bf16.msra.mxu0 0
      %782 = vmatprep.subr.bf16.mxu0 0
      %783 = vmatpush1.bf16.msra.mxu0 0
      %784 = vmatprep.subr.bf16.mxu0 0
      %785 = vmatpush1.bf16.msra.mxu0 0
      %786 = vmatprep.subr.bf16.mxu0 0
      %787 = vmatpush1.bf16.msra.mxu0 0
      %788 = vmatprep.subr.bf16.mxu0 0
      %789 = vmatpush1.bf16.msra.mxu0 0
      %790 = vmatprep.subr.bf16.mxu0 0
      %791 = vmatpush1.bf16.msra.mxu0 0
      %792 = vmatprep.mubr.bf16.mxu0 0
      %793 = vmatmul.mubr.bf16.gmra.mrb[0].mxu0 %v758
      %v794 = vpop.f32.mrb[0].mxu0
      %v795 = vadd.f32 %v740, %v794
      %v796 = vpop.f32.mrb[0].mxu0
      %v797 = vpop.f32.mrb[0].mxu0
      %v798 = vpop.f32.mrb[0].mxu0
      %799 = vdwg.mxu0
      %v800 = vpack.c.bf16 %v474, %v474
      %v802 = vlaneseq
      %v803 = vshrl.u32 %v802, 7
      %v804 = vsub.s32 0, %v803
      %v805 = vrot.slane %v361, %v804
      %v811 = vunpack.c.l.b16 %v348
      %v812 = vunpack.c.l.b16 %v349
      %v813 = vunpack.c.l.b16 %v350
      %v814 = vunpack.c.l.b16 %v351
      %v815 = vpack.c.b16 %v812, %v811
      %v816 = vpack.c.b16 %v814, %v813
      %v820 = vsel %vm392, %v800, 0
      %822 = vmatprep.subr.bf16.mxu0 0
      %823 = vmatpush1.bf16.msra.mxu0 %v815
      %824 = vmatprep.subr.bf16.mxu0 0
      %825 = vmatpush1.bf16.msra.mxu0 %v816
      %826 = vmatprep.subr.bf16.mxu0 0
      %827 = vmatpush1.bf16.msra.mxu0 0
      %828 = vmatprep.subr.bf16.mxu0 0
      %829 = vmatpush1.bf16.msra.mxu0 0
      %830 = vmatprep.subr.bf16.mxu0 0
      %831 = vmatpush1.bf16.msra.mxu0 0
      %832 = vmatprep.subr.bf16.mxu0 0
      %833 = vmatpush1.bf16.msra.mxu0 0
      %834 = vmatprep.subr.bf16.mxu0 0
      %835 = vmatpush1.bf16.msra.mxu0 0
      %836 = vmatprep.subr.bf16.mxu0 0
      %837 = vmatpush1.bf16.msra.mxu0 0
      %838 = vmatprep.subr.bf16.mxu0 0
      %839 = vmatpush1.bf16.msra.mxu0 0
      %840 = vmatprep.subr.bf16.mxu0 0
      %841 = vmatpush1.bf16.msra.mxu0 0
      %842 = vmatprep.subr.bf16.mxu0 0
      %843 = vmatpush1.bf16.msra.mxu0 0
      %844 = vmatprep.subr.bf16.mxu0 0
      %845 = vmatpush1.bf16.msra.mxu0 0
      %846 = vmatprep.subr.bf16.mxu0 0
      %847 = vmatpush1.bf16.msra.mxu0 0
      %848 = vmatprep.subr.bf16.mxu0 0
      %849 = vmatpush1.bf16.msra.mxu0 0
      %850 = vmatprep.subr.bf16.mxu0 0
      %851 = vmatpush1.bf16.msra.mxu0 0
      %852 = vmatprep.subr.bf16.mxu0 0
      %853 = vmatpush1.bf16.msra.mxu0 0
      %854 = vmatprep.mubr.bf16.mxu0 0
      %855 = vmatmul.mubr.bf16.gmra.mrb[0].mxu0 %v820
      %v856 = vpop.f32.mrb[0].mxu0
      %v857 = vadd.f32 %v805, %v856
      %v858 = vpop.f32.mrb[0].mxu0
      %v859 = vpop.f32.mrb[0].mxu0
      %v860 = vpop.f32.mrb[0].mxu0
      %861 = vdwg.mxu0
      %v862 = vadd.f32 %v795, %v857
      %v863 = vxor.u32 %v862, 2147483648
      %v864 = vmul.f32 %v863, 1.442695
      %v865 = vpow.pop %v864
      %v866 = vadd.f32 %v865, 1.0
      %v867 = vrcp.pop %v866
      %v868 = vmul.f32 1.0, %v867
      %870 = vrot.lane.b32.xlu0 %v857, 64
      %v871 = vpop.permute.xlu0 %870
      %v873 = vmul.f32 %v868, %v871
      %875 = vrot.lane.b32.xlu0 %v873, 64
      %v876 = vpop.permute.xlu0 %875
      %v878 = vadd.f32 %v795, %v876
      %v879 = vtanh.pop %v878
      %v880 = vsub.f32 1.0, %v868
      %882 = vrot.lane.b32.xlu0 %v879, 96
      %v883 = vpop.permute.xlu0 %882
      %v885 = vmul.f32 %v880, %v883
      %887 = vrot.lane.b32.xlu0 %v474, 32
      %v888 = vpop.permute.xlu0 %887
      %v890 = vmul.f32 %v868, %v888
      %v891 = vadd.f32 %v885, %v890
      %v892 = vsel %vm575, %v891, %v888
      %894 = vrot.lane.b32.xlu0 %v478, 32
      %v895 = vpop.permute.xlu0 %894
      %v897 = vadd.f32 %v892, %v895
      %899 = vrot.lane.b32.xlu0 %v475, 32
      %v900 = vpop.permute.xlu0 %899
      %v902 = vsel %vm575, %v897, %v900
      %s903 = scalar_lea.vmem %s308, 8
      %v904 = vld [vmem:[%s903] sm:$0xff]
      %vm905 = vcmp.gt.f32.partialorder %v904, 0.0
      %s906 = scalar_lea.vmem %s298, 8
      %v907 = vld [vmem:[%s906] sm:$0xff]
      %908 = vmatprep.subr.bf16.mxu0 0
      %909 = vmatpush1.bf16.msra.mxu0 %v494
      %910 = vmatprep.subr.bf16.mxu0 0
      %911 = vmatpush1.bf16.msra.mxu0 %v495
      %912 = vmatprep.subr.bf16.mxu0 0
      %913 = vmatpush1.bf16.msra.mxu0 0
      %914 = vmatprep.subr.bf16.mxu0 0
      %915 = vmatpush1.bf16.msra.mxu0 0
      %916 = vmatprep.subr.bf16.mxu0 0
      %917 = vmatpush1.bf16.msra.mxu0 0
      %918 = vmatprep.subr.bf16.mxu0 0
      %919 = vmatpush1.bf16.msra.mxu0 0
      %920 = vmatprep.subr.bf16.mxu0 0
      %921 = vmatpush1.bf16.msra.mxu0 0
      %922 = vmatprep.subr.bf16.mxu0 0
      %923 = vmatpush1.bf16.msra.mxu0 0
      %924 = vmatprep.subr.bf16.mxu0 0
      %925 = vmatpush1.bf16.msra.mxu0 0
      %926 = vmatprep.subr.bf16.mxu0 0
      %927 = vmatpush1.bf16.msra.mxu0 0
      %928 = vmatprep.subr.bf16.mxu0 0
      %929 = vmatpush1.bf16.msra.mxu0 0
      %930 = vmatprep.subr.bf16.mxu0 0
      %931 = vmatpush1.bf16.msra.mxu0 0
      %932 = vmatprep.subr.bf16.mxu0 0
      %933 = vmatpush1.bf16.msra.mxu0 0
      %934 = vmatprep.subr.bf16.mxu0 0
      %935 = vmatpush1.bf16.msra.mxu0 0
      %936 = vmatprep.subr.bf16.mxu0 0
      %937 = vmatpush1.bf16.msra.mxu0 0
      %938 = vmatprep.subr.bf16.mxu0 0
      %939 = vmatpush1.bf16.msra.mxu0 0
      %940 = vmatprep.mubr.bf16.mxu0 0
      %941 = vmatmul.mubr.bf16.gmra.mrb[0].mxu0 %v600
      %v942 = vpop.f32.mrb[0].mxu0
      %v943 = vadd.f32 %v484, %v942
      %v944 = vpop.f32.mrb[0].mxu0
      %v945 = vpop.f32.mrb[0].mxu0
      %v946 = vpop.f32.mrb[0].mxu0
      %947 = vdwg.mxu0
      %v948 = vadd.f32 %v443, %v943
      %v949 = vxor.u32 %v948, 2147483648
      %v950 = vmul.f32 %v949, 1.442695
      %v951 = vpow.pop %v950
      %v952 = vadd.f32 %v951, 1.0
      %v953 = vrcp.pop %v952
      %v954 = vmul.f32 1.0, %v953
      %956 = vrot.lane.b32.xlu0 %v943, 64
      %v957 = vpop.permute.xlu0 %956
      %v959 = vmul.f32 %v954, %v957
      %961 = vrot.lane.b32.xlu0 %v959, 64
      %v962 = vpop.permute.xlu0 %961
      %v964 = vadd.f32 %v443, %v962
      %v965 = vtanh.pop %v964
      %v966 = vsub.f32 1.0, %v954
      %968 = vrot.lane.b32.xlu0 %v965, 96
      %v969 = vpop.permute.xlu0 %968
      %v971 = vmul.f32 %v966, %v969
      %v972 = vmul.f32 %v954, %v576
      %v973 = vadd.f32 %v971, %v972
      %v974 = vsel %vm905, 1, 0
      %975 = vset.pattern.permute.xlu0 0
      %976 = vperm.xlu0 %975, %v974
      %v977 = vpop.permute.xlu0 %976
      %vm978 = vcmp.eq.s32.totalorder %v977, 1
      %v979 = vsel %vm978, %v973, %v576
      %v980 = vpack.c.bf16 %v979, %v979
      %982 = vrot.lane.b32.xlu0 %v980, 96
      %v983 = vpop.permute.xlu0 %982
      %v985 = vsel %vm392, %v983, 0
      %987 = vmatprep.subr.bf16.mxu0 0
      %988 = vmatpush1.bf16.msra.mxu0 %v595
      %989 = vmatprep.subr.bf16.mxu0 0
      %990 = vmatpush1.bf16.msra.mxu0 %v596
      %991 = vmatprep.subr.bf16.mxu0 0
      %992 = vmatpush1.bf16.msra.mxu0 0
      %993 = vmatprep.subr.bf16.mxu0 0
      %994 = vmatpush1.bf16.msra.mxu0 0
      %995 = vmatprep.subr.bf16.mxu0 0
      %996 = vmatpush1.bf16.msra.mxu0 0
      %997 = vmatprep.subr.bf16.mxu0 0
      %998 = vmatpush1.bf16.msra.mxu0 0
      %999 = vmatprep.subr.bf16.mxu0 0
      %1000 = vmatpush1.bf16.msra.mxu0 0
      %1001 = vmatprep.subr.bf16.mxu0 0
      %1002 = vmatpush1.bf16.msra.mxu0 0
      %1003 = vmatprep.subr.bf16.mxu0 0
      %1004 = vmatpush1.bf16.msra.mxu0 0
      %1005 = vmatprep.subr.bf16.mxu0 0
      %1006 = vmatpush1.bf16.msra.mxu0 0
      %1007 = vmatprep.subr.bf16.mxu0 0
      %1008 = vmatpush1.bf16.msra.mxu0 0
      %1009 = vmatprep.subr.bf16.mxu0 0
      %1010 = vmatpush1.bf16.msra.mxu0 0
      %1011 = vmatprep.subr.bf16.mxu0 0
      %1012 = vmatpush1.bf16.msra.mxu0 0
      %1013 = vmatprep.subr.bf16.mxu0 0
      %1014 = vmatpush1.bf16.msra.mxu0 0
      %1015 = vmatprep.subr.bf16.mxu0 0
      %1016 = vmatpush1.bf16.msra.mxu0 0
      %1017 = vmatprep.subr.bf16.mxu0 0
      %1018 = vmatpush1.bf16.msra.mxu0 0
      %1019 = vmatprep.mubr.bf16.mxu0 0
      %1020 = vmatmul.mubr.bf16.gmra.mrb[0].mxu0 %v985
      %v1021 = vpop.f32.mrb[0].mxu0
      %v1022 = vadd.f32 %v582, %v1021
      %v1023 = vpop.f32.mrb[0].mxu0
      %v1024 = vpop.f32.mrb[0].mxu0
      %v1025 = vpop.f32.mrb[0].mxu0
      %1026 = vdwg.mxu0
      %1027 = vmatprep.subr.bf16.mxu0 0
      %1028 = vmatpush1.bf16.msra.mxu0 %v657
      %1029 = vmatprep.subr.bf16.mxu0 0
      %1030 = vmatpush1.bf16.msra.mxu0 %v658
      %1031 = vmatprep.subr.bf16.mxu0 0
      %1032 = vmatpush1.bf16.msra.mxu0 0
      %1033 = vmatprep.subr.bf16.mxu0 0
      %1034 = vmatpush1.bf16.msra.mxu0 0
      %1035 = vmatprep.subr.bf16.mxu0 0
      %1036 = vmatpush1.bf16.msra.mxu0 0
      %1037 = vmatprep.subr.bf16.mxu0 0
      %1038 = vmatpush1.bf16.msra.mxu0 0
      %1039 = vmatprep.subr.bf16.mxu0 0
      %1040 = vmatpush1.bf16.msra.mxu0 0
      %1041 = vmatprep.subr.bf16.mxu0 0
      %1042 = vmatpush1.bf16.msra.mxu0 0
      %1043 = vmatprep.subr.bf16.mxu0 0
      %1044 = vmatpush1.bf16.msra.mxu0 0
      %1045 = vmatprep.subr.bf16.mxu0 0
      %1046 = vmatpush1.bf16.msra.mxu0 0
      %1047 = vmatprep.subr.bf16.mxu0 0
      %1048 = vmatpush1.bf16.msra.mxu0 0
      %1049 = vmatprep.subr.bf16.mxu0 0
      %1050 = vmatpush1.bf16.msra.mxu0 0
      %1051 = vmatprep.subr.bf16.mxu0 0
      %1052 = vmatpush1.bf16.msra.mxu0 0
      %1053 = vmatprep.subr.bf16.mxu0 0
      %1054 = vmatpush1.bf16.msra.mxu0 0
      %1055 = vmatprep.subr.bf16.mxu0 0
      %1056 = vmatpush1.bf16.msra.mxu0 0
      %1057 = vmatprep.subr.bf16.mxu0 0
      %1058 = vmatpush1.bf16.msra.mxu0 0
      %1059 = vmatprep.mubr.bf16.mxu0 0
      %1060 = vmatmul.mubr.bf16.gmra.mrb[0].mxu0 %v758
      %v1061 = vpop.f32.mrb[0].mxu0
      %v1062 = vadd.f32 %v647, %v1061
      %v1063 = vpop.f32.mrb[0].mxu0
      %v1064 = vpop.f32.mrb[0].mxu0
      %v1065 = vpop.f32.mrb[0].mxu0
      %1066 = vdwg.mxu0
      %v1067 = vadd.f32 %v1022, %v1062
      %v1068 = vxor.u32 %v1067, 2147483648
      %v1069 = vmul.f32 %v1068, 1.442695
      %v1070 = vpow.pop %v1069
      %v1071 = vadd.f32 %v1070, 1.0
      %v1072 = vrcp.pop %v1071
      %v1073 = vmul.f32 1.0, %v1072
      %1075 = vrot.lane.b32.xlu0 %v1062, 64
      %v1076 = vpop.permute.xlu0 %1075
      %v1078 = vmul.f32 %v1073, %v1076
      %1080 = vrot.lane.b32.xlu0 %v1078, 64
      %v1081 = vpop.permute.xlu0 %1080
      %v1083 = vadd.f32 %v1022, %v1081
      %v1084 = vtanh.pop %v1083
      %v1085 = vsub.f32 1.0, %v1073
      %1087 = vrot.lane.b32.xlu0 %v1084, 96
      %v1088 = vpop.permute.xlu0 %1087
      %v1090 = vmul.f32 %v1085, %v1088
      %v1091 = vmul.f32 %v1073, %v734
      %v1092 = vadd.f32 %v1090, %v1091
      %v1093 = vsel %vm978, %v1092, %v734
      %v1094 = vpack.c.bf16 %v1093, %v1093
      %1096 = vrot.lane.b32.xlu0 %v1094, 96
      %v1097 = vpop.permute.xlu0 %1096
      %v1099 = vsel %vm392, %v1097, 0
      %1101 = vmatprep.subr.bf16.mxu0 0
      %1102 = vmatpush1.bf16.msra.mxu0 %v753
      %1103 = vmatprep.subr.bf16.mxu0 0
      %1104 = vmatpush1.bf16.msra.mxu0 %v754
      %1105 = vmatprep.subr.bf16.mxu0 0
      %1106 = vmatpush1.bf16.msra.mxu0 0
      %1107 = vmatprep.subr.bf16.mxu0 0
      %1108 = vmatpush1.bf16.msra.mxu0 0
      %1109 = vmatprep.subr.bf16.mxu0 0
      %1110 = vmatpush1.bf16.msra.mxu0 0
      %1111 = vmatprep.subr.bf16.mxu0 0
      %1112 = vmatpush1.bf16.msra.mxu0 0
      %1113 = vmatprep.subr.bf16.mxu0 0
      %1114 = vmatpush1.bf16.msra.mxu0 0
      %1115 = vmatprep.subr.bf16.mxu0 0
      %1116 = vmatpush1.bf16.msra.mxu0 0
      %1117 = vmatprep.subr.bf16.mxu0 0
      %1118 = vmatpush1.bf16.msra.mxu0 0
      %1119 = vmatprep.subr.bf16.mxu0 0
      %1120 = vmatpush1.bf16.msra.mxu0 0
      %1121 = vmatprep.subr.bf16.mxu0 0
      %1122 = vmatpush1.bf16.msra.mxu0 0
      %1123 = vmatprep.subr.bf16.mxu0 0
      %1124 = vmatpush1.bf16.msra.mxu0 0
      %1125 = vmatprep.subr.bf16.mxu0 0
      %1126 = vmatpush1.bf16.msra.mxu0 0
      %1127 = vmatprep.subr.bf16.mxu0 0
      %1128 = vmatpush1.bf16.msra.mxu0 0
      %1129 = vmatprep.subr.bf16.mxu0 0
      %1130 = vmatpush1.bf16.msra.mxu0 0
      %1131 = vmatprep.subr.bf16.mxu0 0
      %1132 = vmatpush1.bf16.msra.mxu0 0
      %1133 = vmatprep.mubr.bf16.mxu0 0
      %1134 = vmatmul.mubr.bf16.gmra.mrb[0].mxu0 %v1099
      %v1135 = vpop.f32.mrb[0].mxu0
      %v1136 = vadd.f32 %v740, %v1135
      %v1137 = vpop.f32.mrb[0].mxu0
      %v1138 = vpop.f32.mrb[0].mxu0
      %v1139 = vpop.f32.mrb[0].mxu0
      %1140 = vdwg.mxu0
      %v1141 = vpack.c.bf16 %v892, %v892
      %1143 = vrot.lane.b32.xlu0 %v1141, 96
      %v1144 = vpop.permute.xlu0 %1143
      %v1146 = vsel %vm392, %v1144, 0
      %1148 = vmatprep.subr.bf16.mxu0 0
      %1149 = vmatpush1.bf16.msra.mxu0 %v815
      %1150 = vmatprep.subr.bf16.mxu0 0
      %1151 = vmatpush1.bf16.msra.mxu0 %v816
      %1152 = vmatprep.subr.bf16.mxu0 0
      %1153 = vmatpush1.bf16.msra.mxu0 0
      %1154 = vmatprep.subr.bf16.mxu0 0
      %1155 = vmatpush1.bf16.msra.mxu0 0
      %1156 = vmatprep.subr.bf16.mxu0 0
      %1157 = vmatpush1.bf16.msra.mxu0 0
      %1158 = vmatprep.subr.bf16.mxu0 0
      %1159 = vmatpush1.bf16.msra.mxu0 0
      %1160 = vmatprep.subr.bf16.mxu0 0
      %1161 = vmatpush1.bf16.msra.mxu0 0
      %1162 = vmatprep.subr.bf16.mxu0 0
      %1163 = vmatpush1.bf16.msra.mxu0 0
      %1164 = vmatprep.subr.bf16.mxu0 0
      %1165 = vmatpush1.bf16.msra.mxu0 0
      %1166 = vmatprep.subr.bf16.mxu0 0
      %1167 = vmatpush1.bf16.msra.mxu0 0
      %1168 = vmatprep.subr.bf16.mxu0 0
      %1169 = vmatpush1.bf16.msra.mxu0 0
      %1170 = vmatprep.subr.bf16.mxu0 0
      %1171 = vmatpush1.bf16.msra.mxu0 0
      %1172 = vmatprep.subr.bf16.mxu0 0
      %1173 = vmatpush1.bf16.msra.mxu0 0
      %1174 = vmatprep.subr.bf16.mxu0 0
      %1175 = vmatpush1.bf16.msra.mxu0 0
      %1176 = vmatprep.subr.bf16.mxu0 0
      %1177 = vmatpush1.bf16.msra.mxu0 0
      %1178 = vmatprep.subr.bf16.mxu0 0
      %1179 = vmatpush1.bf16.msra.mxu0 0
      %1180 = vmatprep.mubr.bf16.mxu0 0
      %1181 = vmatmul.mubr.bf16.gmra.mrb[0].mxu0 %v1146
      %v1182 = vpop.f32.mrb[0].mxu0
      %v1183 = vadd.f32 %v805, %v1182
      %v1184 = vpop.f32.mrb[0].mxu0
      %v1185 = vpop.f32.mrb[0].mxu0
      %v1186 = vpop.f32.mrb[0].mxu0
      %1187 = vdwg.mxu0
      %v1188 = vadd.f32 %v1136, %v1183
      %v1189 = vxor.u32 %v1188, 2147483648
      %v1190 = vmul.f32 %v1189, 1.442695
      %v1191 = vpow.pop %v1190
      %v1192 = vadd.f32 %v1191, 1.0
      %v1193 = vrcp.pop %v1192
      %v1194 = vmul.f32 1.0, %v1193
      %1196 = vrot.lane.b32.xlu0 %v1183, 64
      %v1197 = vpop.permute.xlu0 %1196
      %v1199 = vmul.f32 %v1194, %v1197
      %1201 = vrot.lane.b32.xlu0 %v1199, 64
      %v1202 = vpop.permute.xlu0 %1201
      %v1204 = vadd.f32 %v1136, %v1202
      %v1205 = vtanh.pop %v1204
      %v1206 = vsub.f32 1.0, %v1194
      %1208 = vrot.lane.b32.xlu0 %v1205, 96
      %v1209 = vpop.permute.xlu0 %1208
      %v1211 = vmul.f32 %v1206, %v1209
      %v1212 = vmul.f32 %v1194, %v892
      %v1213 = vadd.f32 %v1211, %v1212
      %v1214 = vsel %vm978, %v1213, %v892
      %1216 = vrot.lane.b32.xlu0 %v907, 32
      %v1217 = vpop.permute.xlu0 %1216
      %v1219 = vadd.f32 %v1214, %v1217
      %v1220 = vsel %vm978, %v1219, %v902
      %s1221 = scalar_lea.vmem %s308, 16
      %v1222 = vld [vmem:[%s1221] sm:$0xff]
      %vm1223 = vcmp.gt.f32.partialorder %v1222, 0.0
      %s1224 = scalar_lea.vmem %s298, 16
      %v1225 = vld [vmem:[%s1224] sm:$0xff]
      %1226 = vmatprep.subr.bf16.mxu0 0
      %1227 = vmatpush1.bf16.msra.mxu0 %v494
      %1228 = vmatprep.subr.bf16.mxu0 0
      %1229 = vmatpush1.bf16.msra.mxu0 %v495
      %1230 = vmatprep.subr.bf16.mxu0 0
      %1231 = vmatpush1.bf16.msra.mxu0 0
      %1232 = vmatprep.subr.bf16.mxu0 0
      %1233 = vmatpush1.bf16.msra.mxu0 0
      %1234 = vmatprep.subr.bf16.mxu0 0
      %1235 = vmatpush1.bf16.msra.mxu0 0
      %1236 = vmatprep.subr.bf16.mxu0 0
      %1237 = vmatpush1.bf16.msra.mxu0 0
      %1238 = vmatprep.subr.bf16.mxu0 0
      %1239 = vmatpush1.bf16.msra.mxu0 0
      %1240 = vmatprep.subr.bf16.mxu0 0
      %1241 = vmatpush1.bf16.msra.mxu0 0
      %1242 = vmatprep.subr.bf16.mxu0 0
      %1243 = vmatpush1.bf16.msra.mxu0 0
      %1244 = vmatprep.subr.bf16.mxu0 0
      %1245 = vmatpush1.bf16.msra.mxu0 0
      %1246 = vmatprep.subr.bf16.mxu0 0
      %1247 = vmatpush1.bf16.msra.mxu0 0
      %1248 = vmatprep.subr.bf16.mxu0 0
      %1249 = vmatpush1.bf16.msra.mxu0 0
      %1250 = vmatprep.subr.bf16.mxu0 0
      %1251 = vmatpush1.bf16.msra.mxu0 0
      %1252 = vmatprep.subr.bf16.mxu0 0
      %1253 = vmatpush1.bf16.msra.mxu0 0
      %1254 = vmatprep.subr.bf16.mxu0 0
      %1255 = vmatpush1.bf16.msra.mxu0 0
      %1256 = vmatprep.subr.bf16.mxu0 0
      %1257 = vmatpush1.bf16.msra.mxu0 0
      %1258 = vmatprep.mubr.bf16.mxu0 0
      %1259 = vmatmul.mubr.bf16.gmra.mrb[0].mxu0 %v985
      %v1260 = vpop.f32.mrb[0].mxu0
      %v1261 = vadd.f32 %v484, %v1260
      %v1262 = vpop.f32.mrb[0].mxu0
      %v1263 = vpop.f32.mrb[0].mxu0
      %v1264 = vpop.f32.mrb[0].mxu0
      %1265 = vdwg.mxu0
      %v1266 = vadd.f32 %v448, %v1261
      %v1267 = vxor.u32 %v1266, 2147483648
      %v1268 = vmul.f32 %v1267, 1.442695
      %v1269 = vpow.pop %v1268
      %v1270 = vadd.f32 %v1269, 1.0
      %v1271 = vrcp.pop %v1270
      %v1272 = vmul.f32 1.0, %v1271
      %1274 = vrot.lane.b32.xlu0 %v1261, 64
      %v1275 = vpop.permute.xlu0 %1274
      %v1277 = vmul.f32 %v1272, %v1275
      %1279 = vrot.lane.b32.xlu0 %v1277, 64
      %v1280 = vpop.permute.xlu0 %1279
      %v1282 = vadd.f32 %v448, %v1280
      %v1283 = vtanh.pop %v1282
      %v1284 = vsub.f32 1.0, %v1272
      %1286 = vrot.lane.b32.xlu0 %v1283, 96
      %v1287 = vpop.permute.xlu0 %1286
      %v1289 = vmul.f32 %v1284, %v1287
      %v1290 = vmul.f32 %v1272, %v979
      %v1291 = vadd.f32 %v1289, %v1290
      %v1292 = vsel %vm1223, 1, 0
      %1293 = vset.pattern.permute.xlu0 0
      %1294 = vperm.xlu0 %1293, %v1292
      %v1295 = vpop.permute.xlu0 %1294
      %vm1296 = vcmp.eq.s32.totalorder %v1295, 1
      %v1297 = vsel %vm1296, %v1291, %v979
      %v1298 = vpack.c.bf16 %v1297, %v1297
      %1300 = vrot.lane.b32.xlu0 %v1298, 96
      %v1301 = vpop.permute.xlu0 %1300
      %v1303 = vsel %vm392, %v1301, 0
      %1305 = vmatprep.subr.bf16.mxu0 0
      %1306 = vmatpush1.bf16.msra.mxu0 %v595
      %1307 = vmatprep.subr.bf16.mxu0 0
      %1308 = vmatpush1.bf16.msra.mxu0 %v596
      %1309 = vmatprep.subr.bf16.mxu0 0
      %1310 = vmatpush1.bf16.msra.mxu0 0
      %1311 = vmatprep.subr.bf16.mxu0 0
      %1312 = vmatpush1.bf16.msra.mxu0 0
      %1313 = vmatprep.subr.bf16.mxu0 0
      %1314 = vmatpush1.bf16.msra.mxu0 0
      %1315 = vmatprep.subr.bf16.mxu0 0
      %1316 = vmatpush1.bf16.msra.mxu0 0
      %1317 = vmatprep.subr.bf16.mxu0 0
      %1318 = vmatpush1.bf16.msra.mxu0 0
      %1319 = vmatprep.subr.bf16.mxu0 0
      %1320 = vmatpush1.bf16.msra.mxu0 0
      %1321 = vmatprep.subr.bf16.mxu0 0
      %1322 = vmatpush1.bf16.msra.mxu0 0
      %1323 = vmatprep.subr.bf16.mxu0 0
      %1324 = vmatpush1.bf16.msra.mxu0 0
      %1325 = vmatprep.subr.bf16.mxu0 0
      %1326 = vmatpush1.bf16.msra.mxu0 0
      %1327 = vmatprep.subr.bf16.mxu0 0
      %1328 = vmatpush1.bf16.msra.mxu0 0
      %1329 = vmatprep.subr.bf16.mxu0 0
      %1330 = vmatpush1.bf16.msra.mxu0 0
      %1331 = vmatprep.subr.bf16.mxu0 0
      %1332 = vmatpush1.bf16.msra.mxu0 0
      %1333 = vmatprep.subr.bf16.mxu0 0
      %1334 = vmatpush1.bf16.msra.mxu0 0
      %1335 = vmatprep.subr.bf16.mxu0 0
      %1336 = vmatpush1.bf16.msra.mxu0 0
      %1337 = vmatprep.mubr.bf16.mxu0 0
      %1338 = vmatmul.mubr.bf16.gmra.mrb[0].mxu0 %v1303
      %v1339 = vpop.f32.mrb[0].mxu0
      %v1340 = vadd.f32 %v582, %v1339
      %v1341 = vpop.f32.mrb[0].mxu0
      %v1342 = vpop.f32.mrb[0].mxu0
      %v1343 = vpop.f32.mrb[0].mxu0
      %1344 = vdwg.mxu0
      %1345 = vmatprep.subr.bf16.mxu0 0
      %1346 = vmatpush1.bf16.msra.mxu0 %v657
      %1347 = vmatprep.subr.bf16.mxu0 0
      %1348 = vmatpush1.bf16.msra.mxu0 %v658
      %1349 = vmatprep.subr.bf16.mxu0 0
      %1350 = vmatpush1.bf16.msra.mxu0 0
      %1351 = vmatprep.subr.bf16.mxu0 0
      %1352 = vmatpush1.bf16.msra.mxu0 0
      %1353 = vmatprep.subr.bf16.mxu0 0
      %1354 = vmatpush1.bf16.msra.mxu0 0
      %1355 = vmatprep.subr.bf16.mxu0 0
      %1356 = vmatpush1.bf16.msra.mxu0 0
      %1357 = vmatprep.subr.bf16.mxu0 0
      %1358 = vmatpush1.bf16.msra.mxu0 0
      %1359 = vmatprep.subr.bf16.mxu0 0
      %1360 = vmatpush1.bf16.msra.mxu0 0
      %1361 = vmatprep.subr.bf16.mxu0 0
      %1362 = vmatpush1.bf16.msra.mxu0 0
      %1363 = vmatprep.subr.bf16.mxu0 0
      %1364 = vmatpush1.bf16.msra.mxu0 0
      %1365 = vmatprep.subr.bf16.mxu0 0
      %1366 = vmatpush1.bf16.msra.mxu0 0
      %1367 = vmatprep.subr.bf16.mxu0 0
      %1368 = vmatpush1.bf16.msra.mxu0 0
      %1369 = vmatprep.subr.bf16.mxu0 0
      %1370 = vmatpush1.bf16.msra.mxu0 0
      %1371 = vmatprep.subr.bf16.mxu0 0
      %1372 = vmatpush1.bf16.msra.mxu0 0
      %1373 = vmatprep.subr.bf16.mxu0 0
      %1374 = vmatpush1.bf16.msra.mxu0 0
      %1375 = vmatprep.subr.bf16.mxu0 0
      %1376 = vmatpush1.bf16.msra.mxu0 0
      %1377 = vmatprep.mubr.bf16.mxu0 0
      %1378 = vmatmul.mubr.bf16.gmra.mrb[0].mxu0 %v1099
      %v1379 = vpop.f32.mrb[0].mxu0
      %v1380 = vadd.f32 %v647, %v1379
      %v1381 = vpop.f32.mrb[0].mxu0
      %v1382 = vpop.f32.mrb[0].mxu0
      %v1383 = vpop.f32.mrb[0].mxu0
      %1384 = vdwg.mxu0
      %v1385 = vadd.f32 %v1340, %v1380
      %v1386 = vxor.u32 %v1385, 2147483648
      %v1387 = vmul.f32 %v1386, 1.442695
      %v1388 = vpow.pop %v1387
      %v1389 = vadd.f32 %v1388, 1.0
      %v1390 = vrcp.pop %v1389
      %v1391 = vmul.f32 1.0, %v1390
      %1393 = vrot.lane.b32.xlu0 %v1380, 64
      %v1394 = vpop.permute.xlu0 %1393
      %v1396 = vmul.f32 %v1391, %v1394
      %1398 = vrot.lane.b32.xlu0 %v1396, 64
      %v1399 = vpop.permute.xlu0 %1398
      %v1401 = vadd.f32 %v1340, %v1399
      %v1402 = vtanh.pop %v1401
      %v1403 = vsub.f32 1.0, %v1391
      %1405 = vrot.lane.b32.xlu0 %v1402, 96
      %v1406 = vpop.permute.xlu0 %1405
      %v1408 = vmul.f32 %v1403, %v1406
      %v1409 = vmul.f32 %v1391, %v1093
      %v1410 = vadd.f32 %v1408, %v1409
      %v1411 = vsel %vm1296, %v1410, %v1093
      %v1412 = vpack.c.bf16 %v1411, %v1411
      %1414 = vrot.lane.b32.xlu0 %v1412, 96
      %v1415 = vpop.permute.xlu0 %1414
      %v1417 = vsel %vm392, %v1415, 0
      %1419 = vmatprep.subr.bf16.mxu0 0
      %1420 = vmatpush1.bf16.msra.mxu0 %v753
      %1421 = vmatprep.subr.bf16.mxu0 0
      %1422 = vmatpush1.bf16.msra.mxu0 %v754
      %1423 = vmatprep.subr.bf16.mxu0 0
      %1424 = vmatpush1.bf16.msra.mxu0 0
      %1425 = vmatprep.subr.bf16.mxu0 0
      %1426 = vmatpush1.bf16.msra.mxu0 0
      %1427 = vmatprep.subr.bf16.mxu0 0
      %1428 = vmatpush1.bf16.msra.mxu0 0
      %1429 = vmatprep.subr.bf16.mxu0 0
      %1430 = vmatpush1.bf16.msra.mxu0 0
      %1431 = vmatprep.subr.bf16.mxu0 0
      %1432 = vmatpush1.bf16.msra.mxu0 0
      %1433 = vmatprep.subr.bf16.mxu0 0
      %1434 = vmatpush1.bf16.msra.mxu0 0
      %1435 = vmatprep.subr.bf16.mxu0 0
      %1436 = vmatpush1.bf16.msra.mxu0 0
      %1437 = vmatprep.subr.bf16.mxu0 0
      %1438 = vmatpush1.bf16.msra.mxu0 0
      %1439 = vmatprep.subr.bf16.mxu0 0
      %1440 = vmatpush1.bf16.msra.mxu0 0
      %1441 = vmatprep.subr.bf16.mxu0 0
      %1442 = vmatpush1.bf16.msra.mxu0 0
      %1443 = vmatprep.subr.bf16.mxu0 0
      %1444 = vmatpush1.bf16.msra.mxu0 0
      %1445 = vmatprep.subr.bf16.mxu0 0
      %1446 = vmatpush1.bf16.msra.mxu0 0
      %1447 = vmatprep.subr.bf16.mxu0 0
      %1448 = vmatpush1.bf16.msra.mxu0 0
      %1449 = vmatprep.subr.bf16.mxu0 0
      %1450 = vmatpush1.bf16.msra.mxu0 0
      %1451 = vmatprep.mubr.bf16.mxu0 0
      %1452 = vmatmul.mubr.bf16.gmra.mrb[0].mxu0 %v1417
      %v1453 = vpop.f32.mrb[0].mxu0
      %v1454 = vadd.f32 %v740, %v1453
      %v1455 = vpop.f32.mrb[0].mxu0
      %v1456 = vpop.f32.mrb[0].mxu0
      %v1457 = vpop.f32.mrb[0].mxu0
      %1458 = vdwg.mxu0
      %v1459 = vpack.c.bf16 %v1214, %v1214
      %1461 = vrot.lane.b32.xlu0 %v1459, 96
      %v1462 = vpop.permute.xlu0 %1461
      %v1464 = vsel %vm392, %v1462, 0
      %1466 = vmatprep.subr.bf16.mxu0 0
      %1467 = vmatpush1.bf16.msra.mxu0 %v815
      %1468 = vmatprep.subr.bf16.mxu0 0
      %1469 = vmatpush1.bf16.msra.mxu0 %v816
      %1470 = vmatprep.subr.bf16.mxu0 0
      %1471 = vmatpush1.bf16.msra.mxu0 0
      %1472 = vmatprep.subr.bf16.mxu0 0
      %1473 = vmatpush1.bf16.msra.mxu0 0
      %1474 = vmatprep.subr.bf16.mxu0 0
      %1475 = vmatpush1.bf16.msra.mxu0 0
      %1476 = vmatprep.subr.bf16.mxu0 0
      %1477 = vmatpush1.bf16.msra.mxu0 0
      %1478 = vmatprep.subr.bf16.mxu0 0
      %1479 = vmatpush1.bf16.msra.mxu0 0
      %1480 = vmatprep.subr.bf16.mxu0 0
      %1481 = vmatpush1.bf16.msra.mxu0 0
      %1482 = vmatprep.subr.bf16.mxu0 0
      %1483 = vmatpush1.bf16.msra.mxu0 0
      %1484 = vmatprep.subr.bf16.mxu0 0
      %1485 = vmatpush1.bf16.msra.mxu0 0
      %1486 = vmatprep.subr.bf16.mxu0 0
      %1487 = vmatpush1.bf16.msra.mxu0 0
      %1488 = vmatprep.subr.bf16.mxu0 0
      %1489 = vmatpush1.bf16.msra.mxu0 0
      %1490 = vmatprep.subr.bf16.mxu0 0
      %1491 = vmatpush1.bf16.msra.mxu0 0
      %1492 = vmatprep.subr.bf16.mxu0 0
      %1493 = vmatpush1.bf16.msra.mxu0 0
      %1494 = vmatprep.subr.bf16.mxu0 0
      %1495 = vmatpush1.bf16.msra.mxu0 0
      %1496 = vmatprep.subr.bf16.mxu0 0
      %1497 = vmatpush1.bf16.msra.mxu0 0
      %1498 = vmatprep.mubr.bf16.mxu0 0
      %1499 = vmatmul.mubr.bf16.gmra.mrb[0].mxu0 %v1464
      %v1500 = vpop.f32.mrb[0].mxu0
      %v1501 = vadd.f32 %v805, %v1500
      %v1502 = vpop.f32.mrb[0].mxu0
      %v1503 = vpop.f32.mrb[0].mxu0
      %v1504 = vpop.f32.mrb[0].mxu0
      %1505 = vdwg.mxu0
      %v1506 = vadd.f32 %v1454, %v1501
      %v1507 = vxor.u32 %v1506, 2147483648
      %v1508 = vmul.f32 %v1507, 1.442695
      %v1509 = vpow.pop %v1508
      %v1510 = vadd.f32 %v1509, 1.0
      %v1511 = vrcp.pop %v1510
      %v1512 = vmul.f32 1.0, %v1511
      %1514 = vrot.lane.b32.xlu0 %v1501, 64
      %v1515 = vpop.permute.xlu0 %1514
      %v1517 = vmul.f32 %v1512, %v1515
      %1519 = vrot.lane.b32.xlu0 %v1517, 64
      %v1520 = vpop.permute.xlu0 %1519
      %v1522 = vadd.f32 %v1454, %v1520
      %v1523 = vtanh.pop %v1522
      %v1524 = vsub.f32 1.0, %v1512
      %1526 = vrot.lane.b32.xlu0 %v1523, 96
      %v1527 = vpop.permute.xlu0 %1526
      %v1529 = vmul.f32 %v1524, %v1527
      %v1530 = vmul.f32 %v1512, %v1214
      %v1531 = vadd.f32 %v1529, %v1530
      %v1532 = vsel %vm1296, %v1531, %v1214
      %1534 = vrot.lane.b32.xlu0 %v1225, 32
      %v1535 = vpop.permute.xlu0 %1534
      %v1537 = vadd.f32 %v1532, %v1535
      %v1538 = vsel %vm1296, %v1537, %v1220
      %s1539 = scalar_lea.vmem %s308, 24
      %v1540 = vld [vmem:[%s1539] sm:$0xff]
      %vm1541 = vcmp.gt.f32.partialorder %v1540, 0.0
      %s1542 = scalar_lea.vmem %s298, 24
      %v1543 = vld [vmem:[%s1542] sm:$0xff]
      %1544 = vmatprep.subr.bf16.mxu0 0
      %1545 = vmatpush1.bf16.msra.mxu0 %v494
      %1546 = vmatprep.subr.bf16.mxu0 0
      %1547 = vmatpush1.bf16.msra.mxu0 %v495
      %1548 = vmatprep.subr.bf16.mxu0 0
      %1549 = vmatpush1.bf16.msra.mxu0 0
      %1550 = vmatprep.subr.bf16.mxu0 0
      %1551 = vmatpush1.bf16.msra.mxu0 0
      %1552 = vmatprep.subr.bf16.mxu0 0
      %1553 = vmatpush1.bf16.msra.mxu0 0
      %1554 = vmatprep.subr.bf16.mxu0 0
      %1555 = vmatpush1.bf16.msra.mxu0 0
      %1556 = vmatprep.subr.bf16.mxu0 0
      %1557 = vmatpush1.bf16.msra.mxu0 0
      %1558 = vmatprep.subr.bf16.mxu0 0
      %1559 = vmatpush1.bf16.msra.mxu0 0
      %1560 = vmatprep.subr.bf16.mxu0 0
      %1561 = vmatpush1.bf16.msra.mxu0 0
      %1562 = vmatprep.subr.bf16.mxu0 0
      %1563 = vmatpush1.bf16.msra.mxu0 0
      %1564 = vmatprep.subr.bf16.mxu0 0
      %1565 = vmatpush1.bf16.msra.mxu0 0
      %1566 = vmatprep.subr.bf16.mxu0 0
      %1567 = vmatpush1.bf16.msra.mxu0 0
      %1568 = vmatprep.subr.bf16.mxu0 0
      %1569 = vmatpush1.bf16.msra.mxu0 0
      %1570 = vmatprep.subr.bf16.mxu0 0
      %1571 = vmatpush1.bf16.msra.mxu0 0
      %1572 = vmatprep.subr.bf16.mxu0 0
      %1573 = vmatpush1.bf16.msra.mxu0 0
      %1574 = vmatprep.subr.bf16.mxu0 0
      %1575 = vmatpush1.bf16.msra.mxu0 0
      %1576 = vmatprep.mubr.bf16.mxu0 0
      %1577 = vmatmul.mubr.bf16.gmra.mrb[0].mxu0 %v1303
      %v1578 = vpop.f32.mrb[0].mxu0
      %v1579 = vadd.f32 %v484, %v1578
      %v1580 = vpop.f32.mrb[0].mxu0
      %v1581 = vpop.f32.mrb[0].mxu0
      %v1582 = vpop.f32.mrb[0].mxu0
      %1583 = vdwg.mxu0
      %v1584 = vadd.f32 %v451, %v1579
      %v1585 = vxor.u32 %v1584, 2147483648
      %v1586 = vmul.f32 %v1585, 1.442695
      %v1587 = vpow.pop %v1586
      %v1588 = vadd.f32 %v1587, 1.0
      %v1589 = vrcp.pop %v1588
      %v1590 = vmul.f32 1.0, %v1589
      %1592 = vrot.lane.b32.xlu0 %v1579, 64
      %v1593 = vpop.permute.xlu0 %1592
      %v1595 = vmul.f32 %v1590, %v1593
      %1597 = vrot.lane.b32.xlu0 %v1595, 64
      %v1598 = vpop.permute.xlu0 %1597
      %v1600 = vadd.f32 %v451, %v1598
      %v1601 = vtanh.pop %v1600
      %v1602 = vsub.f32 1.0, %v1590
      %1604 = vrot.lane.b32.xlu0 %v1601, 96
      %v1605 = vpop.permute.xlu0 %1604
      %v1607 = vmul.f32 %v1602, %v1605
      %v1608 = vmul.f32 %v1590, %v1297
      %v1609 = vadd.f32 %v1607, %v1608
      %v1610 = vsel %vm1541, 1, 0
      %1611 = vset.pattern.permute.xlu0 0
      %1612 = vperm.xlu0 %1611, %v1610
      %v1613 = vpop.permute.xlu0 %1612
      %vm1614 = vcmp.eq.s32.totalorder %v1613, 1
      %v1615 = vsel %vm1614, %v1609, %v1297
      %v1616 = vpack.c.bf16 %v1615, %v1615
      %1618 = vrot.lane.b32.xlu0 %v1616, 96
      %v1619 = vpop.permute.xlu0 %1618
      %v1621 = vsel %vm392, %v1619, 0
      %1623 = vmatprep.subr.bf16.mxu0 0
      %1624 = vmatpush1.bf16.msra.mxu0 %v595
      %1625 = vmatprep.subr.bf16.mxu0 0
      %1626 = vmatpush1.bf16.msra.mxu0 %v596
      %1627 = vmatprep.subr.bf16.mxu0 0
      %1628 = vmatpush1.bf16.msra.mxu0 0
      %1629 = vmatprep.subr.bf16.mxu0 0
      %1630 = vmatpush1.bf16.msra.mxu0 0
      %1631 = vmatprep.subr.bf16.mxu0 0
      %1632 = vmatpush1.bf16.msra.mxu0 0
      %1633 = vmatprep.subr.bf16.mxu0 0
      %1634 = vmatpush1.bf16.msra.mxu0 0
      %1635 = vmatprep.subr.bf16.mxu0 0
      %1636 = vmatpush1.bf16.msra.mxu0 0
      %1637 = vmatprep.subr.bf16.mxu0 0
      %1638 = vmatpush1.bf16.msra.mxu0 0
      %1639 = vmatprep.subr.bf16.mxu0 0
      %1640 = vmatpush1.bf16.msra.mxu0 0
      %1641 = vmatprep.subr.bf16.mxu0 0
      %1642 = vmatpush1.bf16.msra.mxu0 0
      %1643 = vmatprep.subr.bf16.mxu0 0
      %1644 = vmatpush1.bf16.msra.mxu0 0
      %1645 = vmatprep.subr.bf16.mxu0 0
      %1646 = vmatpush1.bf16.msra.mxu0 0
      %1647 = vmatprep.subr.bf16.mxu0 0
      %1648 = vmatpush1.bf16.msra.mxu0 0
      %1649 = vmatprep.subr.bf16.mxu0 0
      %1650 = vmatpush1.bf16.msra.mxu0 0
      %1651 = vmatprep.subr.bf16.mxu0 0
      %1652 = vmatpush1.bf16.msra.mxu0 0
      %1653 = vmatprep.subr.bf16.mxu0 0
      %1654 = vmatpush1.bf16.msra.mxu0 0
      %1655 = vmatprep.mubr.bf16.mxu0 0
      %1656 = vmatmul.mubr.bf16.gmra.mrb[0].mxu0 %v1621
      %v1657 = vpop.f32.mrb[0].mxu0
      %v1658 = vadd.f32 %v582, %v1657
      %v1659 = vpop.f32.mrb[0].mxu0
      %v1660 = vpop.f32.mrb[0].mxu0
      %v1661 = vpop.f32.mrb[0].mxu0
      %1662 = vdwg.mxu0
      %1663 = vmatprep.subr.bf16.mxu0 0
      %1664 = vmatpush1.bf16.msra.mxu0 %v657
      %1665 = vmatprep.subr.bf16.mxu0 0
      %1666 = vmatpush1.bf16.msra.mxu0 %v658
      %1667 = vmatprep.subr.bf16.mxu0 0
      %1668 = vmatpush1.bf16.msra.mxu0 0
      %1669 = vmatprep.subr.bf16.mxu0 0
      %1670 = vmatpush1.bf16.msra.mxu0 0
      %1671 = vmatprep.subr.bf16.mxu0 0
      %1672 = vmatpush1.bf16.msra.mxu0 0
      %1673 = vmatprep.subr.bf16.mxu0 0
      %1674 = vmatpush1.bf16.msra.mxu0 0
      %1675 = vmatprep.subr.bf16.mxu0 0
      %1676 = vmatpush1.bf16.msra.mxu0 0
      %1677 = vmatprep.subr.bf16.mxu0 0
      %1678 = vmatpush1.bf16.msra.mxu0 0
      %1679 = vmatprep.subr.bf16.mxu0 0
      %1680 = vmatpush1.bf16.msra.mxu0 0
      %1681 = vmatprep.subr.bf16.mxu0 0
      %1682 = vmatpush1.bf16.msra.mxu0 0
      %1683 = vmatprep.subr.bf16.mxu0 0
      %1684 = vmatpush1.bf16.msra.mxu0 0
      %1685 = vmatprep.subr.bf16.mxu0 0
      %1686 = vmatpush1.bf16.msra.mxu0 0
      %1687 = vmatprep.subr.bf16.mxu0 0
      %1688 = vmatpush1.bf16.msra.mxu0 0
      %1689 = vmatprep.subr.bf16.mxu0 0
      %1690 = vmatpush1.bf16.msra.mxu0 0
      %1691 = vmatprep.subr.bf16.mxu0 0
      %1692 = vmatpush1.bf16.msra.mxu0 0
      %1693 = vmatprep.subr.bf16.mxu0 0
      %1694 = vmatpush1.bf16.msra.mxu0 0
      %1695 = vmatprep.mubr.bf16.mxu0 0
      %1696 = vmatmul.mubr.bf16.gmra.mrb[0].mxu0 %v1417
      %v1697 = vpop.f32.mrb[0].mxu0
      %v1698 = vadd.f32 %v647, %v1697
      %v1699 = vpop.f32.mrb[0].mxu0
      %v1700 = vpop.f32.mrb[0].mxu0
      %v1701 = vpop.f32.mrb[0].mxu0
      %1702 = vdwg.mxu0
      %v1703 = vadd.f32 %v1658, %v1698
      %v1704 = vxor.u32 %v1703, 2147483648
      %v1705 = vmul.f32 %v1704, 1.442695
      %v1706 = vpow.pop %v1705
      %v1707 = vadd.f32 %v1706, 1.0
      %v1708 = vrcp.pop %v1707
      %v1709 = vmul.f32 1.0, %v1708
      %1711 = vrot.lane.b32.xlu0 %v1698, 64
      %v1712 = vpop.permute.xlu0 %1711
      %v1714 = vmul.f32 %v1709, %v1712
      %1716 = vrot.lane.b32.xlu0 %v1714, 64
      %v1717 = vpop.permute.xlu0 %1716
      %v1719 = vadd.f32 %v1658, %v1717
      %v1720 = vtanh.pop %v1719
      %v1721 = vsub.f32 1.0, %v1709
      %1723 = vrot.lane.b32.xlu0 %v1720, 96
      %v1724 = vpop.permute.xlu0 %1723
      %v1726 = vmul.f32 %v1721, %v1724
      %v1727 = vmul.f32 %v1709, %v1411
      %v1728 = vadd.f32 %v1726, %v1727
      %v1729 = vsel %vm1614, %v1728, %v1411
      %v1730 = vpack.c.bf16 %v1729, %v1729
      %1732 = vrot.lane.b32.xlu0 %v1730, 96
      %v1733 = vpop.permute.xlu0 %1732
      %v1735 = vsel %vm392, %v1733, 0
      %1737 = vmatprep.subr.bf16.mxu0 0
      %1738 = vmatpush1.bf16.msra.mxu0 %v753
      %1739 = vmatprep.subr.bf16.mxu0 0
      %1740 = vmatpush1.bf16.msra.mxu0 %v754
      %1741 = vmatprep.subr.bf16.mxu0 0
      %1742 = vmatpush1.bf16.msra.mxu0 0
      %1743 = vmatprep.subr.bf16.mxu0 0
      %1744 = vmatpush1.bf16.msra.mxu0 0
      %1745 = vmatprep.subr.bf16.mxu0 0
      %1746 = vmatpush1.bf16.msra.mxu0 0
      %1747 = vmatprep.subr.bf16.mxu0 0
      %1748 = vmatpush1.bf16.msra.mxu0 0
      %1749 = vmatprep.subr.bf16.mxu0 0
      %1750 = vmatpush1.bf16.msra.mxu0 0
      %1751 = vmatprep.subr.bf16.mxu0 0
      %1752 = vmatpush1.bf16.msra.mxu0 0
      %1753 = vmatprep.subr.bf16.mxu0 0
      %1754 = vmatpush1.bf16.msra.mxu0 0
      %1755 = vmatprep.subr.bf16.mxu0 0
      %1756 = vmatpush1.bf16.msra.mxu0 0
      %1757 = vmatprep.subr.bf16.mxu0 0
      %1758 = vmatpush1.bf16.msra.mxu0 0
      %1759 = vmatprep.subr.bf16.mxu0 0
      %1760 = vmatpush1.bf16.msra.mxu0 0
      %1761 = vmatprep.subr.bf16.mxu0 0
      %1762 = vmatpush1.bf16.msra.mxu0 0
      %1763 = vmatprep.subr.bf16.mxu0 0
      %1764 = vmatpush1.bf16.msra.mxu0 0
      %1765 = vmatprep.subr.bf16.mxu0 0
      %1766 = vmatpush1.bf16.msra.mxu0 0
      %1767 = vmatprep.subr.bf16.mxu0 0
      %1768 = vmatpush1.bf16.msra.mxu0 0
      %1769 = vmatprep.mubr.bf16.mxu0 0
      %1770 = vmatmul.mubr.bf16.gmra.mrb[0].mxu0 %v1735
      %v1771 = vpop.f32.mrb[0].mxu0
      %v1772 = vadd.f32 %v740, %v1771
      %v1773 = vpop.f32.mrb[0].mxu0
      %v1774 = vpop.f32.mrb[0].mxu0
      %v1775 = vpop.f32.mrb[0].mxu0
      %1776 = vdwg.mxu0
      %v1777 = vpack.c.bf16 %v1532, %v1532
      %1779 = vrot.lane.b32.xlu0 %v1777, 96
      %v1780 = vpop.permute.xlu0 %1779
      %v1782 = vsel %vm392, %v1780, 0
      %1784 = vmatprep.subr.bf16.mxu0 0
      %1785 = vmatpush1.bf16.msra.mxu0 %v815
      %1786 = vmatprep.subr.bf16.mxu0 0
      %1787 = vmatpush1.bf16.msra.mxu0 %v816
      %1788 = vmatprep.subr.bf16.mxu0 0
      %1789 = vmatpush1.bf16.msra.mxu0 0
      %1790 = vmatprep.subr.bf16.mxu0 0
      %1791 = vmatpush1.bf16.msra.mxu0 0
      %1792 = vmatprep.subr.bf16.mxu0 0
      %1793 = vmatpush1.bf16.msra.mxu0 0
      %1794 = vmatprep.subr.bf16.mxu0 0
      %1795 = vmatpush1.bf16.msra.mxu0 0
      %1796 = vmatprep.subr.bf16.mxu0 0
      %1797 = vmatpush1.bf16.msra.mxu0 0
      %1798 = vmatprep.subr.bf16.mxu0 0
      %1799 = vmatpush1.bf16.msra.mxu0 0
      %1800 = vmatprep.subr.bf16.mxu0 0
      %1801 = vmatpush1.bf16.msra.mxu0 0
      %1802 = vmatprep.subr.bf16.mxu0 0
      %1803 = vmatpush1.bf16.msra.mxu0 0
      %1804 = vmatprep.subr.bf16.mxu0 0
      %1805 = vmatpush1.bf16.msra.mxu0 0
      %1806 = vmatprep.subr.bf16.mxu0 0
      %1807 = vmatpush1.bf16.msra.mxu0 0
      %1808 = vmatprep.subr.bf16.mxu0 0
      %1809 = vmatpush1.bf16.msra.mxu0 0
      %1810 = vmatprep.subr.bf16.mxu0 0
      %1811 = vmatpush1.bf16.msra.mxu0 0
      %1812 = vmatprep.subr.bf16.mxu0 0
      %1813 = vmatpush1.bf16.msra.mxu0 0
      %1814 = vmatprep.subr.bf16.mxu0 0
      %1815 = vmatpush1.bf16.msra.mxu0 0
      %1816 = vmatprep.mubr.bf16.mxu0 0
      %1817 = vmatmul.mubr.bf16.gmra.mrb[0].mxu0 %v1782
      %v1818 = vpop.f32.mrb[0].mxu0
      %v1819 = vadd.f32 %v805, %v1818
      %v1820 = vpop.f32.mrb[0].mxu0
      %v1821 = vpop.f32.mrb[0].mxu0
      %v1822 = vpop.f32.mrb[0].mxu0
      %1823 = vdwg.mxu0
      %v1824 = vadd.f32 %v1772, %v1819
      %v1825 = vxor.u32 %v1824, 2147483648
      %v1826 = vmul.f32 %v1825, 1.442695
      %v1827 = vpow.pop %v1826
      %v1828 = vadd.f32 %v1827, 1.0
      %v1829 = vrcp.pop %v1828
      %v1830 = vmul.f32 1.0, %v1829
      %1832 = vrot.lane.b32.xlu0 %v1819, 64
      %v1833 = vpop.permute.xlu0 %1832
      %v1835 = vmul.f32 %v1830, %v1833
      %1837 = vrot.lane.b32.xlu0 %v1835, 64
      %v1838 = vpop.permute.xlu0 %1837
      %v1840 = vadd.f32 %v1772, %v1838
      %v1841 = vtanh.pop %v1840
      %v1842 = vsub.f32 1.0, %v1830
      %1844 = vrot.lane.b32.xlu0 %v1841, 96
      %v1845 = vpop.permute.xlu0 %1844
      %v1847 = vmul.f32 %v1842, %v1845
      %v1848 = vmul.f32 %v1830, %v1532
      %v1849 = vadd.f32 %v1847, %v1848
      %v1850 = vsel %vm1614, %v1849, %v1532
      %1852 = vrot.lane.b32.xlu0 %v1543, 32
      %v1853 = vpop.permute.xlu0 %1852
      %v1855 = vadd.f32 %v1850, %v1853
      %v1856 = vsel %vm1614, %v1855, %v1538
      %s1857 = scalar_lea.vmem %s308, 32
      %v1858 = vld [vmem:[%s1857] sm:$0xff]
      %vm1859 = vcmp.gt.f32.partialorder %v1858, 0.0
      %s1860 = scalar_lea.vmem %s298, 32
      %v1861 = vld [vmem:[%s1860] sm:$0xff]
      %1862 = vmatprep.subr.bf16.mxu0 0
      %1863 = vmatpush1.bf16.msra.mxu0 %v494
      %1864 = vmatprep.subr.bf16.mxu0 0
      %1865 = vmatpush1.bf16.msra.mxu0 %v495
      %1866 = vmatprep.subr.bf16.mxu0 0
      %1867 = vmatpush1.bf16.msra.mxu0 0
      %1868 = vmatprep.subr.bf16.mxu0 0
      %1869 = vmatpush1.bf16.msra.mxu0 0
      %1870 = vmatprep.subr.bf16.mxu0 0
      %1871 = vmatpush1.bf16.msra.mxu0 0
      %1872 = vmatprep.subr.bf16.mxu0 0
      %1873 = vmatpush1.bf16.msra.mxu0 0
      %1874 = vmatprep.subr.bf16.mxu0 0
      %1875 = vmatpush1.bf16.msra.mxu0 0
      %1876 = vmatprep.subr.bf16.mxu0 0
      %1877 = vmatpush1.bf16.msra.mxu0 0
      %1878 = vmatprep.subr.bf16.mxu0 0
      %1879 = vmatpush1.bf16.msra.mxu0 0
      %1880 = vmatprep.subr.bf16.mxu0 0
      %1881 = vmatpush1.bf16.msra.mxu0 0
      %1882 = vmatprep.subr.bf16.mxu0 0
      %1883 = vmatpush1.bf16.msra.mxu0 0
      %1884 = vmatprep.subr.bf16.mxu0 0
      %1885 = vmatpush1.bf16.msra.mxu0 0
      %1886 = vmatprep.subr.bf16.mxu0 0
      %1887 = vmatpush1.bf16.msra.mxu0 0
      %1888 = vmatprep.subr.bf16.mxu0 0
      %1889 = vmatpush1.bf16.msra.mxu0 0
      %1890 = vmatprep.subr.bf16.mxu0 0
      %1891 = vmatpush1.bf16.msra.mxu0 0
      %1892 = vmatprep.subr.bf16.mxu0 0
      %1893 = vmatpush1.bf16.msra.mxu0 0
      %1894 = vmatprep.mubr.bf16.mxu0 0
      %1895 = vmatmul.mubr.bf16.gmra.mrb[0].mxu0 %v1621
      %v1896 = vpop.f32.mrb[0].mxu0
      %v1897 = vadd.f32 %v484, %v1896
      %v1898 = vpop.f32.mrb[0].mxu0
      %v1899 = vpop.f32.mrb[0].mxu0
      %v1900 = vpop.f32.mrb[0].mxu0
      %1901 = vdwg.mxu0
      %v1902 = vadd.f32 %v456, %v1897
      %v1903 = vxor.u32 %v1902, 2147483648
      %v1904 = vmul.f32 %v1903, 1.442695
      %v1905 = vpow.pop %v1904
      %v1906 = vadd.f32 %v1905, 1.0
      %v1907 = vrcp.pop %v1906
      %v1908 = vmul.f32 1.0, %v1907
      %1910 = vrot.lane.b32.xlu0 %v1897, 64
      %v1911 = vpop.permute.xlu0 %1910
      %v1913 = vmul.f32 %v1908, %v1911
      %1915 = vrot.lane.b32.xlu0 %v1913, 64
      %v1916 = vpop.permute.xlu0 %1915
      %v1918 = vadd.f32 %v456, %v1916
      %v1919 = vtanh.pop %v1918
      %v1920 = vsub.f32 1.0, %v1908
      %1922 = vrot.lane.b32.xlu0 %v1919, 96
      %v1923 = vpop.permute.xlu0 %1922
      %v1925 = vmul.f32 %v1920, %v1923
      %v1926 = vmul.f32 %v1908, %v1615
      %v1927 = vadd.f32 %v1925, %v1926
      %v1928 = vsel %vm1859, 1, 0
      %1929 = vset.pattern.permute.xlu0 0
      %1930 = vperm.xlu0 %1929, %v1928
      %v1931 = vpop.permute.xlu0 %1930
      %vm1932 = vcmp.eq.s32.totalorder %v1931, 1
      %v1933 = vsel %vm1932, %v1927, %v1615
      %v1934 = vpack.c.bf16 %v1933, %v1933
      %1936 = vrot.lane.b32.xlu0 %v1934, 96
      %v1937 = vpop.permute.xlu0 %1936
      %v1939 = vsel %vm392, %v1937, 0
      %1941 = vmatprep.subr.bf16.mxu0 0
      %1942 = vmatpush1.bf16.msra.mxu0 %v595
      %1943 = vmatprep.subr.bf16.mxu0 0
      %1944 = vmatpush1.bf16.msra.mxu0 %v596
      %1945 = vmatprep.subr.bf16.mxu0 0
      %1946 = vmatpush1.bf16.msra.mxu0 0
      %1947 = vmatprep.subr.bf16.mxu0 0
      %1948 = vmatpush1.bf16.msra.mxu0 0
      %1949 = vmatprep.subr.bf16.mxu0 0
      %1950 = vmatpush1.bf16.msra.mxu0 0
      %1951 = vmatprep.subr.bf16.mxu0 0
      %1952 = vmatpush1.bf16.msra.mxu0 0
      %1953 = vmatprep.subr.bf16.mxu0 0
      %1954 = vmatpush1.bf16.msra.mxu0 0
      %1955 = vmatprep.subr.bf16.mxu0 0
      %1956 = vmatpush1.bf16.msra.mxu0 0
      %1957 = vmatprep.subr.bf16.mxu0 0
      %1958 = vmatpush1.bf16.msra.mxu0 0
      %1959 = vmatprep.subr.bf16.mxu0 0
      %1960 = vmatpush1.bf16.msra.mxu0 0
      %1961 = vmatprep.subr.bf16.mxu0 0
      %1962 = vmatpush1.bf16.msra.mxu0 0
      %1963 = vmatprep.subr.bf16.mxu0 0
      %1964 = vmatpush1.bf16.msra.mxu0 0
      %1965 = vmatprep.subr.bf16.mxu0 0
      %1966 = vmatpush1.bf16.msra.mxu0 0
      %1967 = vmatprep.subr.bf16.mxu0 0
      %1968 = vmatpush1.bf16.msra.mxu0 0
      %1969 = vmatprep.subr.bf16.mxu0 0
      %1970 = vmatpush1.bf16.msra.mxu0 0
      %1971 = vmatprep.subr.bf16.mxu0 0
      %1972 = vmatpush1.bf16.msra.mxu0 0
      %1973 = vmatprep.mubr.bf16.mxu0 0
      %1974 = vmatmul.mubr.bf16.gmra.mrb[0].mxu0 %v1939
      %v1975 = vpop.f32.mrb[0].mxu0
      %v1976 = vadd.f32 %v582, %v1975
      %v1977 = vpop.f32.mrb[0].mxu0
      %v1978 = vpop.f32.mrb[0].mxu0
      %v1979 = vpop.f32.mrb[0].mxu0
      %1980 = vdwg.mxu0
      %1981 = vmatprep.subr.bf16.mxu0 0
      %1982 = vmatpush1.bf16.msra.mxu0 %v657
      %1983 = vmatprep.subr.bf16.mxu0 0
      %1984 = vmatpush1.bf16.msra.mxu0 %v658
      %1985 = vmatprep.subr.bf16.mxu0 0
      %1986 = vmatpush1.bf16.msra.mxu0 0
      %1987 = vmatprep.subr.bf16.mxu0 0
      %1988 = vmatpush1.bf16.msra.mxu0 0
      %1989 = vmatprep.subr.bf16.mxu0 0
      %1990 = vmatpush1.bf16.msra.mxu0 0
      %1991 = vmatprep.subr.bf16.mxu0 0
      %1992 = vmatpush1.bf16.msra.mxu0 0
      %1993 = vmatprep.subr.bf16.mxu0 0
      %1994 = vmatpush1.bf16.msra.mxu0 0
      %1995 = vmatprep.subr.bf16.mxu0 0
      %1996 = vmatpush1.bf16.msra.mxu0 0
      %1997 = vmatprep.subr.bf16.mxu0 0
      %1998 = vmatpush1.bf16.msra.mxu0 0
      %1999 = vmatprep.subr.bf16.mxu0 0
      %2000 = vmatpush1.bf16.msra.mxu0 0
      %2001 = vmatprep.subr.bf16.mxu0 0
      %2002 = vmatpush1.bf16.msra.mxu0 0
      %2003 = vmatprep.subr.bf16.mxu0 0
      %2004 = vmatpush1.bf16.msra.mxu0 0
      %2005 = vmatprep.subr.bf16.mxu0 0
      %2006 = vmatpush1.bf16.msra.mxu0 0
      %2007 = vmatprep.subr.bf16.mxu0 0
      %2008 = vmatpush1.bf16.msra.mxu0 0
      %2009 = vmatprep.subr.bf16.mxu0 0
      %2010 = vmatpush1.bf16.msra.mxu0 0
      %2011 = vmatprep.subr.bf16.mxu0 0
      %2012 = vmatpush1.bf16.msra.mxu0 0
      %2013 = vmatprep.mubr.bf16.mxu0 0
      %2014 = vmatmul.mubr.bf16.gmra.mrb[0].mxu0 %v1735
      %v2015 = vpop.f32.mrb[0].mxu0
      %v2016 = vadd.f32 %v647, %v2015
      %v2017 = vpop.f32.mrb[0].mxu0
      %v2018 = vpop.f32.mrb[0].mxu0
      %v2019 = vpop.f32.mrb[0].mxu0
      %2020 = vdwg.mxu0
      %v2021 = vadd.f32 %v1976, %v2016
      %v2022 = vxor.u32 %v2021, 2147483648
      %v2023 = vmul.f32 %v2022, 1.442695
      %v2024 = vpow.pop %v2023
      %v2025 = vadd.f32 %v2024, 1.0
      %v2026 = vrcp.pop %v2025
      %v2027 = vmul.f32 1.0, %v2026
      %2029 = vrot.lane.b32.xlu0 %v2016, 64
      %v2030 = vpop.permute.xlu0 %2029
      %v2032 = vmul.f32 %v2027, %v2030
      %2034 = vrot.lane.b32.xlu0 %v2032, 64
      %v2035 = vpop.permute.xlu0 %2034
      %v2037 = vadd.f32 %v1976, %v2035
      %v2038 = vtanh.pop %v2037
      %v2039 = vsub.f32 1.0, %v2027
      %2041 = vrot.lane.b32.xlu0 %v2038, 96
      %v2042 = vpop.permute.xlu0 %2041
      %v2044 = vmul.f32 %v2039, %v2042
      %v2045 = vmul.f32 %v2027, %v1729
      %v2046 = vadd.f32 %v2044, %v2045
      %v2047 = vsel %vm1932, %v2046, %v1729
      %v2048 = vpack.c.bf16 %v2047, %v2047
      %2050 = vrot.lane.b32.xlu0 %v2048, 96
      %v2051 = vpop.permute.xlu0 %2050
      %v2053 = vsel %vm392, %v2051, 0
      %2055 = vmatprep.subr.bf16.mxu0 0
      %2056 = vmatpush1.bf16.msra.mxu0 %v753
      %2057 = vmatprep.subr.bf16.mxu0 0
      %2058 = vmatpush1.bf16.msra.mxu0 %v754
      %2059 = vmatprep.subr.bf16.mxu0 0
      %2060 = vmatpush1.bf16.msra.mxu0 0
      %2061 = vmatprep.subr.bf16.mxu0 0
      %2062 = vmatpush1.bf16.msra.mxu0 0
      %2063 = vmatprep.subr.bf16.mxu0 0
      %2064 = vmatpush1.bf16.msra.mxu0 0
      %2065 = vmatprep.subr.bf16.mxu0 0
      %2066 = vmatpush1.bf16.msra.mxu0 0
      %2067 = vmatprep.subr.bf16.mxu0 0
      %2068 = vmatpush1.bf16.msra.mxu0 0
      %2069 = vmatprep.subr.bf16.mxu0 0
      %2070 = vmatpush1.bf16.msra.mxu0 0
      %2071 = vmatprep.subr.bf16.mxu0 0
      %2072 = vmatpush1.bf16.msra.mxu0 0
      %2073 = vmatprep.subr.bf16.mxu0 0
      %2074 = vmatpush1.bf16.msra.mxu0 0
      %2075 = vmatprep.subr.bf16.mxu0 0
      %2076 = vmatpush1.bf16.msra.mxu0 0
      %2077 = vmatprep.subr.bf16.mxu0 0
      %2078 = vmatpush1.bf16.msra.mxu0 0
      %2079 = vmatprep.subr.bf16.mxu0 0
      %2080 = vmatpush1.bf16.msra.mxu0 0
      %2081 = vmatprep.subr.bf16.mxu0 0
      %2082 = vmatpush1.bf16.msra.mxu0 0
      %2083 = vmatprep.subr.bf16.mxu0 0
      %2084 = vmatpush1.bf16.msra.mxu0 0
      %2085 = vmatprep.subr.bf16.mxu0 0
      %2086 = vmatpush1.bf16.msra.mxu0 0
      %2087 = vmatprep.mubr.bf16.mxu0 0
      %2088 = vmatmul.mubr.bf16.gmra.mrb[0].mxu0 %v2053
      %v2089 = vpop.f32.mrb[0].mxu0
      %v2090 = vadd.f32 %v740, %v2089
      %v2091 = vpop.f32.mrb[0].mxu0
      %v2092 = vpop.f32.mrb[0].mxu0
      %v2093 = vpop.f32.mrb[0].mxu0
      %2094 = vdwg.mxu0
      %v2095 = vpack.c.bf16 %v1850, %v1850
      %2097 = vrot.lane.b32.xlu0 %v2095, 96
      %v2098 = vpop.permute.xlu0 %2097
      %v2100 = vsel %vm392, %v2098, 0
      %2102 = vmatprep.subr.bf16.mxu0 0
      %2103 = vmatpush1.bf16.msra.mxu0 %v815
      %2104 = vmatprep.subr.bf16.mxu0 0
      %2105 = vmatpush1.bf16.msra.mxu0 %v816
      %2106 = vmatprep.subr.bf16.mxu0 0
      %2107 = vmatpush1.bf16.msra.mxu0 0
      %2108 = vmatprep.subr.bf16.mxu0 0
      %2109 = vmatpush1.bf16.msra.mxu0 0
      %2110 = vmatprep.subr.bf16.mxu0 0
      %2111 = vmatpush1.bf16.msra.mxu0 0
      %2112 = vmatprep.subr.bf16.mxu0 0
      %2113 = vmatpush1.bf16.msra.mxu0 0
      %2114 = vmatprep.subr.bf16.mxu0 0
      %2115 = vmatpush1.bf16.msra.mxu0 0
      %2116 = vmatprep.subr.bf16.mxu0 0
      %2117 = vmatpush1.bf16.msra.mxu0 0
      %2118 = vmatprep.subr.bf16.mxu0 0
      %2119 = vmatpush1.bf16.msra.mxu0 0
      %2120 = vmatprep.subr.bf16.mxu0 0
      %2121 = vmatpush1.bf16.msra.mxu0 0
      %2122 = vmatprep.subr.bf16.mxu0 0
      %2123 = vmatpush1.bf16.msra.mxu0 0
      %2124 = vmatprep.subr.bf16.mxu0 0
      %2125 = vmatpush1.bf16.msra.mxu0 0
      %2126 = vmatprep.subr.bf16.mxu0 0
      %2127 = vmatpush1.bf16.msra.mxu0 0
      %2128 = vmatprep.subr.bf16.mxu0 0
      %2129 = vmatpush1.bf16.msra.mxu0 0
      %2130 = vmatprep.subr.bf16.mxu0 0
      %2131 = vmatpush1.bf16.msra.mxu0 0
      %2132 = vmatprep.subr.bf16.mxu0 0
      %2133 = vmatpush1.bf16.msra.mxu0 0
      %2134 = vmatprep.mubr.bf16.mxu0 0
      %2135 = vmatmul.mubr.bf16.gmra.mrb[0].mxu0 %v2100
      %v2136 = vpop.f32.mrb[0].mxu0
      %v2137 = vadd.f32 %v805, %v2136
      %v2138 = vpop.f32.mrb[0].mxu0
      %v2139 = vpop.f32.mrb[0].mxu0
      %v2140 = vpop.f32.mrb[0].mxu0
      %2141 = vdwg.mxu0
      %v2142 = vadd.f32 %v2090, %v2137
      %v2143 = vxor.u32 %v2142, 2147483648
      %v2144 = vmul.f32 %v2143, 1.442695
      %v2145 = vpow.pop %v2144
      %v2146 = vadd.f32 %v2145, 1.0
      %v2147 = vrcp.pop %v2146
      %v2148 = vmul.f32 1.0, %v2147
      %2150 = vrot.lane.b32.xlu0 %v2137, 64
      %v2151 = vpop.permute.xlu0 %2150
      %v2153 = vmul.f32 %v2148, %v2151
      %2155 = vrot.lane.b32.xlu0 %v2153, 64
      %v2156 = vpop.permute.xlu0 %2155
      %v2158 = vadd.f32 %v2090, %v2156
      %v2159 = vtanh.pop %v2158
      %v2160 = vsub.f32 1.0, %v2148
      %2162 = vrot.lane.b32.xlu0 %v2159, 96
      %v2163 = vpop.permute.xlu0 %2162
      %v2165 = vmul.f32 %v2160, %v2163
      %v2166 = vmul.f32 %v2148, %v1850
      %v2167 = vadd.f32 %v2165, %v2166
      %v2168 = vsel %vm1932, %v2167, %v1850
      %2170 = vrot.lane.b32.xlu0 %v1861, 32
      %v2171 = vpop.permute.xlu0 %2170
      %v2173 = vadd.f32 %v2168, %v2171
      %v2174 = vsel %vm1932, %v2173, %v1856
      %s2175 = scalar_lea.vmem %s308, 40
      %v2176 = vld [vmem:[%s2175] sm:$0xff]
      %vm2177 = vcmp.gt.f32.partialorder %v2176, 0.0
      %s2178 = scalar_lea.vmem %s298, 40
      %v2179 = vld [vmem:[%s2178] sm:$0xff]
      %2180 = vmatprep.subr.bf16.mxu0 0
      %2181 = vmatpush1.bf16.msra.mxu0 %v494
      %2182 = vmatprep.subr.bf16.mxu0 0
      %2183 = vmatpush1.bf16.msra.mxu0 %v495
      %2184 = vmatprep.subr.bf16.mxu0 0
      %2185 = vmatpush1.bf16.msra.mxu0 0
      %2186 = vmatprep.subr.bf16.mxu0 0
      %2187 = vmatpush1.bf16.msra.mxu0 0
      %2188 = vmatprep.subr.bf16.mxu0 0
      %2189 = vmatpush1.bf16.msra.mxu0 0
      %2190 = vmatprep.subr.bf16.mxu0 0
      %2191 = vmatpush1.bf16.msra.mxu0 0
      %2192 = vmatprep.subr.bf16.mxu0 0
      %2193 = vmatpush1.bf16.msra.mxu0 0
      %2194 = vmatprep.subr.bf16.mxu0 0
      %2195 = vmatpush1.bf16.msra.mxu0 0
      %2196 = vmatprep.subr.bf16.mxu0 0
      %2197 = vmatpush1.bf16.msra.mxu0 0
      %2198 = vmatprep.subr.bf16.mxu0 0
      %2199 = vmatpush1.bf16.msra.mxu0 0
      %2200 = vmatprep.subr.bf16.mxu0 0
      %2201 = vmatpush1.bf16.msra.mxu0 0
      %2202 = vmatprep.subr.bf16.mxu0 0
      %2203 = vmatpush1.bf16.msra.mxu0 0
      %2204 = vmatprep.subr.bf16.mxu0 0
      %2205 = vmatpush1.bf16.msra.mxu0 0
      %2206 = vmatprep.subr.bf16.mxu0 0
      %2207 = vmatpush1.bf16.msra.mxu0 0
      %2208 = vmatprep.subr.bf16.mxu0 0
      %2209 = vmatpush1.bf16.msra.mxu0 0
      %2210 = vmatprep.subr.bf16.mxu0 0
      %2211 = vmatpush1.bf16.msra.mxu0 0
      %2212 = vmatprep.mubr.bf16.mxu0 0
      %2213 = vmatmul.mubr.bf16.gmra.mrb[0].mxu0 %v1939
      %v2214 = vpop.f32.mrb[0].mxu0
      %v2215 = vadd.f32 %v484, %v2214
      %v2216 = vpop.f32.mrb[0].mxu0
      %v2217 = vpop.f32.mrb[0].mxu0
      %v2218 = vpop.f32.mrb[0].mxu0
      %2219 = vdwg.mxu0
      %v2220 = vadd.f32 %v459, %v2215
      %v2221 = vxor.u32 %v2220, 2147483648
      %v2222 = vmul.f32 %v2221, 1.442695
      %v2223 = vpow.pop %v2222
      %v2224 = vadd.f32 %v2223, 1.0
      %v2225 = vrcp.pop %v2224
      %v2226 = vmul.f32 1.0, %v2225
      %2228 = vrot.lane.b32.xlu0 %v2215, 64
      %v2229 = vpop.permute.xlu0 %2228
      %v2231 = vmul.f32 %v2226, %v2229
      %2233 = vrot.lane.b32.xlu0 %v2231, 64
      %v2234 = vpop.permute.xlu0 %2233
      %v2236 = vadd.f32 %v459, %v2234
      %v2237 = vtanh.pop %v2236
      %v2238 = vsub.f32 1.0, %v2226
      %2240 = vrot.lane.b32.xlu0 %v2237, 96
      %v2241 = vpop.permute.xlu0 %2240
      %v2243 = vmul.f32 %v2238, %v2241
      %v2244 = vmul.f32 %v2226, %v1933
      %v2245 = vadd.f32 %v2243, %v2244
      %v2246 = vsel %vm2177, 1, 0
      %2247 = vset.pattern.permute.xlu0 0
      %2248 = vperm.xlu0 %2247, %v2246
      %v2249 = vpop.permute.xlu0 %2248
      %vm2250 = vcmp.eq.s32.totalorder %v2249, 1
      %v2251 = vsel %vm2250, %v2245, %v1933
      %v2252 = vpack.c.bf16 %v2251, %v2251
      %2254 = vrot.lane.b32.xlu0 %v2252, 96
      %v2255 = vpop.permute.xlu0 %2254
      %v2257 = vsel %vm392, %v2255, 0
      %2259 = vmatprep.subr.bf16.mxu0 0
      %2260 = vmatpush1.bf16.msra.mxu0 %v595
      %2261 = vmatprep.subr.bf16.mxu0 0
      %2262 = vmatpush1.bf16.msra.mxu0 %v596
      %2263 = vmatprep.subr.bf16.mxu0 0
      %2264 = vmatpush1.bf16.msra.mxu0 0
      %2265 = vmatprep.subr.bf16.mxu0 0
      %2266 = vmatpush1.bf16.msra.mxu0 0
      %2267 = vmatprep.subr.bf16.mxu0 0
      %2268 = vmatpush1.bf16.msra.mxu0 0
      %2269 = vmatprep.subr.bf16.mxu0 0
      %2270 = vmatpush1.bf16.msra.mxu0 0
      %2271 = vmatprep.subr.bf16.mxu0 0
      %2272 = vmatpush1.bf16.msra.mxu0 0
      %2273 = vmatprep.subr.bf16.mxu0 0
      %2274 = vmatpush1.bf16.msra.mxu0 0
      %2275 = vmatprep.subr.bf16.mxu0 0
      %2276 = vmatpush1.bf16.msra.mxu0 0
      %2277 = vmatprep.subr.bf16.mxu0 0
      %2278 = vmatpush1.bf16.msra.mxu0 0
      %2279 = vmatprep.subr.bf16.mxu0 0
      %2280 = vmatpush1.bf16.msra.mxu0 0
      %2281 = vmatprep.subr.bf16.mxu0 0
      %2282 = vmatpush1.bf16.msra.mxu0 0
      %2283 = vmatprep.subr.bf16.mxu0 0
      %2284 = vmatpush1.bf16.msra.mxu0 0
      %2285 = vmatprep.subr.bf16.mxu0 0
      %2286 = vmatpush1.bf16.msra.mxu0 0
      %2287 = vmatprep.subr.bf16.mxu0 0
      %2288 = vmatpush1.bf16.msra.mxu0 0
      %2289 = vmatprep.subr.bf16.mxu0 0
      %2290 = vmatpush1.bf16.msra.mxu0 0
      %2291 = vmatprep.mubr.bf16.mxu0 0
      %2292 = vmatmul.mubr.bf16.gmra.mrb[0].mxu0 %v2257
      %v2293 = vpop.f32.mrb[0].mxu0
      %v2294 = vadd.f32 %v582, %v2293
      %v2295 = vpop.f32.mrb[0].mxu0
      %v2296 = vpop.f32.mrb[0].mxu0
      %v2297 = vpop.f32.mrb[0].mxu0
      %2298 = vdwg.mxu0
      %2299 = vmatprep.subr.bf16.mxu0 0
      %2300 = vmatpush1.bf16.msra.mxu0 %v657
      %2301 = vmatprep.subr.bf16.mxu0 0
      %2302 = vmatpush1.bf16.msra.mxu0 %v658
      %2303 = vmatprep.subr.bf16.mxu0 0
      %2304 = vmatpush1.bf16.msra.mxu0 0
      %2305 = vmatprep.subr.bf16.mxu0 0
      %2306 = vmatpush1.bf16.msra.mxu0 0
      %2307 = vmatprep.subr.bf16.mxu0 0
      %2308 = vmatpush1.bf16.msra.mxu0 0
      %2309 = vmatprep.subr.bf16.mxu0 0
      %2310 = vmatpush1.bf16.msra.mxu0 0
      %2311 = vmatprep.subr.bf16.mxu0 0
      %2312 = vmatpush1.bf16.msra.mxu0 0
      %2313 = vmatprep.subr.bf16.mxu0 0
      %2314 = vmatpush1.bf16.msra.mxu0 0
      %2315 = vmatprep.subr.bf16.mxu0 0
      %2316 = vmatpush1.bf16.msra.mxu0 0
      %2317 = vmatprep.subr.bf16.mxu0 0
      %2318 = vmatpush1.bf16.msra.mxu0 0
      %2319 = vmatprep.subr.bf16.mxu0 0
      %2320 = vmatpush1.bf16.msra.mxu0 0
      %2321 = vmatprep.subr.bf16.mxu0 0
      %2322 = vmatpush1.bf16.msra.mxu0 0
      %2323 = vmatprep.subr.bf16.mxu0 0
      %2324 = vmatpush1.bf16.msra.mxu0 0
      %2325 = vmatprep.subr.bf16.mxu0 0
      %2326 = vmatpush1.bf16.msra.mxu0 0
      %2327 = vmatprep.subr.bf16.mxu0 0
      %2328 = vmatpush1.bf16.msra.mxu0 0
      %2329 = vmatprep.subr.bf16.mxu0 0
      %2330 = vmatpush1.bf16.msra.mxu0 0
      %2331 = vmatprep.mubr.bf16.mxu0 0
      %2332 = vmatmul.mubr.bf16.gmra.mrb[0].mxu0 %v2053
      %v2333 = vpop.f32.mrb[0].mxu0
      %v2334 = vadd.f32 %v647, %v2333
      %v2335 = vpop.f32.mrb[0].mxu0
      %v2336 = vpop.f32.mrb[0].mxu0
      %v2337 = vpop.f32.mrb[0].mxu0
      %2338 = vdwg.mxu0
      %v2339 = vadd.f32 %v2294, %v2334
      %v2340 = vxor.u32 %v2339, 2147483648
      %v2341 = vmul.f32 %v2340, 1.442695
      %v2342 = vpow.pop %v2341
      %v2343 = vadd.f32 %v2342, 1.0
      %v2344 = vrcp.pop %v2343
      %v2345 = vmul.f32 1.0, %v2344
      %2347 = vrot.lane.b32.xlu0 %v2334, 64
      %v2348 = vpop.permute.xlu0 %2347
      %v2350 = vmul.f32 %v2345, %v2348
      %2352 = vrot.lane.b32.xlu0 %v2350, 64
      %v2353 = vpop.permute.xlu0 %2352
      %v2355 = vadd.f32 %v2294, %v2353
      %v2356 = vtanh.pop %v2355
      %v2357 = vsub.f32 1.0, %v2345
      %2359 = vrot.lane.b32.xlu0 %v2356, 96
      %v2360 = vpop.permute.xlu0 %2359
      %v2362 = vmul.f32 %v2357, %v2360
      %v2363 = vmul.f32 %v2345, %v2047
      %v2364 = vadd.f32 %v2362, %v2363
      %v2365 = vsel %vm2250, %v2364, %v2047
      %v2366 = vpack.c.bf16 %v2365, %v2365
      %2368 = vrot.lane.b32.xlu0 %v2366, 96
      %v2369 = vpop.permute.xlu0 %2368
      %v2371 = vsel %vm392, %v2369, 0
      %2373 = vmatprep.subr.bf16.mxu0 0
      %2374 = vmatpush1.bf16.msra.mxu0 %v753
      %2375 = vmatprep.subr.bf16.mxu0 0
      %2376 = vmatpush1.bf16.msra.mxu0 %v754
      %2377 = vmatprep.subr.bf16.mxu0 0
      %2378 = vmatpush1.bf16.msra.mxu0 0
      %2379 = vmatprep.subr.bf16.mxu0 0
      %2380 = vmatpush1.bf16.msra.mxu0 0
      %2381 = vmatprep.subr.bf16.mxu0 0
      %2382 = vmatpush1.bf16.msra.mxu0 0
      %2383 = vmatprep.subr.bf16.mxu0 0
      %2384 = vmatpush1.bf16.msra.mxu0 0
      %2385 = vmatprep.subr.bf16.mxu0 0
      %2386 = vmatpush1.bf16.msra.mxu0 0
      %2387 = vmatprep.subr.bf16.mxu0 0
      %2388 = vmatpush1.bf16.msra.mxu0 0
      %2389 = vmatprep.subr.bf16.mxu0 0
      %2390 = vmatpush1.bf16.msra.mxu0 0
      %2391 = vmatprep.subr.bf16.mxu0 0
      %2392 = vmatpush1.bf16.msra.mxu0 0
      %2393 = vmatprep.subr.bf16.mxu0 0
      %2394 = vmatpush1.bf16.msra.mxu0 0
      %2395 = vmatprep.subr.bf16.mxu0 0
      %2396 = vmatpush1.bf16.msra.mxu0 0
      %2397 = vmatprep.subr.bf16.mxu0 0
      %2398 = vmatpush1.bf16.msra.mxu0 0
      %2399 = vmatprep.subr.bf16.mxu0 0
      %2400 = vmatpush1.bf16.msra.mxu0 0
      %2401 = vmatprep.subr.bf16.mxu0 0
      %2402 = vmatpush1.bf16.msra.mxu0 0
      %2403 = vmatprep.subr.bf16.mxu0 0
      %2404 = vmatpush1.bf16.msra.mxu0 0
      %2405 = vmatprep.mubr.bf16.mxu0 0
      %2406 = vmatmul.mubr.bf16.gmra.mrb[0].mxu0 %v2371
      %v2407 = vpop.f32.mrb[0].mxu0
      %v2408 = vadd.f32 %v740, %v2407
      %v2409 = vpop.f32.mrb[0].mxu0
      %v2410 = vpop.f32.mrb[0].mxu0
      %v2411 = vpop.f32.mrb[0].mxu0
      %2412 = vdwg.mxu0
      %v2413 = vpack.c.bf16 %v2168, %v2168
      %2415 = vrot.lane.b32.xlu0 %v2413, 96
      %v2416 = vpop.permute.xlu0 %2415
      %v2418 = vsel %vm392, %v2416, 0
      %2420 = vmatprep.subr.bf16.mxu0 0
      %2421 = vmatpush1.bf16.msra.mxu0 %v815
      %2422 = vmatprep.subr.bf16.mxu0 0
      %2423 = vmatpush1.bf16.msra.mxu0 %v816
      %2424 = vmatprep.subr.bf16.mxu0 0
      %2425 = vmatpush1.bf16.msra.mxu0 0
      %2426 = vmatprep.subr.bf16.mxu0 0
      %2427 = vmatpush1.bf16.msra.mxu0 0
      %2428 = vmatprep.subr.bf16.mxu0 0
      %2429 = vmatpush1.bf16.msra.mxu0 0
      %2430 = vmatprep.subr.bf16.mxu0 0
      %2431 = vmatpush1.bf16.msra.mxu0 0
      %2432 = vmatprep.subr.bf16.mxu0 0
      %2433 = vmatpush1.bf16.msra.mxu0 0
      %2434 = vmatprep.subr.bf16.mxu0 0
      %2435 = vmatpush1.bf16.msra.mxu0 0
      %2436 = vmatprep.subr.bf16.mxu0 0
      %2437 = vmatpush1.bf16.msra.mxu0 0
      %2438 = vmatprep.subr.bf16.mxu0 0
      %2439 = vmatpush1.bf16.msra.mxu0 0
      %2440 = vmatprep.subr.bf16.mxu0 0
      %2441 = vmatpush1.bf16.msra.mxu0 0
      %2442 = vmatprep.subr.bf16.mxu0 0
      %2443 = vmatpush1.bf16.msra.mxu0 0
      %2444 = vmatprep.subr.bf16.mxu0 0
      %2445 = vmatpush1.bf16.msra.mxu0 0
      %2446 = vmatprep.subr.bf16.mxu0 0
      %2447 = vmatpush1.bf16.msra.mxu0 0
      %2448 = vmatprep.subr.bf16.mxu0 0
      %2449 = vmatpush1.bf16.msra.mxu0 0
      %2450 = vmatprep.subr.bf16.mxu0 0
      %2451 = vmatpush1.bf16.msra.mxu0 0
      %2452 = vmatprep.mubr.bf16.mxu0 0
      %2453 = vmatmul.mubr.bf16.gmra.mrb[0].mxu0 %v2418
      %v2454 = vpop.f32.mrb[0].mxu0
      %v2455 = vadd.f32 %v805, %v2454
      %v2456 = vpop.f32.mrb[0].mxu0
      %v2457 = vpop.f32.mrb[0].mxu0
      %v2458 = vpop.f32.mrb[0].mxu0
      %2459 = vdwg.mxu0
      %v2460 = vadd.f32 %v2408, %v2455
      %v2461 = vxor.u32 %v2460, 2147483648
      %v2462 = vmul.f32 %v2461, 1.442695
      %v2463 = vpow.pop %v2462
      %v2464 = vadd.f32 %v2463, 1.0
      %v2465 = vrcp.pop %v2464
      %v2466 = vmul.f32 1.0, %v2465
      %2468 = vrot.lane.b32.xlu0 %v2455, 64
      %v2469 = vpop.permute.xlu0 %2468
      %v2471 = vmul.f32 %v2466, %v2469
      %2473 = vrot.lane.b32.xlu0 %v2471, 64
      %v2474 = vpop.permute.xlu0 %2473
      %v2476 = vadd.f32 %v2408, %v2474
      %v2477 = vtanh.pop %v2476
      %v2478 = vsub.f32 1.0, %v2466
      %2480 = vrot.lane.b32.xlu0 %v2477, 96
      %v2481 = vpop.permute.xlu0 %2480
      %v2483 = vmul.f32 %v2478, %v2481
      %v2484 = vmul.f32 %v2466, %v2168
      %v2485 = vadd.f32 %v2483, %v2484
      %v2486 = vsel %vm2250, %v2485, %v2168
      %2488 = vrot.lane.b32.xlu0 %v2179, 32
      %v2489 = vpop.permute.xlu0 %2488
      %v2491 = vadd.f32 %v2486, %v2489
      %v2492 = vsel %vm2250, %v2491, %v2174
      %s2493 = scalar_lea.vmem %s308, 48
      %v2494 = vld [vmem:[%s2493] sm:$0xff]
      %vm2495 = vcmp.gt.f32.partialorder %v2494, 0.0
      %s2496 = scalar_lea.vmem %s298, 48
      %v2497 = vld [vmem:[%s2496] sm:$0xff]
      %2498 = vmatprep.subr.bf16.mxu0 0
      %2499 = vmatpush1.bf16.msra.mxu0 %v494
      %2500 = vmatprep.subr.bf16.mxu0 0
      %2501 = vmatpush1.bf16.msra.mxu0 %v495
      %2502 = vmatprep.subr.bf16.mxu0 0
      %2503 = vmatpush1.bf16.msra.mxu0 0
      %2504 = vmatprep.subr.bf16.mxu0 0
      %2505 = vmatpush1.bf16.msra.mxu0 0
      %2506 = vmatprep.subr.bf16.mxu0 0
      %2507 = vmatpush1.bf16.msra.mxu0 0
      %2508 = vmatprep.subr.bf16.mxu0 0
      %2509 = vmatpush1.bf16.msra.mxu0 0
      %2510 = vmatprep.subr.bf16.mxu0 0
      %2511 = vmatpush1.bf16.msra.mxu0 0
      %2512 = vmatprep.subr.bf16.mxu0 0
      %2513 = vmatpush1.bf16.msra.mxu0 0
      %2514 = vmatprep.subr.bf16.mxu0 0
      %2515 = vmatpush1.bf16.msra.mxu0 0
      %2516 = vmatprep.subr.bf16.mxu0 0
      %2517 = vmatpush1.bf16.msra.mxu0 0
      %2518 = vmatprep.subr.bf16.mxu0 0
      %2519 = vmatpush1.bf16.msra.mxu0 0
      %2520 = vmatprep.subr.bf16.mxu0 0
      %2521 = vmatpush1.bf16.msra.mxu0 0
      %2522 = vmatprep.subr.bf16.mxu0 0
      %2523 = vmatpush1.bf16.msra.mxu0 0
      %2524 = vmatprep.subr.bf16.mxu0 0
      %2525 = vmatpush1.bf16.msra.mxu0 0
      %2526 = vmatprep.subr.bf16.mxu0 0
      %2527 = vmatpush1.bf16.msra.mxu0 0
      %2528 = vmatprep.subr.bf16.mxu0 0
      %2529 = vmatpush1.bf16.msra.mxu0 0
      %2530 = vmatprep.mubr.bf16.mxu0 0
      %2531 = vmatmul.mubr.bf16.gmra.mrb[0].mxu0 %v2257
      %v2532 = vpop.f32.mrb[0].mxu0
      %v2533 = vadd.f32 %v484, %v2532
      %v2534 = vpop.f32.mrb[0].mxu0
      %v2535 = vpop.f32.mrb[0].mxu0
      %v2536 = vpop.f32.mrb[0].mxu0
      %2537 = vdwg.mxu0
      %v2538 = vadd.f32 %v464, %v2533
      %v2539 = vxor.u32 %v2538, 2147483648
      %v2540 = vmul.f32 %v2539, 1.442695
      %v2541 = vpow.pop %v2540
      %v2542 = vadd.f32 %v2541, 1.0
      %v2543 = vrcp.pop %v2542
      %v2544 = vmul.f32 1.0, %v2543
      %2546 = vrot.lane.b32.xlu0 %v2533, 64
      %v2547 = vpop.permute.xlu0 %2546
      %v2549 = vmul.f32 %v2544, %v2547
      %2551 = vrot.lane.b32.xlu0 %v2549, 64
      %v2552 = vpop.permute.xlu0 %2551
      %v2554 = vadd.f32 %v464, %v2552
      %v2555 = vtanh.pop %v2554
      %v2556 = vsub.f32 1.0, %v2544
      %2558 = vrot.lane.b32.xlu0 %v2555, 96
      %v2559 = vpop.permute.xlu0 %2558
      %v2561 = vmul.f32 %v2556, %v2559
      %v2562 = vmul.f32 %v2544, %v2251
      %v2563 = vadd.f32 %v2561, %v2562
      %v2564 = vsel %vm2495, 1, 0
      %2565 = vset.pattern.permute.xlu0 0
      %2566 = vperm.xlu0 %2565, %v2564
      %v2567 = vpop.permute.xlu0 %2566
      %vm2568 = vcmp.eq.s32.totalorder %v2567, 1
      %v2569 = vsel %vm2568, %v2563, %v2251
      %v2570 = vpack.c.bf16 %v2569, %v2569
      %2572 = vrot.lane.b32.xlu0 %v2570, 96
      %v2573 = vpop.permute.xlu0 %2572
      %v2575 = vsel %vm392, %v2573, 0
      %2577 = vmatprep.subr.bf16.mxu0 0
      %2578 = vmatpush1.bf16.msra.mxu0 %v595
      %2579 = vmatprep.subr.bf16.mxu0 0
      %2580 = vmatpush1.bf16.msra.mxu0 %v596
      %2581 = vmatprep.subr.bf16.mxu0 0
      %2582 = vmatpush1.bf16.msra.mxu0 0
      %2583 = vmatprep.subr.bf16.mxu0 0
      %2584 = vmatpush1.bf16.msra.mxu0 0
      %2585 = vmatprep.subr.bf16.mxu0 0
      %2586 = vmatpush1.bf16.msra.mxu0 0
      %2587 = vmatprep.subr.bf16.mxu0 0
      %2588 = vmatpush1.bf16.msra.mxu0 0
      %2589 = vmatprep.subr.bf16.mxu0 0
      %2590 = vmatpush1.bf16.msra.mxu0 0
      %2591 = vmatprep.subr.bf16.mxu0 0
      %2592 = vmatpush1.bf16.msra.mxu0 0
      %2593 = vmatprep.subr.bf16.mxu0 0
      %2594 = vmatpush1.bf16.msra.mxu0 0
      %2595 = vmatprep.subr.bf16.mxu0 0
      %2596 = vmatpush1.bf16.msra.mxu0 0
      %2597 = vmatprep.subr.bf16.mxu0 0
      %2598 = vmatpush1.bf16.msra.mxu0 0
      %2599 = vmatprep.subr.bf16.mxu0 0
      %2600 = vmatpush1.bf16.msra.mxu0 0
      %2601 = vmatprep.subr.bf16.mxu0 0
      %2602 = vmatpush1.bf16.msra.mxu0 0
      %2603 = vmatprep.subr.bf16.mxu0 0
      %2604 = vmatpush1.bf16.msra.mxu0 0
      %2605 = vmatprep.subr.bf16.mxu0 0
      %2606 = vmatpush1.bf16.msra.mxu0 0
      %2607 = vmatprep.subr.bf16.mxu0 0
      %2608 = vmatpush1.bf16.msra.mxu0 0
      %2609 = vmatprep.mubr.bf16.mxu0 0
      %2610 = vmatmul.mubr.bf16.gmra.mrb[0].mxu0 %v2575
      %v2611 = vpop.f32.mrb[0].mxu0
      %v2612 = vadd.f32 %v582, %v2611
      %v2613 = vpop.f32.mrb[0].mxu0
      %v2614 = vpop.f32.mrb[0].mxu0
      %v2615 = vpop.f32.mrb[0].mxu0
      %2616 = vdwg.mxu0
      %2617 = vmatprep.subr.bf16.mxu0 0
      %2618 = vmatpush1.bf16.msra.mxu0 %v657
      %2619 = vmatprep.subr.bf16.mxu0 0
      %2620 = vmatpush1.bf16.msra.mxu0 %v658
      %2621 = vmatprep.subr.bf16.mxu0 0
      %2622 = vmatpush1.bf16.msra.mxu0 0
      %2623 = vmatprep.subr.bf16.mxu0 0
      %2624 = vmatpush1.bf16.msra.mxu0 0
      %2625 = vmatprep.subr.bf16.mxu0 0
      %2626 = vmatpush1.bf16.msra.mxu0 0
      %2627 = vmatprep.subr.bf16.mxu0 0
      %2628 = vmatpush1.bf16.msra.mxu0 0
      %2629 = vmatprep.subr.bf16.mxu0 0
      %2630 = vmatpush1.bf16.msra.mxu0 0
      %2631 = vmatprep.subr.bf16.mxu0 0
      %2632 = vmatpush1.bf16.msra.mxu0 0
      %2633 = vmatprep.subr.bf16.mxu0 0
      %2634 = vmatpush1.bf16.msra.mxu0 0
      %2635 = vmatprep.subr.bf16.mxu0 0
      %2636 = vmatpush1.bf16.msra.mxu0 0
      %2637 = vmatprep.subr.bf16.mxu0 0
      %2638 = vmatpush1.bf16.msra.mxu0 0
      %2639 = vmatprep.subr.bf16.mxu0 0
      %2640 = vmatpush1.bf16.msra.mxu0 0
      %2641 = vmatprep.subr.bf16.mxu0 0
      %2642 = vmatpush1.bf16.msra.mxu0 0
      %2643 = vmatprep.subr.bf16.mxu0 0
      %2644 = vmatpush1.bf16.msra.mxu0 0
      %2645 = vmatprep.subr.bf16.mxu0 0
      %2646 = vmatpush1.bf16.msra.mxu0 0
      %2647 = vmatprep.subr.bf16.mxu0 0
      %2648 = vmatpush1.bf16.msra.mxu0 0
      %2649 = vmatprep.mubr.bf16.mxu0 0
      %2650 = vmatmul.mubr.bf16.gmra.mrb[0].mxu0 %v2371
      %v2651 = vpop.f32.mrb[0].mxu0
      %v2652 = vadd.f32 %v647, %v2651
      %v2653 = vpop.f32.mrb[0].mxu0
      %v2654 = vpop.f32.mrb[0].mxu0
      %v2655 = vpop.f32.mrb[0].mxu0
      %2656 = vdwg.mxu0
      %v2657 = vadd.f32 %v2612, %v2652
      %v2658 = vxor.u32 %v2657, 2147483648
      %v2659 = vmul.f32 %v2658, 1.442695
      %v2660 = vpow.pop %v2659
      %v2661 = vadd.f32 %v2660, 1.0
      %v2662 = vrcp.pop %v2661
      %v2663 = vmul.f32 1.0, %v2662
      %2665 = vrot.lane.b32.xlu0 %v2652, 64
      %v2666 = vpop.permute.xlu0 %2665
      %v2668 = vmul.f32 %v2663, %v2666
      %2670 = vrot.lane.b32.xlu0 %v2668, 64
      %v2671 = vpop.permute.xlu0 %2670
      %v2673 = vadd.f32 %v2612, %v2671
      %v2674 = vtanh.pop %v2673
      %v2675 = vsub.f32 1.0, %v2663
      %2677 = vrot.lane.b32.xlu0 %v2674, 96
      %v2678 = vpop.permute.xlu0 %2677
      %v2680 = vmul.f32 %v2675, %v2678
      %v2681 = vmul.f32 %v2663, %v2365
      %v2682 = vadd.f32 %v2680, %v2681
      %v2683 = vsel %vm2568, %v2682, %v2365
      %v2684 = vpack.c.bf16 %v2683, %v2683
      %2686 = vrot.lane.b32.xlu0 %v2684, 96
      %v2687 = vpop.permute.xlu0 %2686
      %v2689 = vsel %vm392, %v2687, 0
      %2691 = vmatprep.subr.bf16.mxu0 0
      %2692 = vmatpush1.bf16.msra.mxu0 %v753
      %2693 = vmatprep.subr.bf16.mxu0 0
      %2694 = vmatpush1.bf16.msra.mxu0 %v754
      %2695 = vmatprep.subr.bf16.mxu0 0
      %2696 = vmatpush1.bf16.msra.mxu0 0
      %2697 = vmatprep.subr.bf16.mxu0 0
      %2698 = vmatpush1.bf16.msra.mxu0 0
      %2699 = vmatprep.subr.bf16.mxu0 0
      %2700 = vmatpush1.bf16.msra.mxu0 0
      %2701 = vmatprep.subr.bf16.mxu0 0
      %2702 = vmatpush1.bf16.msra.mxu0 0
      %2703 = vmatprep.subr.bf16.mxu0 0
      %2704 = vmatpush1.bf16.msra.mxu0 0
      %2705 = vmatprep.subr.bf16.mxu0 0
      %2706 = vmatpush1.bf16.msra.mxu0 0
      %2707 = vmatprep.subr.bf16.mxu0 0
      %2708 = vmatpush1.bf16.msra.mxu0 0
      %2709 = vmatprep.subr.bf16.mxu0 0
      %2710 = vmatpush1.bf16.msra.mxu0 0
      %2711 = vmatprep.subr.bf16.mxu0 0
      %2712 = vmatpush1.bf16.msra.mxu0 0
      %2713 = vmatprep.subr.bf16.mxu0 0
      %2714 = vmatpush1.bf16.msra.mxu0 0
      %2715 = vmatprep.subr.bf16.mxu0 0
      %2716 = vmatpush1.bf16.msra.mxu0 0
      %2717 = vmatprep.subr.bf16.mxu0 0
      %2718 = vmatpush1.bf16.msra.mxu0 0
      %2719 = vmatprep.subr.bf16.mxu0 0
      %2720 = vmatpush1.bf16.msra.mxu0 0
      %2721 = vmatprep.subr.bf16.mxu0 0
      %2722 = vmatpush1.bf16.msra.mxu0 0
      %2723 = vmatprep.mubr.bf16.mxu0 0
      %2724 = vmatmul.mubr.bf16.gmra.mrb[0].mxu0 %v2689
      %v2725 = vpop.f32.mrb[0].mxu0
      %v2726 = vadd.f32 %v740, %v2725
      %v2727 = vpop.f32.mrb[0].mxu0
      %v2728 = vpop.f32.mrb[0].mxu0
      %v2729 = vpop.f32.mrb[0].mxu0
      %2730 = vdwg.mxu0
      %v2731 = vpack.c.bf16 %v2486, %v2486
      %2733 = vrot.lane.b32.xlu0 %v2731, 96
      %v2734 = vpop.permute.xlu0 %2733
      %v2736 = vsel %vm392, %v2734, 0
      %2738 = vmatprep.subr.bf16.mxu0 0
      %2739 = vmatpush1.bf16.msra.mxu0 %v815
      %2740 = vmatprep.subr.bf16.mxu0 0
      %2741 = vmatpush1.bf16.msra.mxu0 %v816
      %2742 = vmatprep.subr.bf16.mxu0 0
      %2743 = vmatpush1.bf16.msra.mxu0 0
      %2744 = vmatprep.subr.bf16.mxu0 0
      %2745 = vmatpush1.bf16.msra.mxu0 0
      %2746 = vmatprep.subr.bf16.mxu0 0
      %2747 = vmatpush1.bf16.msra.mxu0 0
      %2748 = vmatprep.subr.bf16.mxu0 0
      %2749 = vmatpush1.bf16.msra.mxu0 0
      %2750 = vmatprep.subr.bf16.mxu0 0
      %2751 = vmatpush1.bf16.msra.mxu0 0
      %2752 = vmatprep.subr.bf16.mxu0 0
      %2753 = vmatpush1.bf16.msra.mxu0 0
      %2754 = vmatprep.subr.bf16.mxu0 0
      %2755 = vmatpush1.bf16.msra.mxu0 0
      %2756 = vmatprep.subr.bf16.mxu0 0
      %2757 = vmatpush1.bf16.msra.mxu0 0
      %2758 = vmatprep.subr.bf16.mxu0 0
      %2759 = vmatpush1.bf16.msra.mxu0 0
      %2760 = vmatprep.subr.bf16.mxu0 0
      %2761 = vmatpush1.bf16.msra.mxu0 0
      %2762 = vmatprep.subr.bf16.mxu0 0
      %2763 = vmatpush1.bf16.msra.mxu0 0
      %2764 = vmatprep.subr.bf16.mxu0 0
      %2765 = vmatpush1.bf16.msra.mxu0 0
      %2766 = vmatprep.subr.bf16.mxu0 0
      %2767 = vmatpush1.bf16.msra.mxu0 0
      %2768 = vmatprep.subr.bf16.mxu0 0
      %2769 = vmatpush1.bf16.msra.mxu0 0
      %2770 = vmatprep.mubr.bf16.mxu0 0
      %2771 = vmatmul.mubr.bf16.gmra.mrb[0].mxu0 %v2736
      %v2772 = vpop.f32.mrb[0].mxu0
      %v2773 = vadd.f32 %v805, %v2772
      %v2774 = vpop.f32.mrb[0].mxu0
      %v2775 = vpop.f32.mrb[0].mxu0
      %v2776 = vpop.f32.mrb[0].mxu0
      %2777 = vdwg.mxu0
      %v2778 = vadd.f32 %v2726, %v2773
      %v2779 = vxor.u32 %v2778, 2147483648
      %v2780 = vmul.f32 %v2779, 1.442695
      %v2781 = vpow.pop %v2780
      %v2782 = vadd.f32 %v2781, 1.0
      %v2783 = vrcp.pop %v2782
      %v2784 = vmul.f32 1.0, %v2783
      %2786 = vrot.lane.b32.xlu0 %v2773, 64
      %v2787 = vpop.permute.xlu0 %2786
      %v2789 = vmul.f32 %v2784, %v2787
      %2791 = vrot.lane.b32.xlu0 %v2789, 64
      %v2792 = vpop.permute.xlu0 %2791
      %v2794 = vadd.f32 %v2726, %v2792
      %v2795 = vtanh.pop %v2794
      %v2796 = vsub.f32 1.0, %v2784
      %2798 = vrot.lane.b32.xlu0 %v2795, 96
      %v2799 = vpop.permute.xlu0 %2798
      %v2801 = vmul.f32 %v2796, %v2799
      %v2802 = vmul.f32 %v2784, %v2486
      %v2803 = vadd.f32 %v2801, %v2802
      %v2804 = vsel %vm2568, %v2803, %v2486
      %2806 = vrot.lane.b32.xlu0 %v2497, 32
      %v2807 = vpop.permute.xlu0 %2806
      %v2809 = vadd.f32 %v2804, %v2807
      %v2810 = vsel %vm2568, %v2809, %v2492
      %s2811 = scalar_lea.vmem %s308, 56
      %v2812 = vld [vmem:[%s2811] sm:$0xff]
      %vm2813 = vcmp.gt.f32.partialorder %v2812, 0.0
      %s2814 = scalar_lea.vmem %s298, 56
      %v2815 = vld [vmem:[%s2814] sm:$0xff]
      %2816 = vmatprep.subr.bf16.mxu0 0
      %2817 = vmatpush1.bf16.msra.mxu0 %v494
      %2818 = vmatprep.subr.bf16.mxu0 0
      %2819 = vmatpush1.bf16.msra.mxu0 %v495
      %2820 = vmatprep.subr.bf16.mxu0 0
      %2821 = vmatpush1.bf16.msra.mxu0 0
      %2822 = vmatprep.subr.bf16.mxu0 0
      %2823 = vmatpush1.bf16.msra.mxu0 0
      %2824 = vmatprep.subr.bf16.mxu0 0
      %2825 = vmatpush1.bf16.msra.mxu0 0
      %2826 = vmatprep.subr.bf16.mxu0 0
      %2827 = vmatpush1.bf16.msra.mxu0 0
      %2828 = vmatprep.subr.bf16.mxu0 0
      %2829 = vmatpush1.bf16.msra.mxu0 0
      %2830 = vmatprep.subr.bf16.mxu0 0
      %2831 = vmatpush1.bf16.msra.mxu0 0
      %2832 = vmatprep.subr.bf16.mxu0 0
      %2833 = vmatpush1.bf16.msra.mxu0 0
      %2834 = vmatprep.subr.bf16.mxu0 0
      %2835 = vmatpush1.bf16.msra.mxu0 0
      %2836 = vmatprep.subr.bf16.mxu0 0
      %2837 = vmatpush1.bf16.msra.mxu0 0
      %2838 = vmatprep.subr.bf16.mxu0 0
      %2839 = vmatpush1.bf16.msra.mxu0 0
      %2840 = vmatprep.subr.bf16.mxu0 0
      %2841 = vmatpush1.bf16.msra.mxu0 0
      %2842 = vmatprep.subr.bf16.mxu0 0
      %2843 = vmatpush1.bf16.msra.mxu0 0
      %2844 = vmatprep.subr.bf16.mxu0 0
      %2845 = vmatpush1.bf16.msra.mxu0 0
      %2846 = vmatprep.subr.bf16.mxu0 0
      %2847 = vmatpush1.bf16.msra.mxu0 0
      %2848 = vmatprep.mubr.bf16.mxu0 0
      %2849 = vmatmul.mubr.bf16.gmra.mrb[0].mxu0 %v2575
      %v2850 = vpop.f32.mrb[0].mxu0
      %v2851 = vadd.f32 %v484, %v2850
      %v2852 = vpop.f32.mrb[0].mxu0
      %v2853 = vpop.f32.mrb[0].mxu0
      %v2854 = vpop.f32.mrb[0].mxu0
      %2855 = vdwg.mxu0
      %v2856 = vadd.f32 %v467, %v2851
      %v2857 = vxor.u32 %v2856, 2147483648
      %v2858 = vmul.f32 %v2857, 1.442695
      %v2859 = vpow.pop %v2858
      %v2860 = vadd.f32 %v2859, 1.0
      %v2861 = vrcp.pop %v2860
      %v2862 = vmul.f32 1.0, %v2861
      %2864 = vrot.lane.b32.xlu0 %v2851, 64
      %v2865 = vpop.permute.xlu0 %2864
      %v2867 = vmul.f32 %v2862, %v2865
      %2869 = vrot.lane.b32.xlu0 %v2867, 64
      %v2870 = vpop.permute.xlu0 %2869
      %v2872 = vadd.f32 %v467, %v2870
      %v2873 = vtanh.pop %v2872
      %v2874 = vsub.f32 1.0, %v2862
      %2876 = vrot.lane.b32.xlu0 %v2873, 96
      %v2877 = vpop.permute.xlu0 %2876
      %v2879 = vmul.f32 %v2874, %v2877
      %v2880 = vmul.f32 %v2862, %v2569
      %v2881 = vadd.f32 %v2879, %v2880
      %v2882 = vsel %vm2813, 1, 0
      %2883 = vset.pattern.permute.xlu0 0
      %2884 = vperm.xlu0 %2883, %v2882
      %v2885 = vpop.permute.xlu0 %2884
      %vm2886 = vcmp.eq.s32.totalorder %v2885, 1
      %v2887 = vsel %vm2886, %v2881, %v2569
      %v2888 = vpack.c.bf16 %v2887, %v2887
      %2890 = vrot.lane.b32.xlu0 %v2888, 96
      %v2891 = vpop.permute.xlu0 %2890
      %v2893 = vsel %vm392, %v2891, 0
      %2895 = vmatprep.subr.bf16.mxu0 0
      %2896 = vmatpush1.bf16.msra.mxu0 %v595
      %2897 = vmatprep.subr.bf16.mxu0 0
      %2898 = vmatpush1.bf16.msra.mxu0 %v596
      %2899 = vmatprep.subr.bf16.mxu0 0
      %2900 = vmatpush1.bf16.msra.mxu0 0
      %2901 = vmatprep.subr.bf16.mxu0 0
      %2902 = vmatpush1.bf16.msra.mxu0 0
      %2903 = vmatprep.subr.bf16.mxu0 0
      %2904 = vmatpush1.bf16.msra.mxu0 0
      %2905 = vmatprep.subr.bf16.mxu0 0
      %2906 = vmatpush1.bf16.msra.mxu0 0
      %2907 = vmatprep.subr.bf16.mxu0 0
      %2908 = vmatpush1.bf16.msra.mxu0 0
      %2909 = vmatprep.subr.bf16.mxu0 0
      %2910 = vmatpush1.bf16.msra.mxu0 0
      %2911 = vmatprep.subr.bf16.mxu0 0
      %2912 = vmatpush1.bf16.msra.mxu0 0
      %2913 = vmatprep.subr.bf16.mxu0 0
      %2914 = vmatpush1.bf16.msra.mxu0 0
      %2915 = vmatprep.subr.bf16.mxu0 0
      %2916 = vmatpush1.bf16.msra.mxu0 0
      %2917 = vmatprep.subr.bf16.mxu0 0
      %2918 = vmatpush1.bf16.msra.mxu0 0
      %2919 = vmatprep.subr.bf16.mxu0 0
      %2920 = vmatpush1.bf16.msra.mxu0 0
      %2921 = vmatprep.subr.bf16.mxu0 0
      %2922 = vmatpush1.bf16.msra.mxu0 0
      %2923 = vmatprep.subr.bf16.mxu0 0
      %2924 = vmatpush1.bf16.msra.mxu0 0
      %2925 = vmatprep.subr.bf16.mxu0 0
      %2926 = vmatpush1.bf16.msra.mxu0 0
      %2927 = vmatprep.mubr.bf16.mxu0 0
      %2928 = vmatmul.mubr.bf16.gmra.mrb[0].mxu0 %v2893
      %v2929 = vpop.f32.mrb[0].mxu0
      %v2930 = vadd.f32 %v582, %v2929
      %v2931 = vpop.f32.mrb[0].mxu0
      %v2932 = vpop.f32.mrb[0].mxu0
      %v2933 = vpop.f32.mrb[0].mxu0
      %2934 = vdwg.mxu0
      %2935 = vmatprep.subr.bf16.mxu0 0
      %2936 = vmatpush1.bf16.msra.mxu0 %v657
      %2937 = vmatprep.subr.bf16.mxu0 0
      %2938 = vmatpush1.bf16.msra.mxu0 %v658
      %2939 = vmatprep.subr.bf16.mxu0 0
      %2940 = vmatpush1.bf16.msra.mxu0 0
      %2941 = vmatprep.subr.bf16.mxu0 0
      %2942 = vmatpush1.bf16.msra.mxu0 0
      %2943 = vmatprep.subr.bf16.mxu0 0
      %2944 = vmatpush1.bf16.msra.mxu0 0
      %2945 = vmatprep.subr.bf16.mxu0 0
      %2946 = vmatpush1.bf16.msra.mxu0 0
      %2947 = vmatprep.subr.bf16.mxu0 0
      %2948 = vmatpush1.bf16.msra.mxu0 0
      %2949 = vmatprep.subr.bf16.mxu0 0
      %2950 = vmatpush1.bf16.msra.mxu0 0
      %2951 = vmatprep.subr.bf16.mxu0 0
      %2952 = vmatpush1.bf16.msra.mxu0 0
      %2953 = vmatprep.subr.bf16.mxu0 0
      %2954 = vmatpush1.bf16.msra.mxu0 0
      %2955 = vmatprep.subr.bf16.mxu0 0
      %2956 = vmatpush1.bf16.msra.mxu0 0
      %2957 = vmatprep.subr.bf16.mxu0 0
      %2958 = vmatpush1.bf16.msra.mxu0 0
      %2959 = vmatprep.subr.bf16.mxu0 0
      %2960 = vmatpush1.bf16.msra.mxu0 0
      %2961 = vmatprep.subr.bf16.mxu0 0
      %2962 = vmatpush1.bf16.msra.mxu0 0
      %2963 = vmatprep.subr.bf16.mxu0 0
      %2964 = vmatpush1.bf16.msra.mxu0 0
      %2965 = vmatprep.subr.bf16.mxu0 0
      %2966 = vmatpush1.bf16.msra.mxu0 0
      %2967 = vmatprep.mubr.bf16.mxu0 0
      %2968 = vmatmul.mubr.bf16.gmra.mrb[0].mxu0 %v2689
      %v2969 = vpop.f32.mrb[0].mxu0
      %v2970 = vadd.f32 %v647, %v2969
      %v2971 = vpop.f32.mrb[0].mxu0
      %v2972 = vpop.f32.mrb[0].mxu0
      %v2973 = vpop.f32.mrb[0].mxu0
      %2974 = vdwg.mxu0
      %v2975 = vadd.f32 %v2930, %v2970
      %v2976 = vxor.u32 %v2975, 2147483648
      %v2977 = vmul.f32 %v2976, 1.442695
      %v2978 = vpow.pop %v2977
      %v2979 = vadd.f32 %v2978, 1.0
      %v2980 = vrcp.pop %v2979
      %v2981 = vmul.f32 1.0, %v2980
      %2983 = vrot.lane.b32.xlu0 %v2970, 64
      %v2984 = vpop.permute.xlu0 %2983
      %v2986 = vmul.f32 %v2981, %v2984
      %2988 = vrot.lane.b32.xlu0 %v2986, 64
      %v2989 = vpop.permute.xlu0 %2988
      %v2991 = vadd.f32 %v2930, %v2989
      %v2992 = vtanh.pop %v2991
      %v2993 = vsub.f32 1.0, %v2981
      %2995 = vrot.lane.b32.xlu0 %v2992, 96
      %v2996 = vpop.permute.xlu0 %2995
      %v2998 = vmul.f32 %v2993, %v2996
      %v2999 = vmul.f32 %v2981, %v2683
      %v3000 = vadd.f32 %v2998, %v2999
      %v3001 = vsel %vm2886, %v3000, %v2683
      %v3002 = vpack.c.bf16 %v3001, %v3001
      %3004 = vrot.lane.b32.xlu0 %v3002, 96
      %v3005 = vpop.permute.xlu0 %3004
      %v3007 = vsel %vm392, %v3005, 0
      %3009 = vmatprep.subr.bf16.mxu0 0
      %3010 = vmatpush1.bf16.msra.mxu0 %v753
      %3011 = vmatprep.subr.bf16.mxu0 0
      %3012 = vmatpush1.bf16.msra.mxu0 %v754
      %3013 = vmatprep.subr.bf16.mxu0 0
      %3014 = vmatpush1.bf16.msra.mxu0 0
      %3015 = vmatprep.subr.bf16.mxu0 0
      %3016 = vmatpush1.bf16.msra.mxu0 0
      %3017 = vmatprep.subr.bf16.mxu0 0
      %3018 = vmatpush1.bf16.msra.mxu0 0
      %3019 = vmatprep.subr.bf16.mxu0 0
      %3020 = vmatpush1.bf16.msra.mxu0 0
      %3021 = vmatprep.subr.bf16.mxu0 0
      %3022 = vmatpush1.bf16.msra.mxu0 0
      %3023 = vmatprep.subr.bf16.mxu0 0
      %3024 = vmatpush1.bf16.msra.mxu0 0
      %3025 = vmatprep.subr.bf16.mxu0 0
      %3026 = vmatpush1.bf16.msra.mxu0 0
      %3027 = vmatprep.subr.bf16.mxu0 0
      %3028 = vmatpush1.bf16.msra.mxu0 0
      %3029 = vmatprep.subr.bf16.mxu0 0
      %3030 = vmatpush1.bf16.msra.mxu0 0
      %3031 = vmatprep.subr.bf16.mxu0 0
      %3032 = vmatpush1.bf16.msra.mxu0 0
      %3033 = vmatprep.subr.bf16.mxu0 0
      %3034 = vmatpush1.bf16.msra.mxu0 0
      %3035 = vmatprep.subr.bf16.mxu0 0
      %3036 = vmatpush1.bf16.msra.mxu0 0
      %3037 = vmatprep.subr.bf16.mxu0 0
      %3038 = vmatpush1.bf16.msra.mxu0 0
      %3039 = vmatprep.subr.bf16.mxu0 0
      %3040 = vmatpush1.bf16.msra.mxu0 0
      %3041 = vmatprep.mubr.bf16.mxu0 0
      %3042 = vmatmul.mubr.bf16.gmra.mrb[0].mxu0 %v3007
      %v3043 = vpop.f32.mrb[0].mxu0
      %v3044 = vadd.f32 %v740, %v3043
      %v3045 = vpop.f32.mrb[0].mxu0
      %v3046 = vpop.f32.mrb[0].mxu0
      %v3047 = vpop.f32.mrb[0].mxu0
      %3048 = vdwg.mxu0
      %v3049 = vpack.c.bf16 %v2804, %v2804
      %3051 = vrot.lane.b32.xlu0 %v3049, 96
      %v3052 = vpop.permute.xlu0 %3051
      %v3054 = vsel %vm392, %v3052, 0
      %3056 = vmatprep.subr.bf16.mxu0 0
      %3057 = vmatpush1.bf16.msra.mxu0 %v815
      %3058 = vmatprep.subr.bf16.mxu0 0
      %3059 = vmatpush1.bf16.msra.mxu0 %v816
      %3060 = vmatprep.subr.bf16.mxu0 0
      %3061 = vmatpush1.bf16.msra.mxu0 0
      %3062 = vmatprep.subr.bf16.mxu0 0
      %3063 = vmatpush1.bf16.msra.mxu0 0
      %3064 = vmatprep.subr.bf16.mxu0 0
      %3065 = vmatpush1.bf16.msra.mxu0 0
      %3066 = vmatprep.subr.bf16.mxu0 0
      %3067 = vmatpush1.bf16.msra.mxu0 0
      %3068 = vmatprep.subr.bf16.mxu0 0
      %3069 = vmatpush1.bf16.msra.mxu0 0
      %3070 = vmatprep.subr.bf16.mxu0 0
      %3071 = vmatpush1.bf16.msra.mxu0 0
      %3072 = vmatprep.subr.bf16.mxu0 0
      %3073 = vmatpush1.bf16.msra.mxu0 0
      %3074 = vmatprep.subr.bf16.mxu0 0
      %3075 = vmatpush1.bf16.msra.mxu0 0
      %3076 = vmatprep.subr.bf16.mxu0 0
      %3077 = vmatpush1.bf16.msra.mxu0 0
      %3078 = vmatprep.subr.bf16.mxu0 0
      %3079 = vmatpush1.bf16.msra.mxu0 0
      %3080 = vmatprep.subr.bf16.mxu0 0
      %3081 = vmatpush1.bf16.msra.mxu0 0
      %3082 = vmatprep.subr.bf16.mxu0 0
      %3083 = vmatpush1.bf16.msra.mxu0 0
      %3084 = vmatprep.subr.bf16.mxu0 0
      %3085 = vmatpush1.bf16.msra.mxu0 0
      %3086 = vmatprep.subr.bf16.mxu0 0
      %3087 = vmatpush1.bf16.msra.mxu0 0
      %3088 = vmatprep.mubr.bf16.mxu0 0
      %3089 = vmatmul.mubr.bf16.gmra.mrb[0].mxu0 %v3054
      %v3090 = vpop.f32.mrb[0].mxu0
      %v3091 = vadd.f32 %v805, %v3090
      %v3092 = vpop.f32.mrb[0].mxu0
      %v3093 = vpop.f32.mrb[0].mxu0
      %v3094 = vpop.f32.mrb[0].mxu0
      %3095 = vdwg.mxu0
      %v3096 = vadd.f32 %v3044, %v3091
      %v3097 = vxor.u32 %v3096, 2147483648
      %v3098 = vmul.f32 %v3097, 1.442695
      %v3099 = vpow.pop %v3098
      %v3100 = vadd.f32 %v3099, 1.0
      %v3101 = vrcp.pop %v3100
      %v3102 = vmul.f32 1.0, %v3101
      %3104 = vrot.lane.b32.xlu0 %v3091, 64
      %v3105 = vpop.permute.xlu0 %3104
      %v3107 = vmul.f32 %v3102, %v3105
      %3109 = vrot.lane.b32.xlu0 %v3107, 64
      %v3110 = vpop.permute.xlu0 %3109
      %v3112 = vadd.f32 %v3044, %v3110
      %v3113 = vtanh.pop %v3112
      %v3114 = vsub.f32 1.0, %v3102
      %3116 = vrot.lane.b32.xlu0 %v3113, 96
      %v3117 = vpop.permute.xlu0 %3116
      %v3119 = vmul.f32 %v3114, %v3117
      %v3120 = vmul.f32 %v3102, %v2804
      %v3121 = vadd.f32 %v3119, %v3120
      %v3122 = vsel %vm2886, %v3121, %v2804
      %3124 = vrot.lane.b32.xlu0 %v2815, 32
      %v3125 = vpop.permute.xlu0 %3124
      %v3127 = vadd.f32 %v3122, %v3125
      %v3128 = vsel %vm2886, %v3127, %v2810
      %3130 = vrot.lane.b32.xlu0 %v2887, 96
      %v3131 = vpop.permute.xlu0 %3130
      %3133 = vst.msk [vmem:[#allocation2] sm:$0xff] %vm392, %v3131
      %3135 = vrot.lane.b32.xlu0 %v3001, 96
      %v3136 = vpop.permute.xlu0 %3135
      %3138 = vst.msk [vmem:[%s471] sm:$0xff] %vm392, %v3136
      %3140 = vrot.lane.b32.xlu0 %v3122, 96
      %v3141 = vpop.permute.xlu0 %3140
      %3143 = vst.msk [vmem:[%s473] sm:$0xff] %vm392, %v3141
      %3145 = vrot.lane.b32.xlu0 %v3128, 96
      %v3146 = vpop.permute.xlu0 %3145
      %3148 = vst.msk [vmem:[%s313] sm:$0xff] %vm392, %v3146
      %p3149 = scmp.lt.s32.totalorder %s21, 1
      %s3150 = scalar_select %p3149, %s21, 1
      %s3151 = smul.addr %s3150, 8
      %s3152 = scalar_lea.vmem %s6, %s3151
      // Predicated region
      $region49: #{goal_predictor_forward.2} parent=43 // pred_check
        %p3153 = pneg %p187
      $region50: #{goal_predictor_forward.2} parent=43 // pred_check_branch
        %3155 = sbr.rel (%p3153) target = $region52
      $region51: #{goal_predictor_forward.2} parent=43 // pred_region
        _
      $region52: #{goal_predictor_forward.2} parent=43 // pred_fallthru
        _
    $region44: #{goal_predictor_forward.2} parent=5 // pred_fallthru
      _
    %p3156 = scmp.le.s32.totalorder 2, %s12
    // Predicated region
    $region53: #{goal_predictor_forward.2} parent=5 // pred_check
      %p3157 = pneg %p3156
    $region54: #{goal_predictor_forward.2} parent=5 // pred_check_branch
      %3159 = sbr.rel (%p3157) target = $region56
    $region55: #{goal_predictor_forward.2} parent=5 // pred_region
      %s3160 = ssub.s32 %s12, 2
      // Predicated region
      $region57: #{goal_predictor_forward.2} parent=55 // pred_check
        %p3161 = pneg %p193
      $region58: #{goal_predictor_forward.2} parent=55 // pred_check_branch
        %3163 = sbr.rel (%p3161) target = $region60
      $region59: #{goal_predictor_forward.2} parent=55 // pred_region
        %p3164 = scmp.lt.s32.totalorder %s23, 1
        %s3165 = scalar_select %p3164, %s23, 1
        %s3166 = smul.addr %s3165, 8
        %s3167 = scalar_lea.vmem %s6, %s3166
      $region60: #{goal_predictor_forward.2} parent=55 // pred_fallthru
        _
    $region56: #{goal_predictor_forward.2} parent=5 // pred_fallthru
      _
  $region6: #{goal_predictor_forward.2} parent=0 // loop_footer
    %s16 = sadd.s32 1, %s12
  $region7: #{goal_predictor_forward.2} parent=0 // loop_footer_branch
    %11 = sbr.rel target = $region3
  $region8: #{goal_predictor_forward.2} parent=0 // loop_exit
    _

</llo_original>
